<compile_context>
chip_gen: v7x
topology: tpu7x:2x2x1
jax: 0.10.0
libtpu: 0.0.40
codegen_flags: <defaults>
</compile_context>

<pallas_src>
import jax
import jax.numpy as jnp
from jax.experimental import pallas as pl
from jax.experimental.pallas import tpu as pltpu

N_TRACK = 10
N_WAYPOINTS = 3
D_MODEL = 64
NUM_LAYERS = 2
NUM_HEADS = 4
HEAD_DIM = D_MODEL // NUM_HEADS
D_FF = 4 * D_MODEL
LN_EPS = 1e-5

SQ = 8            # n_waypoints (3) padded to one full sublane group
SK = 24           # 2*n_track (20) padded to a sublane multiple
B_TILE_MAX = 16   # batch elements per grid step (16*SQ = 128 query rows)
NEG_INF = -1e30

# dot_general dimension numbers for A @ B^T (contract last dim of both).
TRANS_B_DIMS = (((1,), (1,)), ((), ()))


# ----------------------------------------------------------------------------
# In-kernel helpers
# ----------------------------------------------------------------------------
def _layer_norm(x, gamma, beta):
    mu = jnp.mean(x, axis=-1, keepdims=True)
    var = jnp.mean((x - mu) ** 2, axis=-1, keepdims=True)
    return (x - mu) * jax.lax.rsqrt(var + LN_EPS) * gamma + beta


def _mha(q_in, kv_in, bias,
         wq_ref, wk_ref, wv_ref, bq_ref, bk_ref, bv_ref, wo_ref, bo_ref, l):
    """Multi-head attention on batch-flattened rows.

    q_in: (M, D), kv_in: (N, D).  `bias` is an (M, N) additive mask that is
    block-diagonal over the batch tile and -inf on padded key positions, so a
    single flat MXU matmul per head replaces per-batch tiny matmuls.  Per-head
    weights are pre-transposed (D, HD) / (HD, D) slabs; head outputs are
    accumulated through the per-head output-projection slabs (no lane-axis
    concat, no 16-lane activation slicing).
    """
    scale = 1.0 / (HEAD_DIM ** 0.5)
    acc = None
    for h in range(NUM_HEADS):  # static unroll over heads
        qh = (jnp.dot(q_in, wq_ref[l, h], preferred_element_type=jnp.float32)
              + bq_ref[l, h]) * scale
        kh = jnp.dot(kv_in, wk_ref[l, h], preferred_element_type=jnp.float32) + bk_ref[l, h]
        vh = jnp.dot(kv_in, wv_ref[l, h], preferred_element_type=jnp.float32) + bv_ref[l, h]
        # Scores over ALL batch rows in one MXU pass; batch separation and
        # key-padding handled by the block-diagonal additive bias.
        s = jax.lax.dot_general(qh, kh, TRANS_B_DIMS,
                                preferred_element_type=jnp.float32) + bias
        m = jnp.max(s, axis=-1, keepdims=True)
        e = jnp.exp(s - m)
        p = e * pl.reciprocal(jnp.sum(e, axis=-1, keepdims=True), approx=True)
        oh = jnp.dot(p, vh, preferred_element_type=jnp.float32)
        ctr = jnp.dot(oh, wo_ref[l, h], preferred_element_type=jnp.float32)
        acc = ctr if acc is None else acc + ctr
    return acc + bo_ref[l]


def decoder_kernel(mem_ref, q0_ref, sbias_ref, cbias_ref,
                   sa_wq_ref, sa_wk_ref, sa_wv_ref, sa_bq_ref, sa_bk_ref, sa_bv_ref,
                   sa_wo_ref, sa_bo_ref,
                   ca_wq_ref, ca_wk_ref, ca_wv_ref, ca_bq_ref, ca_bk_ref, ca_bv_ref,
                   ca_wo_ref, ca_bo_ref,
                   ln1_g_ref, ln1_b_ref, ln2_g_ref, ln2_b_ref, ln3_g_ref, ln3_b_ref,
                   ff1_w_ref, ff1_b_ref, ff2_w_ref, ff2_b_ref,
                   out_ref):
    mem = mem_ref[...]        # (b_tile*SK, D)          encoded, padded track memory
    q0 = q0_ref[...]          # (b_tile*SQ, D)          tiled, padded query embeddings
    sbias = sbias_ref[...]    # (b_tile*SQ, b_tile*SQ)  self-attn block-diag mask bias
    cbias = cbias_ref[...]    # (b_tile*SQ, b_tile*SK)  cross-attn block-diag mask bias

    out = q0
    for l in range(NUM_LAYERS):  # static unroll over decoder layers
        # --- self-attention block (post-norm) ---
        sa = _mha(out, out, sbias,
                  sa_wq_ref, sa_wk_ref, sa_wv_ref, sa_bq_ref, sa_bk_ref, sa_bv_ref,
                  sa_wo_ref, sa_bo_ref, l)
        out = _layer_norm(out + sa, ln1_g_ref[l], ln1_b_ref[l])
        # --- cross-attention block ---
        ca = _mha(out, mem, cbias,
                  ca_wq_ref, ca_wk_ref, ca_wv_ref, ca_bq_ref, ca_bk_ref, ca_bv_ref,
                  ca_wo_ref, ca_bo_ref, l)
        out = _layer_norm(out + ca, ln2_g_ref[l], ln2_b_ref[l])
        # --- feed-forward block (relu) ---
        h = jnp.dot(out, ff1_w_ref[l], preferred_element_type=jnp.float32) + ff1_b_ref[l]
        h = jnp.maximum(h, 0.0)
        ff = jnp.dot(h, ff2_w_ref[l], preferred_element_type=jnp.float32) + ff2_b_ref[l]
        out = _layer_norm(out + ff, ln3_g_ref[l], ln3_b_ref[l])

    out_ref[...] = out + q0   # outer residual (query embeddings)


# ----------------------------------------------------------------------------
# Wrapper-side layout plumbing
# ----------------------------------------------------------------------------
def _full_spec(shape):
    """BlockSpec covering the whole array, identical for every grid step."""
    nd = len(shape)
    return pl.BlockSpec(shape, lambda b, _nd=nd: (0,) * _nd)


def _pack_attention(in_w, in_b, out_w):
    """Split PyTorch MHA in_proj/out_proj into per-head, pre-transposed slabs.

    in_w: (L, 3D, D), in_b: (L, 3D), out_w: (L, D, D)
    Returns wq/wk/wv: (L, H, D, HD); bq/bk/bv: (L, H, 1, HD); wo: (L, H, HD, D)
    such that  x @ wq[l,h] + bq[l,h] == (x @ Wq^T + bq)[:, h*HD:(h+1)*HD]
    and        sum_h head_h @ wo[l,h] == concat_heads @ Wo^T .
    """
    L = in_w.shape[0]

    def split_w(w):   # (L, D, D) row-major output channels -> (L, H, D, HD)
        return w.reshape(L, NUM_HEADS, HEAD_DIM, D_MODEL).transpose(0, 1, 3, 2)

    def split_b(b):   # (L, D) -> (L, H, 1, HD)
        return b.reshape(L, NUM_HEADS, 1, HEAD_DIM)

    wq = split_w(in_w[:, 0:D_MODEL])
    wk = split_w(in_w[:, D_MODEL:2 * D_MODEL])
    wv = split_w(in_w[:, 2 * D_MODEL:3 * D_MODEL])
    bq = split_b(in_b[:, 0:D_MODEL])
    bk = split_b(in_b[:, D_MODEL:2 * D_MODEL])
    bv = split_b(in_b[:, 2 * D_MODEL:3 * D_MODEL])
    wo = out_w.reshape(L, D_MODEL, NUM_HEADS, HEAD_DIM).transpose(0, 2, 3, 1)
    return wq, wk, wv, bq, bk, bv, wo


def _attention_biases(bt):
    """Block-diagonal (over the batch tile) additive masks for self/cross attn."""
    rows = jnp.arange(bt * SQ, dtype=jnp.int32)
    row_b = rows // SQ
    cols_s = jnp.arange(bt * SQ, dtype=jnp.int32)
    cols_c = jnp.arange(bt * SK, dtype=jnp.int32)
    ok_s = (row_b[:, None] == (cols_s // SQ)[None, :]) & ((cols_s % SQ) < N_WAYPOINTS)[None, :]
    ok_c = (row_b[:, None] == (cols_c // SK)[None, :]) & ((cols_c % SK) < 2 * N_TRACK)[None, :]
    sbias = jnp.where(ok_s, 0.0, NEG_INF).astype(jnp.float32)
    cbias = jnp.where(ok_c, 0.0, NEG_INF).astype(jnp.float32)
    return sbias, cbias


def transformer_planner_forward(track_left, track_right, params):
    (enc_w, enc_b, qemb,
     sa_in_w, sa_in_b, sa_out_w, sa_out_b,
     ca_in_w, ca_in_b, ca_out_w, ca_out_b,
     ln1_g, ln1_b, ln2_g, ln2_b, ln3_g, ln3_b,
     ff1_w, ff1_b, ff2_w, ff2_b,
     out_w, out_b) = params

    B = track_left.shape[0]
    bt = min(B, B_TILE_MAX)
    num_blocks = -(-B // bt)
    if num_blocks > 1 and num_blocks % 2:
        num_blocks += 1            # even number of grid steps for v7x's 2 TensorCores
    b_pad = num_blocks * bt

    # ---- input encoder + padding done in XLA (lane-width-2, free plumbing) ---
    x = jnp.concatenate([track_left, track_right], axis=1)              # (B, 20, 2)
    mem = jnp.einsum('bsc,cd->bsd', x, enc_w.T) + enc_b                  # (B, 20, D)
    mem = jnp.pad(mem, ((0, b_pad - B), (0, SK - 2 * N_TRACK), (0, 0)))  # (b_pad, SK, D)
    mem_flat = mem.reshape(b_pad * SK, D_MODEL)

    # Query embeddings: pad 3 -> SQ rows, tile over the batch tile.
    q0 = jnp.pad(qemb, ((0, SQ - N_WAYPOINTS), (0, 0)))                  # (SQ, D)
    q0_tile = jnp.tile(q0, (bt, 1))                                      # (bt*SQ, D)

    # Block-diagonal batch masks (also mask padded key positions).
    self_bias, cross_bias = _attention_biases(bt)

    # Pre-split / pre-transposed weights (no in-kernel .T or lane slicing).
    sa_wq, sa_wk, sa_wv, sa_bq, sa_bk, sa_bv, sa_wo = _pack_attention(sa_in_w, sa_in_b, sa_out_w)
    ca_wq, ca_wk, ca_wv, ca_bq, ca_bk, ca_bv, ca_wo = _pack_attention(ca_in_w, ca_in_b, ca_out_w)
    ff1_wt = ff1_w.transpose(0, 2, 1)                                    # (L, D, 4D)
    ff2_wt = ff2_w.transpose(0, 2, 1)                                    # (L, 4D, D)
    L = NUM_LAYERS
    sa_bo = sa_out_b.reshape(L, 1, D_MODEL)
    ca_bo = ca_out_b.reshape(L, 1, D_MODEL)
    ln1_g_r, ln1_b_r = ln1_g.reshape(L, 1, D_MODEL), ln1_b.reshape(L, 1, D_MODEL)
    ln2_g_r, ln2_b_r = ln2_g.reshape(L, 1, D_MODEL), ln2_b.reshape(L, 1, D_MODEL)
    ln3_g_r, ln3_b_r = ln3_g.reshape(L, 1, D_MODEL), ln3_b.reshape(L, 1, D_MODEL)
    ff1_b_r = ff1_b.reshape(L, 1, D_FF)
    ff2_b_r = ff2_b.reshape(L, 1, D_MODEL)
    # TODO(synk): weights could be cast to bfloat16 (f32 accumulation) once the
    # kernel is MXU-bound at large batch; kept f32 to match PyTorch numerics.

    kernel_inputs = [
        mem_flat, q0_tile, self_bias, cross_bias,
        sa_wq, sa_wk, sa_wv, sa_bq, sa_bk, sa_bv, sa_wo, sa_bo,
        ca_wq, ca_wk, ca_wv, ca_bq, ca_bk, ca_bv, ca_wo, ca_bo,
        ln1_g_r, ln1_b_r, ln2_g_r, ln2_b_r, ln3_g_r, ln3_b_r,
        ff1_wt, ff1_b_r, ff2_wt, ff2_b_r,
    ]

    in_specs = [
        pl.BlockSpec((bt * SK, D_MODEL), lambda b: (b, 0)),              # memory tile
    ] + [_full_spec(p.shape) for p in kernel_inputs[1:]]                 # resident params

    out_specs = pl.BlockSpec((bt * SQ, D_MODEL), lambda b: (b, 0))

    dec_flat = pl.pallas_call(
        decoder_kernel,
        out_shape=jax.ShapeDtypeStruct((b_pad * SQ, D_MODEL), jnp.float32),
        grid_spec=pltpu.PrefetchScalarGridSpec(
            num_scalar_prefetch=0,
            grid=(num_blocks,),
            in_specs=in_specs,
            out_specs=out_specs,
        ),
        compiler_params=pltpu.CompilerParams(
            dimension_semantics=("parallel",)),
    )(*kernel_inputs)

    dec = dec_flat.reshape(b_pad, SQ, D_MODEL)[:B, :N_WAYPOINTS]         # (B, 3, D)
    waypoints = jnp.einsum('bqd,dk->bqk', dec, out_w.T) + out_b          # (B, 3, 2)
    return waypoints


# ----------------------------------------------------------------------------
# Parameters (PyTorch layout) and demo
# ----------------------------------------------------------------------------
def init_params(key):
    """Deterministic synthetic parameters matching the PyTorch module's shapes."""
    ks = jax.random.split(key, 16)
    s = 0.02
    f32 = jnp.float32

    enc_w = s * jax.random.normal(ks[0], (D_MODEL, 2), f32)            # input_encoder.weight
    enc_b = jnp.zeros((1, D_MODEL), f32)                               # input_encoder.bias
    qemb = s * jax.random.normal(ks[1], (N_WAYPOINTS, D_MODEL), f32)   # query_embed.weight

    L = NUM_LAYERS
    sa_in_w = s * jax.random.normal(ks[2], (L, 3 * D_MODEL, D_MODEL), f32)
    sa_in_b = jnp.zeros((L, 3 * D_MODEL), f32)
    sa_out_w = s * jax.random.normal(ks[3], (L, D_MODEL, D_MODEL), f32)
    sa_out_b = jnp.zeros((L, D_MODEL), f32)
    ca_in_w = s * jax.random.normal(ks[4], (L, 3 * D_MODEL, D_MODEL), f32)
    ca_in_b = jnp.zeros((L, 3 * D_MODEL), f32)
    ca_out_w = s * jax.random.normal(ks[5], (L, D_MODEL, D_MODEL), f32)
    ca_out_b = jnp.zeros((L, D_MODEL), f32)
    ln1_g = jnp.ones((L, D_MODEL), f32)
    ln1_b = jnp.zeros((L, D_MODEL), f32)
    ln2_g = jnp.ones((L, D_MODEL), f32)
    ln2_b = jnp.zeros((L, D_MODEL), f32)
    ln3_g = jnp.ones((L, D_MODEL), f32)
    ln3_b = jnp.zeros((L, D_MODEL), f32)
    ff1_w = s * jax.random.normal(ks[6], (L, D_FF, D_MODEL), f32)      # linear1.weight
    ff1_b = jnp.zeros((L, D_FF), f32)
    ff2_w = s * jax.random.normal(ks[7], (L, D_MODEL, D_FF), f32)      # linear2.weight
    ff2_b = jnp.zeros((L, D_MODEL), f32)
    out_w = s * jax.random.normal(ks[8], (2, D_MODEL), f32)            # output_proj.weight
    out_b = jnp.zeros((1, 2), f32)                                     # output_proj.bias

    # NOTE: residual_proj from __init__ is never used in forward -> intentionally omitted.
    # TODO(synk): dropout is identity in eval mode; training-mode dropout not implemented.
    return [enc_w, enc_b, qemb,
            sa_in_w, sa_in_b, sa_out_w, sa_out_b,
            ca_in_w, ca_in_b, ca_out_w, ca_out_b,
            ln1_g, ln1_b, ln2_g, ln2_b, ln3_g, ln3_b,
            ff1_w, ff1_b, ff2_w, ff2_b,
            out_w, out_b]


if __name__ == "__main__":
    key = jax.random.PRNGKey(0)
    k_params, k_left, k_right = jax.random.split(key, 3)

    B = 2
    track_left = jax.random.normal(k_left, (B, N_TRACK, 2), jnp.float32)
    track_right = jax.random.normal(k_right, (B, N_TRACK, 2), jnp.float32)
    params = init_params(k_params)

    waypoints = jax.jit(transformer_planner_forward)(track_left, track_right, params)
    waypoints = jax.block_until_ready(waypoints)

    assert waypoints.shape == (B, N_WAYPOINTS, 2), waypoints.shape
    assert waypoints.dtype == jnp.float32
    assert bool(jnp.all(jnp.isfinite(waypoints)))
    print("KERNEL_OK")
</pallas_src>

<mosaic_0001>
module attributes {stable_mosaic.version = 11 : i64} {
  func.func @decoder_kernel(%arg0: i32, %arg1: memref<48x64xf32, #tpu.memory_space<vmem>>, %arg2: memref<16x64xf32, #tpu.memory_space<vmem>>, %arg3: memref<16x16xf32, #tpu.memory_space<vmem>>, %arg4: memref<16x48xf32, #tpu.memory_space<vmem>>, %arg5: memref<2x4x64x16xf32, #tpu.memory_space<vmem>>, %arg6: memref<2x4x64x16xf32, #tpu.memory_space<vmem>>, %arg7: memref<2x4x64x16xf32, #tpu.memory_space<vmem>>, %arg8: memref<2x4x1x16xf32, #tpu.memory_space<vmem>>, %arg9: memref<2x4x1x16xf32, #tpu.memory_space<vmem>>, %arg10: memref<2x4x1x16xf32, #tpu.memory_space<vmem>>, %arg11: memref<2x4x16x64xf32, #tpu.memory_space<vmem>>, %arg12: memref<2x1x64xf32, #tpu.memory_space<vmem>>, %arg13: memref<2x4x64x16xf32, #tpu.memory_space<vmem>>, %arg14: memref<2x4x64x16xf32, #tpu.memory_space<vmem>>, %arg15: memref<2x4x64x16xf32, #tpu.memory_space<vmem>>, %arg16: memref<2x4x1x16xf32, #tpu.memory_space<vmem>>, %arg17: memref<2x4x1x16xf32, #tpu.memory_space<vmem>>, %arg18: memref<2x4x1x16xf32, #tpu.memory_space<vmem>>, %arg19: memref<2x4x16x64xf32, #tpu.memory_space<vmem>>, %arg20: memref<2x1x64xf32, #tpu.memory_space<vmem>>, %arg21: memref<2x1x64xf32, #tpu.memory_space<vmem>>, %arg22: memref<2x1x64xf32, #tpu.memory_space<vmem>>, %arg23: memref<2x1x64xf32, #tpu.memory_space<vmem>>, %arg24: memref<2x1x64xf32, #tpu.memory_space<vmem>>, %arg25: memref<2x1x64xf32, #tpu.memory_space<vmem>>, %arg26: memref<2x1x64xf32, #tpu.memory_space<vmem>>, %arg27: memref<2x64x256xf32, #tpu.memory_space<vmem>>, %arg28: memref<2x1x256xf32, #tpu.memory_space<vmem>>, %arg29: memref<2x256x64xf32, #tpu.memory_space<vmem>>, %arg30: memref<2x1x64xf32, #tpu.memory_space<vmem>>, %arg31: memref<16x64xf32, #tpu.memory_space<vmem>>) attributes {dimension_semantics = [#tpu.dimension_semantics<parallel>], iteration_bounds = array<i64: 1>, scalar_prefetch = 0 : i64, scratch_operands = 0 : i64, tpu.core_type = #tpu.core_type<tc>, window_params = [{transform_indices = @transform_0, window_bounds = array<i64: 48, 64>}, {pipeline_mode = #tpu.pipeline_mode<synchronous>, transform_indices = @transform_1, window_bounds = array<i64: 16, 64>}, {pipeline_mode = #tpu.pipeline_mode<synchronous>, transform_indices = @transform_2, window_bounds = array<i64: 16, 16>}, {pipeline_mode = #tpu.pipeline_mode<synchronous>, transform_indices = @transform_3, window_bounds = array<i64: 16, 48>}, {pipeline_mode = #tpu.pipeline_mode<synchronous>, transform_indices = @transform_4, window_bounds = array<i64: 2, 4, 64, 16>}, {pipeline_mode = #tpu.pipeline_mode<synchronous>, transform_indices = @transform_5, window_bounds = array<i64: 2, 4, 64, 16>}, {pipeline_mode = #tpu.pipeline_mode<synchronous>, transform_indices = @transform_6, window_bounds = array<i64: 2, 4, 64, 16>}, {pipeline_mode = #tpu.pipeline_mode<synchronous>, transform_indices = @transform_7, window_bounds = array<i64: 2, 4, 1, 16>}, {pipeline_mode = #tpu.pipeline_mode<synchronous>, transform_indices = @transform_8, window_bounds = array<i64: 2, 4, 1, 16>}, {pipeline_mode = #tpu.pipeline_mode<synchronous>, transform_indices = @transform_9, window_bounds = array<i64: 2, 4, 1, 16>}, {pipeline_mode = #tpu.pipeline_mode<synchronous>, transform_indices = @transform_10, window_bounds = array<i64: 2, 4, 16, 64>}, {pipeline_mode = #tpu.pipeline_mode<synchronous>, transform_indices = @transform_11, window_bounds = array<i64: 2, 1, 64>}, {pipeline_mode = #tpu.pipeline_mode<synchronous>, transform_indices = @transform_12, window_bounds = array<i64: 2, 4, 64, 16>}, {pipeline_mode = #tpu.pipeline_mode<synchronous>, transform_indices = @transform_13, window_bounds = array<i64: 2, 4, 64, 16>}, {pipeline_mode = #tpu.pipeline_mode<synchronous>, transform_indices = @transform_14, window_bounds = array<i64: 2, 4, 64, 16>}, {pipeline_mode = #tpu.pipeline_mode<synchronous>, transform_indices = @transform_15, window_bounds = array<i64: 2, 4, 1, 16>}, {pipeline_mode = #tpu.pipeline_mode<synchronous>, transform_indices = @transform_16, window_bounds = array<i64: 2, 4, 1, 16>}, {pipeline_mode = #tpu.pipeline_mode<synchronous>, transform_indices = @transform_17, window_bounds = array<i64: 2, 4, 1, 16>}, {pipeline_mode = #tpu.pipeline_mode<synchronous>, transform_indices = @transform_18, window_bounds = array<i64: 2, 4, 16, 64>}, {pipeline_mode = #tpu.pipeline_mode<synchronous>, transform_indices = @transform_19, window_bounds = array<i64: 2, 1, 64>}, {pipeline_mode = #tpu.pipeline_mode<synchronous>, transform_indices = @transform_20, window_bounds = array<i64: 2, 1, 64>}, {pipeline_mode = #tpu.pipeline_mode<synchronous>, transform_indices = @transform_21, window_bounds = array<i64: 2, 1, 64>}, {pipeline_mode = #tpu.pipeline_mode<synchronous>, transform_indices = @transform_22, window_bounds = array<i64: 2, 1, 64>}, {pipeline_mode = #tpu.pipeline_mode<synchronous>, transform_indices = @transform_23, window_bounds = array<i64: 2, 1, 64>}, {pipeline_mode = #tpu.pipeline_mode<synchronous>, transform_indices = @transform_24, window_bounds = array<i64: 2, 1, 64>}, {pipeline_mode = #tpu.pipeline_mode<synchronous>, transform_indices = @transform_25, window_bounds = array<i64: 2, 1, 64>}, {pipeline_mode = #tpu.pipeline_mode<synchronous>, transform_indices = @transform_26, window_bounds = array<i64: 2, 64, 256>}, {pipeline_mode = #tpu.pipeline_mode<synchronous>, transform_indices = @transform_27, window_bounds = array<i64: 2, 1, 256>}, {pipeline_mode = #tpu.pipeline_mode<synchronous>, transform_indices = @transform_28, window_bounds = array<i64: 2, 256, 64>}, {pipeline_mode = #tpu.pipeline_mode<synchronous>, transform_indices = @transform_29, window_bounds = array<i64: 2, 1, 64>}, {transform_indices = @transform_30, window_bounds = array<i64: 16, 64>}]} {
    %c0 = arith.constant 0 : index
    %c0_0 = arith.constant 0 : index
    %0 = vector.load %arg1[%c0, %c0_0] : memref<48x64xf32, #tpu.memory_space<vmem>>, vector<48x64xf32>
    %c0_1 = arith.constant 0 : index
    %c0_2 = arith.constant 0 : index
    %1 = vector.load %arg2[%c0_1, %c0_2] : memref<16x64xf32, #tpu.memory_space<vmem>>, vector<16x64xf32>
    %c0_3 = arith.constant 0 : index
    %c0_4 = arith.constant 0 : index
    %2 = vector.load %arg3[%c0_3, %c0_4] : memref<16x16xf32, #tpu.memory_space<vmem>>, vector<16x16xf32>
    %c0_5 = arith.constant 0 : index
    %c0_6 = arith.constant 0 : index
    %3 = vector.load %arg4[%c0_5, %c0_6] : memref<16x48xf32, #tpu.memory_space<vmem>>, vector<16x48xf32>
    %c0_7 = arith.constant 0 : index
    %c0_8 = arith.constant 0 : index
    %c0_9 = arith.constant 0 : index
    %c0_10 = arith.constant 0 : index
    %4 = vector.load %arg5[%c0_7, %c0_8, %c0_9, %c0_10] : memref<2x4x64x16xf32, #tpu.memory_space<vmem>>, vector<1x1x64x16xf32>
    %5 = vector.shape_cast %4 : vector<1x1x64x16xf32> to vector<64x16xf32>
    %cst = arith.constant dense<0.000000e+00> : vector<16x16xf32>
    %6 = tpu.matmul %1, %5, %cst {dimension_numbers = #tpu.dot_dimension_numbers<[1], [0], [0], [1], [0, 0, 1, 1], [], []>} : vector<16x64xf32>, vector<64x16xf32>, vector<16x16xf32> -> vector<16x16xf32>
    %c0_11 = arith.constant 0 : index
    %c0_12 = arith.constant 0 : index
    %c0_13 = arith.constant 0 : index
    %c0_14 = arith.constant 0 : index
    %7 = vector.load %arg8[%c0_11, %c0_12, %c0_13, %c0_14] : memref<2x4x1x16xf32, #tpu.memory_space<vmem>>, vector<1x1x1x16xf32>
    %8 = vector.shape_cast %7 : vector<1x1x1x16xf32> to vector<1x16xf32>
    %9 = vector.broadcast %8 : vector<1x16xf32> to vector<16x16xf32>
    %10 = arith.addf %6, %9 : vector<16x16xf32>
    %cst_15 = arith.constant 2.500000e-01 : f32
    %11 = vector.broadcast %cst_15 : f32 to vector<16x16xf32>
    %12 = arith.mulf %10, %11 : vector<16x16xf32>
    %c0_16 = arith.constant 0 : index
    %c0_17 = arith.constant 0 : index
    %c0_18 = arith.constant 0 : index
    %c0_19 = arith.constant 0 : index
    %13 = vector.load %arg6[%c0_16, %c0_17, %c0_18, %c0_19] : memref<2x4x64x16xf32, #tpu.memory_space<vmem>>, vector<1x1x64x16xf32>
    %14 = vector.shape_cast %13 : vector<1x1x64x16xf32> to vector<64x16xf32>
    %cst_20 = arith.constant dense<0.000000e+00> : vector<16x16xf32>
    %15 = tpu.matmul %1, %14, %cst_20 {dimension_numbers = #tpu.dot_dimension_numbers<[1], [0], [0], [1], [0, 0, 1, 1], [], []>} : vector<16x64xf32>, vector<64x16xf32>, vector<16x16xf32> -> vector<16x16xf32>
    %c0_21 = arith.constant 0 : index
    %c0_22 = arith.constant 0 : index
    %c0_23 = arith.constant 0 : index
    %c0_24 = arith.constant 0 : index
    %16 = vector.load %arg9[%c0_21, %c0_22, %c0_23, %c0_24] : memref<2x4x1x16xf32, #tpu.memory_space<vmem>>, vector<1x1x1x16xf32>
    %17 = vector.shape_cast %16 : vector<1x1x1x16xf32> to vector<1x16xf32>
    %18 = vector.broadcast %17 : vector<1x16xf32> to vector<16x16xf32>
    %19 = arith.addf %15, %18 : vector<16x16xf32>
    %c0_25 = arith.constant 0 : index
    %c0_26 = arith.constant 0 : index
    %c0_27 = arith.constant 0 : index
    %c0_28 = arith.constant 0 : index
    %20 = vector.load %arg7[%c0_25, %c0_26, %c0_27, %c0_28] : memref<2x4x64x16xf32, #tpu.memory_space<vmem>>, vector<1x1x64x16xf32>
    %21 = vector.shape_cast %20 : vector<1x1x64x16xf32> to vector<64x16xf32>
    %cst_29 = arith.constant dense<0.000000e+00> : vector<16x16xf32>
    %22 = tpu.matmul %1, %21, %cst_29 {dimension_numbers = #tpu.dot_dimension_numbers<[1], [0], [0], [1], [0, 0, 1, 1], [], []>} : vector<16x64xf32>, vector<64x16xf32>, vector<16x16xf32> -> vector<16x16xf32>
    %c0_30 = arith.constant 0 : index
    %c0_31 = arith.constant 0 : index
    %c0_32 = arith.constant 0 : index
    %c0_33 = arith.constant 0 : index
    %23 = vector.load %arg10[%c0_30, %c0_31, %c0_32, %c0_33] : memref<2x4x1x16xf32, #tpu.memory_space<vmem>>, vector<1x1x1x16xf32>
    %24 = vector.shape_cast %23 : vector<1x1x1x16xf32> to vector<1x16xf32>
    %25 = vector.broadcast %24 : vector<1x16xf32> to vector<16x16xf32>
    %26 = arith.addf %22, %25 : vector<16x16xf32>
    %cst_34 = arith.constant dense<0.000000e+00> : vector<16x16xf32>
    %27 = tpu.matmul %12, %19, %cst_34 {dimension_numbers = #tpu.dot_dimension_numbers<[1], [1], [0], [0], [0, 0, 1, 0], [], []>} : vector<16x16xf32>, vector<16x16xf32>, vector<16x16xf32> -> vector<16x16xf32>
    %28 = arith.addf %27, %2 : vector<16x16xf32>
    %cst_35 = arith.constant dense<0xFF800000> : vector<16xf32>
    %29 = vector.multi_reduction <maximumf>, %28, %cst_35 [1] : vector<16x16xf32> to vector<16xf32>
    %30 = vector.shape_cast %29 : vector<16xf32> to vector<16x1xf32>
    %31 = vector.broadcast %30 : vector<16x1xf32> to vector<16x16xf32>
    %32 = arith.subf %28, %31 : vector<16x16xf32>
    %33 = math.exp %32 : vector<16x16xf32>
    %cst_36 = arith.constant dense<0.000000e+00> : vector<16xf32>
    %34 = vector.multi_reduction <add>, %33, %cst_36 [1] : vector<16x16xf32> to vector<16xf32>
    %35 = vector.shape_cast %34 : vector<16xf32> to vector<16x1xf32>
    %36 = tpu.reciprocal %35 {approx = true} : vector<16x1xf32> -> vector<16x1xf32>
    %37 = vector.broadcast %36 : vector<16x1xf32> to vector<16x16xf32>
    %38 = arith.mulf %33, %37 : vector<16x16xf32>
    %cst_37 = arith.constant dense<0.000000e+00> : vector<16x16xf32>
    %39 = tpu.matmul %38, %26, %cst_37 {dimension_numbers = #tpu.dot_dimension_numbers<[1], [0], [0], [1], [0, 0, 1, 1], [], []>} : vector<16x16xf32>, vector<16x16xf32>, vector<16x16xf32> -> vector<16x16xf32>
    %c0_38 = arith.constant 0 : index
    %c0_39 = arith.constant 0 : index
    %c0_40 = arith.constant 0 : index
    %c0_41 = arith.constant 0 : index
    %40 = vector.load %arg11[%c0_38, %c0_39, %c0_40, %c0_41] : memref<2x4x16x64xf32, #tpu.memory_space<vmem>>, vector<1x1x16x64xf32>
    %41 = vector.shape_cast %40 : vector<1x1x16x64xf32> to vector<16x64xf32>
    %cst_42 = arith.constant dense<0.000000e+00> : vector<16x64xf32>
    %42 = tpu.matmul %39, %41, %cst_42 {dimension_numbers = #tpu.dot_dimension_numbers<[1], [0], [0], [1], [0, 0, 1, 1], [], []>} : vector<16x16xf32>, vector<16x64xf32>, vector<16x64xf32> -> vector<16x64xf32>
    %c0_43 = arith.constant 0 : index
    %c1 = arith.constant 1 : index
    %c0_44 = arith.constant 0 : index
    %c0_45 = arith.constant 0 : index
    %43 = vector.load %arg5[%c0_43, %c1, %c0_44, %c0_45] : memref<2x4x64x16xf32, #tpu.memory_space<vmem>>, vector<1x1x64x16xf32>
    %44 = vector.shape_cast %43 : vector<1x1x64x16xf32> to vector<64x16xf32>
    %cst_46 = arith.constant dense<0.000000e+00> : vector<16x16xf32>
    %45 = tpu.matmul %1, %44, %cst_46 {dimension_numbers = #tpu.dot_dimension_numbers<[1], [0], [0], [1], [0, 0, 1, 1], [], []>} : vector<16x64xf32>, vector<64x16xf32>, vector<16x16xf32> -> vector<16x16xf32>
    %c0_47 = arith.constant 0 : index
    %c1_48 = arith.constant 1 : index
    %c0_49 = arith.constant 0 : index
    %c0_50 = arith.constant 0 : index
    %46 = vector.load %arg8[%c0_47, %c1_48, %c0_49, %c0_50] : memref<2x4x1x16xf32, #tpu.memory_space<vmem>>, vector<1x1x1x16xf32>
    %47 = vector.shape_cast %46 : vector<1x1x1x16xf32> to vector<1x16xf32>
    %48 = vector.broadcast %47 : vector<1x16xf32> to vector<16x16xf32>
    %49 = arith.addf %45, %48 : vector<16x16xf32>
    %cst_51 = arith.constant 2.500000e-01 : f32
    %50 = vector.broadcast %cst_51 : f32 to vector<16x16xf32>
    %51 = arith.mulf %49, %50 : vector<16x16xf32>
    %c0_52 = arith.constant 0 : index
    %c1_53 = arith.constant 1 : index
    %c0_54 = arith.constant 0 : index
    %c0_55 = arith.constant 0 : index
    %52 = vector.load %arg6[%c0_52, %c1_53, %c0_54, %c0_55] : memref<2x4x64x16xf32, #tpu.memory_space<vmem>>, vector<1x1x64x16xf32>
    %53 = vector.shape_cast %52 : vector<1x1x64x16xf32> to vector<64x16xf32>
    %cst_56 = arith.constant dense<0.000000e+00> : vector<16x16xf32>
    %54 = tpu.matmul %1, %53, %cst_56 {dimension_numbers = #tpu.dot_dimension_numbers<[1], [0], [0], [1], [0, 0, 1, 1], [], []>} : vector<16x64xf32>, vector<64x16xf32>, vector<16x16xf32> -> vector<16x16xf32>
    %c0_57 = arith.constant 0 : index
    %c1_58 = arith.constant 1 : index
    %c0_59 = arith.constant 0 : index
    %c0_60 = arith.constant 0 : index
    %55 = vector.load %arg9[%c0_57, %c1_58, %c0_59, %c0_60] : memref<2x4x1x16xf32, #tpu.memory_space<vmem>>, vector<1x1x1x16xf32>
    %56 = vector.shape_cast %55 : vector<1x1x1x16xf32> to vector<1x16xf32>
    %57 = vector.broadcast %56 : vector<1x16xf32> to vector<16x16xf32>
    %58 = arith.addf %54, %57 : vector<16x16xf32>
    %c0_61 = arith.constant 0 : index
    %c1_62 = arith.constant 1 : index
    %c0_63 = arith.constant 0 : index
    %c0_64 = arith.constant 0 : index
    %59 = vector.load %arg7[%c0_61, %c1_62, %c0_63, %c0_64] : memref<2x4x64x16xf32, #tpu.memory_space<vmem>>, vector<1x1x64x16xf32>
    %60 = vector.shape_cast %59 : vector<1x1x64x16xf32> to vector<64x16xf32>
    %cst_65 = arith.constant dense<0.000000e+00> : vector<16x16xf32>
    %61 = tpu.matmul %1, %60, %cst_65 {dimension_numbers = #tpu.dot_dimension_numbers<[1], [0], [0], [1], [0, 0, 1, 1], [], []>} : vector<16x64xf32>, vector<64x16xf32>, vector<16x16xf32> -> vector<16x16xf32>
    %c0_66 = arith.constant 0 : index
    %c1_67 = arith.constant 1 : index
    %c0_68 = arith.constant 0 : index
    %c0_69 = arith.constant 0 : index
    %62 = vector.load %arg10[%c0_66, %c1_67, %c0_68, %c0_69] : memref<2x4x1x16xf32, #tpu.memory_space<vmem>>, vector<1x1x1x16xf32>
    %63 = vector.shape_cast %62 : vector<1x1x1x16xf32> to vector<1x16xf32>
    %64 = vector.broadcast %63 : vector<1x16xf32> to vector<16x16xf32>
    %65 = arith.addf %61, %64 : vector<16x16xf32>
    %cst_70 = arith.constant dense<0.000000e+00> : vector<16x16xf32>
    %66 = tpu.matmul %51, %58, %cst_70 {dimension_numbers = #tpu.dot_dimension_numbers<[1], [1], [0], [0], [0, 0, 1, 0], [], []>} : vector<16x16xf32>, vector<16x16xf32>, vector<16x16xf32> -> vector<16x16xf32>
    %67 = arith.addf %66, %2 : vector<16x16xf32>
    %cst_71 = arith.constant dense<0xFF800000> : vector<16xf32>
    %68 = vector.multi_reduction <maximumf>, %67, %cst_71 [1] : vector<16x16xf32> to vector<16xf32>
    %69 = vector.shape_cast %68 : vector<16xf32> to vector<16x1xf32>
    %70 = vector.broadcast %69 : vector<16x1xf32> to vector<16x16xf32>
    %71 = arith.subf %67, %70 : vector<16x16xf32>
    %72 = math.exp %71 : vector<16x16xf32>
    %cst_72 = arith.constant dense<0.000000e+00> : vector<16xf32>
    %73 = vector.multi_reduction <add>, %72, %cst_72 [1] : vector<16x16xf32> to vector<16xf32>
    %74 = vector.shape_cast %73 : vector<16xf32> to vector<16x1xf32>
    %75 = tpu.reciprocal %74 {approx = true} : vector<16x1xf32> -> vector<16x1xf32>
    %76 = vector.broadcast %75 : vector<16x1xf32> to vector<16x16xf32>
    %77 = arith.mulf %72, %76 : vector<16x16xf32>
    %cst_73 = arith.constant dense<0.000000e+00> : vector<16x16xf32>
    %78 = tpu.matmul %77, %65, %cst_73 {dimension_numbers = #tpu.dot_dimension_numbers<[1], [0], [0], [1], [0, 0, 1, 1], [], []>} : vector<16x16xf32>, vector<16x16xf32>, vector<16x16xf32> -> vector<16x16xf32>
    %c0_74 = arith.constant 0 : index
    %c1_75 = arith.constant 1 : index
    %c0_76 = arith.constant 0 : index
    %c0_77 = arith.constant 0 : index
    %79 = vector.load %arg11[%c0_74, %c1_75, %c0_76, %c0_77] : memref<2x4x16x64xf32, #tpu.memory_space<vmem>>, vector<1x1x16x64xf32>
    %80 = vector.shape_cast %79 : vector<1x1x16x64xf32> to vector<16x64xf32>
    %cst_78 = arith.constant dense<0.000000e+00> : vector<16x64xf32>
    %81 = tpu.matmul %78, %80, %cst_78 {dimension_numbers = #tpu.dot_dimension_numbers<[1], [0], [0], [1], [0, 0, 1, 1], [], []>} : vector<16x16xf32>, vector<16x64xf32>, vector<16x64xf32> -> vector<16x64xf32>
    %82 = arith.addf %42, %81 : vector<16x64xf32>
    %c0_79 = arith.constant 0 : index
    %c2 = arith.constant 2 : index
    %c0_80 = arith.constant 0 : index
    %c0_81 = arith.constant 0 : index
    %83 = vector.load %arg5[%c0_79, %c2, %c0_80, %c0_81] : memref<2x4x64x16xf32, #tpu.memory_space<vmem>>, vector<1x1x64x16xf32>
    %84 = vector.shape_cast %83 : vector<1x1x64x16xf32> to vector<64x16xf32>
    %cst_82 = arith.constant dense<0.000000e+00> : vector<16x16xf32>
    %85 = tpu.matmul %1, %84, %cst_82 {dimension_numbers = #tpu.dot_dimension_numbers<[1], [0], [0], [1], [0, 0, 1, 1], [], []>} : vector<16x64xf32>, vector<64x16xf32>, vector<16x16xf32> -> vector<16x16xf32>
    %c0_83 = arith.constant 0 : index
    %c2_84 = arith.constant 2 : index
    %c0_85 = arith.constant 0 : index
    %c0_86 = arith.constant 0 : index
    %86 = vector.load %arg8[%c0_83, %c2_84, %c0_85, %c0_86] : memref<2x4x1x16xf32, #tpu.memory_space<vmem>>, vector<1x1x1x16xf32>
    %87 = vector.shape_cast %86 : vector<1x1x1x16xf32> to vector<1x16xf32>
    %88 = vector.broadcast %87 : vector<1x16xf32> to vector<16x16xf32>
    %89 = arith.addf %85, %88 : vector<16x16xf32>
    %cst_87 = arith.constant 2.500000e-01 : f32
    %90 = vector.broadcast %cst_87 : f32 to vector<16x16xf32>
    %91 = arith.mulf %89, %90 : vector<16x16xf32>
    %c0_88 = arith.constant 0 : index
    %c2_89 = arith.constant 2 : index
    %c0_90 = arith.constant 0 : index
    %c0_91 = arith.constant 0 : index
    %92 = vector.load %arg6[%c0_88, %c2_89, %c0_90, %c0_91] : memref<2x4x64x16xf32, #tpu.memory_space<vmem>>, vector<1x1x64x16xf32>
    %93 = vector.shape_cast %92 : vector<1x1x64x16xf32> to vector<64x16xf32>
    %cst_92 = arith.constant dense<0.000000e+00> : vector<16x16xf32>
    %94 = tpu.matmul %1, %93, %cst_92 {dimension_numbers = #tpu.dot_dimension_numbers<[1], [0], [0], [1], [0, 0, 1, 1], [], []>} : vector<16x64xf32>, vector<64x16xf32>, vector<16x16xf32> -> vector<16x16xf32>
    %c0_93 = arith.constant 0 : index
    %c2_94 = arith.constant 2 : index
    %c0_95 = arith.constant 0 : index
    %c0_96 = arith.constant 0 : index
    %95 = vector.load %arg9[%c0_93, %c2_94, %c0_95, %c0_96] : memref<2x4x1x16xf32, #tpu.memory_space<vmem>>, vector<1x1x1x16xf32>
    %96 = vector.shape_cast %95 : vector<1x1x1x16xf32> to vector<1x16xf32>
    %97 = vector.broadcast %96 : vector<1x16xf32> to vector<16x16xf32>
    %98 = arith.addf %94, %97 : vector<16x16xf32>
    %c0_97 = arith.constant 0 : index
    %c2_98 = arith.constant 2 : index
    %c0_99 = arith.constant 0 : index
    %c0_100 = arith.constant 0 : index
    %99 = vector.load %arg7[%c0_97, %c2_98, %c0_99, %c0_100] : memref<2x4x64x16xf32, #tpu.memory_space<vmem>>, vector<1x1x64x16xf32>
    %100 = vector.shape_cast %99 : vector<1x1x64x16xf32> to vector<64x16xf32>
    %cst_101 = arith.constant dense<0.000000e+00> : vector<16x16xf32>
    %101 = tpu.matmul %1, %100, %cst_101 {dimension_numbers = #tpu.dot_dimension_numbers<[1], [0], [0], [1], [0, 0, 1, 1], [], []>} : vector<16x64xf32>, vector<64x16xf32>, vector<16x16xf32> -> vector<16x16xf32>
    %c0_102 = arith.constant 0 : index
    %c2_103 = arith.constant 2 : index
    %c0_104 = arith.constant 0 : index
    %c0_105 = arith.constant 0 : index
    %102 = vector.load %arg10[%c0_102, %c2_103, %c0_104, %c0_105] : memref<2x4x1x16xf32, #tpu.memory_space<vmem>>, vector<1x1x1x16xf32>
    %103 = vector.shape_cast %102 : vector<1x1x1x16xf32> to vector<1x16xf32>
    %104 = vector.broadcast %103 : vector<1x16xf32> to vector<16x16xf32>
    %105 = arith.addf %101, %104 : vector<16x16xf32>
    %cst_106 = arith.constant dense<0.000000e+00> : vector<16x16xf32>
    %106 = tpu.matmul %91, %98, %cst_106 {dimension_numbers = #tpu.dot_dimension_numbers<[1], [1], [0], [0], [0, 0, 1, 0], [], []>} : vector<16x16xf32>, vector<16x16xf32>, vector<16x16xf32> -> vector<16x16xf32>
    %107 = arith.addf %106, %2 : vector<16x16xf32>
    %cst_107 = arith.constant dense<0xFF800000> : vector<16xf32>
    %108 = vector.multi_reduction <maximumf>, %107, %cst_107 [1] : vector<16x16xf32> to vector<16xf32>
    %109 = vector.shape_cast %108 : vector<16xf32> to vector<16x1xf32>
    %110 = vector.broadcast %109 : vector<16x1xf32> to vector<16x16xf32>
    %111 = arith.subf %107, %110 : vector<16x16xf32>
    %112 = math.exp %111 : vector<16x16xf32>
    %cst_108 = arith.constant dense<0.000000e+00> : vector<16xf32>
    %113 = vector.multi_reduction <add>, %112, %cst_108 [1] : vector<16x16xf32> to vector<16xf32>
    %114 = vector.shape_cast %113 : vector<16xf32> to vector<16x1xf32>
    %115 = tpu.reciprocal %114 {approx = true} : vector<16x1xf32> -> vector<16x1xf32>
    %116 = vector.broadcast %115 : vector<16x1xf32> to vector<16x16xf32>
    %117 = arith.mulf %112, %116 : vector<16x16xf32>
    %cst_109 = arith.constant dense<0.000000e+00> : vector<16x16xf32>
    %118 = tpu.matmul %117, %105, %cst_109 {dimension_numbers = #tpu.dot_dimension_numbers<[1], [0], [0], [1], [0, 0, 1, 1], [], []>} : vector<16x16xf32>, vector<16x16xf32>, vector<16x16xf32> -> vector<16x16xf32>
    %c0_110 = arith.constant 0 : index
    %c2_111 = arith.constant 2 : index
    %c0_112 = arith.constant 0 : index
    %c0_113 = arith.constant 0 : index
    %119 = vector.load %arg11[%c0_110, %c2_111, %c0_112, %c0_113] : memref<2x4x16x64xf32, #tpu.memory_space<vmem>>, vector<1x1x16x64xf32>
    %120 = vector.shape_cast %119 : vector<1x1x16x64xf32> to vector<16x64xf32>
    %cst_114 = arith.constant dense<0.000000e+00> : vector<16x64xf32>
    %121 = tpu.matmul %118, %120, %cst_114 {dimension_numbers = #tpu.dot_dimension_numbers<[1], [0], [0], [1], [0, 0, 1, 1], [], []>} : vector<16x16xf32>, vector<16x64xf32>, vector<16x64xf32> -> vector<16x64xf32>
    %122 = arith.addf %82, %121 : vector<16x64xf32>
    %c0_115 = arith.constant 0 : index
    %c3 = arith.constant 3 : index
    %c0_116 = arith.constant 0 : index
    %c0_117 = arith.constant 0 : index
    %123 = vector.load %arg5[%c0_115, %c3, %c0_116, %c0_117] : memref<2x4x64x16xf32, #tpu.memory_space<vmem>>, vector<1x1x64x16xf32>
    %124 = vector.shape_cast %123 : vector<1x1x64x16xf32> to vector<64x16xf32>
    %cst_118 = arith.constant dense<0.000000e+00> : vector<16x16xf32>
    %125 = tpu.matmul %1, %124, %cst_118 {dimension_numbers = #tpu.dot_dimension_numbers<[1], [0], [0], [1], [0, 0, 1, 1], [], []>} : vector<16x64xf32>, vector<64x16xf32>, vector<16x16xf32> -> vector<16x16xf32>
    %c0_119 = arith.constant 0 : index
    %c3_120 = arith.constant 3 : index
    %c0_121 = arith.constant 0 : index
    %c0_122 = arith.constant 0 : index
    %126 = vector.load %arg8[%c0_119, %c3_120, %c0_121, %c0_122] : memref<2x4x1x16xf32, #tpu.memory_space<vmem>>, vector<1x1x1x16xf32>
    %127 = vector.shape_cast %126 : vector<1x1x1x16xf32> to vector<1x16xf32>
    %128 = vector.broadcast %127 : vector<1x16xf32> to vector<16x16xf32>
    %129 = arith.addf %125, %128 : vector<16x16xf32>
    %cst_123 = arith.constant 2.500000e-01 : f32
    %130 = vector.broadcast %cst_123 : f32 to vector<16x16xf32>
    %131 = arith.mulf %129, %130 : vector<16x16xf32>
    %c0_124 = arith.constant 0 : index
    %c3_125 = arith.constant 3 : index
    %c0_126 = arith.constant 0 : index
    %c0_127 = arith.constant 0 : index
    %132 = vector.load %arg6[%c0_124, %c3_125, %c0_126, %c0_127] : memref<2x4x64x16xf32, #tpu.memory_space<vmem>>, vector<1x1x64x16xf32>
    %133 = vector.shape_cast %132 : vector<1x1x64x16xf32> to vector<64x16xf32>
    %cst_128 = arith.constant dense<0.000000e+00> : vector<16x16xf32>
    %134 = tpu.matmul %1, %133, %cst_128 {dimension_numbers = #tpu.dot_dimension_numbers<[1], [0], [0], [1], [0, 0, 1, 1], [], []>} : vector<16x64xf32>, vector<64x16xf32>, vector<16x16xf32> -> vector<16x16xf32>
    %c0_129 = arith.constant 0 : index
    %c3_130 = arith.constant 3 : index
    %c0_131 = arith.constant 0 : index
    %c0_132 = arith.constant 0 : index
    %135 = vector.load %arg9[%c0_129, %c3_130, %c0_131, %c0_132] : memref<2x4x1x16xf32, #tpu.memory_space<vmem>>, vector<1x1x1x16xf32>
    %136 = vector.shape_cast %135 : vector<1x1x1x16xf32> to vector<1x16xf32>
    %137 = vector.broadcast %136 : vector<1x16xf32> to vector<16x16xf32>
    %138 = arith.addf %134, %137 : vector<16x16xf32>
    %c0_133 = arith.constant 0 : index
    %c3_134 = arith.constant 3 : index
    %c0_135 = arith.constant 0 : index
    %c0_136 = arith.constant 0 : index
    %139 = vector.load %arg7[%c0_133, %c3_134, %c0_135, %c0_136] : memref<2x4x64x16xf32, #tpu.memory_space<vmem>>, vector<1x1x64x16xf32>
    %140 = vector.shape_cast %139 : vector<1x1x64x16xf32> to vector<64x16xf32>
    %cst_137 = arith.constant dense<0.000000e+00> : vector<16x16xf32>
    %141 = tpu.matmul %1, %140, %cst_137 {dimension_numbers = #tpu.dot_dimension_numbers<[1], [0], [0], [1], [0, 0, 1, 1], [], []>} : vector<16x64xf32>, vector<64x16xf32>, vector<16x16xf32> -> vector<16x16xf32>
    %c0_138 = arith.constant 0 : index
    %c3_139 = arith.constant 3 : index
    %c0_140 = arith.constant 0 : index
    %c0_141 = arith.constant 0 : index
    %142 = vector.load %arg10[%c0_138, %c3_139, %c0_140, %c0_141] : memref<2x4x1x16xf32, #tpu.memory_space<vmem>>, vector<1x1x1x16xf32>
    %143 = vector.shape_cast %142 : vector<1x1x1x16xf32> to vector<1x16xf32>
    %144 = vector.broadcast %143 : vector<1x16xf32> to vector<16x16xf32>
    %145 = arith.addf %141, %144 : vector<16x16xf32>
    %cst_142 = arith.constant dense<0.000000e+00> : vector<16x16xf32>
    %146 = tpu.matmul %131, %138, %cst_142 {dimension_numbers = #tpu.dot_dimension_numbers<[1], [1], [0], [0], [0, 0, 1, 0], [], []>} : vector<16x16xf32>, vector<16x16xf32>, vector<16x16xf32> -> vector<16x16xf32>
    %147 = arith.addf %146, %2 : vector<16x16xf32>
    %cst_143 = arith.constant dense<0xFF800000> : vector<16xf32>
    %148 = vector.multi_reduction <maximumf>, %147, %cst_143 [1] : vector<16x16xf32> to vector<16xf32>
    %149 = vector.shape_cast %148 : vector<16xf32> to vector<16x1xf32>
    %150 = vector.broadcast %149 : vector<16x1xf32> to vector<16x16xf32>
    %151 = arith.subf %147, %150 : vector<16x16xf32>
    %152 = math.exp %151 : vector<16x16xf32>
    %cst_144 = arith.constant dense<0.000000e+00> : vector<16xf32>
    %153 = vector.multi_reduction <add>, %152, %cst_144 [1] : vector<16x16xf32> to vector<16xf32>
    %154 = vector.shape_cast %153 : vector<16xf32> to vector<16x1xf32>
    %155 = tpu.reciprocal %154 {approx = true} : vector<16x1xf32> -> vector<16x1xf32>
    %156 = vector.broadcast %155 : vector<16x1xf32> to vector<16x16xf32>
    %157 = arith.mulf %152, %156 : vector<16x16xf32>
    %cst_145 = arith.constant dense<0.000000e+00> : vector<16x16xf32>
    %158 = tpu.matmul %157, %145, %cst_145 {dimension_numbers = #tpu.dot_dimension_numbers<[1], [0], [0], [1], [0, 0, 1, 1], [], []>} : vector<16x16xf32>, vector<16x16xf32>, vector<16x16xf32> -> vector<16x16xf32>
    %c0_146 = arith.constant 0 : index
    %c3_147 = arith.constant 3 : index
    %c0_148 = arith.constant 0 : index
    %c0_149 = arith.constant 0 : index
    %159 = vector.load %arg11[%c0_146, %c3_147, %c0_148, %c0_149] : memref<2x4x16x64xf32, #tpu.memory_space<vmem>>, vector<1x1x16x64xf32>
    %160 = vector.shape_cast %159 : vector<1x1x16x64xf32> to vector<16x64xf32>
    %cst_150 = arith.constant dense<0.000000e+00> : vector<16x64xf32>
    %161 = tpu.matmul %158, %160, %cst_150 {dimension_numbers = #tpu.dot_dimension_numbers<[1], [0], [0], [1], [0, 0, 1, 1], [], []>} : vector<16x16xf32>, vector<16x64xf32>, vector<16x64xf32> -> vector<16x64xf32>
    %162 = arith.addf %122, %161 : vector<16x64xf32>
    %c0_151 = arith.constant 0 : index
    %c0_152 = arith.constant 0 : index
    %c0_153 = arith.constant 0 : index
    %163 = vector.load %arg12[%c0_151, %c0_152, %c0_153] : memref<2x1x64xf32, #tpu.memory_space<vmem>>, vector<1x1x64xf32>
    %164 = vector.shape_cast %163 : vector<1x1x64xf32> to vector<1x64xf32>
    %165 = vector.broadcast %164 : vector<1x64xf32> to vector<16x64xf32>
    %166 = arith.addf %162, %165 : vector<16x64xf32>
    %167 = arith.addf %1, %166 : vector<16x64xf32>
    %c0_154 = arith.constant 0 : index
    %c0_155 = arith.constant 0 : index
    %c0_156 = arith.constant 0 : index
    %168 = vector.load %arg21[%c0_154, %c0_155, %c0_156] : memref<2x1x64xf32, #tpu.memory_space<vmem>>, vector<1x1x64xf32>
    %169 = vector.shape_cast %168 : vector<1x1x64xf32> to vector<1x64xf32>
    %c0_157 = arith.constant 0 : index
    %c0_158 = arith.constant 0 : index
    %c0_159 = arith.constant 0 : index
    %170 = vector.load %arg22[%c0_157, %c0_158, %c0_159] : memref<2x1x64xf32, #tpu.memory_space<vmem>>, vector<1x1x64xf32>
    %171 = vector.shape_cast %170 : vector<1x1x64xf32> to vector<1x64xf32>
    %cst_160 = arith.constant dense<0.000000e+00> : vector<16xf32>
    %172 = vector.multi_reduction <add>, %167, %cst_160 [1] : vector<16x64xf32> to vector<16xf32>
    %173 = vector.shape_cast %172 : vector<16xf32> to vector<16x1xf32>
    %cst_161 = arith.constant 6.400000e+01 : f32
    %174 = vector.broadcast %cst_161 : f32 to vector<16x1xf32>
    %175 = arith.divf %173, %174 : vector<16x1xf32>
    %176 = vector.broadcast %175 : vector<16x1xf32> to vector<16x64xf32>
    %177 = arith.subf %167, %176 : vector<16x64xf32>
    %178 = arith.mulf %177, %177 : vector<16x64xf32>
    %cst_162 = arith.constant dense<0.000000e+00> : vector<16xf32>
    %179 = vector.multi_reduction <add>, %178, %cst_162 [1] : vector<16x64xf32> to vector<16xf32>
    %180 = vector.shape_cast %179 : vector<16xf32> to vector<16x1xf32>
    %cst_163 = arith.constant 6.400000e+01 : f32
    %181 = vector.broadcast %cst_163 : f32 to vector<16x1xf32>
    %182 = arith.divf %180, %181 : vector<16x1xf32>
    %183 = vector.broadcast %175 : vector<16x1xf32> to vector<16x64xf32>
    %184 = arith.subf %167, %183 : vector<16x64xf32>
    %cst_164 = arith.constant 9.99999974E-6 : f32
    %185 = vector.broadcast %cst_164 : f32 to vector<16x1xf32>
    %186 = arith.addf %182, %185 : vector<16x1xf32>
    %187 = math.rsqrt %186 : vector<16x1xf32>
    %188 = vector.broadcast %187 : vector<16x1xf32> to vector<16x64xf32>
    %189 = arith.mulf %184, %188 : vector<16x64xf32>
    %190 = vector.broadcast %169 : vector<1x64xf32> to vector<16x64xf32>
    %191 = arith.mulf %189, %190 : vector<16x64xf32>
    %192 = vector.broadcast %171 : vector<1x64xf32> to vector<16x64xf32>
    %193 = arith.addf %191, %192 : vector<16x64xf32>
    %c0_165 = arith.constant 0 : index
    %c0_166 = arith.constant 0 : index
    %c0_167 = arith.constant 0 : index
    %c0_168 = arith.constant 0 : index
    %194 = vector.load %arg13[%c0_165, %c0_166, %c0_167, %c0_168] : memref<2x4x64x16xf32, #tpu.memory_space<vmem>>, vector<1x1x64x16xf32>
    %195 = vector.shape_cast %194 : vector<1x1x64x16xf32> to vector<64x16xf32>
    %cst_169 = arith.constant dense<0.000000e+00> : vector<16x16xf32>
    %196 = tpu.matmul %193, %195, %cst_169 {dimension_numbers = #tpu.dot_dimension_numbers<[1], [0], [0], [1], [0, 0, 1, 1], [], []>} : vector<16x64xf32>, vector<64x16xf32>, vector<16x16xf32> -> vector<16x16xf32>
    %c0_170 = arith.constant 0 : index
    %c0_171 = arith.constant 0 : index
    %c0_172 = arith.constant 0 : index
    %c0_173 = arith.constant 0 : index
    %197 = vector.load %arg16[%c0_170, %c0_171, %c0_172, %c0_173] : memref<2x4x1x16xf32, #tpu.memory_space<vmem>>, vector<1x1x1x16xf32>
    %198 = vector.shape_cast %197 : vector<1x1x1x16xf32> to vector<1x16xf32>
    %199 = vector.broadcast %198 : vector<1x16xf32> to vector<16x16xf32>
    %200 = arith.addf %196, %199 : vector<16x16xf32>
    %cst_174 = arith.constant 2.500000e-01 : f32
    %201 = vector.broadcast %cst_174 : f32 to vector<16x16xf32>
    %202 = arith.mulf %200, %201 : vector<16x16xf32>
    %c0_175 = arith.constant 0 : index
    %c0_176 = arith.constant 0 : index
    %c0_177 = arith.constant 0 : index
    %c0_178 = arith.constant 0 : index
    %203 = vector.load %arg14[%c0_175, %c0_176, %c0_177, %c0_178] : memref<2x4x64x16xf32, #tpu.memory_space<vmem>>, vector<1x1x64x16xf32>
    %204 = vector.shape_cast %203 : vector<1x1x64x16xf32> to vector<64x16xf32>
    %cst_179 = arith.constant dense<0.000000e+00> : vector<48x16xf32>
    %205 = tpu.matmul %0, %204, %cst_179 {dimension_numbers = #tpu.dot_dimension_numbers<[1], [0], [0], [1], [0, 0, 1, 1], [], []>} : vector<48x64xf32>, vector<64x16xf32>, vector<48x16xf32> -> vector<48x16xf32>
    %c0_180 = arith.constant 0 : index
    %c0_181 = arith.constant 0 : index
    %c0_182 = arith.constant 0 : index
    %c0_183 = arith.constant 0 : index
    %206 = vector.load %arg17[%c0_180, %c0_181, %c0_182, %c0_183] : memref<2x4x1x16xf32, #tpu.memory_space<vmem>>, vector<1x1x1x16xf32>
    %207 = vector.shape_cast %206 : vector<1x1x1x16xf32> to vector<1x16xf32>
    %208 = vector.broadcast %207 : vector<1x16xf32> to vector<48x16xf32>
    %209 = arith.addf %205, %208 : vector<48x16xf32>
    %c0_184 = arith.constant 0 : index
    %c0_185 = arith.constant 0 : index
    %c0_186 = arith.constant 0 : index
    %c0_187 = arith.constant 0 : index
    %210 = vector.load %arg15[%c0_184, %c0_185, %c0_186, %c0_187] : memref<2x4x64x16xf32, #tpu.memory_space<vmem>>, vector<1x1x64x16xf32>
    %211 = vector.shape_cast %210 : vector<1x1x64x16xf32> to vector<64x16xf32>
    %cst_188 = arith.constant dense<0.000000e+00> : vector<48x16xf32>
    %212 = tpu.matmul %0, %211, %cst_188 {dimension_numbers = #tpu.dot_dimension_numbers<[1], [0], [0], [1], [0, 0, 1, 1], [], []>} : vector<48x64xf32>, vector<64x16xf32>, vector<48x16xf32> -> vector<48x16xf32>
    %c0_189 = arith.constant 0 : index
    %c0_190 = arith.constant 0 : index
    %c0_191 = arith.constant 0 : index
    %c0_192 = arith.constant 0 : index
    %213 = vector.load %arg18[%c0_189, %c0_190, %c0_191, %c0_192] : memref<2x4x1x16xf32, #tpu.memory_space<vmem>>, vector<1x1x1x16xf32>
    %214 = vector.shape_cast %213 : vector<1x1x1x16xf32> to vector<1x16xf32>
    %215 = vector.broadcast %214 : vector<1x16xf32> to vector<48x16xf32>
    %216 = arith.addf %212, %215 : vector<48x16xf32>
    %cst_193 = arith.constant dense<0.000000e+00> : vector<16x48xf32>
    %217 = tpu.matmul %202, %209, %cst_193 {dimension_numbers = #tpu.dot_dimension_numbers<[1], [1], [0], [0], [0, 0, 1, 0], [], []>} : vector<16x16xf32>, vector<48x16xf32>, vector<16x48xf32> -> vector<16x48xf32>
    %218 = arith.addf %217, %3 : vector<16x48xf32>
    %cst_194 = arith.constant dense<0xFF800000> : vector<16xf32>
    %219 = vector.multi_reduction <maximumf>, %218, %cst_194 [1] : vector<16x48xf32> to vector<16xf32>
    %220 = vector.shape_cast %219 : vector<16xf32> to vector<16x1xf32>
    %221 = vector.broadcast %220 : vector<16x1xf32> to vector<16x48xf32>
    %222 = arith.subf %218, %221 : vector<16x48xf32>
    %223 = math.exp %222 : vector<16x48xf32>
    %cst_195 = arith.constant dense<0.000000e+00> : vector<16xf32>
    %224 = vector.multi_reduction <add>, %223, %cst_195 [1] : vector<16x48xf32> to vector<16xf32>
    %225 = vector.shape_cast %224 : vector<16xf32> to vector<16x1xf32>
    %226 = tpu.reciprocal %225 {approx = true} : vector<16x1xf32> -> vector<16x1xf32>
    %227 = vector.broadcast %226 : vector<16x1xf32> to vector<16x48xf32>
    %228 = arith.mulf %223, %227 : vector<16x48xf32>
    %cst_196 = arith.constant dense<0.000000e+00> : vector<16x16xf32>
    %229 = tpu.matmul %228, %216, %cst_196 {dimension_numbers = #tpu.dot_dimension_numbers<[1], [0], [0], [1], [0, 0, 1, 1], [], []>} : vector<16x48xf32>, vector<48x16xf32>, vector<16x16xf32> -> vector<16x16xf32>
    %c0_197 = arith.constant 0 : index
    %c0_198 = arith.constant 0 : index
    %c0_199 = arith.constant 0 : index
    %c0_200 = arith.constant 0 : index
    %230 = vector.load %arg19[%c0_197, %c0_198, %c0_199, %c0_200] : memref<2x4x16x64xf32, #tpu.memory_space<vmem>>, vector<1x1x16x64xf32>
    %231 = vector.shape_cast %230 : vector<1x1x16x64xf32> to vector<16x64xf32>
    %cst_201 = arith.constant dense<0.000000e+00> : vector<16x64xf32>
    %232 = tpu.matmul %229, %231, %cst_201 {dimension_numbers = #tpu.dot_dimension_numbers<[1], [0], [0], [1], [0, 0, 1, 1], [], []>} : vector<16x16xf32>, vector<16x64xf32>, vector<16x64xf32> -> vector<16x64xf32>
    %c0_202 = arith.constant 0 : index
    %c1_203 = arith.constant 1 : index
    %c0_204 = arith.constant 0 : index
    %c0_205 = arith.constant 0 : index
    %233 = vector.load %arg13[%c0_202, %c1_203, %c0_204, %c0_205] : memref<2x4x64x16xf32, #tpu.memory_space<vmem>>, vector<1x1x64x16xf32>
    %234 = vector.shape_cast %233 : vector<1x1x64x16xf32> to vector<64x16xf32>
    %cst_206 = arith.constant dense<0.000000e+00> : vector<16x16xf32>
    %235 = tpu.matmul %193, %234, %cst_206 {dimension_numbers = #tpu.dot_dimension_numbers<[1], [0], [0], [1], [0, 0, 1, 1], [], []>} : vector<16x64xf32>, vector<64x16xf32>, vector<16x16xf32> -> vector<16x16xf32>
    %c0_207 = arith.constant 0 : index
    %c1_208 = arith.constant 1 : index
    %c0_209 = arith.constant 0 : index
    %c0_210 = arith.constant 0 : index
    %236 = vector.load %arg16[%c0_207, %c1_208, %c0_209, %c0_210] : memref<2x4x1x16xf32, #tpu.memory_space<vmem>>, vector<1x1x1x16xf32>
    %237 = vector.shape_cast %236 : vector<1x1x1x16xf32> to vector<1x16xf32>
    %238 = vector.broadcast %237 : vector<1x16xf32> to vector<16x16xf32>
    %239 = arith.addf %235, %238 : vector<16x16xf32>
    %cst_211 = arith.constant 2.500000e-01 : f32
    %240 = vector.broadcast %cst_211 : f32 to vector<16x16xf32>
    %241 = arith.mulf %239, %240 : vector<16x16xf32>
    %c0_212 = arith.constant 0 : index
    %c1_213 = arith.constant 1 : index
    %c0_214 = arith.constant 0 : index
    %c0_215 = arith.constant 0 : index
    %242 = vector.load %arg14[%c0_212, %c1_213, %c0_214, %c0_215] : memref<2x4x64x16xf32, #tpu.memory_space<vmem>>, vector<1x1x64x16xf32>
    %243 = vector.shape_cast %242 : vector<1x1x64x16xf32> to vector<64x16xf32>
    %cst_216 = arith.constant dense<0.000000e+00> : vector<48x16xf32>
    %244 = tpu.matmul %0, %243, %cst_216 {dimension_numbers = #tpu.dot_dimension_numbers<[1], [0], [0], [1], [0, 0, 1, 1], [], []>} : vector<48x64xf32>, vector<64x16xf32>, vector<48x16xf32> -> vector<48x16xf32>
    %c0_217 = arith.constant 0 : index
    %c1_218 = arith.constant 1 : index
    %c0_219 = arith.constant 0 : index
    %c0_220 = arith.constant 0 : index
    %245 = vector.load %arg17[%c0_217, %c1_218, %c0_219, %c0_220] : memref<2x4x1x16xf32, #tpu.memory_space<vmem>>, vector<1x1x1x16xf32>
    %246 = vector.shape_cast %245 : vector<1x1x1x16xf32> to vector<1x16xf32>
    %247 = vector.broadcast %246 : vector<1x16xf32> to vector<48x16xf32>
    %248 = arith.addf %244, %247 : vector<48x16xf32>
    %c0_221 = arith.constant 0 : index
    %c1_222 = arith.constant 1 : index
    %c0_223 = arith.constant 0 : index
    %c0_224 = arith.constant 0 : index
    %249 = vector.load %arg15[%c0_221, %c1_222, %c0_223, %c0_224] : memref<2x4x64x16xf32, #tpu.memory_space<vmem>>, vector<1x1x64x16xf32>
    %250 = vector.shape_cast %249 : vector<1x1x64x16xf32> to vector<64x16xf32>
    %cst_225 = arith.constant dense<0.000000e+00> : vector<48x16xf32>
    %251 = tpu.matmul %0, %250, %cst_225 {dimension_numbers = #tpu.dot_dimension_numbers<[1], [0], [0], [1], [0, 0, 1, 1], [], []>} : vector<48x64xf32>, vector<64x16xf32>, vector<48x16xf32> -> vector<48x16xf32>
    %c0_226 = arith.constant 0 : index
    %c1_227 = arith.constant 1 : index
    %c0_228 = arith.constant 0 : index
    %c0_229 = arith.constant 0 : index
    %252 = vector.load %arg18[%c0_226, %c1_227, %c0_228, %c0_229] : memref<2x4x1x16xf32, #tpu.memory_space<vmem>>, vector<1x1x1x16xf32>
    %253 = vector.shape_cast %252 : vector<1x1x1x16xf32> to vector<1x16xf32>
    %254 = vector.broadcast %253 : vector<1x16xf32> to vector<48x16xf32>
    %255 = arith.addf %251, %254 : vector<48x16xf32>
    %cst_230 = arith.constant dense<0.000000e+00> : vector<16x48xf32>
    %256 = tpu.matmul %241, %248, %cst_230 {dimension_numbers = #tpu.dot_dimension_numbers<[1], [1], [0], [0], [0, 0, 1, 0], [], []>} : vector<16x16xf32>, vector<48x16xf32>, vector<16x48xf32> -> vector<16x48xf32>
    %257 = arith.addf %256, %3 : vector<16x48xf32>
    %cst_231 = arith.constant dense<0xFF800000> : vector<16xf32>
    %258 = vector.multi_reduction <maximumf>, %257, %cst_231 [1] : vector<16x48xf32> to vector<16xf32>
    %259 = vector.shape_cast %258 : vector<16xf32> to vector<16x1xf32>
    %260 = vector.broadcast %259 : vector<16x1xf32> to vector<16x48xf32>
    %261 = arith.subf %257, %260 : vector<16x48xf32>
    %262 = math.exp %261 : vector<16x48xf32>
    %cst_232 = arith.constant dense<0.000000e+00> : vector<16xf32>
    %263 = vector.multi_reduction <add>, %262, %cst_232 [1] : vector<16x48xf32> to vector<16xf32>
    %264 = vector.shape_cast %263 : vector<16xf32> to vector<16x1xf32>
    %265 = tpu.reciprocal %264 {approx = true} : vector<16x1xf32> -> vector<16x1xf32>
    %266 = vector.broadcast %265 : vector<16x1xf32> to vector<16x48xf32>
    %267 = arith.mulf %262, %266 : vector<16x48xf32>
    %cst_233 = arith.constant dense<0.000000e+00> : vector<16x16xf32>
    %268 = tpu.matmul %267, %255, %cst_233 {dimension_numbers = #tpu.dot_dimension_numbers<[1], [0], [0], [1], [0, 0, 1, 1], [], []>} : vector<16x48xf32>, vector<48x16xf32>, vector<16x16xf32> -> vector<16x16xf32>
    %c0_234 = arith.constant 0 : index
    %c1_235 = arith.constant 1 : index
    %c0_236 = arith.constant 0 : index
    %c0_237 = arith.constant 0 : index
    %269 = vector.load %arg19[%c0_234, %c1_235, %c0_236, %c0_237] : memref<2x4x16x64xf32, #tpu.memory_space<vmem>>, vector<1x1x16x64xf32>
    %270 = vector.shape_cast %269 : vector<1x1x16x64xf32> to vector<16x64xf32>
    %cst_238 = arith.constant dense<0.000000e+00> : vector<16x64xf32>
    %271 = tpu.matmul %268, %270, %cst_238 {dimension_numbers = #tpu.dot_dimension_numbers<[1], [0], [0], [1], [0, 0, 1, 1], [], []>} : vector<16x16xf32>, vector<16x64xf32>, vector<16x64xf32> -> vector<16x64xf32>
    %272 = arith.addf %232, %271 : vector<16x64xf32>
    %c0_239 = arith.constant 0 : index
    %c2_240 = arith.constant 2 : index
    %c0_241 = arith.constant 0 : index
    %c0_242 = arith.constant 0 : index
    %273 = vector.load %arg13[%c0_239, %c2_240, %c0_241, %c0_242] : memref<2x4x64x16xf32, #tpu.memory_space<vmem>>, vector<1x1x64x16xf32>
    %274 = vector.shape_cast %273 : vector<1x1x64x16xf32> to vector<64x16xf32>
    %cst_243 = arith.constant dense<0.000000e+00> : vector<16x16xf32>
    %275 = tpu.matmul %193, %274, %cst_243 {dimension_numbers = #tpu.dot_dimension_numbers<[1], [0], [0], [1], [0, 0, 1, 1], [], []>} : vector<16x64xf32>, vector<64x16xf32>, vector<16x16xf32> -> vector<16x16xf32>
    %c0_244 = arith.constant 0 : index
    %c2_245 = arith.constant 2 : index
    %c0_246 = arith.constant 0 : index
    %c0_247 = arith.constant 0 : index
    %276 = vector.load %arg16[%c0_244, %c2_245, %c0_246, %c0_247] : memref<2x4x1x16xf32, #tpu.memory_space<vmem>>, vector<1x1x1x16xf32>
    %277 = vector.shape_cast %276 : vector<1x1x1x16xf32> to vector<1x16xf32>
    %278 = vector.broadcast %277 : vector<1x16xf32> to vector<16x16xf32>
    %279 = arith.addf %275, %278 : vector<16x16xf32>
    %cst_248 = arith.constant 2.500000e-01 : f32
    %280 = vector.broadcast %cst_248 : f32 to vector<16x16xf32>
    %281 = arith.mulf %279, %280 : vector<16x16xf32>
    %c0_249 = arith.constant 0 : index
    %c2_250 = arith.constant 2 : index
    %c0_251 = arith.constant 0 : index
    %c0_252 = arith.constant 0 : index
    %282 = vector.load %arg14[%c0_249, %c2_250, %c0_251, %c0_252] : memref<2x4x64x16xf32, #tpu.memory_space<vmem>>, vector<1x1x64x16xf32>
    %283 = vector.shape_cast %282 : vector<1x1x64x16xf32> to vector<64x16xf32>
    %cst_253 = arith.constant dense<0.000000e+00> : vector<48x16xf32>
    %284 = tpu.matmul %0, %283, %cst_253 {dimension_numbers = #tpu.dot_dimension_numbers<[1], [0], [0], [1], [0, 0, 1, 1], [], []>} : vector<48x64xf32>, vector<64x16xf32>, vector<48x16xf32> -> vector<48x16xf32>
    %c0_254 = arith.constant 0 : index
    %c2_255 = arith.constant 2 : index
    %c0_256 = arith.constant 0 : index
    %c0_257 = arith.constant 0 : index
    %285 = vector.load %arg17[%c0_254, %c2_255, %c0_256, %c0_257] : memref<2x4x1x16xf32, #tpu.memory_space<vmem>>, vector<1x1x1x16xf32>
    %286 = vector.shape_cast %285 : vector<1x1x1x16xf32> to vector<1x16xf32>
    %287 = vector.broadcast %286 : vector<1x16xf32> to vector<48x16xf32>
    %288 = arith.addf %284, %287 : vector<48x16xf32>
    %c0_258 = arith.constant 0 : index
    %c2_259 = arith.constant 2 : index
    %c0_260 = arith.constant 0 : index
    %c0_261 = arith.constant 0 : index
    %289 = vector.load %arg15[%c0_258, %c2_259, %c0_260, %c0_261] : memref<2x4x64x16xf32, #tpu.memory_space<vmem>>, vector<1x1x64x16xf32>
    %290 = vector.shape_cast %289 : vector<1x1x64x16xf32> to vector<64x16xf32>
    %cst_262 = arith.constant dense<0.000000e+00> : vector<48x16xf32>
    %291 = tpu.matmul %0, %290, %cst_262 {dimension_numbers = #tpu.dot_dimension_numbers<[1], [0], [0], [1], [0, 0, 1, 1], [], []>} : vector<48x64xf32>, vector<64x16xf32>, vector<48x16xf32> -> vector<48x16xf32>
    %c0_263 = arith.constant 0 : index
    %c2_264 = arith.constant 2 : index
    %c0_265 = arith.constant 0 : index
    %c0_266 = arith.constant 0 : index
    %292 = vector.load %arg18[%c0_263, %c2_264, %c0_265, %c0_266] : memref<2x4x1x16xf32, #tpu.memory_space<vmem>>, vector<1x1x1x16xf32>
    %293 = vector.shape_cast %292 : vector<1x1x1x16xf32> to vector<1x16xf32>
    %294 = vector.broadcast %293 : vector<1x16xf32> to vector<48x16xf32>
    %295 = arith.addf %291, %294 : vector<48x16xf32>
    %cst_267 = arith.constant dense<0.000000e+00> : vector<16x48xf32>
    %296 = tpu.matmul %281, %288, %cst_267 {dimension_numbers = #tpu.dot_dimension_numbers<[1], [1], [0], [0], [0, 0, 1, 0], [], []>} : vector<16x16xf32>, vector<48x16xf32>, vector<16x48xf32> -> vector<16x48xf32>
    %297 = arith.addf %296, %3 : vector<16x48xf32>
    %cst_268 = arith.constant dense<0xFF800000> : vector<16xf32>
    %298 = vector.multi_reduction <maximumf>, %297, %cst_268 [1] : vector<16x48xf32> to vector<16xf32>
    %299 = vector.shape_cast %298 : vector<16xf32> to vector<16x1xf32>
    %300 = vector.broadcast %299 : vector<16x1xf32> to vector<16x48xf32>
    %301 = arith.subf %297, %300 : vector<16x48xf32>
    %302 = math.exp %301 : vector<16x48xf32>
    %cst_269 = arith.constant dense<0.000000e+00> : vector<16xf32>
    %303 = vector.multi_reduction <add>, %302, %cst_269 [1] : vector<16x48xf32> to vector<16xf32>
    %304 = vector.shape_cast %303 : vector<16xf32> to vector<16x1xf32>
    %305 = tpu.reciprocal %304 {approx = true} : vector<16x1xf32> -> vector<16x1xf32>
    %306 = vector.broadcast %305 : vector<16x1xf32> to vector<16x48xf32>
    %307 = arith.mulf %302, %306 : vector<16x48xf32>
    %cst_270 = arith.constant dense<0.000000e+00> : vector<16x16xf32>
    %308 = tpu.matmul %307, %295, %cst_270 {dimension_numbers = #tpu.dot_dimension_numbers<[1], [0], [0], [1], [0, 0, 1, 1], [], []>} : vector<16x48xf32>, vector<48x16xf32>, vector<16x16xf32> -> vector<16x16xf32>
    %c0_271 = arith.constant 0 : index
    %c2_272 = arith.constant 2 : index
    %c0_273 = arith.constant 0 : index
    %c0_274 = arith.constant 0 : index
    %309 = vector.load %arg19[%c0_271, %c2_272, %c0_273, %c0_274] : memref<2x4x16x64xf32, #tpu.memory_space<vmem>>, vector<1x1x16x64xf32>
    %310 = vector.shape_cast %309 : vector<1x1x16x64xf32> to vector<16x64xf32>
    %cst_275 = arith.constant dense<0.000000e+00> : vector<16x64xf32>
    %311 = tpu.matmul %308, %310, %cst_275 {dimension_numbers = #tpu.dot_dimension_numbers<[1], [0], [0], [1], [0, 0, 1, 1], [], []>} : vector<16x16xf32>, vector<16x64xf32>, vector<16x64xf32> -> vector<16x64xf32>
    %312 = arith.addf %272, %311 : vector<16x64xf32>
    %c0_276 = arith.constant 0 : index
    %c3_277 = arith.constant 3 : index
    %c0_278 = arith.constant 0 : index
    %c0_279 = arith.constant 0 : index
    %313 = vector.load %arg13[%c0_276, %c3_277, %c0_278, %c0_279] : memref<2x4x64x16xf32, #tpu.memory_space<vmem>>, vector<1x1x64x16xf32>
    %314 = vector.shape_cast %313 : vector<1x1x64x16xf32> to vector<64x16xf32>
    %cst_280 = arith.constant dense<0.000000e+00> : vector<16x16xf32>
    %315 = tpu.matmul %193, %314, %cst_280 {dimension_numbers = #tpu.dot_dimension_numbers<[1], [0], [0], [1], [0, 0, 1, 1], [], []>} : vector<16x64xf32>, vector<64x16xf32>, vector<16x16xf32> -> vector<16x16xf32>
    %c0_281 = arith.constant 0 : index
    %c3_282 = arith.constant 3 : index
    %c0_283 = arith.constant 0 : index
    %c0_284 = arith.constant 0 : index
    %316 = vector.load %arg16[%c0_281, %c3_282, %c0_283, %c0_284] : memref<2x4x1x16xf32, #tpu.memory_space<vmem>>, vector<1x1x1x16xf32>
    %317 = vector.shape_cast %316 : vector<1x1x1x16xf32> to vector<1x16xf32>
    %318 = vector.broadcast %317 : vector<1x16xf32> to vector<16x16xf32>
    %319 = arith.addf %315, %318 : vector<16x16xf32>
    %cst_285 = arith.constant 2.500000e-01 : f32
    %320 = vector.broadcast %cst_285 : f32 to vector<16x16xf32>
    %321 = arith.mulf %319, %320 : vector<16x16xf32>
    %c0_286 = arith.constant 0 : index
    %c3_287 = arith.constant 3 : index
    %c0_288 = arith.constant 0 : index
    %c0_289 = arith.constant 0 : index
    %322 = vector.load %arg14[%c0_286, %c3_287, %c0_288, %c0_289] : memref<2x4x64x16xf32, #tpu.memory_space<vmem>>, vector<1x1x64x16xf32>
    %323 = vector.shape_cast %322 : vector<1x1x64x16xf32> to vector<64x16xf32>
    %cst_290 = arith.constant dense<0.000000e+00> : vector<48x16xf32>
    %324 = tpu.matmul %0, %323, %cst_290 {dimension_numbers = #tpu.dot_dimension_numbers<[1], [0], [0], [1], [0, 0, 1, 1], [], []>} : vector<48x64xf32>, vector<64x16xf32>, vector<48x16xf32> -> vector<48x16xf32>
    %c0_291 = arith.constant 0 : index
    %c3_292 = arith.constant 3 : index
    %c0_293 = arith.constant 0 : index
    %c0_294 = arith.constant 0 : index
    %325 = vector.load %arg17[%c0_291, %c3_292, %c0_293, %c0_294] : memref<2x4x1x16xf32, #tpu.memory_space<vmem>>, vector<1x1x1x16xf32>
    %326 = vector.shape_cast %325 : vector<1x1x1x16xf32> to vector<1x16xf32>
    %327 = vector.broadcast %326 : vector<1x16xf32> to vector<48x16xf32>
    %328 = arith.addf %324, %327 : vector<48x16xf32>
    %c0_295 = arith.constant 0 : index
    %c3_296 = arith.constant 3 : index
    %c0_297 = arith.constant 0 : index
    %c0_298 = arith.constant 0 : index
    %329 = vector.load %arg15[%c0_295, %c3_296, %c0_297, %c0_298] : memref<2x4x64x16xf32, #tpu.memory_space<vmem>>, vector<1x1x64x16xf32>
    %330 = vector.shape_cast %329 : vector<1x1x64x16xf32> to vector<64x16xf32>
    %cst_299 = arith.constant dense<0.000000e+00> : vector<48x16xf32>
    %331 = tpu.matmul %0, %330, %cst_299 {dimension_numbers = #tpu.dot_dimension_numbers<[1], [0], [0], [1], [0, 0, 1, 1], [], []>} : vector<48x64xf32>, vector<64x16xf32>, vector<48x16xf32> -> vector<48x16xf32>
    %c0_300 = arith.constant 0 : index
    %c3_301 = arith.constant 3 : index
    %c0_302 = arith.constant 0 : index
    %c0_303 = arith.constant 0 : index
    %332 = vector.load %arg18[%c0_300, %c3_301, %c0_302, %c0_303] : memref<2x4x1x16xf32, #tpu.memory_space<vmem>>, vector<1x1x1x16xf32>
    %333 = vector.shape_cast %332 : vector<1x1x1x16xf32> to vector<1x16xf32>
    %334 = vector.broadcast %333 : vector<1x16xf32> to vector<48x16xf32>
    %335 = arith.addf %331, %334 : vector<48x16xf32>
    %cst_304 = arith.constant dense<0.000000e+00> : vector<16x48xf32>
    %336 = tpu.matmul %321, %328, %cst_304 {dimension_numbers = #tpu.dot_dimension_numbers<[1], [1], [0], [0], [0, 0, 1, 0], [], []>} : vector<16x16xf32>, vector<48x16xf32>, vector<16x48xf32> -> vector<16x48xf32>
    %337 = arith.addf %336, %3 : vector<16x48xf32>
    %cst_305 = arith.constant dense<0xFF800000> : vector<16xf32>
    %338 = vector.multi_reduction <maximumf>, %337, %cst_305 [1] : vector<16x48xf32> to vector<16xf32>
    %339 = vector.shape_cast %338 : vector<16xf32> to vector<16x1xf32>
    %340 = vector.broadcast %339 : vector<16x1xf32> to vector<16x48xf32>
    %341 = arith.subf %337, %340 : vector<16x48xf32>
    %342 = math.exp %341 : vector<16x48xf32>
    %cst_306 = arith.constant dense<0.000000e+00> : vector<16xf32>
    %343 = vector.multi_reduction <add>, %342, %cst_306 [1] : vector<16x48xf32> to vector<16xf32>
    %344 = vector.shape_cast %343 : vector<16xf32> to vector<16x1xf32>
    %345 = tpu.reciprocal %344 {approx = true} : vector<16x1xf32> -> vector<16x1xf32>
    %346 = vector.broadcast %345 : vector<16x1xf32> to vector<16x48xf32>
    %347 = arith.mulf %342, %346 : vector<16x48xf32>
    %cst_307 = arith.constant dense<0.000000e+00> : vector<16x16xf32>
    %348 = tpu.matmul %347, %335, %cst_307 {dimension_numbers = #tpu.dot_dimension_numbers<[1], [0], [0], [1], [0, 0, 1, 1], [], []>} : vector<16x48xf32>, vector<48x16xf32>, vector<16x16xf32> -> vector<16x16xf32>
    %c0_308 = arith.constant 0 : index
    %c3_309 = arith.constant 3 : index
    %c0_310 = arith.constant 0 : index
    %c0_311 = arith.constant 0 : index
    %349 = vector.load %arg19[%c0_308, %c3_309, %c0_310, %c0_311] : memref<2x4x16x64xf32, #tpu.memory_space<vmem>>, vector<1x1x16x64xf32>
    %350 = vector.shape_cast %349 : vector<1x1x16x64xf32> to vector<16x64xf32>
    %cst_312 = arith.constant dense<0.000000e+00> : vector<16x64xf32>
    %351 = tpu.matmul %348, %350, %cst_312 {dimension_numbers = #tpu.dot_dimension_numbers<[1], [0], [0], [1], [0, 0, 1, 1], [], []>} : vector<16x16xf32>, vector<16x64xf32>, vector<16x64xf32> -> vector<16x64xf32>
    %352 = arith.addf %312, %351 : vector<16x64xf32>
    %c0_313 = arith.constant 0 : index
    %c0_314 = arith.constant 0 : index
    %c0_315 = arith.constant 0 : index
    %353 = vector.load %arg20[%c0_313, %c0_314, %c0_315] : memref<2x1x64xf32, #tpu.memory_space<vmem>>, vector<1x1x64xf32>
    %354 = vector.shape_cast %353 : vector<1x1x64xf32> to vector<1x64xf32>
    %355 = vector.broadcast %354 : vector<1x64xf32> to vector<16x64xf32>
    %356 = arith.addf %352, %355 : vector<16x64xf32>
    %357 = arith.addf %193, %356 : vector<16x64xf32>
    %c0_316 = arith.constant 0 : index
    %c0_317 = arith.constant 0 : index
    %c0_318 = arith.constant 0 : index
    %358 = vector.load %arg23[%c0_316, %c0_317, %c0_318] : memref<2x1x64xf32, #tpu.memory_space<vmem>>, vector<1x1x64xf32>
    %359 = vector.shape_cast %358 : vector<1x1x64xf32> to vector<1x64xf32>
    %c0_319 = arith.constant 0 : index
    %c0_320 = arith.constant 0 : index
    %c0_321 = arith.constant 0 : index
    %360 = vector.load %arg24[%c0_319, %c0_320, %c0_321] : memref<2x1x64xf32, #tpu.memory_space<vmem>>, vector<1x1x64xf32>
    %361 = vector.shape_cast %360 : vector<1x1x64xf32> to vector<1x64xf32>
    %cst_322 = arith.constant dense<0.000000e+00> : vector<16xf32>
    %362 = vector.multi_reduction <add>, %357, %cst_322 [1] : vector<16x64xf32> to vector<16xf32>
    %363 = vector.shape_cast %362 : vector<16xf32> to vector<16x1xf32>
    %cst_323 = arith.constant 6.400000e+01 : f32
    %364 = vector.broadcast %cst_323 : f32 to vector<16x1xf32>
    %365 = arith.divf %363, %364 : vector<16x1xf32>
    %366 = vector.broadcast %365 : vector<16x1xf32> to vector<16x64xf32>
    %367 = arith.subf %357, %366 : vector<16x64xf32>
    %368 = arith.mulf %367, %367 : vector<16x64xf32>
    %cst_324 = arith.constant dense<0.000000e+00> : vector<16xf32>
    %369 = vector.multi_reduction <add>, %368, %cst_324 [1] : vector<16x64xf32> to vector<16xf32>
    %370 = vector.shape_cast %369 : vector<16xf32> to vector<16x1xf32>
    %cst_325 = arith.constant 6.400000e+01 : f32
    %371 = vector.broadcast %cst_325 : f32 to vector<16x1xf32>
    %372 = arith.divf %370, %371 : vector<16x1xf32>
    %373 = vector.broadcast %365 : vector<16x1xf32> to vector<16x64xf32>
    %374 = arith.subf %357, %373 : vector<16x64xf32>
    %cst_326 = arith.constant 9.99999974E-6 : f32
    %375 = vector.broadcast %cst_326 : f32 to vector<16x1xf32>
    %376 = arith.addf %372, %375 : vector<16x1xf32>
    %377 = math.rsqrt %376 : vector<16x1xf32>
    %378 = vector.broadcast %377 : vector<16x1xf32> to vector<16x64xf32>
    %379 = arith.mulf %374, %378 : vector<16x64xf32>
    %380 = vector.broadcast %359 : vector<1x64xf32> to vector<16x64xf32>
    %381 = arith.mulf %379, %380 : vector<16x64xf32>
    %382 = vector.broadcast %361 : vector<1x64xf32> to vector<16x64xf32>
    %383 = arith.addf %381, %382 : vector<16x64xf32>
    %c0_327 = arith.constant 0 : index
    %c0_328 = arith.constant 0 : index
    %c0_329 = arith.constant 0 : index
    %384 = vector.load %arg27[%c0_327, %c0_328, %c0_329] : memref<2x64x256xf32, #tpu.memory_space<vmem>>, vector<1x64x256xf32>
    %385 = vector.shape_cast %384 : vector<1x64x256xf32> to vector<64x256xf32>
    %cst_330 = arith.constant dense<0.000000e+00> : vector<16x256xf32>
    %386 = tpu.matmul %383, %385, %cst_330 {dimension_numbers = #tpu.dot_dimension_numbers<[1], [0], [0], [1], [0, 0, 1, 1], [], []>} : vector<16x64xf32>, vector<64x256xf32>, vector<16x256xf32> -> vector<16x256xf32>
    %c0_331 = arith.constant 0 : index
    %c0_332 = arith.constant 0 : index
    %c0_333 = arith.constant 0 : index
    %387 = vector.load %arg28[%c0_331, %c0_332, %c0_333] : memref<2x1x256xf32, #tpu.memory_space<vmem>>, vector<1x1x256xf32>
    %388 = vector.shape_cast %387 : vector<1x1x256xf32> to vector<1x256xf32>
    %389 = vector.broadcast %388 : vector<1x256xf32> to vector<16x256xf32>
    %390 = arith.addf %386, %389 : vector<16x256xf32>
    %cst_334 = arith.constant 0.000000e+00 : f32
    %391 = vector.broadcast %cst_334 : f32 to vector<16x256xf32>
    %392 = arith.maximumf %390, %391 : vector<16x256xf32>
    %c0_335 = arith.constant 0 : index
    %c0_336 = arith.constant 0 : index
    %c0_337 = arith.constant 0 : index
    %393 = vector.load %arg29[%c0_335, %c0_336, %c0_337] : memref<2x256x64xf32, #tpu.memory_space<vmem>>, vector<1x256x64xf32>
    %394 = vector.shape_cast %393 : vector<1x256x64xf32> to vector<256x64xf32>
    %cst_338 = arith.constant dense<0.000000e+00> : vector<16x64xf32>
    %395 = tpu.matmul %392, %394, %cst_338 {dimension_numbers = #tpu.dot_dimension_numbers<[1], [0], [0], [1], [0, 0, 1, 1], [], []>} : vector<16x256xf32>, vector<256x64xf32>, vector<16x64xf32> -> vector<16x64xf32>
    %c0_339 = arith.constant 0 : index
    %c0_340 = arith.constant 0 : index
    %c0_341 = arith.constant 0 : index
    %396 = vector.load %arg30[%c0_339, %c0_340, %c0_341] : memref<2x1x64xf32, #tpu.memory_space<vmem>>, vector<1x1x64xf32>
    %397 = vector.shape_cast %396 : vector<1x1x64xf32> to vector<1x64xf32>
    %398 = vector.broadcast %397 : vector<1x64xf32> to vector<16x64xf32>
    %399 = arith.addf %395, %398 : vector<16x64xf32>
    %400 = arith.addf %383, %399 : vector<16x64xf32>
    %c0_342 = arith.constant 0 : index
    %c0_343 = arith.constant 0 : index
    %c0_344 = arith.constant 0 : index
    %401 = vector.load %arg25[%c0_342, %c0_343, %c0_344] : memref<2x1x64xf32, #tpu.memory_space<vmem>>, vector<1x1x64xf32>
    %402 = vector.shape_cast %401 : vector<1x1x64xf32> to vector<1x64xf32>
    %c0_345 = arith.constant 0 : index
    %c0_346 = arith.constant 0 : index
    %c0_347 = arith.constant 0 : index
    %403 = vector.load %arg26[%c0_345, %c0_346, %c0_347] : memref<2x1x64xf32, #tpu.memory_space<vmem>>, vector<1x1x64xf32>
    %404 = vector.shape_cast %403 : vector<1x1x64xf32> to vector<1x64xf32>
    %cst_348 = arith.constant dense<0.000000e+00> : vector<16xf32>
    %405 = vector.multi_reduction <add>, %400, %cst_348 [1] : vector<16x64xf32> to vector<16xf32>
    %406 = vector.shape_cast %405 : vector<16xf32> to vector<16x1xf32>
    %cst_349 = arith.constant 6.400000e+01 : f32
    %407 = vector.broadcast %cst_349 : f32 to vector<16x1xf32>
    %408 = arith.divf %406, %407 : vector<16x1xf32>
    %409 = vector.broadcast %408 : vector<16x1xf32> to vector<16x64xf32>
    %410 = arith.subf %400, %409 : vector<16x64xf32>
    %411 = arith.mulf %410, %410 : vector<16x64xf32>
    %cst_350 = arith.constant dense<0.000000e+00> : vector<16xf32>
    %412 = vector.multi_reduction <add>, %411, %cst_350 [1] : vector<16x64xf32> to vector<16xf32>
    %413 = vector.shape_cast %412 : vector<16xf32> to vector<16x1xf32>
    %cst_351 = arith.constant 6.400000e+01 : f32
    %414 = vector.broadcast %cst_351 : f32 to vector<16x1xf32>
    %415 = arith.divf %413, %414 : vector<16x1xf32>
    %416 = vector.broadcast %408 : vector<16x1xf32> to vector<16x64xf32>
    %417 = arith.subf %400, %416 : vector<16x64xf32>
    %cst_352 = arith.constant 9.99999974E-6 : f32
    %418 = vector.broadcast %cst_352 : f32 to vector<16x1xf32>
    %419 = arith.addf %415, %418 : vector<16x1xf32>
    %420 = math.rsqrt %419 : vector<16x1xf32>
    %421 = vector.broadcast %420 : vector<16x1xf32> to vector<16x64xf32>
    %422 = arith.mulf %417, %421 : vector<16x64xf32>
    %423 = vector.broadcast %402 : vector<1x64xf32> to vector<16x64xf32>
    %424 = arith.mulf %422, %423 : vector<16x64xf32>
    %425 = vector.broadcast %404 : vector<1x64xf32> to vector<16x64xf32>
    %426 = arith.addf %424, %425 : vector<16x64xf32>
    %c1_353 = arith.constant 1 : index
    %c0_354 = arith.constant 0 : index
    %c0_355 = arith.constant 0 : index
    %c0_356 = arith.constant 0 : index
    %427 = vector.load %arg5[%c1_353, %c0_354, %c0_355, %c0_356] : memref<2x4x64x16xf32, #tpu.memory_space<vmem>>, vector<1x1x64x16xf32>
    %428 = vector.shape_cast %427 : vector<1x1x64x16xf32> to vector<64x16xf32>
    %cst_357 = arith.constant dense<0.000000e+00> : vector<16x16xf32>
    %429 = tpu.matmul %426, %428, %cst_357 {dimension_numbers = #tpu.dot_dimension_numbers<[1], [0], [0], [1], [0, 0, 1, 1], [], []>} : vector<16x64xf32>, vector<64x16xf32>, vector<16x16xf32> -> vector<16x16xf32>
    %c1_358 = arith.constant 1 : index
    %c0_359 = arith.constant 0 : index
    %c0_360 = arith.constant 0 : index
    %c0_361 = arith.constant 0 : index
    %430 = vector.load %arg8[%c1_358, %c0_359, %c0_360, %c0_361] : memref<2x4x1x16xf32, #tpu.memory_space<vmem>>, vector<1x1x1x16xf32>
    %431 = vector.shape_cast %430 : vector<1x1x1x16xf32> to vector<1x16xf32>
    %432 = vector.broadcast %431 : vector<1x16xf32> to vector<16x16xf32>
    %433 = arith.addf %429, %432 : vector<16x16xf32>
    %cst_362 = arith.constant 2.500000e-01 : f32
    %434 = vector.broadcast %cst_362 : f32 to vector<16x16xf32>
    %435 = arith.mulf %433, %434 : vector<16x16xf32>
    %c1_363 = arith.constant 1 : index
    %c0_364 = arith.constant 0 : index
    %c0_365 = arith.constant 0 : index
    %c0_366 = arith.constant 0 : index
    %436 = vector.load %arg6[%c1_363, %c0_364, %c0_365, %c0_366] : memref<2x4x64x16xf32, #tpu.memory_space<vmem>>, vector<1x1x64x16xf32>
    %437 = vector.shape_cast %436 : vector<1x1x64x16xf32> to vector<64x16xf32>
    %cst_367 = arith.constant dense<0.000000e+00> : vector<16x16xf32>
    %438 = tpu.matmul %426, %437, %cst_367 {dimension_numbers = #tpu.dot_dimension_numbers<[1], [0], [0], [1], [0, 0, 1, 1], [], []>} : vector<16x64xf32>, vector<64x16xf32>, vector<16x16xf32> -> vector<16x16xf32>
    %c1_368 = arith.constant 1 : index
    %c0_369 = arith.constant 0 : index
    %c0_370 = arith.constant 0 : index
    %c0_371 = arith.constant 0 : index
    %439 = vector.load %arg9[%c1_368, %c0_369, %c0_370, %c0_371] : memref<2x4x1x16xf32, #tpu.memory_space<vmem>>, vector<1x1x1x16xf32>
    %440 = vector.shape_cast %439 : vector<1x1x1x16xf32> to vector<1x16xf32>
    %441 = vector.broadcast %440 : vector<1x16xf32> to vector<16x16xf32>
    %442 = arith.addf %438, %441 : vector<16x16xf32>
    %c1_372 = arith.constant 1 : index
    %c0_373 = arith.constant 0 : index
    %c0_374 = arith.constant 0 : index
    %c0_375 = arith.constant 0 : index
    %443 = vector.load %arg7[%c1_372, %c0_373, %c0_374, %c0_375] : memref<2x4x64x16xf32, #tpu.memory_space<vmem>>, vector<1x1x64x16xf32>
    %444 = vector.shape_cast %443 : vector<1x1x64x16xf32> to vector<64x16xf32>
    %cst_376 = arith.constant dense<0.000000e+00> : vector<16x16xf32>
    %445 = tpu.matmul %426, %444, %cst_376 {dimension_numbers = #tpu.dot_dimension_numbers<[1], [0], [0], [1], [0, 0, 1, 1], [], []>} : vector<16x64xf32>, vector<64x16xf32>, vector<16x16xf32> -> vector<16x16xf32>
    %c1_377 = arith.constant 1 : index
    %c0_378 = arith.constant 0 : index
    %c0_379 = arith.constant 0 : index
    %c0_380 = arith.constant 0 : index
    %446 = vector.load %arg10[%c1_377, %c0_378, %c0_379, %c0_380] : memref<2x4x1x16xf32, #tpu.memory_space<vmem>>, vector<1x1x1x16xf32>
    %447 = vector.shape_cast %446 : vector<1x1x1x16xf32> to vector<1x16xf32>
    %448 = vector.broadcast %447 : vector<1x16xf32> to vector<16x16xf32>
    %449 = arith.addf %445, %448 : vector<16x16xf32>
    %cst_381 = arith.constant dense<0.000000e+00> : vector<16x16xf32>
    %450 = tpu.matmul %435, %442, %cst_381 {dimension_numbers = #tpu.dot_dimension_numbers<[1], [1], [0], [0], [0, 0, 1, 0], [], []>} : vector<16x16xf32>, vector<16x16xf32>, vector<16x16xf32> -> vector<16x16xf32>
    %451 = arith.addf %450, %2 : vector<16x16xf32>
    %cst_382 = arith.constant dense<0xFF800000> : vector<16xf32>
    %452 = vector.multi_reduction <maximumf>, %451, %cst_382 [1] : vector<16x16xf32> to vector<16xf32>
    %453 = vector.shape_cast %452 : vector<16xf32> to vector<16x1xf32>
    %454 = vector.broadcast %453 : vector<16x1xf32> to vector<16x16xf32>
    %455 = arith.subf %451, %454 : vector<16x16xf32>
    %456 = math.exp %455 : vector<16x16xf32>
    %cst_383 = arith.constant dense<0.000000e+00> : vector<16xf32>
    %457 = vector.multi_reduction <add>, %456, %cst_383 [1] : vector<16x16xf32> to vector<16xf32>
    %458 = vector.shape_cast %457 : vector<16xf32> to vector<16x1xf32>
    %459 = tpu.reciprocal %458 {approx = true} : vector<16x1xf32> -> vector<16x1xf32>
    %460 = vector.broadcast %459 : vector<16x1xf32> to vector<16x16xf32>
    %461 = arith.mulf %456, %460 : vector<16x16xf32>
    %cst_384 = arith.constant dense<0.000000e+00> : vector<16x16xf32>
    %462 = tpu.matmul %461, %449, %cst_384 {dimension_numbers = #tpu.dot_dimension_numbers<[1], [0], [0], [1], [0, 0, 1, 1], [], []>} : vector<16x16xf32>, vector<16x16xf32>, vector<16x16xf32> -> vector<16x16xf32>
    %c1_385 = arith.constant 1 : index
    %c0_386 = arith.constant 0 : index
    %c0_387 = arith.constant 0 : index
    %c0_388 = arith.constant 0 : index
    %463 = vector.load %arg11[%c1_385, %c0_386, %c0_387, %c0_388] : memref<2x4x16x64xf32, #tpu.memory_space<vmem>>, vector<1x1x16x64xf32>
    %464 = vector.shape_cast %463 : vector<1x1x16x64xf32> to vector<16x64xf32>
    %cst_389 = arith.constant dense<0.000000e+00> : vector<16x64xf32>
    %465 = tpu.matmul %462, %464, %cst_389 {dimension_numbers = #tpu.dot_dimension_numbers<[1], [0], [0], [1], [0, 0, 1, 1], [], []>} : vector<16x16xf32>, vector<16x64xf32>, vector<16x64xf32> -> vector<16x64xf32>
    %c1_390 = arith.constant 1 : index
    %c1_391 = arith.constant 1 : index
    %c0_392 = arith.constant 0 : index
    %c0_393 = arith.constant 0 : index
    %466 = vector.load %arg5[%c1_390, %c1_391, %c0_392, %c0_393] : memref<2x4x64x16xf32, #tpu.memory_space<vmem>>, vector<1x1x64x16xf32>
    %467 = vector.shape_cast %466 : vector<1x1x64x16xf32> to vector<64x16xf32>
    %cst_394 = arith.constant dense<0.000000e+00> : vector<16x16xf32>
    %468 = tpu.matmul %426, %467, %cst_394 {dimension_numbers = #tpu.dot_dimension_numbers<[1], [0], [0], [1], [0, 0, 1, 1], [], []>} : vector<16x64xf32>, vector<64x16xf32>, vector<16x16xf32> -> vector<16x16xf32>
    %c1_395 = arith.constant 1 : index
    %c1_396 = arith.constant 1 : index
    %c0_397 = arith.constant 0 : index
    %c0_398 = arith.constant 0 : index
    %469 = vector.load %arg8[%c1_395, %c1_396, %c0_397, %c0_398] : memref<2x4x1x16xf32, #tpu.memory_space<vmem>>, vector<1x1x1x16xf32>
    %470 = vector.shape_cast %469 : vector<1x1x1x16xf32> to vector<1x16xf32>
    %471 = vector.broadcast %470 : vector<1x16xf32> to vector<16x16xf32>
    %472 = arith.addf %468, %471 : vector<16x16xf32>
    %cst_399 = arith.constant 2.500000e-01 : f32
    %473 = vector.broadcast %cst_399 : f32 to vector<16x16xf32>
    %474 = arith.mulf %472, %473 : vector<16x16xf32>
    %c1_400 = arith.constant 1 : index
    %c1_401 = arith.constant 1 : index
    %c0_402 = arith.constant 0 : index
    %c0_403 = arith.constant 0 : index
    %475 = vector.load %arg6[%c1_400, %c1_401, %c0_402, %c0_403] : memref<2x4x64x16xf32, #tpu.memory_space<vmem>>, vector<1x1x64x16xf32>
    %476 = vector.shape_cast %475 : vector<1x1x64x16xf32> to vector<64x16xf32>
    %cst_404 = arith.constant dense<0.000000e+00> : vector<16x16xf32>
    %477 = tpu.matmul %426, %476, %cst_404 {dimension_numbers = #tpu.dot_dimension_numbers<[1], [0], [0], [1], [0, 0, 1, 1], [], []>} : vector<16x64xf32>, vector<64x16xf32>, vector<16x16xf32> -> vector<16x16xf32>
    %c1_405 = arith.constant 1 : index
    %c1_406 = arith.constant 1 : index
    %c0_407 = arith.constant 0 : index
    %c0_408 = arith.constant 0 : index
    %478 = vector.load %arg9[%c1_405, %c1_406, %c0_407, %c0_408] : memref<2x4x1x16xf32, #tpu.memory_space<vmem>>, vector<1x1x1x16xf32>
    %479 = vector.shape_cast %478 : vector<1x1x1x16xf32> to vector<1x16xf32>
    %480 = vector.broadcast %479 : vector<1x16xf32> to vector<16x16xf32>
    %481 = arith.addf %477, %480 : vector<16x16xf32>
    %c1_409 = arith.constant 1 : index
    %c1_410 = arith.constant 1 : index
    %c0_411 = arith.constant 0 : index
    %c0_412 = arith.constant 0 : index
    %482 = vector.load %arg7[%c1_409, %c1_410, %c0_411, %c0_412] : memref<2x4x64x16xf32, #tpu.memory_space<vmem>>, vector<1x1x64x16xf32>
    %483 = vector.shape_cast %482 : vector<1x1x64x16xf32> to vector<64x16xf32>
    %cst_413 = arith.constant dense<0.000000e+00> : vector<16x16xf32>
    %484 = tpu.matmul %426, %483, %cst_413 {dimension_numbers = #tpu.dot_dimension_numbers<[1], [0], [0], [1], [0, 0, 1, 1], [], []>} : vector<16x64xf32>, vector<64x16xf32>, vector<16x16xf32> -> vector<16x16xf32>
    %c1_414 = arith.constant 1 : index
    %c1_415 = arith.constant 1 : index
    %c0_416 = arith.constant 0 : index
    %c0_417 = arith.constant 0 : index
    %485 = vector.load %arg10[%c1_414, %c1_415, %c0_416, %c0_417] : memref<2x4x1x16xf32, #tpu.memory_space<vmem>>, vector<1x1x1x16xf32>
    %486 = vector.shape_cast %485 : vector<1x1x1x16xf32> to vector<1x16xf32>
    %487 = vector.broadcast %486 : vector<1x16xf32> to vector<16x16xf32>
    %488 = arith.addf %484, %487 : vector<16x16xf32>
    %cst_418 = arith.constant dense<0.000000e+00> : vector<16x16xf32>
    %489 = tpu.matmul %474, %481, %cst_418 {dimension_numbers = #tpu.dot_dimension_numbers<[1], [1], [0], [0], [0, 0, 1, 0], [], []>} : vector<16x16xf32>, vector<16x16xf32>, vector<16x16xf32> -> vector<16x16xf32>
    %490 = arith.addf %489, %2 : vector<16x16xf32>
    %cst_419 = arith.constant dense<0xFF800000> : vector<16xf32>
    %491 = vector.multi_reduction <maximumf>, %490, %cst_419 [1] : vector<16x16xf32> to vector<16xf32>
    %492 = vector.shape_cast %491 : vector<16xf32> to vector<16x1xf32>
    %493 = vector.broadcast %492 : vector<16x1xf32> to vector<16x16xf32>
    %494 = arith.subf %490, %493 : vector<16x16xf32>
    %495 = math.exp %494 : vector<16x16xf32>
    %cst_420 = arith.constant dense<0.000000e+00> : vector<16xf32>
    %496 = vector.multi_reduction <add>, %495, %cst_420 [1] : vector<16x16xf32> to vector<16xf32>
    %497 = vector.shape_cast %496 : vector<16xf32> to vector<16x1xf32>
    %498 = tpu.reciprocal %497 {approx = true} : vector<16x1xf32> -> vector<16x1xf32>
    %499 = vector.broadcast %498 : vector<16x1xf32> to vector<16x16xf32>
    %500 = arith.mulf %495, %499 : vector<16x16xf32>
    %cst_421 = arith.constant dense<0.000000e+00> : vector<16x16xf32>
    %501 = tpu.matmul %500, %488, %cst_421 {dimension_numbers = #tpu.dot_dimension_numbers<[1], [0], [0], [1], [0, 0, 1, 1], [], []>} : vector<16x16xf32>, vector<16x16xf32>, vector<16x16xf32> -> vector<16x16xf32>
    %c1_422 = arith.constant 1 : index
    %c1_423 = arith.constant 1 : index
    %c0_424 = arith.constant 0 : index
    %c0_425 = arith.constant 0 : index
    %502 = vector.load %arg11[%c1_422, %c1_423, %c0_424, %c0_425] : memref<2x4x16x64xf32, #tpu.memory_space<vmem>>, vector<1x1x16x64xf32>
    %503 = vector.shape_cast %502 : vector<1x1x16x64xf32> to vector<16x64xf32>
    %cst_426 = arith.constant dense<0.000000e+00> : vector<16x64xf32>
    %504 = tpu.matmul %501, %503, %cst_426 {dimension_numbers = #tpu.dot_dimension_numbers<[1], [0], [0], [1], [0, 0, 1, 1], [], []>} : vector<16x16xf32>, vector<16x64xf32>, vector<16x64xf32> -> vector<16x64xf32>
    %505 = arith.addf %465, %504 : vector<16x64xf32>
    %c1_427 = arith.constant 1 : index
    %c2_428 = arith.constant 2 : index
    %c0_429 = arith.constant 0 : index
    %c0_430 = arith.constant 0 : index
    %506 = vector.load %arg5[%c1_427, %c2_428, %c0_429, %c0_430] : memref<2x4x64x16xf32, #tpu.memory_space<vmem>>, vector<1x1x64x16xf32>
    %507 = vector.shape_cast %506 : vector<1x1x64x16xf32> to vector<64x16xf32>
    %cst_431 = arith.constant dense<0.000000e+00> : vector<16x16xf32>
    %508 = tpu.matmul %426, %507, %cst_431 {dimension_numbers = #tpu.dot_dimension_numbers<[1], [0], [0], [1], [0, 0, 1, 1], [], []>} : vector<16x64xf32>, vector<64x16xf32>, vector<16x16xf32> -> vector<16x16xf32>
    %c1_432 = arith.constant 1 : index
    %c2_433 = arith.constant 2 : index
    %c0_434 = arith.constant 0 : index
    %c0_435 = arith.constant 0 : index
    %509 = vector.load %arg8[%c1_432, %c2_433, %c0_434, %c0_435] : memref<2x4x1x16xf32, #tpu.memory_space<vmem>>, vector<1x1x1x16xf32>
    %510 = vector.shape_cast %509 : vector<1x1x1x16xf32> to vector<1x16xf32>
    %511 = vector.broadcast %510 : vector<1x16xf32> to vector<16x16xf32>
    %512 = arith.addf %508, %511 : vector<16x16xf32>
    %cst_436 = arith.constant 2.500000e-01 : f32
    %513 = vector.broadcast %cst_436 : f32 to vector<16x16xf32>
    %514 = arith.mulf %512, %513 : vector<16x16xf32>
    %c1_437 = arith.constant 1 : index
    %c2_438 = arith.constant 2 : index
    %c0_439 = arith.constant 0 : index
    %c0_440 = arith.constant 0 : index
    %515 = vector.load %arg6[%c1_437, %c2_438, %c0_439, %c0_440] : memref<2x4x64x16xf32, #tpu.memory_space<vmem>>, vector<1x1x64x16xf32>
    %516 = vector.shape_cast %515 : vector<1x1x64x16xf32> to vector<64x16xf32>
    %cst_441 = arith.constant dense<0.000000e+00> : vector<16x16xf32>
    %517 = tpu.matmul %426, %516, %cst_441 {dimension_numbers = #tpu.dot_dimension_numbers<[1], [0], [0], [1], [0, 0, 1, 1], [], []>} : vector<16x64xf32>, vector<64x16xf32>, vector<16x16xf32> -> vector<16x16xf32>
    %c1_442 = arith.constant 1 : index
    %c2_443 = arith.constant 2 : index
    %c0_444 = arith.constant 0 : index
    %c0_445 = arith.constant 0 : index
    %518 = vector.load %arg9[%c1_442, %c2_443, %c0_444, %c0_445] : memref<2x4x1x16xf32, #tpu.memory_space<vmem>>, vector<1x1x1x16xf32>
    %519 = vector.shape_cast %518 : vector<1x1x1x16xf32> to vector<1x16xf32>
    %520 = vector.broadcast %519 : vector<1x16xf32> to vector<16x16xf32>
    %521 = arith.addf %517, %520 : vector<16x16xf32>
    %c1_446 = arith.constant 1 : index
    %c2_447 = arith.constant 2 : index
    %c0_448 = arith.constant 0 : index
    %c0_449 = arith.constant 0 : index
    %522 = vector.load %arg7[%c1_446, %c2_447, %c0_448, %c0_449] : memref<2x4x64x16xf32, #tpu.memory_space<vmem>>, vector<1x1x64x16xf32>
    %523 = vector.shape_cast %522 : vector<1x1x64x16xf32> to vector<64x16xf32>
    %cst_450 = arith.constant dense<0.000000e+00> : vector<16x16xf32>
    %524 = tpu.matmul %426, %523, %cst_450 {dimension_numbers = #tpu.dot_dimension_numbers<[1], [0], [0], [1], [0, 0, 1, 1], [], []>} : vector<16x64xf32>, vector<64x16xf32>, vector<16x16xf32> -> vector<16x16xf32>
    %c1_451 = arith.constant 1 : index
    %c2_452 = arith.constant 2 : index
    %c0_453 = arith.constant 0 : index
    %c0_454 = arith.constant 0 : index
    %525 = vector.load %arg10[%c1_451, %c2_452, %c0_453, %c0_454] : memref<2x4x1x16xf32, #tpu.memory_space<vmem>>, vector<1x1x1x16xf32>
    %526 = vector.shape_cast %525 : vector<1x1x1x16xf32> to vector<1x16xf32>
    %527 = vector.broadcast %526 : vector<1x16xf32> to vector<16x16xf32>
    %528 = arith.addf %524, %527 : vector<16x16xf32>
    %cst_455 = arith.constant dense<0.000000e+00> : vector<16x16xf32>
    %529 = tpu.matmul %514, %521, %cst_455 {dimension_numbers = #tpu.dot_dimension_numbers<[1], [1], [0], [0], [0, 0, 1, 0], [], []>} : vector<16x16xf32>, vector<16x16xf32>, vector<16x16xf32> -> vector<16x16xf32>
    %530 = arith.addf %529, %2 : vector<16x16xf32>
    %cst_456 = arith.constant dense<0xFF800000> : vector<16xf32>
    %531 = vector.multi_reduction <maximumf>, %530, %cst_456 [1] : vector<16x16xf32> to vector<16xf32>
    %532 = vector.shape_cast %531 : vector<16xf32> to vector<16x1xf32>
    %533 = vector.broadcast %532 : vector<16x1xf32> to vector<16x16xf32>
    %534 = arith.subf %530, %533 : vector<16x16xf32>
    %535 = math.exp %534 : vector<16x16xf32>
    %cst_457 = arith.constant dense<0.000000e+00> : vector<16xf32>
    %536 = vector.multi_reduction <add>, %535, %cst_457 [1] : vector<16x16xf32> to vector<16xf32>
    %537 = vector.shape_cast %536 : vector<16xf32> to vector<16x1xf32>
    %538 = tpu.reciprocal %537 {approx = true} : vector<16x1xf32> -> vector<16x1xf32>
    %539 = vector.broadcast %538 : vector<16x1xf32> to vector<16x16xf32>
    %540 = arith.mulf %535, %539 : vector<16x16xf32>
    %cst_458 = arith.constant dense<0.000000e+00> : vector<16x16xf32>
    %541 = tpu.matmul %540, %528, %cst_458 {dimension_numbers = #tpu.dot_dimension_numbers<[1], [0], [0], [1], [0, 0, 1, 1], [], []>} : vector<16x16xf32>, vector<16x16xf32>, vector<16x16xf32> -> vector<16x16xf32>
    %c1_459 = arith.constant 1 : index
    %c2_460 = arith.constant 2 : index
    %c0_461 = arith.constant 0 : index
    %c0_462 = arith.constant 0 : index
    %542 = vector.load %arg11[%c1_459, %c2_460, %c0_461, %c0_462] : memref<2x4x16x64xf32, #tpu.memory_space<vmem>>, vector<1x1x16x64xf32>
    %543 = vector.shape_cast %542 : vector<1x1x16x64xf32> to vector<16x64xf32>
    %cst_463 = arith.constant dense<0.000000e+00> : vector<16x64xf32>
    %544 = tpu.matmul %541, %543, %cst_463 {dimension_numbers = #tpu.dot_dimension_numbers<[1], [0], [0], [1], [0, 0, 1, 1], [], []>} : vector<16x16xf32>, vector<16x64xf32>, vector<16x64xf32> -> vector<16x64xf32>
    %545 = arith.addf %505, %544 : vector<16x64xf32>
    %c1_464 = arith.constant 1 : index
    %c3_465 = arith.constant 3 : index
    %c0_466 = arith.constant 0 : index
    %c0_467 = arith.constant 0 : index
    %546 = vector.load %arg5[%c1_464, %c3_465, %c0_466, %c0_467] : memref<2x4x64x16xf32, #tpu.memory_space<vmem>>, vector<1x1x64x16xf32>
    %547 = vector.shape_cast %546 : vector<1x1x64x16xf32> to vector<64x16xf32>
    %cst_468 = arith.constant dense<0.000000e+00> : vector<16x16xf32>
    %548 = tpu.matmul %426, %547, %cst_468 {dimension_numbers = #tpu.dot_dimension_numbers<[1], [0], [0], [1], [0, 0, 1, 1], [], []>} : vector<16x64xf32>, vector<64x16xf32>, vector<16x16xf32> -> vector<16x16xf32>
    %c1_469 = arith.constant 1 : index
    %c3_470 = arith.constant 3 : index
    %c0_471 = arith.constant 0 : index
    %c0_472 = arith.constant 0 : index
    %549 = vector.load %arg8[%c1_469, %c3_470, %c0_471, %c0_472] : memref<2x4x1x16xf32, #tpu.memory_space<vmem>>, vector<1x1x1x16xf32>
    %550 = vector.shape_cast %549 : vector<1x1x1x16xf32> to vector<1x16xf32>
    %551 = vector.broadcast %550 : vector<1x16xf32> to vector<16x16xf32>
    %552 = arith.addf %548, %551 : vector<16x16xf32>
    %cst_473 = arith.constant 2.500000e-01 : f32
    %553 = vector.broadcast %cst_473 : f32 to vector<16x16xf32>
    %554 = arith.mulf %552, %553 : vector<16x16xf32>
    %c1_474 = arith.constant 1 : index
    %c3_475 = arith.constant 3 : index
    %c0_476 = arith.constant 0 : index
    %c0_477 = arith.constant 0 : index
    %555 = vector.load %arg6[%c1_474, %c3_475, %c0_476, %c0_477] : memref<2x4x64x16xf32, #tpu.memory_space<vmem>>, vector<1x1x64x16xf32>
    %556 = vector.shape_cast %555 : vector<1x1x64x16xf32> to vector<64x16xf32>
    %cst_478 = arith.constant dense<0.000000e+00> : vector<16x16xf32>
    %557 = tpu.matmul %426, %556, %cst_478 {dimension_numbers = #tpu.dot_dimension_numbers<[1], [0], [0], [1], [0, 0, 1, 1], [], []>} : vector<16x64xf32>, vector<64x16xf32>, vector<16x16xf32> -> vector<16x16xf32>
    %c1_479 = arith.constant 1 : index
    %c3_480 = arith.constant 3 : index
    %c0_481 = arith.constant 0 : index
    %c0_482 = arith.constant 0 : index
    %558 = vector.load %arg9[%c1_479, %c3_480, %c0_481, %c0_482] : memref<2x4x1x16xf32, #tpu.memory_space<vmem>>, vector<1x1x1x16xf32>
    %559 = vector.shape_cast %558 : vector<1x1x1x16xf32> to vector<1x16xf32>
    %560 = vector.broadcast %559 : vector<1x16xf32> to vector<16x16xf32>
    %561 = arith.addf %557, %560 : vector<16x16xf32>
    %c1_483 = arith.constant 1 : index
    %c3_484 = arith.constant 3 : index
    %c0_485 = arith.constant 0 : index
    %c0_486 = arith.constant 0 : index
    %562 = vector.load %arg7[%c1_483, %c3_484, %c0_485, %c0_486] : memref<2x4x64x16xf32, #tpu.memory_space<vmem>>, vector<1x1x64x16xf32>
    %563 = vector.shape_cast %562 : vector<1x1x64x16xf32> to vector<64x16xf32>
    %cst_487 = arith.constant dense<0.000000e+00> : vector<16x16xf32>
    %564 = tpu.matmul %426, %563, %cst_487 {dimension_numbers = #tpu.dot_dimension_numbers<[1], [0], [0], [1], [0, 0, 1, 1], [], []>} : vector<16x64xf32>, vector<64x16xf32>, vector<16x16xf32> -> vector<16x16xf32>
    %c1_488 = arith.constant 1 : index
    %c3_489 = arith.constant 3 : index
    %c0_490 = arith.constant 0 : index
    %c0_491 = arith.constant 0 : index
    %565 = vector.load %arg10[%c1_488, %c3_489, %c0_490, %c0_491] : memref<2x4x1x16xf32, #tpu.memory_space<vmem>>, vector<1x1x1x16xf32>
    %566 = vector.shape_cast %565 : vector<1x1x1x16xf32> to vector<1x16xf32>
    %567 = vector.broadcast %566 : vector<1x16xf32> to vector<16x16xf32>
    %568 = arith.addf %564, %567 : vector<16x16xf32>
    %cst_492 = arith.constant dense<0.000000e+00> : vector<16x16xf32>
    %569 = tpu.matmul %554, %561, %cst_492 {dimension_numbers = #tpu.dot_dimension_numbers<[1], [1], [0], [0], [0, 0, 1, 0], [], []>} : vector<16x16xf32>, vector<16x16xf32>, vector<16x16xf32> -> vector<16x16xf32>
    %570 = arith.addf %569, %2 : vector<16x16xf32>
    %cst_493 = arith.constant dense<0xFF800000> : vector<16xf32>
    %571 = vector.multi_reduction <maximumf>, %570, %cst_493 [1] : vector<16x16xf32> to vector<16xf32>
    %572 = vector.shape_cast %571 : vector<16xf32> to vector<16x1xf32>
    %573 = vector.broadcast %572 : vector<16x1xf32> to vector<16x16xf32>
    %574 = arith.subf %570, %573 : vector<16x16xf32>
    %575 = math.exp %574 : vector<16x16xf32>
    %cst_494 = arith.constant dense<0.000000e+00> : vector<16xf32>
    %576 = vector.multi_reduction <add>, %575, %cst_494 [1] : vector<16x16xf32> to vector<16xf32>
    %577 = vector.shape_cast %576 : vector<16xf32> to vector<16x1xf32>
    %578 = tpu.reciprocal %577 {approx = true} : vector<16x1xf32> -> vector<16x1xf32>
    %579 = vector.broadcast %578 : vector<16x1xf32> to vector<16x16xf32>
    %580 = arith.mulf %575, %579 : vector<16x16xf32>
    %cst_495 = arith.constant dense<0.000000e+00> : vector<16x16xf32>
    %581 = tpu.matmul %580, %568, %cst_495 {dimension_numbers = #tpu.dot_dimension_numbers<[1], [0], [0], [1], [0, 0, 1, 1], [], []>} : vector<16x16xf32>, vector<16x16xf32>, vector<16x16xf32> -> vector<16x16xf32>
    %c1_496 = arith.constant 1 : index
    %c3_497 = arith.constant 3 : index
    %c0_498 = arith.constant 0 : index
    %c0_499 = arith.constant 0 : index
    %582 = vector.load %arg11[%c1_496, %c3_497, %c0_498, %c0_499] : memref<2x4x16x64xf32, #tpu.memory_space<vmem>>, vector<1x1x16x64xf32>
    %583 = vector.shape_cast %582 : vector<1x1x16x64xf32> to vector<16x64xf32>
    %cst_500 = arith.constant dense<0.000000e+00> : vector<16x64xf32>
    %584 = tpu.matmul %581, %583, %cst_500 {dimension_numbers = #tpu.dot_dimension_numbers<[1], [0], [0], [1], [0, 0, 1, 1], [], []>} : vector<16x16xf32>, vector<16x64xf32>, vector<16x64xf32> -> vector<16x64xf32>
    %585 = arith.addf %545, %584 : vector<16x64xf32>
    %c1_501 = arith.constant 1 : index
    %c0_502 = arith.constant 0 : index
    %c0_503 = arith.constant 0 : index
    %586 = vector.load %arg12[%c1_501, %c0_502, %c0_503] : memref<2x1x64xf32, #tpu.memory_space<vmem>>, vector<1x1x64xf32>
    %587 = vector.shape_cast %586 : vector<1x1x64xf32> to vector<1x64xf32>
    %588 = vector.broadcast %587 : vector<1x64xf32> to vector<16x64xf32>
    %589 = arith.addf %585, %588 : vector<16x64xf32>
    %590 = arith.addf %426, %589 : vector<16x64xf32>
    %c1_504 = arith.constant 1 : index
    %c0_505 = arith.constant 0 : index
    %c0_506 = arith.constant 0 : index
    %591 = vector.load %arg21[%c1_504, %c0_505, %c0_506] : memref<2x1x64xf32, #tpu.memory_space<vmem>>, vector<1x1x64xf32>
    %592 = vector.shape_cast %591 : vector<1x1x64xf32> to vector<1x64xf32>
    %c1_507 = arith.constant 1 : index
    %c0_508 = arith.constant 0 : index
    %c0_509 = arith.constant 0 : index
    %593 = vector.load %arg22[%c1_507, %c0_508, %c0_509] : memref<2x1x64xf32, #tpu.memory_space<vmem>>, vector<1x1x64xf32>
    %594 = vector.shape_cast %593 : vector<1x1x64xf32> to vector<1x64xf32>
    %cst_510 = arith.constant dense<0.000000e+00> : vector<16xf32>
    %595 = vector.multi_reduction <add>, %590, %cst_510 [1] : vector<16x64xf32> to vector<16xf32>
    %596 = vector.shape_cast %595 : vector<16xf32> to vector<16x1xf32>
    %cst_511 = arith.constant 6.400000e+01 : f32
    %597 = vector.broadcast %cst_511 : f32 to vector<16x1xf32>
    %598 = arith.divf %596, %597 : vector<16x1xf32>
    %599 = vector.broadcast %598 : vector<16x1xf32> to vector<16x64xf32>
    %600 = arith.subf %590, %599 : vector<16x64xf32>
    %601 = arith.mulf %600, %600 : vector<16x64xf32>
    %cst_512 = arith.constant dense<0.000000e+00> : vector<16xf32>
    %602 = vector.multi_reduction <add>, %601, %cst_512 [1] : vector<16x64xf32> to vector<16xf32>
    %603 = vector.shape_cast %602 : vector<16xf32> to vector<16x1xf32>
    %cst_513 = arith.constant 6.400000e+01 : f32
    %604 = vector.broadcast %cst_513 : f32 to vector<16x1xf32>
    %605 = arith.divf %603, %604 : vector<16x1xf32>
    %606 = vector.broadcast %598 : vector<16x1xf32> to vector<16x64xf32>
    %607 = arith.subf %590, %606 : vector<16x64xf32>
    %cst_514 = arith.constant 9.99999974E-6 : f32
    %608 = vector.broadcast %cst_514 : f32 to vector<16x1xf32>
    %609 = arith.addf %605, %608 : vector<16x1xf32>
    %610 = math.rsqrt %609 : vector<16x1xf32>
    %611 = vector.broadcast %610 : vector<16x1xf32> to vector<16x64xf32>
    %612 = arith.mulf %607, %611 : vector<16x64xf32>
    %613 = vector.broadcast %592 : vector<1x64xf32> to vector<16x64xf32>
    %614 = arith.mulf %612, %613 : vector<16x64xf32>
    %615 = vector.broadcast %594 : vector<1x64xf32> to vector<16x64xf32>
    %616 = arith.addf %614, %615 : vector<16x64xf32>
    %c1_515 = arith.constant 1 : index
    %c0_516 = arith.constant 0 : index
    %c0_517 = arith.constant 0 : index
    %c0_518 = arith.constant 0 : index
    %617 = vector.load %arg13[%c1_515, %c0_516, %c0_517, %c0_518] : memref<2x4x64x16xf32, #tpu.memory_space<vmem>>, vector<1x1x64x16xf32>
    %618 = vector.shape_cast %617 : vector<1x1x64x16xf32> to vector<64x16xf32>
    %cst_519 = arith.constant dense<0.000000e+00> : vector<16x16xf32>
    %619 = tpu.matmul %616, %618, %cst_519 {dimension_numbers = #tpu.dot_dimension_numbers<[1], [0], [0], [1], [0, 0, 1, 1], [], []>} : vector<16x64xf32>, vector<64x16xf32>, vector<16x16xf32> -> vector<16x16xf32>
    %c1_520 = arith.constant 1 : index
    %c0_521 = arith.constant 0 : index
    %c0_522 = arith.constant 0 : index
    %c0_523 = arith.constant 0 : index
    %620 = vector.load %arg16[%c1_520, %c0_521, %c0_522, %c0_523] : memref<2x4x1x16xf32, #tpu.memory_space<vmem>>, vector<1x1x1x16xf32>
    %621 = vector.shape_cast %620 : vector<1x1x1x16xf32> to vector<1x16xf32>
    %622 = vector.broadcast %621 : vector<1x16xf32> to vector<16x16xf32>
    %623 = arith.addf %619, %622 : vector<16x16xf32>
    %cst_524 = arith.constant 2.500000e-01 : f32
    %624 = vector.broadcast %cst_524 : f32 to vector<16x16xf32>
    %625 = arith.mulf %623, %624 : vector<16x16xf32>
    %c1_525 = arith.constant 1 : index
    %c0_526 = arith.constant 0 : index
    %c0_527 = arith.constant 0 : index
    %c0_528 = arith.constant 0 : index
    %626 = vector.load %arg14[%c1_525, %c0_526, %c0_527, %c0_528] : memref<2x4x64x16xf32, #tpu.memory_space<vmem>>, vector<1x1x64x16xf32>
    %627 = vector.shape_cast %626 : vector<1x1x64x16xf32> to vector<64x16xf32>
    %cst_529 = arith.constant dense<0.000000e+00> : vector<48x16xf32>
    %628 = tpu.matmul %0, %627, %cst_529 {dimension_numbers = #tpu.dot_dimension_numbers<[1], [0], [0], [1], [0, 0, 1, 1], [], []>} : vector<48x64xf32>, vector<64x16xf32>, vector<48x16xf32> -> vector<48x16xf32>
    %c1_530 = arith.constant 1 : index
    %c0_531 = arith.constant 0 : index
    %c0_532 = arith.constant 0 : index
    %c0_533 = arith.constant 0 : index
    %629 = vector.load %arg17[%c1_530, %c0_531, %c0_532, %c0_533] : memref<2x4x1x16xf32, #tpu.memory_space<vmem>>, vector<1x1x1x16xf32>
    %630 = vector.shape_cast %629 : vector<1x1x1x16xf32> to vector<1x16xf32>
    %631 = vector.broadcast %630 : vector<1x16xf32> to vector<48x16xf32>
    %632 = arith.addf %628, %631 : vector<48x16xf32>
    %c1_534 = arith.constant 1 : index
    %c0_535 = arith.constant 0 : index
    %c0_536 = arith.constant 0 : index
    %c0_537 = arith.constant 0 : index
    %633 = vector.load %arg15[%c1_534, %c0_535, %c0_536, %c0_537] : memref<2x4x64x16xf32, #tpu.memory_space<vmem>>, vector<1x1x64x16xf32>
    %634 = vector.shape_cast %633 : vector<1x1x64x16xf32> to vector<64x16xf32>
    %cst_538 = arith.constant dense<0.000000e+00> : vector<48x16xf32>
    %635 = tpu.matmul %0, %634, %cst_538 {dimension_numbers = #tpu.dot_dimension_numbers<[1], [0], [0], [1], [0, 0, 1, 1], [], []>} : vector<48x64xf32>, vector<64x16xf32>, vector<48x16xf32> -> vector<48x16xf32>
    %c1_539 = arith.constant 1 : index
    %c0_540 = arith.constant 0 : index
    %c0_541 = arith.constant 0 : index
    %c0_542 = arith.constant 0 : index
    %636 = vector.load %arg18[%c1_539, %c0_540, %c0_541, %c0_542] : memref<2x4x1x16xf32, #tpu.memory_space<vmem>>, vector<1x1x1x16xf32>
    %637 = vector.shape_cast %636 : vector<1x1x1x16xf32> to vector<1x16xf32>
    %638 = vector.broadcast %637 : vector<1x16xf32> to vector<48x16xf32>
    %639 = arith.addf %635, %638 : vector<48x16xf32>
    %cst_543 = arith.constant dense<0.000000e+00> : vector<16x48xf32>
    %640 = tpu.matmul %625, %632, %cst_543 {dimension_numbers = #tpu.dot_dimension_numbers<[1], [1], [0], [0], [0, 0, 1, 0], [], []>} : vector<16x16xf32>, vector<48x16xf32>, vector<16x48xf32> -> vector<16x48xf32>
    %641 = arith.addf %640, %3 : vector<16x48xf32>
    %cst_544 = arith.constant dense<0xFF800000> : vector<16xf32>
    %642 = vector.multi_reduction <maximumf>, %641, %cst_544 [1] : vector<16x48xf32> to vector<16xf32>
    %643 = vector.shape_cast %642 : vector<16xf32> to vector<16x1xf32>
    %644 = vector.broadcast %643 : vector<16x1xf32> to vector<16x48xf32>
    %645 = arith.subf %641, %644 : vector<16x48xf32>
    %646 = math.exp %645 : vector<16x48xf32>
    %cst_545 = arith.constant dense<0.000000e+00> : vector<16xf32>
    %647 = vector.multi_reduction <add>, %646, %cst_545 [1] : vector<16x48xf32> to vector<16xf32>
    %648 = vector.shape_cast %647 : vector<16xf32> to vector<16x1xf32>
    %649 = tpu.reciprocal %648 {approx = true} : vector<16x1xf32> -> vector<16x1xf32>
    %650 = vector.broadcast %649 : vector<16x1xf32> to vector<16x48xf32>
    %651 = arith.mulf %646, %650 : vector<16x48xf32>
    %cst_546 = arith.constant dense<0.000000e+00> : vector<16x16xf32>
    %652 = tpu.matmul %651, %639, %cst_546 {dimension_numbers = #tpu.dot_dimension_numbers<[1], [0], [0], [1], [0, 0, 1, 1], [], []>} : vector<16x48xf32>, vector<48x16xf32>, vector<16x16xf32> -> vector<16x16xf32>
    %c1_547 = arith.constant 1 : index
    %c0_548 = arith.constant 0 : index
    %c0_549 = arith.constant 0 : index
    %c0_550 = arith.constant 0 : index
    %653 = vector.load %arg19[%c1_547, %c0_548, %c0_549, %c0_550] : memref<2x4x16x64xf32, #tpu.memory_space<vmem>>, vector<1x1x16x64xf32>
    %654 = vector.shape_cast %653 : vector<1x1x16x64xf32> to vector<16x64xf32>
    %cst_551 = arith.constant dense<0.000000e+00> : vector<16x64xf32>
    %655 = tpu.matmul %652, %654, %cst_551 {dimension_numbers = #tpu.dot_dimension_numbers<[1], [0], [0], [1], [0, 0, 1, 1], [], []>} : vector<16x16xf32>, vector<16x64xf32>, vector<16x64xf32> -> vector<16x64xf32>
    %c1_552 = arith.constant 1 : index
    %c1_553 = arith.constant 1 : index
    %c0_554 = arith.constant 0 : index
    %c0_555 = arith.constant 0 : index
    %656 = vector.load %arg13[%c1_552, %c1_553, %c0_554, %c0_555] : memref<2x4x64x16xf32, #tpu.memory_space<vmem>>, vector<1x1x64x16xf32>
    %657 = vector.shape_cast %656 : vector<1x1x64x16xf32> to vector<64x16xf32>
    %cst_556 = arith.constant dense<0.000000e+00> : vector<16x16xf32>
    %658 = tpu.matmul %616, %657, %cst_556 {dimension_numbers = #tpu.dot_dimension_numbers<[1], [0], [0], [1], [0, 0, 1, 1], [], []>} : vector<16x64xf32>, vector<64x16xf32>, vector<16x16xf32> -> vector<16x16xf32>
    %c1_557 = arith.constant 1 : index
    %c1_558 = arith.constant 1 : index
    %c0_559 = arith.constant 0 : index
    %c0_560 = arith.constant 0 : index
    %659 = vector.load %arg16[%c1_557, %c1_558, %c0_559, %c0_560] : memref<2x4x1x16xf32, #tpu.memory_space<vmem>>, vector<1x1x1x16xf32>
    %660 = vector.shape_cast %659 : vector<1x1x1x16xf32> to vector<1x16xf32>
    %661 = vector.broadcast %660 : vector<1x16xf32> to vector<16x16xf32>
    %662 = arith.addf %658, %661 : vector<16x16xf32>
    %cst_561 = arith.constant 2.500000e-01 : f32
    %663 = vector.broadcast %cst_561 : f32 to vector<16x16xf32>
    %664 = arith.mulf %662, %663 : vector<16x16xf32>
    %c1_562 = arith.constant 1 : index
    %c1_563 = arith.constant 1 : index
    %c0_564 = arith.constant 0 : index
    %c0_565 = arith.constant 0 : index
    %665 = vector.load %arg14[%c1_562, %c1_563, %c0_564, %c0_565] : memref<2x4x64x16xf32, #tpu.memory_space<vmem>>, vector<1x1x64x16xf32>
    %666 = vector.shape_cast %665 : vector<1x1x64x16xf32> to vector<64x16xf32>
    %cst_566 = arith.constant dense<0.000000e+00> : vector<48x16xf32>
    %667 = tpu.matmul %0, %666, %cst_566 {dimension_numbers = #tpu.dot_dimension_numbers<[1], [0], [0], [1], [0, 0, 1, 1], [], []>} : vector<48x64xf32>, vector<64x16xf32>, vector<48x16xf32> -> vector<48x16xf32>
    %c1_567 = arith.constant 1 : index
    %c1_568 = arith.constant 1 : index
    %c0_569 = arith.constant 0 : index
    %c0_570 = arith.constant 0 : index
    %668 = vector.load %arg17[%c1_567, %c1_568, %c0_569, %c0_570] : memref<2x4x1x16xf32, #tpu.memory_space<vmem>>, vector<1x1x1x16xf32>
    %669 = vector.shape_cast %668 : vector<1x1x1x16xf32> to vector<1x16xf32>
    %670 = vector.broadcast %669 : vector<1x16xf32> to vector<48x16xf32>
    %671 = arith.addf %667, %670 : vector<48x16xf32>
    %c1_571 = arith.constant 1 : index
    %c1_572 = arith.constant 1 : index
    %c0_573 = arith.constant 0 : index
    %c0_574 = arith.constant 0 : index
    %672 = vector.load %arg15[%c1_571, %c1_572, %c0_573, %c0_574] : memref<2x4x64x16xf32, #tpu.memory_space<vmem>>, vector<1x1x64x16xf32>
    %673 = vector.shape_cast %672 : vector<1x1x64x16xf32> to vector<64x16xf32>
    %cst_575 = arith.constant dense<0.000000e+00> : vector<48x16xf32>
    %674 = tpu.matmul %0, %673, %cst_575 {dimension_numbers = #tpu.dot_dimension_numbers<[1], [0], [0], [1], [0, 0, 1, 1], [], []>} : vector<48x64xf32>, vector<64x16xf32>, vector<48x16xf32> -> vector<48x16xf32>
    %c1_576 = arith.constant 1 : index
    %c1_577 = arith.constant 1 : index
    %c0_578 = arith.constant 0 : index
    %c0_579 = arith.constant 0 : index
    %675 = vector.load %arg18[%c1_576, %c1_577, %c0_578, %c0_579] : memref<2x4x1x16xf32, #tpu.memory_space<vmem>>, vector<1x1x1x16xf32>
    %676 = vector.shape_cast %675 : vector<1x1x1x16xf32> to vector<1x16xf32>
    %677 = vector.broadcast %676 : vector<1x16xf32> to vector<48x16xf32>
    %678 = arith.addf %674, %677 : vector<48x16xf32>
    %cst_580 = arith.constant dense<0.000000e+00> : vector<16x48xf32>
    %679 = tpu.matmul %664, %671, %cst_580 {dimension_numbers = #tpu.dot_dimension_numbers<[1], [1], [0], [0], [0, 0, 1, 0], [], []>} : vector<16x16xf32>, vector<48x16xf32>, vector<16x48xf32> -> vector<16x48xf32>
    %680 = arith.addf %679, %3 : vector<16x48xf32>
    %cst_581 = arith.constant dense<0xFF800000> : vector<16xf32>
    %681 = vector.multi_reduction <maximumf>, %680, %cst_581 [1] : vector<16x48xf32> to vector<16xf32>
    %682 = vector.shape_cast %681 : vector<16xf32> to vector<16x1xf32>
    %683 = vector.broadcast %682 : vector<16x1xf32> to vector<16x48xf32>
    %684 = arith.subf %680, %683 : vector<16x48xf32>
    %685 = math.exp %684 : vector<16x48xf32>
    %cst_582 = arith.constant dense<0.000000e+00> : vector<16xf32>
    %686 = vector.multi_reduction <add>, %685, %cst_582 [1] : vector<16x48xf32> to vector<16xf32>
    %687 = vector.shape_cast %686 : vector<16xf32> to vector<16x1xf32>
    %688 = tpu.reciprocal %687 {approx = true} : vector<16x1xf32> -> vector<16x1xf32>
    %689 = vector.broadcast %688 : vector<16x1xf32> to vector<16x48xf32>
    %690 = arith.mulf %685, %689 : vector<16x48xf32>
    %cst_583 = arith.constant dense<0.000000e+00> : vector<16x16xf32>
    %691 = tpu.matmul %690, %678, %cst_583 {dimension_numbers = #tpu.dot_dimension_numbers<[1], [0], [0], [1], [0, 0, 1, 1], [], []>} : vector<16x48xf32>, vector<48x16xf32>, vector<16x16xf32> -> vector<16x16xf32>
    %c1_584 = arith.constant 1 : index
    %c1_585 = arith.constant 1 : index
    %c0_586 = arith.constant 0 : index
    %c0_587 = arith.constant 0 : index
    %692 = vector.load %arg19[%c1_584, %c1_585, %c0_586, %c0_587] : memref<2x4x16x64xf32, #tpu.memory_space<vmem>>, vector<1x1x16x64xf32>
    %693 = vector.shape_cast %692 : vector<1x1x16x64xf32> to vector<16x64xf32>
    %cst_588 = arith.constant dense<0.000000e+00> : vector<16x64xf32>
    %694 = tpu.matmul %691, %693, %cst_588 {dimension_numbers = #tpu.dot_dimension_numbers<[1], [0], [0], [1], [0, 0, 1, 1], [], []>} : vector<16x16xf32>, vector<16x64xf32>, vector<16x64xf32> -> vector<16x64xf32>
    %695 = arith.addf %655, %694 : vector<16x64xf32>
    %c1_589 = arith.constant 1 : index
    %c2_590 = arith.constant 2 : index
    %c0_591 = arith.constant 0 : index
    %c0_592 = arith.constant 0 : index
    %696 = vector.load %arg13[%c1_589, %c2_590, %c0_591, %c0_592] : memref<2x4x64x16xf32, #tpu.memory_space<vmem>>, vector<1x1x64x16xf32>
    %697 = vector.shape_cast %696 : vector<1x1x64x16xf32> to vector<64x16xf32>
    %cst_593 = arith.constant dense<0.000000e+00> : vector<16x16xf32>
    %698 = tpu.matmul %616, %697, %cst_593 {dimension_numbers = #tpu.dot_dimension_numbers<[1], [0], [0], [1], [0, 0, 1, 1], [], []>} : vector<16x64xf32>, vector<64x16xf32>, vector<16x16xf32> -> vector<16x16xf32>
    %c1_594 = arith.constant 1 : index
    %c2_595 = arith.constant 2 : index
    %c0_596 = arith.constant 0 : index
    %c0_597 = arith.constant 0 : index
    %699 = vector.load %arg16[%c1_594, %c2_595, %c0_596, %c0_597] : memref<2x4x1x16xf32, #tpu.memory_space<vmem>>, vector<1x1x1x16xf32>
    %700 = vector.shape_cast %699 : vector<1x1x1x16xf32> to vector<1x16xf32>
    %701 = vector.broadcast %700 : vector<1x16xf32> to vector<16x16xf32>
    %702 = arith.addf %698, %701 : vector<16x16xf32>
    %cst_598 = arith.constant 2.500000e-01 : f32
    %703 = vector.broadcast %cst_598 : f32 to vector<16x16xf32>
    %704 = arith.mulf %702, %703 : vector<16x16xf32>
    %c1_599 = arith.constant 1 : index
    %c2_600 = arith.constant 2 : index
    %c0_601 = arith.constant 0 : index
    %c0_602 = arith.constant 0 : index
    %705 = vector.load %arg14[%c1_599, %c2_600, %c0_601, %c0_602] : memref<2x4x64x16xf32, #tpu.memory_space<vmem>>, vector<1x1x64x16xf32>
    %706 = vector.shape_cast %705 : vector<1x1x64x16xf32> to vector<64x16xf32>
    %cst_603 = arith.constant dense<0.000000e+00> : vector<48x16xf32>
    %707 = tpu.matmul %0, %706, %cst_603 {dimension_numbers = #tpu.dot_dimension_numbers<[1], [0], [0], [1], [0, 0, 1, 1], [], []>} : vector<48x64xf32>, vector<64x16xf32>, vector<48x16xf32> -> vector<48x16xf32>
    %c1_604 = arith.constant 1 : index
    %c2_605 = arith.constant 2 : index
    %c0_606 = arith.constant 0 : index
    %c0_607 = arith.constant 0 : index
    %708 = vector.load %arg17[%c1_604, %c2_605, %c0_606, %c0_607] : memref<2x4x1x16xf32, #tpu.memory_space<vmem>>, vector<1x1x1x16xf32>
    %709 = vector.shape_cast %708 : vector<1x1x1x16xf32> to vector<1x16xf32>
    %710 = vector.broadcast %709 : vector<1x16xf32> to vector<48x16xf32>
    %711 = arith.addf %707, %710 : vector<48x16xf32>
    %c1_608 = arith.constant 1 : index
    %c2_609 = arith.constant 2 : index
    %c0_610 = arith.constant 0 : index
    %c0_611 = arith.constant 0 : index
    %712 = vector.load %arg15[%c1_608, %c2_609, %c0_610, %c0_611] : memref<2x4x64x16xf32, #tpu.memory_space<vmem>>, vector<1x1x64x16xf32>
    %713 = vector.shape_cast %712 : vector<1x1x64x16xf32> to vector<64x16xf32>
    %cst_612 = arith.constant dense<0.000000e+00> : vector<48x16xf32>
    %714 = tpu.matmul %0, %713, %cst_612 {dimension_numbers = #tpu.dot_dimension_numbers<[1], [0], [0], [1], [0, 0, 1, 1], [], []>} : vector<48x64xf32>, vector<64x16xf32>, vector<48x16xf32> -> vector<48x16xf32>
    %c1_613 = arith.constant 1 : index
    %c2_614 = arith.constant 2 : index
    %c0_615 = arith.constant 0 : index
    %c0_616 = arith.constant 0 : index
    %715 = vector.load %arg18[%c1_613, %c2_614, %c0_615, %c0_616] : memref<2x4x1x16xf32, #tpu.memory_space<vmem>>, vector<1x1x1x16xf32>
    %716 = vector.shape_cast %715 : vector<1x1x1x16xf32> to vector<1x16xf32>
    %717 = vector.broadcast %716 : vector<1x16xf32> to vector<48x16xf32>
    %718 = arith.addf %714, %717 : vector<48x16xf32>
    %cst_617 = arith.constant dense<0.000000e+00> : vector<16x48xf32>
    %719 = tpu.matmul %704, %711, %cst_617 {dimension_numbers = #tpu.dot_dimension_numbers<[1], [1], [0], [0], [0, 0, 1, 0], [], []>} : vector<16x16xf32>, vector<48x16xf32>, vector<16x48xf32> -> vector<16x48xf32>
    %720 = arith.addf %719, %3 : vector<16x48xf32>
    %cst_618 = arith.constant dense<0xFF800000> : vector<16xf32>
    %721 = vector.multi_reduction <maximumf>, %720, %cst_618 [1] : vector<16x48xf32> to vector<16xf32>
    %722 = vector.shape_cast %721 : vector<16xf32> to vector<16x1xf32>
    %723 = vector.broadcast %722 : vector<16x1xf32> to vector<16x48xf32>
    %724 = arith.subf %720, %723 : vector<16x48xf32>
    %725 = math.exp %724 : vector<16x48xf32>
    %cst_619 = arith.constant dense<0.000000e+00> : vector<16xf32>
    %726 = vector.multi_reduction <add>, %725, %cst_619 [1] : vector<16x48xf32> to vector<16xf32>
    %727 = vector.shape_cast %726 : vector<16xf32> to vector<16x1xf32>
    %728 = tpu.reciprocal %727 {approx = true} : vector<16x1xf32> -> vector<16x1xf32>
    %729 = vector.broadcast %728 : vector<16x1xf32> to vector<16x48xf32>
    %730 = arith.mulf %725, %729 : vector<16x48xf32>
    %cst_620 = arith.constant dense<0.000000e+00> : vector<16x16xf32>
    %731 = tpu.matmul %730, %718, %cst_620 {dimension_numbers = #tpu.dot_dimension_numbers<[1], [0], [0], [1], [0, 0, 1, 1], [], []>} : vector<16x48xf32>, vector<48x16xf32>, vector<16x16xf32> -> vector<16x16xf32>
    %c1_621 = arith.constant 1 : index
    %c2_622 = arith.constant 2 : index
    %c0_623 = arith.constant 0 : index
    %c0_624 = arith.constant 0 : index
    %732 = vector.load %arg19[%c1_621, %c2_622, %c0_623, %c0_624] : memref<2x4x16x64xf32, #tpu.memory_space<vmem>>, vector<1x1x16x64xf32>
    %733 = vector.shape_cast %732 : vector<1x1x16x64xf32> to vector<16x64xf32>
    %cst_625 = arith.constant dense<0.000000e+00> : vector<16x64xf32>
    %734 = tpu.matmul %731, %733, %cst_625 {dimension_numbers = #tpu.dot_dimension_numbers<[1], [0], [0], [1], [0, 0, 1, 1], [], []>} : vector<16x16xf32>, vector<16x64xf32>, vector<16x64xf32> -> vector<16x64xf32>
    %735 = arith.addf %695, %734 : vector<16x64xf32>
    %c1_626 = arith.constant 1 : index
    %c3_627 = arith.constant 3 : index
    %c0_628 = arith.constant 0 : index
    %c0_629 = arith.constant 0 : index
    %736 = vector.load %arg13[%c1_626, %c3_627, %c0_628, %c0_629] : memref<2x4x64x16xf32, #tpu.memory_space<vmem>>, vector<1x1x64x16xf32>
    %737 = vector.shape_cast %736 : vector<1x1x64x16xf32> to vector<64x16xf32>
    %cst_630 = arith.constant dense<0.000000e+00> : vector<16x16xf32>
    %738 = tpu.matmul %616, %737, %cst_630 {dimension_numbers = #tpu.dot_dimension_numbers<[1], [0], [0], [1], [0, 0, 1, 1], [], []>} : vector<16x64xf32>, vector<64x16xf32>, vector<16x16xf32> -> vector<16x16xf32>
    %c1_631 = arith.constant 1 : index
    %c3_632 = arith.constant 3 : index
    %c0_633 = arith.constant 0 : index
    %c0_634 = arith.constant 0 : index
    %739 = vector.load %arg16[%c1_631, %c3_632, %c0_633, %c0_634] : memref<2x4x1x16xf32, #tpu.memory_space<vmem>>, vector<1x1x1x16xf32>
    %740 = vector.shape_cast %739 : vector<1x1x1x16xf32> to vector<1x16xf32>
    %741 = vector.broadcast %740 : vector<1x16xf32> to vector<16x16xf32>
    %742 = arith.addf %738, %741 : vector<16x16xf32>
    %cst_635 = arith.constant 2.500000e-01 : f32
    %743 = vector.broadcast %cst_635 : f32 to vector<16x16xf32>
    %744 = arith.mulf %742, %743 : vector<16x16xf32>
    %c1_636 = arith.constant 1 : index
    %c3_637 = arith.constant 3 : index
    %c0_638 = arith.constant 0 : index
    %c0_639 = arith.constant 0 : index
    %745 = vector.load %arg14[%c1_636, %c3_637, %c0_638, %c0_639] : memref<2x4x64x16xf32, #tpu.memory_space<vmem>>, vector<1x1x64x16xf32>
    %746 = vector.shape_cast %745 : vector<1x1x64x16xf32> to vector<64x16xf32>
    %cst_640 = arith.constant dense<0.000000e+00> : vector<48x16xf32>
    %747 = tpu.matmul %0, %746, %cst_640 {dimension_numbers = #tpu.dot_dimension_numbers<[1], [0], [0], [1], [0, 0, 1, 1], [], []>} : vector<48x64xf32>, vector<64x16xf32>, vector<48x16xf32> -> vector<48x16xf32>
    %c1_641 = arith.constant 1 : index
    %c3_642 = arith.constant 3 : index
    %c0_643 = arith.constant 0 : index
    %c0_644 = arith.constant 0 : index
    %748 = vector.load %arg17[%c1_641, %c3_642, %c0_643, %c0_644] : memref<2x4x1x16xf32, #tpu.memory_space<vmem>>, vector<1x1x1x16xf32>
    %749 = vector.shape_cast %748 : vector<1x1x1x16xf32> to vector<1x16xf32>
    %750 = vector.broadcast %749 : vector<1x16xf32> to vector<48x16xf32>
    %751 = arith.addf %747, %750 : vector<48x16xf32>
    %c1_645 = arith.constant 1 : index
    %c3_646 = arith.constant 3 : index
    %c0_647 = arith.constant 0 : index
    %c0_648 = arith.constant 0 : index
    %752 = vector.load %arg15[%c1_645, %c3_646, %c0_647, %c0_648] : memref<2x4x64x16xf32, #tpu.memory_space<vmem>>, vector<1x1x64x16xf32>
    %753 = vector.shape_cast %752 : vector<1x1x64x16xf32> to vector<64x16xf32>
    %cst_649 = arith.constant dense<0.000000e+00> : vector<48x16xf32>
    %754 = tpu.matmul %0, %753, %cst_649 {dimension_numbers = #tpu.dot_dimension_numbers<[1], [0], [0], [1], [0, 0, 1, 1], [], []>} : vector<48x64xf32>, vector<64x16xf32>, vector<48x16xf32> -> vector<48x16xf32>
    %c1_650 = arith.constant 1 : index
    %c3_651 = arith.constant 3 : index
    %c0_652 = arith.constant 0 : index
    %c0_653 = arith.constant 0 : index
    %755 = vector.load %arg18[%c1_650, %c3_651, %c0_652, %c0_653] : memref<2x4x1x16xf32, #tpu.memory_space<vmem>>, vector<1x1x1x16xf32>
    %756 = vector.shape_cast %755 : vector<1x1x1x16xf32> to vector<1x16xf32>
    %757 = vector.broadcast %756 : vector<1x16xf32> to vector<48x16xf32>
    %758 = arith.addf %754, %757 : vector<48x16xf32>
    %cst_654 = arith.constant dense<0.000000e+00> : vector<16x48xf32>
    %759 = tpu.matmul %744, %751, %cst_654 {dimension_numbers = #tpu.dot_dimension_numbers<[1], [1], [0], [0], [0, 0, 1, 0], [], []>} : vector<16x16xf32>, vector<48x16xf32>, vector<16x48xf32> -> vector<16x48xf32>
    %760 = arith.addf %759, %3 : vector<16x48xf32>
    %cst_655 = arith.constant dense<0xFF800000> : vector<16xf32>
    %761 = vector.multi_reduction <maximumf>, %760, %cst_655 [1] : vector<16x48xf32> to vector<16xf32>
    %762 = vector.shape_cast %761 : vector<16xf32> to vector<16x1xf32>
    %763 = vector.broadcast %762 : vector<16x1xf32> to vector<16x48xf32>
    %764 = arith.subf %760, %763 : vector<16x48xf32>
    %765 = math.exp %764 : vector<16x48xf32>
    %cst_656 = arith.constant dense<0.000000e+00> : vector<16xf32>
    %766 = vector.multi_reduction <add>, %765, %cst_656 [1] : vector<16x48xf32> to vector<16xf32>
    %767 = vector.shape_cast %766 : vector<16xf32> to vector<16x1xf32>
    %768 = tpu.reciprocal %767 {approx = true} : vector<16x1xf32> -> vector<16x1xf32>
    %769 = vector.broadcast %768 : vector<16x1xf32> to vector<16x48xf32>
    %770 = arith.mulf %765, %769 : vector<16x48xf32>
    %cst_657 = arith.constant dense<0.000000e+00> : vector<16x16xf32>
    %771 = tpu.matmul %770, %758, %cst_657 {dimension_numbers = #tpu.dot_dimension_numbers<[1], [0], [0], [1], [0, 0, 1, 1], [], []>} : vector<16x48xf32>, vector<48x16xf32>, vector<16x16xf32> -> vector<16x16xf32>
    %c1_658 = arith.constant 1 : index
    %c3_659 = arith.constant 3 : index
    %c0_660 = arith.constant 0 : index
    %c0_661 = arith.constant 0 : index
    %772 = vector.load %arg19[%c1_658, %c3_659, %c0_660, %c0_661] : memref<2x4x16x64xf32, #tpu.memory_space<vmem>>, vector<1x1x16x64xf32>
    %773 = vector.shape_cast %772 : vector<1x1x16x64xf32> to vector<16x64xf32>
    %cst_662 = arith.constant dense<0.000000e+00> : vector<16x64xf32>
    %774 = tpu.matmul %771, %773, %cst_662 {dimension_numbers = #tpu.dot_dimension_numbers<[1], [0], [0], [1], [0, 0, 1, 1], [], []>} : vector<16x16xf32>, vector<16x64xf32>, vector<16x64xf32> -> vector<16x64xf32>
    %775 = arith.addf %735, %774 : vector<16x64xf32>
    %c1_663 = arith.constant 1 : index
    %c0_664 = arith.constant 0 : index
    %c0_665 = arith.constant 0 : index
    %776 = vector.load %arg20[%c1_663, %c0_664, %c0_665] : memref<2x1x64xf32, #tpu.memory_space<vmem>>, vector<1x1x64xf32>
    %777 = vector.shape_cast %776 : vector<1x1x64xf32> to vector<1x64xf32>
    %778 = vector.broadcast %777 : vector<1x64xf32> to vector<16x64xf32>
    %779 = arith.addf %775, %778 : vector<16x64xf32>
    %780 = arith.addf %616, %779 : vector<16x64xf32>
    %c1_666 = arith.constant 1 : index
    %c0_667 = arith.constant 0 : index
    %c0_668 = arith.constant 0 : index
    %781 = vector.load %arg23[%c1_666, %c0_667, %c0_668] : memref<2x1x64xf32, #tpu.memory_space<vmem>>, vector<1x1x64xf32>
    %782 = vector.shape_cast %781 : vector<1x1x64xf32> to vector<1x64xf32>
    %c1_669 = arith.constant 1 : index
    %c0_670 = arith.constant 0 : index
    %c0_671 = arith.constant 0 : index
    %783 = vector.load %arg24[%c1_669, %c0_670, %c0_671] : memref<2x1x64xf32, #tpu.memory_space<vmem>>, vector<1x1x64xf32>
    %784 = vector.shape_cast %783 : vector<1x1x64xf32> to vector<1x64xf32>
    %cst_672 = arith.constant dense<0.000000e+00> : vector<16xf32>
    %785 = vector.multi_reduction <add>, %780, %cst_672 [1] : vector<16x64xf32> to vector<16xf32>
    %786 = vector.shape_cast %785 : vector<16xf32> to vector<16x1xf32>
    %cst_673 = arith.constant 6.400000e+01 : f32
    %787 = vector.broadcast %cst_673 : f32 to vector<16x1xf32>
    %788 = arith.divf %786, %787 : vector<16x1xf32>
    %789 = vector.broadcast %788 : vector<16x1xf32> to vector<16x64xf32>
    %790 = arith.subf %780, %789 : vector<16x64xf32>
    %791 = arith.mulf %790, %790 : vector<16x64xf32>
    %cst_674 = arith.constant dense<0.000000e+00> : vector<16xf32>
    %792 = vector.multi_reduction <add>, %791, %cst_674 [1] : vector<16x64xf32> to vector<16xf32>
    %793 = vector.shape_cast %792 : vector<16xf32> to vector<16x1xf32>
    %cst_675 = arith.constant 6.400000e+01 : f32
    %794 = vector.broadcast %cst_675 : f32 to vector<16x1xf32>
    %795 = arith.divf %793, %794 : vector<16x1xf32>
    %796 = vector.broadcast %788 : vector<16x1xf32> to vector<16x64xf32>
    %797 = arith.subf %780, %796 : vector<16x64xf32>
    %cst_676 = arith.constant 9.99999974E-6 : f32
    %798 = vector.broadcast %cst_676 : f32 to vector<16x1xf32>
    %799 = arith.addf %795, %798 : vector<16x1xf32>
    %800 = math.rsqrt %799 : vector<16x1xf32>
    %801 = vector.broadcast %800 : vector<16x1xf32> to vector<16x64xf32>
    %802 = arith.mulf %797, %801 : vector<16x64xf32>
    %803 = vector.broadcast %782 : vector<1x64xf32> to vector<16x64xf32>
    %804 = arith.mulf %802, %803 : vector<16x64xf32>
    %805 = vector.broadcast %784 : vector<1x64xf32> to vector<16x64xf32>
    %806 = arith.addf %804, %805 : vector<16x64xf32>
    %c1_677 = arith.constant 1 : index
    %c0_678 = arith.constant 0 : index
    %c0_679 = arith.constant 0 : index
    %807 = vector.load %arg27[%c1_677, %c0_678, %c0_679] : memref<2x64x256xf32, #tpu.memory_space<vmem>>, vector<1x64x256xf32>
    %808 = vector.shape_cast %807 : vector<1x64x256xf32> to vector<64x256xf32>
    %cst_680 = arith.constant dense<0.000000e+00> : vector<16x256xf32>
    %809 = tpu.matmul %806, %808, %cst_680 {dimension_numbers = #tpu.dot_dimension_numbers<[1], [0], [0], [1], [0, 0, 1, 1], [], []>} : vector<16x64xf32>, vector<64x256xf32>, vector<16x256xf32> -> vector<16x256xf32>
    %c1_681 = arith.constant 1 : index
    %c0_682 = arith.constant 0 : index
    %c0_683 = arith.constant 0 : index
    %810 = vector.load %arg28[%c1_681, %c0_682, %c0_683] : memref<2x1x256xf32, #tpu.memory_space<vmem>>, vector<1x1x256xf32>
    %811 = vector.shape_cast %810 : vector<1x1x256xf32> to vector<1x256xf32>
    %812 = vector.broadcast %811 : vector<1x256xf32> to vector<16x256xf32>
    %813 = arith.addf %809, %812 : vector<16x256xf32>
    %cst_684 = arith.constant 0.000000e+00 : f32
    %814 = vector.broadcast %cst_684 : f32 to vector<16x256xf32>
    %815 = arith.maximumf %813, %814 : vector<16x256xf32>
    %c1_685 = arith.constant 1 : index
    %c0_686 = arith.constant 0 : index
    %c0_687 = arith.constant 0 : index
    %816 = vector.load %arg29[%c1_685, %c0_686, %c0_687] : memref<2x256x64xf32, #tpu.memory_space<vmem>>, vector<1x256x64xf32>
    %817 = vector.shape_cast %816 : vector<1x256x64xf32> to vector<256x64xf32>
    %cst_688 = arith.constant dense<0.000000e+00> : vector<16x64xf32>
    %818 = tpu.matmul %815, %817, %cst_688 {dimension_numbers = #tpu.dot_dimension_numbers<[1], [0], [0], [1], [0, 0, 1, 1], [], []>} : vector<16x256xf32>, vector<256x64xf32>, vector<16x64xf32> -> vector<16x64xf32>
    %c1_689 = arith.constant 1 : index
    %c0_690 = arith.constant 0 : index
    %c0_691 = arith.constant 0 : index
    %819 = vector.load %arg30[%c1_689, %c0_690, %c0_691] : memref<2x1x64xf32, #tpu.memory_space<vmem>>, vector<1x1x64xf32>
    %820 = vector.shape_cast %819 : vector<1x1x64xf32> to vector<1x64xf32>
    %821 = vector.broadcast %820 : vector<1x64xf32> to vector<16x64xf32>
    %822 = arith.addf %818, %821 : vector<16x64xf32>
    %823 = arith.addf %806, %822 : vector<16x64xf32>
    %c1_692 = arith.constant 1 : index
    %c0_693 = arith.constant 0 : index
    %c0_694 = arith.constant 0 : index
    %824 = vector.load %arg25[%c1_692, %c0_693, %c0_694] : memref<2x1x64xf32, #tpu.memory_space<vmem>>, vector<1x1x64xf32>
    %825 = vector.shape_cast %824 : vector<1x1x64xf32> to vector<1x64xf32>
    %c1_695 = arith.constant 1 : index
    %c0_696 = arith.constant 0 : index
    %c0_697 = arith.constant 0 : index
    %826 = vector.load %arg26[%c1_695, %c0_696, %c0_697] : memref<2x1x64xf32, #tpu.memory_space<vmem>>, vector<1x1x64xf32>
    %827 = vector.shape_cast %826 : vector<1x1x64xf32> to vector<1x64xf32>
    %cst_698 = arith.constant dense<0.000000e+00> : vector<16xf32>
    %828 = vector.multi_reduction <add>, %823, %cst_698 [1] : vector<16x64xf32> to vector<16xf32>
    %829 = vector.shape_cast %828 : vector<16xf32> to vector<16x1xf32>
    %cst_699 = arith.constant 6.400000e+01 : f32
    %830 = vector.broadcast %cst_699 : f32 to vector<16x1xf32>
    %831 = arith.divf %829, %830 : vector<16x1xf32>
    %832 = vector.broadcast %831 : vector<16x1xf32> to vector<16x64xf32>
    %833 = arith.subf %823, %832 : vector<16x64xf32>
    %834 = arith.mulf %833, %833 : vector<16x64xf32>
    %cst_700 = arith.constant dense<0.000000e+00> : vector<16xf32>
    %835 = vector.multi_reduction <add>, %834, %cst_700 [1] : vector<16x64xf32> to vector<16xf32>
    %836 = vector.shape_cast %835 : vector<16xf32> to vector<16x1xf32>
    %cst_701 = arith.constant 6.400000e+01 : f32
    %837 = vector.broadcast %cst_701 : f32 to vector<16x1xf32>
    %838 = arith.divf %836, %837 : vector<16x1xf32>
    %839 = vector.broadcast %831 : vector<16x1xf32> to vector<16x64xf32>
    %840 = arith.subf %823, %839 : vector<16x64xf32>
    %cst_702 = arith.constant 9.99999974E-6 : f32
    %841 = vector.broadcast %cst_702 : f32 to vector<16x1xf32>
    %842 = arith.addf %838, %841 : vector<16x1xf32>
    %843 = math.rsqrt %842 : vector<16x1xf32>
    %844 = vector.broadcast %843 : vector<16x1xf32> to vector<16x64xf32>
    %845 = arith.mulf %840, %844 : vector<16x64xf32>
    %846 = vector.broadcast %825 : vector<1x64xf32> to vector<16x64xf32>
    %847 = arith.mulf %845, %846 : vector<16x64xf32>
    %848 = vector.broadcast %827 : vector<1x64xf32> to vector<16x64xf32>
    %849 = arith.addf %847, %848 : vector<16x64xf32>
    %850 = arith.addf %849, %1 : vector<16x64xf32>
    %c0_703 = arith.constant 0 : index
    %c0_704 = arith.constant 0 : index
    %851 = vector.load %arg31[%c0_703, %c0_704] : memref<16x64xf32, #tpu.memory_space<vmem>>, vector<16x64xf32>
    tpu.vector_store %arg31[%c0_703, %c0_704], %850 {strides = array<i32>} : memref<16x64xf32, #tpu.memory_space<vmem>>, vector<16x64xf32>,
    return
  }
  func.func @transform_0(%arg0: i32) -> (i32, i32) {
    %c0_i32 = arith.constant 0 : i32
    %c0_i32_0 = arith.constant 0 : i32
    return %arg0, %c0_i32 : i32, i32
  }
  func.func @transform_1(%arg0: i32) -> (i32, i32) {
    %c0_i32 = arith.constant 0 : i32
    %c0_i32_0 = arith.constant 0 : i32
    %c0_i32_1 = arith.constant 0 : i32
    return %c0_i32, %c0_i32_0 : i32, i32
  }
  func.func @transform_2(%arg0: i32) -> (i32, i32) {
    %c0_i32 = arith.constant 0 : i32
    %c0_i32_0 = arith.constant 0 : i32
    %c0_i32_1 = arith.constant 0 : i32
    return %c0_i32, %c0_i32_0 : i32, i32
  }
  func.func @transform_3(%arg0: i32) -> (i32, i32) {
    %c0_i32 = arith.constant 0 : i32
    %c0_i32_0 = arith.constant 0 : i32
    %c0_i32_1 = arith.constant 0 : i32
    return %c0_i32, %c0_i32_0 : i32, i32
  }
  func.func @transform_4(%arg0: i32) -> (i32, i32, i32, i32) {
    %c0_i32 = arith.constant 0 : i32
    %c0_i32_0 = arith.constant 0 : i32
    %c0_i32_1 = arith.constant 0 : i32
    %c0_i32_2 = arith.constant 0 : i32
    %c0_i32_3 = arith.constant 0 : i32
    return %c0_i32, %c0_i32_0, %c0_i32_1, %c0_i32_2 : i32, i32, i32, i32
  }
  func.func @transform_5(%arg0: i32) -> (i32, i32, i32, i32) {
    %c0_i32 = arith.constant 0 : i32
    %c0_i32_0 = arith.constant 0 : i32
    %c0_i32_1 = arith.constant 0 : i32
    %c0_i32_2 = arith.constant 0 : i32
    %c0_i32_3 = arith.constant 0 : i32
    return %c0_i32, %c0_i32_0, %c0_i32_1, %c0_i32_2 : i32, i32, i32, i32
  }
  func.func @transform_6(%arg0: i32) -> (i32, i32, i32, i32) {
    %c0_i32 = arith.constant 0 : i32
    %c0_i32_0 = arith.constant 0 : i32
    %c0_i32_1 = arith.constant 0 : i32
    %c0_i32_2 = arith.constant 0 : i32
    %c0_i32_3 = arith.constant 0 : i32
    return %c0_i32, %c0_i32_0, %c0_i32_1, %c0_i32_2 : i32, i32, i32, i32
  }
  func.func @transform_7(%arg0: i32) -> (i32, i32, i32, i32) {
    %c0_i32 = arith.constant 0 : i32
    %c0_i32_0 = arith.constant 0 : i32
    %c0_i32_1 = arith.constant 0 : i32
    %c0_i32_2 = arith.constant 0 : i32
    %c0_i32_3 = arith.constant 0 : i32
    return %c0_i32, %c0_i32_0, %c0_i32_1, %c0_i32_2 : i32, i32, i32, i32
  }
  func.func @transform_8(%arg0: i32) -> (i32, i32, i32, i32) {
    %c0_i32 = arith.constant 0 : i32
    %c0_i32_0 = arith.constant 0 : i32
    %c0_i32_1 = arith.constant 0 : i32
    %c0_i32_2 = arith.constant 0 : i32
    %c0_i32_3 = arith.constant 0 : i32
    return %c0_i32, %c0_i32_0, %c0_i32_1, %c0_i32_2 : i32, i32, i32, i32
  }
  func.func @transform_9(%arg0: i32) -> (i32, i32, i32, i32) {
    %c0_i32 = arith.constant 0 : i32
    %c0_i32_0 = arith.constant 0 : i32
    %c0_i32_1 = arith.constant 0 : i32
    %c0_i32_2 = arith.constant 0 : i32
    %c0_i32_3 = arith.constant 0 : i32
    return %c0_i32, %c0_i32_0, %c0_i32_1, %c0_i32_2 : i32, i32, i32, i32
  }
  func.func @transform_10(%arg0: i32) -> (i32, i32, i32, i32) {
    %c0_i32 = arith.constant 0 : i32
    %c0_i32_0 = arith.constant 0 : i32
    %c0_i32_1 = arith.constant 0 : i32
    %c0_i32_2 = arith.constant 0 : i32
    %c0_i32_3 = arith.constant 0 : i32
    return %c0_i32, %c0_i32_0, %c0_i32_1, %c0_i32_2 : i32, i32, i32, i32
  }
  func.func @transform_11(%arg0: i32) -> (i32, i32, i32) {
    %c0_i32 = arith.constant 0 : i32
    %c0_i32_0 = arith.constant 0 : i32
    %c0_i32_1 = arith.constant 0 : i32
    %c0_i32_2 = arith.constant 0 : i32
    return %c0_i32, %c0_i32_0, %c0_i32_1 : i32, i32, i32
  }
  func.func @transform_12(%arg0: i32) -> (i32, i32, i32, i32) {
    %c0_i32 = arith.constant 0 : i32
    %c0_i32_0 = arith.constant 0 : i32
    %c0_i32_1 = arith.constant 0 : i32
    %c0_i32_2 = arith.constant 0 : i32
    %c0_i32_3 = arith.constant 0 : i32
    return %c0_i32, %c0_i32_0, %c0_i32_1, %c0_i32_2 : i32, i32, i32, i32
  }
  func.func @transform_13(%arg0: i32) -> (i32, i32, i32, i32) {
    %c0_i32 = arith.constant 0 : i32
    %c0_i32_0 = arith.constant 0 : i32
    %c0_i32_1 = arith.constant 0 : i32
    %c0_i32_2 = arith.constant 0 : i32
    %c0_i32_3 = arith.constant 0 : i32
    return %c0_i32, %c0_i32_0, %c0_i32_1, %c0_i32_2 : i32, i32, i32, i32
  }
  func.func @transform_14(%arg0: i32) -> (i32, i32, i32, i32) {
    %c0_i32 = arith.constant 0 : i32
    %c0_i32_0 = arith.constant 0 : i32
    %c0_i32_1 = arith.constant 0 : i32
    %c0_i32_2 = arith.constant 0 : i32
    %c0_i32_3 = arith.constant 0 : i32
    return %c0_i32, %c0_i32_0, %c0_i32_1, %c0_i32_2 : i32, i32, i32, i32
  }
  func.func @transform_15(%arg0: i32) -> (i32, i32, i32, i32) {
    %c0_i32 = arith.constant 0 : i32
    %c0_i32_0 = arith.constant 0 : i32
    %c0_i32_1 = arith.constant 0 : i32
    %c0_i32_2 = arith.constant 0 : i32
    %c0_i32_3 = arith.constant 0 : i32
    return %c0_i32, %c0_i32_0, %c0_i32_1, %c0_i32_2 : i32, i32, i32, i32
  }
  func.func @transform_16(%arg0: i32) -> (i32, i32, i32, i32) {
    %c0_i32 = arith.constant 0 : i32
    %c0_i32_0 = arith.constant 0 : i32
    %c0_i32_1 = arith.constant 0 : i32
    %c0_i32_2 = arith.constant 0 : i32
    %c0_i32_3 = arith.constant 0 : i32
    return %c0_i32, %c0_i32_0, %c0_i32_1, %c0_i32_2 : i32, i32, i32, i32
  }
  func.func @transform_17(%arg0: i32) -> (i32, i32, i32, i32) {
    %c0_i32 = arith.constant 0 : i32
    %c0_i32_0 = arith.constant 0 : i32
    %c0_i32_1 = arith.constant 0 : i32
    %c0_i32_2 = arith.constant 0 : i32
    %c0_i32_3 = arith.constant 0 : i32
    return %c0_i32, %c0_i32_0, %c0_i32_1, %c0_i32_2 : i32, i32, i32, i32
  }
  func.func @transform_18(%arg0: i32) -> (i32, i32, i32, i32) {
    %c0_i32 = arith.constant 0 : i32
    %c0_i32_0 = arith.constant 0 : i32
    %c0_i32_1 = arith.constant 0 : i32
    %c0_i32_2 = arith.constant 0 : i32
    %c0_i32_3 = arith.constant 0 : i32
    return %c0_i32, %c0_i32_0, %c0_i32_1, %c0_i32_2 : i32, i32, i32, i32
  }
  func.func @transform_19(%arg0: i32) -> (i32, i32, i32) {
    %c0_i32 = arith.constant 0 : i32
    %c0_i32_0 = arith.constant 0 : i32
    %c0_i32_1 = arith.constant 0 : i32
    %c0_i32_2 = arith.constant 0 : i32
    return %c0_i32, %c0_i32_0, %c0_i32_1 : i32, i32, i32
  }
  func.func @transform_20(%arg0: i32) -> (i32, i32, i32) {
    %c0_i32 = arith.constant 0 : i32
    %c0_i32_0 = arith.constant 0 : i32
    %c0_i32_1 = arith.constant 0 : i32
    %c0_i32_2 = arith.constant 0 : i32
    return %c0_i32, %c0_i32_0, %c0_i32_1 : i32, i32, i32
  }
  func.func @transform_21(%arg0: i32) -> (i32, i32, i32) {
    %c0_i32 = arith.constant 0 : i32
    %c0_i32_0 = arith.constant 0 : i32
    %c0_i32_1 = arith.constant 0 : i32
    %c0_i32_2 = arith.constant 0 : i32
    return %c0_i32, %c0_i32_0, %c0_i32_1 : i32, i32, i32
  }
  func.func @transform_22(%arg0: i32) -> (i32, i32, i32) {
    %c0_i32 = arith.constant 0 : i32
    %c0_i32_0 = arith.constant 0 : i32
    %c0_i32_1 = arith.constant 0 : i32
    %c0_i32_2 = arith.constant 0 : i32
    return %c0_i32, %c0_i32_0, %c0_i32_1 : i32, i32, i32
  }
  func.func @transform_23(%arg0: i32) -> (i32, i32, i32) {
    %c0_i32 = arith.constant 0 : i32
    %c0_i32_0 = arith.constant 0 : i32
    %c0_i32_1 = arith.constant 0 : i32
    %c0_i32_2 = arith.constant 0 : i32
    return %c0_i32, %c0_i32_0, %c0_i32_1 : i32, i32, i32
  }
  func.func @transform_24(%arg0: i32) -> (i32, i32, i32) {
    %c0_i32 = arith.constant 0 : i32
    %c0_i32_0 = arith.constant 0 : i32
    %c0_i32_1 = arith.constant 0 : i32
    %c0_i32_2 = arith.constant 0 : i32
    return %c0_i32, %c0_i32_0, %c0_i32_1 : i32, i32, i32
  }
  func.func @transform_25(%arg0: i32) -> (i32, i32, i32) {
    %c0_i32 = arith.constant 0 : i32
    %c0_i32_0 = arith.constant 0 : i32
    %c0_i32_1 = arith.constant 0 : i32
    %c0_i32_2 = arith.constant 0 : i32
    return %c0_i32, %c0_i32_0, %c0_i32_1 : i32, i32, i32
  }
  func.func @transform_26(%arg0: i32) -> (i32, i32, i32) {
    %c0_i32 = arith.constant 0 : i32
    %c0_i32_0 = arith.constant 0 : i32
    %c0_i32_1 = arith.constant 0 : i32
    %c0_i32_2 = arith.constant 0 : i32
    return %c0_i32, %c0_i32_0, %c0_i32_1 : i32, i32, i32
  }
  func.func @transform_27(%arg0: i32) -> (i32, i32, i32) {
    %c0_i32 = arith.constant 0 : i32
    %c0_i32_0 = arith.constant 0 : i32
    %c0_i32_1 = arith.constant 0 : i32
    %c0_i32_2 = arith.constant 0 : i32
    return %c0_i32, %c0_i32_0, %c0_i32_1 : i32, i32, i32
  }
  func.func @transform_28(%arg0: i32) -> (i32, i32, i32) {
    %c0_i32 = arith.constant 0 : i32
    %c0_i32_0 = arith.constant 0 : i32
    %c0_i32_1 = arith.constant 0 : i32
    %c0_i32_2 = arith.constant 0 : i32
    return %c0_i32, %c0_i32_0, %c0_i32_1 : i32, i32, i32
  }
  func.func @transform_29(%arg0: i32) -> (i32, i32, i32) {
    %c0_i32 = arith.constant 0 : i32
    %c0_i32_0 = arith.constant 0 : i32
    %c0_i32_1 = arith.constant 0 : i32
    %c0_i32_2 = arith.constant 0 : i32
    return %c0_i32, %c0_i32_0, %c0_i32_1 : i32, i32, i32
  }
  func.func @transform_30(%arg0: i32) -> (i32, i32) {
    %c0_i32 = arith.constant 0 : i32
    %c0_i32_0 = arith.constant 0 : i32
    return %arg0, %c0_i32 : i32, i32
  }
}

</mosaic_0001>

<llo_original>
// kernel: transformer_planner_forward.1
$region0: #{transformer_planner_forward.1}
  #allocation0 [shape = 'u32[]', space=smem, size = 0x4, offset = 0x4, fixed_abs, tag = 'smem constant byte address 0x4 - core index']
  #allocation1 [shape = 'u32[144,128]{1,0:T(1,128)}', space=vmem, size = 0x12000, scoped, tag = 'internal scratch']
  %s0 = inlined_call_operand.smem [shape: u32[31], index: -1, kind: input, shape index: {}]
  %s1 = sld [smem:[%s0]]
  %s2 = scalar_lea.smem %s0, 1
  %s3 = sld [smem:[%s2]]
  %s4 = scalar_lea.smem %s0, 2
  %s5 = sld [smem:[%s4]]
  %s6 = scalar_lea.smem %s0, 3
  %s7 = sld [smem:[%s6]]
  %s8 = scalar_lea.smem %s0, 4
  %s9 = sld [smem:[%s8]]
  %s10 = scalar_lea.smem %s0, 5
  %s11 = sld [smem:[%s10]]
  %s12 = scalar_lea.smem %s0, 6
  %s13 = sld [smem:[%s12]]
  %s14 = scalar_lea.smem %s0, 7
  %s15 = sld [smem:[%s14]]
  %s16 = scalar_lea.smem %s0, 8
  %s17 = sld [smem:[%s16]]
  %s18 = scalar_lea.smem %s0, 9
  %s19 = sld [smem:[%s18]]
  %s20 = scalar_lea.smem %s0, 10
  %s21 = sld [smem:[%s20]]
  %s22 = scalar_lea.smem %s0, 11
  %s23 = sld [smem:[%s22]]
  %s24 = scalar_lea.smem %s0, 12
  %s25 = sld [smem:[%s24]]
  %s26 = scalar_lea.smem %s0, 13
  %s27 = sld [smem:[%s26]]
  %s28 = scalar_lea.smem %s0, 14
  %s29 = sld [smem:[%s28]]
  %s30 = scalar_lea.smem %s0, 15
  %s31 = sld [smem:[%s30]]
  %s32 = scalar_lea.smem %s0, 16
  %s33 = sld [smem:[%s32]]
  %s34 = scalar_lea.smem %s0, 17
  %s35 = sld [smem:[%s34]]
  %s36 = scalar_lea.smem %s0, 18
  %s37 = sld [smem:[%s36]]
  %s38 = scalar_lea.smem %s0, 19
  %s39 = sld [smem:[%s38]]
  %s40 = scalar_lea.smem %s0, 20
  %s41 = sld [smem:[%s40]]
  %s42 = scalar_lea.smem %s0, 21
  %s43 = sld [smem:[%s42]]
  %s44 = scalar_lea.smem %s0, 22
  %s45 = sld [smem:[%s44]]
  %s46 = scalar_lea.smem %s0, 23
  %s47 = sld [smem:[%s46]]
  %s48 = scalar_lea.smem %s0, 24
  %s49 = sld [smem:[%s48]]
  %s50 = scalar_lea.smem %s0, 25
  %s51 = sld [smem:[%s50]]
  %s52 = scalar_lea.smem %s0, 26
  %s53 = sld [smem:[%s52]]
  %s54 = scalar_lea.smem %s0, 27
  %s55 = sld [smem:[%s54]]
  %s56 = scalar_lea.smem %s0, 28
  %s57 = sld [smem:[%s56]]
  %s58 = scalar_lea.smem %s0, 29
  %s59 = sld [smem:[%s58]]
  %s60 = scalar_lea.smem %s0, 30
  %s61 = sld [smem:[%s60]]
  %s62 = sld [smem:[#allocation0]]
  $region130: #{transformer_planner_forward.1} parent=0
    _
  %s64 = ssub.s32 1, %s62
  %s65 = scalar_select 0, %s64, %s62
  // Predicated region
  $region2: #{transformer_planner_forward.1} parent=0 // pred_check
    _
  $region3: #{transformer_planner_forward.1} parent=0 // pred_check_branch
    %67 = sbr.rel (0) target = $region5
  $region4: #{transformer_planner_forward.1} parent=0 // pred_region
    _
  $region5: #{transformer_planner_forward.1} parent=0 // pred_fallthru
    _
  // Predicated region
  $region6: #{transformer_planner_forward.1} parent=0 // pred_check
    _
  $region7: #{transformer_planner_forward.1} parent=0 // pred_check_branch
    %69 = sbr.rel (0) target = $region9
  $region8: #{transformer_planner_forward.1} parent=0 // pred_region
    _
  $region9: #{transformer_planner_forward.1} parent=0 // pred_fallthru
    _
  // Predicated region
  $region10: #{transformer_planner_forward.1} parent=0 // pred_check
    _
  $region11: #{transformer_planner_forward.1} parent=0 // pred_check_branch
    %71 = sbr.rel (0) target = $region13
  $region12: #{transformer_planner_forward.1} parent=0 // pred_region
    _
  $region13: #{transformer_planner_forward.1} parent=0 // pred_fallthru
    _
  // Predicated region
  $region14: #{transformer_planner_forward.1} parent=0 // pred_check
    _
  $region15: #{transformer_planner_forward.1} parent=0 // pred_check_branch
    %73 = sbr.rel (0) target = $region17
  $region16: #{transformer_planner_forward.1} parent=0 // pred_region
    _
  $region17: #{transformer_planner_forward.1} parent=0 // pred_fallthru
    _
  // Predicated region
  $region18: #{transformer_planner_forward.1} parent=0 // pred_check
    _
  $region19: #{transformer_planner_forward.1} parent=0 // pred_check_branch
    %75 = sbr.rel (0) target = $region21
  $region20: #{transformer_planner_forward.1} parent=0 // pred_region
    _
  $region21: #{transformer_planner_forward.1} parent=0 // pred_fallthru
    _
  // Predicated region
  $region22: #{transformer_planner_forward.1} parent=0 // pred_check
    _
  $region23: #{transformer_planner_forward.1} parent=0 // pred_check_branch
    %77 = sbr.rel (0) target = $region25
  $region24: #{transformer_planner_forward.1} parent=0 // pred_region
    _
  $region25: #{transformer_planner_forward.1} parent=0 // pred_fallthru
    _
  // Predicated region
  $region26: #{transformer_planner_forward.1} parent=0 // pred_check
    _
  $region27: #{transformer_planner_forward.1} parent=0 // pred_check_branch
    %79 = sbr.rel (0) target = $region29
  $region28: #{transformer_planner_forward.1} parent=0 // pred_region
    _
  $region29: #{transformer_planner_forward.1} parent=0 // pred_fallthru
    _
  // Predicated region
  $region30: #{transformer_planner_forward.1} parent=0 // pred_check
    _
  $region31: #{transformer_planner_forward.1} parent=0 // pred_check_branch
    %81 = sbr.rel (0) target = $region33
  $region32: #{transformer_planner_forward.1} parent=0 // pred_region
    _
  $region33: #{transformer_planner_forward.1} parent=0 // pred_fallthru
    _
  // Predicated region
  $region34: #{transformer_planner_forward.1} parent=0 // pred_check
    _
  $region35: #{transformer_planner_forward.1} parent=0 // pred_check_branch
    %83 = sbr.rel (0) target = $region37
  $region36: #{transformer_planner_forward.1} parent=0 // pred_region
    _
  $region37: #{transformer_planner_forward.1} parent=0 // pred_fallthru
    _
  // Predicated region
  $region38: #{transformer_planner_forward.1} parent=0 // pred_check
    _
  $region39: #{transformer_planner_forward.1} parent=0 // pred_check_branch
    %85 = sbr.rel (0) target = $region41
  $region40: #{transformer_planner_forward.1} parent=0 // pred_region
    _
  $region41: #{transformer_planner_forward.1} parent=0 // pred_fallthru
    _
  // Predicated region
  $region42: #{transformer_planner_forward.1} parent=0 // pred_check
    _
  $region43: #{transformer_planner_forward.1} parent=0 // pred_check_branch
    %87 = sbr.rel (0) target = $region45
  $region44: #{transformer_planner_forward.1} parent=0 // pred_region
    _
  $region45: #{transformer_planner_forward.1} parent=0 // pred_fallthru
    _
  // Predicated region
  $region46: #{transformer_planner_forward.1} parent=0 // pred_check
    _
  $region47: #{transformer_planner_forward.1} parent=0 // pred_check_branch
    %89 = sbr.rel (0) target = $region49
  $region48: #{transformer_planner_forward.1} parent=0 // pred_region
    _
  $region49: #{transformer_planner_forward.1} parent=0 // pred_fallthru
    _
  // Predicated region
  $region50: #{transformer_planner_forward.1} parent=0 // pred_check
    _
  $region51: #{transformer_planner_forward.1} parent=0 // pred_check_branch
    %91 = sbr.rel (0) target = $region53
  $region52: #{transformer_planner_forward.1} parent=0 // pred_region
    _
  $region53: #{transformer_planner_forward.1} parent=0 // pred_fallthru
    _
  // Predicated region
  $region54: #{transformer_planner_forward.1} parent=0 // pred_check
    _
  $region55: #{transformer_planner_forward.1} parent=0 // pred_check_branch
    %93 = sbr.rel (0) target = $region57
  $region56: #{transformer_planner_forward.1} parent=0 // pred_region
    _
  $region57: #{transformer_planner_forward.1} parent=0 // pred_fallthru
    _
  // Predicated region
  $region58: #{transformer_planner_forward.1} parent=0 // pred_check
    _
  $region59: #{transformer_planner_forward.1} parent=0 // pred_check_branch
    %95 = sbr.rel (0) target = $region61
  $region60: #{transformer_planner_forward.1} parent=0 // pred_region
    _
  $region61: #{transformer_planner_forward.1} parent=0 // pred_fallthru
    _
  // Predicated region
  $region62: #{transformer_planner_forward.1} parent=0 // pred_check
    _
  $region63: #{transformer_planner_forward.1} parent=0 // pred_check_branch
    %97 = sbr.rel (0) target = $region65
  $region64: #{transformer_planner_forward.1} parent=0 // pred_region
    _
  $region65: #{transformer_planner_forward.1} parent=0 // pred_fallthru
    _
  // Predicated region
  $region66: #{transformer_planner_forward.1} parent=0 // pred_check
    _
  $region67: #{transformer_planner_forward.1} parent=0 // pred_check_branch
    %99 = sbr.rel (0) target = $region69
  $region68: #{transformer_planner_forward.1} parent=0 // pred_region
    _
  $region69: #{transformer_planner_forward.1} parent=0 // pred_fallthru
    _
  // Predicated region
  $region70: #{transformer_planner_forward.1} parent=0 // pred_check
    _
  $region71: #{transformer_planner_forward.1} parent=0 // pred_check_branch
    %101 = sbr.rel (0) target = $region73
  $region72: #{transformer_planner_forward.1} parent=0 // pred_region
    _
  $region73: #{transformer_planner_forward.1} parent=0 // pred_fallthru
    _
  // Predicated region
  $region74: #{transformer_planner_forward.1} parent=0 // pred_check
    _
  $region75: #{transformer_planner_forward.1} parent=0 // pred_check_branch
    %103 = sbr.rel (0) target = $region77
  $region76: #{transformer_planner_forward.1} parent=0 // pred_region
    _
  $region77: #{transformer_planner_forward.1} parent=0 // pred_fallthru
    _
  // Predicated region
  $region78: #{transformer_planner_forward.1} parent=0 // pred_check
    _
  $region79: #{transformer_planner_forward.1} parent=0 // pred_check_branch
    %105 = sbr.rel (0) target = $region81
  $region80: #{transformer_planner_forward.1} parent=0 // pred_region
    _
  $region81: #{transformer_planner_forward.1} parent=0 // pred_fallthru
    _
  // Predicated region
  $region82: #{transformer_planner_forward.1} parent=0 // pred_check
    _
  $region83: #{transformer_planner_forward.1} parent=0 // pred_check_branch
    %107 = sbr.rel (0) target = $region85
  $region84: #{transformer_planner_forward.1} parent=0 // pred_region
    _
  $region85: #{transformer_planner_forward.1} parent=0 // pred_fallthru
    _
  // Predicated region
  $region86: #{transformer_planner_forward.1} parent=0 // pred_check
    _
  $region87: #{transformer_planner_forward.1} parent=0 // pred_check_branch
    %109 = sbr.rel (0) target = $region89
  $region88: #{transformer_planner_forward.1} parent=0 // pred_region
    _
  $region89: #{transformer_planner_forward.1} parent=0 // pred_fallthru
    _
  // Predicated region
  $region90: #{transformer_planner_forward.1} parent=0 // pred_check
    _
  $region91: #{transformer_planner_forward.1} parent=0 // pred_check_branch
    %111 = sbr.rel (0) target = $region93
  $region92: #{transformer_planner_forward.1} parent=0 // pred_region
    _
  $region93: #{transformer_planner_forward.1} parent=0 // pred_fallthru
    _
  // Predicated region
  $region94: #{transformer_planner_forward.1} parent=0 // pred_check
    _
  $region95: #{transformer_planner_forward.1} parent=0 // pred_check_branch
    %113 = sbr.rel (0) target = $region97
  $region96: #{transformer_planner_forward.1} parent=0 // pred_region
    _
  $region97: #{transformer_planner_forward.1} parent=0 // pred_fallthru
    _
  // Predicated region
  $region98: #{transformer_planner_forward.1} parent=0 // pred_check
    _
  $region99: #{transformer_planner_forward.1} parent=0 // pred_check_branch
    %115 = sbr.rel (0) target = $region101
  $region100: #{transformer_planner_forward.1} parent=0 // pred_region
    _
  $region101: #{transformer_planner_forward.1} parent=0 // pred_fallthru
    _
  // Predicated region
  $region102: #{transformer_planner_forward.1} parent=0 // pred_check
    _
  $region103: #{transformer_planner_forward.1} parent=0 // pred_check_branch
    %117 = sbr.rel (0) target = $region105
  $region104: #{transformer_planner_forward.1} parent=0 // pred_region
    _
  $region105: #{transformer_planner_forward.1} parent=0 // pred_fallthru
    _
  // Predicated region
  $region106: #{transformer_planner_forward.1} parent=0 // pred_check
    _
  $region107: #{transformer_planner_forward.1} parent=0 // pred_check_branch
    %119 = sbr.rel (0) target = $region109
  $region108: #{transformer_planner_forward.1} parent=0 // pred_region
    _
  $region109: #{transformer_planner_forward.1} parent=0 // pred_fallthru
    _
  // Predicated region
  $region110: #{transformer_planner_forward.1} parent=0 // pred_check
    _
  $region111: #{transformer_planner_forward.1} parent=0 // pred_check_branch
    %121 = sbr.rel (0) target = $region113
  $region112: #{transformer_planner_forward.1} parent=0 // pred_region
    _
  $region113: #{transformer_planner_forward.1} parent=0 // pred_fallthru
    _
  // Predicated region
  $region114: #{transformer_planner_forward.1} parent=0 // pred_check
    _
  $region115: #{transformer_planner_forward.1} parent=0 // pred_check_branch
    %123 = sbr.rel (0) target = $region117
  $region116: #{transformer_planner_forward.1} parent=0 // pred_region
    _
  $region117: #{transformer_planner_forward.1} parent=0 // pred_fallthru
    _
  // Predicated region
  $region118: #{transformer_planner_forward.1} parent=0 // pred_check
    _
  $region119: #{transformer_planner_forward.1} parent=0 // pred_check_branch
    %125 = sbr.rel (0) target = $region121
  $region120: #{transformer_planner_forward.1} parent=0 // pred_region
    _
  $region121: #{transformer_planner_forward.1} parent=0 // pred_fallthru
    _
  %v126 = vld [vmem:[%s1] sm:$0xff]
  %v127 = vld [vmem:[%s1 + $0x8] sm:$0xff]
  %v128 = vld [vmem:[%s1 + $0x10] sm:$0xff]
  %v129 = vld [vmem:[%s1 + $0x18] sm:$0xff]
  %v130 = vld [vmem:[%s1 + $0x20] sm:$0xff]
  %v131 = vld [vmem:[%s1 + $0x28] sm:$0xff]
  %v132 = vld [vmem:[%s3] sm:$0xff]
  %v133 = vld [vmem:[%s3 + $0x8] sm:$0xff]
  %v134 = vld [vmem:[%s5] sm:$0xff]
  %v135 = vld [vmem:[%s5 + $0x8] sm:$0xff]
  %v136 = vld [vmem:[%s7] sm:$0xff]
  %v137 = vld [vmem:[%s7 + $0x8] sm:$0xff]
  %v138 = vld [vmem:[%s9] sm:$0xff]
  %v139 = vld [vmem:[%s9 + $0x8] sm:$0xff]
  %v140 = vld [vmem:[%s9 + $0x10] sm:$0xff]
  %v141 = vld [vmem:[%s9 + $0x18] sm:$0xff]
  %v142 = vld [vmem:[%s9 + $0x20] sm:$0xff]
  %v143 = vld [vmem:[%s9 + $0x28] sm:$0xff]
  %v144 = vld [vmem:[%s9 + $0x30] sm:$0xff]
  %v145 = vld [vmem:[%s9 + $0x38] sm:$0xff]
  %v146 = vld [vmem:[%s15] sm:$0x1]
  %v148 = vlaneseq
  %v149 = vshrl.u32 %v148, 7
  %v150 = vsub.s32 0, %v149
  %v151 = vrot.slane %v146, %v150
  %vm153 = vcmask 523264
  %v155 = vsel %vm153, %v132, 0
  %v158 = vsel %vm153, %v133, 0
  %160 = vmatprep.subr.mxu0 0.0
  %161 = vmatpush1.msra.mxu0 %v138
  %162 = vmatprep.subr.mxu0 0.0
  %163 = vmatpush1.msra.mxu0 %v139
  %164 = vmatprep.subr.mxu0 0.0
  %165 = vmatpush1.msra.mxu0 %v140
  %166 = vmatprep.subr.mxu0 0.0
  %167 = vmatpush1.msra.mxu0 %v141
  %168 = vmatprep.subr.mxu0 0.0
  %169 = vmatpush1.msra.mxu0 %v142
  %170 = vmatprep.subr.mxu0 0.0
  %171 = vmatpush1.msra.mxu0 %v143
  %172 = vmatprep.subr.mxu0 0.0
  %173 = vmatpush1.msra.mxu0 %v144
  %174 = vmatprep.subr.mxu0 0.0
  %175 = vmatpush1.msra.mxu0 %v145
  %176 = vmatprep.subr.mxu0 0.0
  %177 = vmatpush1.msra.mxu0 0.0
  %178 = vmatprep.subr.mxu0 0.0
  %179 = vmatpush1.msra.mxu0 0.0
  %180 = vmatprep.subr.mxu0 0.0
  %181 = vmatpush1.msra.mxu0 0.0
  %182 = vmatprep.subr.mxu0 0.0
  %183 = vmatpush1.msra.mxu0 0.0
  %184 = vmatprep.subr.mxu0 0.0
  %185 = vmatpush1.msra.mxu0 0.0
  %186 = vmatprep.subr.mxu0 0.0
  %187 = vmatpush1.msra.mxu0 0.0
  %188 = vmatprep.subr.mxu0 0.0
  %189 = vmatpush1.msra.mxu0 0.0
  %190 = vmatprep.subr.mxu0 0.0
  %191 = vmatpush1.msra.mxu0 0.0
  %192 = vmatprep.subr.mxu0 0.0
  %193 = vmatpush1.msra.mxu0 0.0
  %194 = vmatprep.subr.mxu0 0.0
  %195 = vmatpush1.msra.mxu0 0.0
  %196 = vmatprep.subr.mxu0 0.0
  %197 = vmatpush1.msra.mxu0 0.0
  %198 = vmatprep.subr.mxu0 0.0
  %199 = vmatpush1.msra.mxu0 0.0
  %200 = vmatprep.subr.mxu0 0.0
  %201 = vmatpush1.msra.mxu0 0.0
  %202 = vmatprep.subr.mxu0 0.0
  %203 = vmatpush1.msra.mxu0 0.0
  %204 = vmatprep.subr.mxu0 0.0
  %205 = vmatpush1.msra.mxu0 0.0
  %206 = vmatprep.subr.mxu0 0.0
  %207 = vmatpush1.msra.mxu0 0.0
  %208 = vmatprep.subr.mxu0 0.0
  %209 = vmatpush1.msra.mxu0 0.0
  %210 = vmatprep.subr.mxu0 0.0
  %211 = vmatpush1.msra.mxu0 0.0
  %212 = vmatprep.subr.mxu0 0.0
  %213 = vmatpush1.msra.mxu0 0.0
  %214 = vmatprep.subr.mxu0 0.0
  %215 = vmatpush1.msra.mxu0 0.0
  %216 = vmatprep.subr.mxu0 0.0
  %217 = vmatpush1.msra.mxu0 0.0
  %218 = vmatprep.subr.mxu0 0.0
  %219 = vmatpush1.msra.mxu0 0.0
  %220 = vmatprep.subr.mxu0 0.0
  %221 = vmatpush1.msra.mxu0 0.0
  %222 = vmatprep.subr.mxu0 0.0
  %223 = vmatpush1.msra.mxu0 0.0
  %224 = vmatprep.mubr.f32.mxu0 0.0
  %225 = vmatmul.mubr.f32.gmra.mrb[0].mxu0 %v155
  %v226 = vpop.f32.mrb[0].mxu0
  %v227 = vadd.f32 %v151, %v226
  %v228 = vpop.f32.mrb[0].mxu0
  %229 = vmatprep.mubr.f32.mxu0 0.0
  %230 = vmatmul.mubr.f32.gmra.mrb[0].mxu0 %v158
  %v231 = vpop.f32.mrb[0].mxu0
  %v232 = vadd.f32 %v151, %v231
  %v233 = vpop.f32.mrb[0].mxu0
  %234 = vdwg.mxu0
  %v235 = vmul.f32 %v227, 0.25
  %v236 = vmul.f32 %v232, 0.25
  %v237 = vld [vmem:[%s11] sm:$0xff]
  %v238 = vld [vmem:[%s11 + $0x8] sm:$0xff]
  %v239 = vld [vmem:[%s11 + $0x10] sm:$0xff]
  %v240 = vld [vmem:[%s11 + $0x18] sm:$0xff]
  %v241 = vld [vmem:[%s11 + $0x20] sm:$0xff]
  %v242 = vld [vmem:[%s11 + $0x28] sm:$0xff]
  %v243 = vld [vmem:[%s11 + $0x30] sm:$0xff]
  %v244 = vld [vmem:[%s11 + $0x38] sm:$0xff]
  %v245 = vld [vmem:[%s17] sm:$0x1]
  %v247 = vlaneseq
  %v248 = vshrl.u32 %v247, 7
  %v249 = vsub.s32 0, %v248
  %v250 = vrot.slane %v245, %v249
  %252 = vmatprep.subr.mxu0 0.0
  %253 = vmatpush1.msra.mxu0 %v237
  %254 = vmatprep.subr.mxu0 0.0
  %255 = vmatpush1.msra.mxu0 %v238
  %256 = vmatprep.subr.mxu0 0.0
  %257 = vmatpush1.msra.mxu0 %v239
  %258 = vmatprep.subr.mxu0 0.0
  %259 = vmatpush1.msra.mxu0 %v240
  %260 = vmatprep.subr.mxu0 0.0
  %261 = vmatpush1.msra.mxu0 %v241
  %262 = vmatprep.subr.mxu0 0.0
  %263 = vmatpush1.msra.mxu0 %v242
  %264 = vmatprep.subr.mxu0 0.0
  %265 = vmatpush1.msra.mxu0 %v243
  %266 = vmatprep.subr.mxu0 0.0
  %267 = vmatpush1.msra.mxu0 %v244
  %268 = vmatprep.subr.mxu0 0.0
  %269 = vmatpush1.msra.mxu0 0.0
  %270 = vmatprep.subr.mxu0 0.0
  %271 = vmatpush1.msra.mxu0 0.0
  %272 = vmatprep.subr.mxu0 0.0
  %273 = vmatpush1.msra.mxu0 0.0
  %274 = vmatprep.subr.mxu0 0.0
  %275 = vmatpush1.msra.mxu0 0.0
  %276 = vmatprep.subr.mxu0 0.0
  %277 = vmatpush1.msra.mxu0 0.0
  %278 = vmatprep.subr.mxu0 0.0
  %279 = vmatpush1.msra.mxu0 0.0
  %280 = vmatprep.subr.mxu0 0.0
  %281 = vmatpush1.msra.mxu0 0.0
  %282 = vmatprep.subr.mxu0 0.0
  %283 = vmatpush1.msra.mxu0 0.0
  %284 = vmatprep.subr.mxu0 0.0
  %285 = vmatpush1.msra.mxu0 0.0
  %286 = vmatprep.subr.mxu0 0.0
  %287 = vmatpush1.msra.mxu0 0.0
  %288 = vmatprep.subr.mxu0 0.0
  %289 = vmatpush1.msra.mxu0 0.0
  %290 = vmatprep.subr.mxu0 0.0
  %291 = vmatpush1.msra.mxu0 0.0
  %292 = vmatprep.subr.mxu0 0.0
  %293 = vmatpush1.msra.mxu0 0.0
  %294 = vmatprep.subr.mxu0 0.0
  %295 = vmatpush1.msra.mxu0 0.0
  %296 = vmatprep.subr.mxu0 0.0
  %297 = vmatpush1.msra.mxu0 0.0
  %298 = vmatprep.subr.mxu0 0.0
  %299 = vmatpush1.msra.mxu0 0.0
  %300 = vmatprep.subr.mxu0 0.0
  %301 = vmatpush1.msra.mxu0 0.0
  %302 = vmatprep.subr.mxu0 0.0
  %303 = vmatpush1.msra.mxu0 0.0
  %304 = vmatprep.subr.mxu0 0.0
  %305 = vmatpush1.msra.mxu0 0.0
  %306 = vmatprep.subr.mxu0 0.0
  %307 = vmatpush1.msra.mxu0 0.0
  %308 = vmatprep.subr.mxu0 0.0
  %309 = vmatpush1.msra.mxu0 0.0
  %310 = vmatprep.subr.mxu0 0.0
  %311 = vmatpush1.msra.mxu0 0.0
  %312 = vmatprep.subr.mxu0 0.0
  %313 = vmatpush1.msra.mxu0 0.0
  %314 = vmatprep.subr.mxu0 0.0
  %315 = vmatpush1.msra.mxu0 0.0
  %316 = vmatprep.mubr.f32.mxu0 0.0
  %317 = vmatmul.mubr.f32.gmra.mrb[0].mxu0 %v155
  %v318 = vpop.f32.mrb[0].mxu0
  %v319 = vadd.f32 %v250, %v318
  %v320 = vpop.f32.mrb[0].mxu0
  %321 = vmatprep.mubr.f32.mxu0 0.0
  %322 = vmatmul.mubr.f32.gmra.mrb[0].mxu0 %v158
  %v323 = vpop.f32.mrb[0].mxu0
  %v324 = vadd.f32 %v250, %v323
  %v325 = vpop.f32.mrb[0].mxu0
  %326 = vdwg.mxu0
  %v327 = vld [vmem:[%s13] sm:$0xff]
  %v328 = vld [vmem:[%s13 + $0x8] sm:$0xff]
  %v329 = vld [vmem:[%s13 + $0x10] sm:$0xff]
  %v330 = vld [vmem:[%s13 + $0x18] sm:$0xff]
  %v331 = vld [vmem:[%s13 + $0x20] sm:$0xff]
  %v332 = vld [vmem:[%s13 + $0x28] sm:$0xff]
  %v333 = vld [vmem:[%s13 + $0x30] sm:$0xff]
  %v334 = vld [vmem:[%s13 + $0x38] sm:$0xff]
  %v335 = vld [vmem:[%s19] sm:$0x1]
  %v337 = vlaneseq
  %v338 = vshrl.u32 %v337, 7
  %v339 = vsub.s32 0, %v338
  %v340 = vrot.slane %v335, %v339
  %342 = vmatprep.subr.mxu0 0.0
  %343 = vmatpush1.msra.mxu0 %v327
  %344 = vmatprep.subr.mxu0 0.0
  %345 = vmatpush1.msra.mxu0 %v328
  %346 = vmatprep.subr.mxu0 0.0
  %347 = vmatpush1.msra.mxu0 %v329
  %348 = vmatprep.subr.mxu0 0.0
  %349 = vmatpush1.msra.mxu0 %v330
  %350 = vmatprep.subr.mxu0 0.0
  %351 = vmatpush1.msra.mxu0 %v331
  %352 = vmatprep.subr.mxu0 0.0
  %353 = vmatpush1.msra.mxu0 %v332
  %354 = vmatprep.subr.mxu0 0.0
  %355 = vmatpush1.msra.mxu0 %v333
  %356 = vmatprep.subr.mxu0 0.0
  %357 = vmatpush1.msra.mxu0 %v334
  %358 = vmatprep.subr.mxu0 0.0
  %359 = vmatpush1.msra.mxu0 0.0
  %360 = vmatprep.subr.mxu0 0.0
  %361 = vmatpush1.msra.mxu0 0.0
  %362 = vmatprep.subr.mxu0 0.0
  %363 = vmatpush1.msra.mxu0 0.0
  %364 = vmatprep.subr.mxu0 0.0
  %365 = vmatpush1.msra.mxu0 0.0
  %366 = vmatprep.subr.mxu0 0.0
  %367 = vmatpush1.msra.mxu0 0.0
  %368 = vmatprep.subr.mxu0 0.0
  %369 = vmatpush1.msra.mxu0 0.0
  %370 = vmatprep.subr.mxu0 0.0
  %371 = vmatpush1.msra.mxu0 0.0
  %372 = vmatprep.subr.mxu0 0.0
  %373 = vmatpush1.msra.mxu0 0.0
  %374 = vmatprep.subr.mxu0 0.0
  %375 = vmatpush1.msra.mxu0 0.0
  %376 = vmatprep.subr.mxu0 0.0
  %377 = vmatpush1.msra.mxu0 0.0
  %378 = vmatprep.subr.mxu0 0.0
  %379 = vmatpush1.msra.mxu0 0.0
  %380 = vmatprep.subr.mxu0 0.0
  %381 = vmatpush1.msra.mxu0 0.0
  %382 = vmatprep.subr.mxu0 0.0
  %383 = vmatpush1.msra.mxu0 0.0
  %384 = vmatprep.subr.mxu0 0.0
  %385 = vmatpush1.msra.mxu0 0.0
  %386 = vmatprep.subr.mxu0 0.0
  %387 = vmatpush1.msra.mxu0 0.0
  %388 = vmatprep.subr.mxu0 0.0
  %389 = vmatpush1.msra.mxu0 0.0
  %390 = vmatprep.subr.mxu0 0.0
  %391 = vmatpush1.msra.mxu0 0.0
  %392 = vmatprep.subr.mxu0 0.0
  %393 = vmatpush1.msra.mxu0 0.0
  %394 = vmatprep.subr.mxu0 0.0
  %395 = vmatpush1.msra.mxu0 0.0
  %396 = vmatprep.subr.mxu0 0.0
  %397 = vmatpush1.msra.mxu0 0.0
  %398 = vmatprep.subr.mxu0 0.0
  %399 = vmatpush1.msra.mxu0 0.0
  %400 = vmatprep.subr.mxu0 0.0
  %401 = vmatpush1.msra.mxu0 0.0
  %402 = vmatprep.subr.mxu0 0.0
  %403 = vmatpush1.msra.mxu0 0.0
  %404 = vmatprep.subr.mxu0 0.0
  %405 = vmatpush1.msra.mxu0 0.0
  %406 = vmatprep.mubr.f32.mxu0 0.0
  %407 = vmatmul.mubr.f32.gmra.mrb[0].mxu0 %v155
  %v408 = vpop.f32.mrb[0].mxu0
  %v409 = vadd.f32 %v340, %v408
  %v410 = vpop.f32.mrb[0].mxu0
  %411 = vmatprep.mubr.f32.mxu0 0.0
  %412 = vmatmul.mubr.f32.gmra.mrb[0].mxu0 %v158
  %v413 = vpop.f32.mrb[0].mxu0
  %v414 = vadd.f32 %v340, %v413
  %v415 = vpop.f32.mrb[0].mxu0
  %416 = vdwg.mxu0
  %vm417 = vcmask 130048
  %v419 = vsel %vm417, %v235, 0
  %v422 = vsel %vm417, %v236, 0
  %v425 = vsel %vm417, %v319, 0
  %v428 = vsel %vm417, %v324, 0
  %430 = vmatprep.subr.mxu0 0.0
  %431 = vmatpush1.xpose.msra.mxu0 %v425
  %432 = vmatprep.subr.mxu0 0.0
  %433 = vmatpush1.xpose.msra.mxu0 %v428
  %434 = vmatprep.subr.mxu0 0.0
  %435 = vmatpush1.xpose.msra.mxu0 0.0
  %436 = vmatprep.subr.mxu0 0.0
  %437 = vmatpush1.xpose.msra.mxu0 0.0
  %438 = vmatprep.subr.mxu0 0.0
  %439 = vmatpush1.xpose.msra.mxu0 0.0
  %440 = vmatprep.subr.mxu0 0.0
  %441 = vmatpush1.xpose.msra.mxu0 0.0
  %442 = vmatprep.subr.mxu0 0.0
  %443 = vmatpush1.xpose.msra.mxu0 0.0
  %444 = vmatprep.subr.mxu0 0.0
  %445 = vmatpush1.xpose.msra.mxu0 0.0
  %446 = vmatprep.subr.mxu0 0.0
  %447 = vmatpush1.xpose.msra.mxu0 0.0
  %448 = vmatprep.subr.mxu0 0.0
  %449 = vmatpush1.xpose.msra.mxu0 0.0
  %450 = vmatprep.subr.mxu0 0.0
  %451 = vmatpush1.xpose.msra.mxu0 0.0
  %452 = vmatprep.subr.mxu0 0.0
  %453 = vmatpush1.xpose.msra.mxu0 0.0
  %454 = vmatprep.subr.mxu0 0.0
  %455 = vmatpush1.xpose.msra.mxu0 0.0
  %456 = vmatprep.subr.mxu0 0.0
  %457 = vmatpush1.xpose.msra.mxu0 0.0
  %458 = vmatprep.subr.mxu0 0.0
  %459 = vmatpush1.xpose.msra.mxu0 0.0
  %460 = vmatprep.subr.mxu0 0.0
  %461 = vmatpush1.xpose.msra.mxu0 0.0
  %462 = vmatprep.subr.mxu0 0.0
  %463 = vmatpush1.xpose.msra.mxu0 0.0
  %464 = vmatprep.subr.mxu0 0.0
  %465 = vmatpush1.xpose.msra.mxu0 0.0
  %466 = vmatprep.subr.mxu0 0.0
  %467 = vmatpush1.xpose.msra.mxu0 0.0
  %468 = vmatprep.subr.mxu0 0.0
  %469 = vmatpush1.xpose.msra.mxu0 0.0
  %470 = vmatprep.subr.mxu0 0.0
  %471 = vmatpush1.xpose.msra.mxu0 0.0
  %472 = vmatprep.subr.mxu0 0.0
  %473 = vmatpush1.xpose.msra.mxu0 0.0
  %474 = vmatprep.subr.mxu0 0.0
  %475 = vmatpush1.xpose.msra.mxu0 0.0
  %476 = vmatprep.subr.mxu0 0.0
  %477 = vmatpush1.xpose.msra.mxu0 0.0
  %478 = vmatprep.subr.mxu0 0.0
  %479 = vmatpush1.xpose.msra.mxu0 0.0
  %480 = vmatprep.subr.mxu0 0.0
  %481 = vmatpush1.xpose.msra.mxu0 0.0
  %482 = vmatprep.subr.mxu0 0.0
  %483 = vmatpush1.xpose.msra.mxu0 0.0
  %484 = vmatprep.subr.mxu0 0.0
  %485 = vmatpush1.xpose.msra.mxu0 0.0
  %486 = vmatprep.subr.mxu0 0.0
  %487 = vmatpush1.xpose.msra.mxu0 0.0
  %488 = vmatprep.subr.mxu0 0.0
  %489 = vmatpush1.xpose.msra.mxu0 0.0
  %490 = vmatprep.subr.mxu0 0.0
  %491 = vmatpush1.xpose.msra.mxu0 0.0
  %492 = vmatprep.subr.mxu0 0.0
  %493 = vmatpush1.xpose.msra.mxu0 0.0
  %494 = vmatprep.mubr.f32.mxu0 0.0
  %495 = vmatmul.mubr.f32.gmra.mrb[0].mxu0 %v419
  %v496 = vpop.f32.mrb[0].mxu0
  %v497 = vadd.f32 %v134, %v496
  %v498 = vpop.f32.mrb[0].mxu0
  %499 = vmatprep.mubr.f32.mxu0 0.0
  %500 = vmatmul.mubr.f32.gmra.mrb[0].mxu0 %v422
  %v501 = vpop.f32.mrb[0].mxu0
  %v502 = vadd.f32 %v135, %v501
  %v503 = vpop.f32.mrb[0].mxu0
  %504 = vdwg.mxu0
  %v505 = vsel %vm417, %v497, -inf
  %506 = vmax.xlane.f32.xlu0 %v505
  %v507 = vpop.xlane.xlu0 %506
  %v508 = vsel %vm417, %v502, -inf
  %509 = vmax.xlane.f32.xlu0 %v508
  %v510 = vpop.xlane.xlu0 %509
  %v511 = vsub.f32 %v497, %v507
  %v512 = vsub.f32 %v502, %v510
  %v513 = vmul.f32 %v511, 1.442695
  %v514 = vpow.pop %v513
  %v515 = vmul.f32 %v512, 1.442695
  %v516 = vpow.pop %v515
  %v517 = vsel %vm417, %v514, 0.0
  %518 = vadd.xlane.f32.xlu0 %v517
  %v519 = vpop.xlane.xlu0 %518
  %v520 = vsel %vm417, %v516, 0.0
  %521 = vadd.xlane.f32.xlu0 %v520
  %v522 = vpop.xlane.xlu0 %521
  %v523 = vrcp.pop %v519
  %v524 = vrcp.pop %v522
  %v525 = vmul.f32 %v514, %v523
  %v526 = vmul.f32 %v516, %v524
  %v528 = vsel %vm417, %v525, 0
  %v531 = vsel %vm417, %v526, 0
  %533 = vmatprep.subr.mxu0 0.0
  %534 = vmatpush1.msra.mxu0 %v409
  %535 = vmatprep.subr.mxu0 0.0
  %536 = vmatpush1.msra.mxu0 %v414
  %537 = vmatprep.subr.mxu0 0.0
  %538 = vmatpush1.msra.mxu0 0.0
  %539 = vmatprep.subr.mxu0 0.0
  %540 = vmatpush1.msra.mxu0 0.0
  %541 = vmatprep.subr.mxu0 0.0
  %542 = vmatpush1.msra.mxu0 0.0
  %543 = vmatprep.subr.mxu0 0.0
  %544 = vmatpush1.msra.mxu0 0.0
  %545 = vmatprep.subr.mxu0 0.0
  %546 = vmatpush1.msra.mxu0 0.0
  %547 = vmatprep.subr.mxu0 0.0
  %548 = vmatpush1.msra.mxu0 0.0
  %549 = vmatprep.subr.mxu0 0.0
  %550 = vmatpush1.msra.mxu0 0.0
  %551 = vmatprep.subr.mxu0 0.0
  %552 = vmatpush1.msra.mxu0 0.0
  %553 = vmatprep.subr.mxu0 0.0
  %554 = vmatpush1.msra.mxu0 0.0
  %555 = vmatprep.subr.mxu0 0.0
  %556 = vmatpush1.msra.mxu0 0.0
  %557 = vmatprep.subr.mxu0 0.0
  %558 = vmatpush1.msra.mxu0 0.0
  %559 = vmatprep.subr.mxu0 0.0
  %560 = vmatpush1.msra.mxu0 0.0
  %561 = vmatprep.subr.mxu0 0.0
  %562 = vmatpush1.msra.mxu0 0.0
  %563 = vmatprep.subr.mxu0 0.0
  %564 = vmatpush1.msra.mxu0 0.0
  %565 = vmatprep.subr.mxu0 0.0
  %566 = vmatpush1.msra.mxu0 0.0
  %567 = vmatprep.subr.mxu0 0.0
  %568 = vmatpush1.msra.mxu0 0.0
  %569 = vmatprep.subr.mxu0 0.0
  %570 = vmatpush1.msra.mxu0 0.0
  %571 = vmatprep.subr.mxu0 0.0
  %572 = vmatpush1.msra.mxu0 0.0
  %573 = vmatprep.subr.mxu0 0.0
  %574 = vmatpush1.msra.mxu0 0.0
  %575 = vmatprep.subr.mxu0 0.0
  %576 = vmatpush1.msra.mxu0 0.0
  %577 = vmatprep.subr.mxu0 0.0
  %578 = vmatpush1.msra.mxu0 0.0
  %579 = vmatprep.subr.mxu0 0.0
  %580 = vmatpush1.msra.mxu0 0.0
  %581 = vmatprep.subr.mxu0 0.0
  %582 = vmatpush1.msra.mxu0 0.0
  %583 = vmatprep.subr.mxu0 0.0
  %584 = vmatpush1.msra.mxu0 0.0
  %585 = vmatprep.subr.mxu0 0.0
  %586 = vmatpush1.msra.mxu0 0.0
  %587 = vmatprep.subr.mxu0 0.0
  %588 = vmatpush1.msra.mxu0 0.0
  %589 = vmatprep.subr.mxu0 0.0
  %590 = vmatpush1.msra.mxu0 0.0
  %591 = vmatprep.subr.mxu0 0.0
  %592 = vmatpush1.msra.mxu0 0.0
  %593 = vmatprep.subr.mxu0 0.0
  %594 = vmatpush1.msra.mxu0 0.0
  %595 = vmatprep.subr.mxu0 0.0
  %596 = vmatpush1.msra.mxu0 0.0
  %597 = vmatprep.mubr.f32.mxu0 0.0
  %598 = vmatmul.mubr.f32.gmra.mrb[0].mxu0 %v528
  %v599 = vpop.f32.mrb[0].mxu0
  %v600 = vadd.f32 0.0, %v599
  %v601 = vpop.f32.mrb[0].mxu0
  %602 = vmatprep.mubr.f32.mxu0 0.0
  %603 = vmatmul.mubr.f32.gmra.mrb[0].mxu0 %v531
  %v604 = vpop.f32.mrb[0].mxu0
  %v605 = vadd.f32 0.0, %v604
  %v606 = vpop.f32.mrb[0].mxu0
  %607 = vdwg.mxu0
  %v608 = vld [vmem:[%s21] sm:$0xff]
  %v609 = vld [vmem:[%s21 + $0x8] sm:$0xff]
  %s610 = scalar_lea.vmem %s9, 64
  %v611 = vld [vmem:[%s610] sm:$0xff]
  %v612 = vld [vmem:[%s610 + $0x8] sm:$0xff]
  %v613 = vld [vmem:[%s610 + $0x10] sm:$0xff]
  %v614 = vld [vmem:[%s610 + $0x18] sm:$0xff]
  %v615 = vld [vmem:[%s610 + $0x20] sm:$0xff]
  %v616 = vld [vmem:[%s610 + $0x28] sm:$0xff]
  %v617 = vld [vmem:[%s610 + $0x30] sm:$0xff]
  %v618 = vld [vmem:[%s610 + $0x38] sm:$0xff]
  %s619 = scalar_lea.vmem %s15, 1
  %v620 = vld [vmem:[%s619] sm:$0x1]
  %v622 = vlaneseq
  %v623 = vshrl.u32 %v622, 7
  %v624 = vsub.s32 0, %v623
  %v625 = vrot.slane %v620, %v624
  %627 = vmatprep.subr.mxu0 0.0
  %628 = vmatpush1.msra.mxu0 %v611
  %629 = vmatprep.subr.mxu0 0.0
  %630 = vmatpush1.msra.mxu0 %v612
  %631 = vmatprep.subr.mxu0 0.0
  %632 = vmatpush1.msra.mxu0 %v613
  %633 = vmatprep.subr.mxu0 0.0
  %634 = vmatpush1.msra.mxu0 %v614
  %635 = vmatprep.subr.mxu0 0.0
  %636 = vmatpush1.msra.mxu0 %v615
  %637 = vmatprep.subr.mxu0 0.0
  %638 = vmatpush1.msra.mxu0 %v616
  %639 = vmatprep.subr.mxu0 0.0
  %640 = vmatpush1.msra.mxu0 %v617
  %641 = vmatprep.subr.mxu0 0.0
  %642 = vmatpush1.msra.mxu0 %v618
  %643 = vmatprep.subr.mxu0 0.0
  %644 = vmatpush1.msra.mxu0 0.0
  %645 = vmatprep.subr.mxu0 0.0
  %646 = vmatpush1.msra.mxu0 0.0
  %647 = vmatprep.subr.mxu0 0.0
  %648 = vmatpush1.msra.mxu0 0.0
  %649 = vmatprep.subr.mxu0 0.0
  %650 = vmatpush1.msra.mxu0 0.0
  %651 = vmatprep.subr.mxu0 0.0
  %652 = vmatpush1.msra.mxu0 0.0
  %653 = vmatprep.subr.mxu0 0.0
  %654 = vmatpush1.msra.mxu0 0.0
  %655 = vmatprep.subr.mxu0 0.0
  %656 = vmatpush1.msra.mxu0 0.0
  %657 = vmatprep.subr.mxu0 0.0
  %658 = vmatpush1.msra.mxu0 0.0
  %659 = vmatprep.subr.mxu0 0.0
  %660 = vmatpush1.msra.mxu0 0.0
  %661 = vmatprep.subr.mxu0 0.0
  %662 = vmatpush1.msra.mxu0 0.0
  %663 = vmatprep.subr.mxu0 0.0
  %664 = vmatpush1.msra.mxu0 0.0
  %665 = vmatprep.subr.mxu0 0.0
  %666 = vmatpush1.msra.mxu0 0.0
  %667 = vmatprep.subr.mxu0 0.0
  %668 = vmatpush1.msra.mxu0 0.0
  %669 = vmatprep.subr.mxu0 0.0
  %670 = vmatpush1.msra.mxu0 0.0
  %671 = vmatprep.subr.mxu0 0.0
  %672 = vmatpush1.msra.mxu0 0.0
  %673 = vmatprep.subr.mxu0 0.0
  %674 = vmatpush1.msra.mxu0 0.0
  %675 = vmatprep.subr.mxu0 0.0
  %676 = vmatpush1.msra.mxu0 0.0
  %677 = vmatprep.subr.mxu0 0.0
  %678 = vmatpush1.msra.mxu0 0.0
  %679 = vmatprep.subr.mxu0 0.0
  %680 = vmatpush1.msra.mxu0 0.0
  %681 = vmatprep.subr.mxu0 0.0
  %682 = vmatpush1.msra.mxu0 0.0
  %683 = vmatprep.subr.mxu0 0.0
  %684 = vmatpush1.msra.mxu0 0.0
  %685 = vmatprep.subr.mxu0 0.0
  %686 = vmatpush1.msra.mxu0 0.0
  %687 = vmatprep.subr.mxu0 0.0
  %688 = vmatpush1.msra.mxu0 0.0
  %689 = vmatprep.subr.mxu0 0.0
  %690 = vmatpush1.msra.mxu0 0.0
  %691 = vmatprep.mubr.f32.mxu0 0.0
  %692 = vmatmul.mubr.f32.gmra.mrb[0].mxu0 %v155
  %v693 = vpop.f32.mrb[0].mxu0
  %v694 = vadd.f32 %v625, %v693
  %v695 = vpop.f32.mrb[0].mxu0
  %696 = vmatprep.mubr.f32.mxu0 0.0
  %697 = vmatmul.mubr.f32.gmra.mrb[0].mxu0 %v158
  %v698 = vpop.f32.mrb[0].mxu0
  %v699 = vadd.f32 %v625, %v698
  %v700 = vpop.f32.mrb[0].mxu0
  %701 = vdwg.mxu0
  %v702 = vmul.f32 %v694, 0.25
  %v703 = vmul.f32 %v699, 0.25
  %s704 = scalar_lea.vmem %s11, 64
  %v705 = vld [vmem:[%s704] sm:$0xff]
  %v706 = vld [vmem:[%s704 + $0x8] sm:$0xff]
  %v707 = vld [vmem:[%s704 + $0x10] sm:$0xff]
  %v708 = vld [vmem:[%s704 + $0x18] sm:$0xff]
  %v709 = vld [vmem:[%s704 + $0x20] sm:$0xff]
  %v710 = vld [vmem:[%s704 + $0x28] sm:$0xff]
  %v711 = vld [vmem:[%s704 + $0x30] sm:$0xff]
  %v712 = vld [vmem:[%s704 + $0x38] sm:$0xff]
  %s713 = scalar_lea.vmem %s17, 1
  %v714 = vld [vmem:[%s713] sm:$0x1]
  %v716 = vlaneseq
  %v717 = vshrl.u32 %v716, 7
  %v718 = vsub.s32 0, %v717
  %v719 = vrot.slane %v714, %v718
  %721 = vmatprep.subr.mxu0 0.0
  %722 = vmatpush1.msra.mxu0 %v705
  %723 = vmatprep.subr.mxu0 0.0
  %724 = vmatpush1.msra.mxu0 %v706
  %725 = vmatprep.subr.mxu0 0.0
  %726 = vmatpush1.msra.mxu0 %v707
  %727 = vmatprep.subr.mxu0 0.0
  %728 = vmatpush1.msra.mxu0 %v708
  %729 = vmatprep.subr.mxu0 0.0
  %730 = vmatpush1.msra.mxu0 %v709
  %731 = vmatprep.subr.mxu0 0.0
  %732 = vmatpush1.msra.mxu0 %v710
  %733 = vmatprep.subr.mxu0 0.0
  %734 = vmatpush1.msra.mxu0 %v711
  %735 = vmatprep.subr.mxu0 0.0
  %736 = vmatpush1.msra.mxu0 %v712
  %737 = vmatprep.subr.mxu0 0.0
  %738 = vmatpush1.msra.mxu0 0.0
  %739 = vmatprep.subr.mxu0 0.0
  %740 = vmatpush1.msra.mxu0 0.0
  %741 = vmatprep.subr.mxu0 0.0
  %742 = vmatpush1.msra.mxu0 0.0
  %743 = vmatprep.subr.mxu0 0.0
  %744 = vmatpush1.msra.mxu0 0.0
  %745 = vmatprep.subr.mxu0 0.0
  %746 = vmatpush1.msra.mxu0 0.0
  %747 = vmatprep.subr.mxu0 0.0
  %748 = vmatpush1.msra.mxu0 0.0
  %749 = vmatprep.subr.mxu0 0.0
  %750 = vmatpush1.msra.mxu0 0.0
  %751 = vmatprep.subr.mxu0 0.0
  %752 = vmatpush1.msra.mxu0 0.0
  %753 = vmatprep.subr.mxu0 0.0
  %754 = vmatpush1.msra.mxu0 0.0
  %755 = vmatprep.subr.mxu0 0.0
  %756 = vmatpush1.msra.mxu0 0.0
  %757 = vmatprep.subr.mxu0 0.0
  %758 = vmatpush1.msra.mxu0 0.0
  %759 = vmatprep.subr.mxu0 0.0
  %760 = vmatpush1.msra.mxu0 0.0
  %761 = vmatprep.subr.mxu0 0.0
  %762 = vmatpush1.msra.mxu0 0.0
  %763 = vmatprep.subr.mxu0 0.0
  %764 = vmatpush1.msra.mxu0 0.0
  %765 = vmatprep.subr.mxu0 0.0
  %766 = vmatpush1.msra.mxu0 0.0
  %767 = vmatprep.subr.mxu0 0.0
  %768 = vmatpush1.msra.mxu0 0.0
  %769 = vmatprep.subr.mxu0 0.0
  %770 = vmatpush1.msra.mxu0 0.0
  %771 = vmatprep.subr.mxu0 0.0
  %772 = vmatpush1.msra.mxu0 0.0
  %773 = vmatprep.subr.mxu0 0.0
  %774 = vmatpush1.msra.mxu0 0.0
  %775 = vmatprep.subr.mxu0 0.0
  %776 = vmatpush1.msra.mxu0 0.0
  %777 = vmatprep.subr.mxu0 0.0
  %778 = vmatpush1.msra.mxu0 0.0
  %779 = vmatprep.subr.mxu0 0.0
  %780 = vmatpush1.msra.mxu0 0.0
  %781 = vmatprep.subr.mxu0 0.0
  %782 = vmatpush1.msra.mxu0 0.0
  %783 = vmatprep.subr.mxu0 0.0
  %784 = vmatpush1.msra.mxu0 0.0
  %785 = vmatprep.mubr.f32.mxu0 0.0
  %786 = vmatmul.mubr.f32.gmra.mrb[0].mxu0 %v155
  %v787 = vpop.f32.mrb[0].mxu0
  %v788 = vadd.f32 %v719, %v787
  %v789 = vpop.f32.mrb[0].mxu0
  %790 = vmatprep.mubr.f32.mxu0 0.0
  %791 = vmatmul.mubr.f32.gmra.mrb[0].mxu0 %v158
  %v792 = vpop.f32.mrb[0].mxu0
  %v793 = vadd.f32 %v719, %v792
  %v794 = vpop.f32.mrb[0].mxu0
  %795 = vdwg.mxu0
  %s796 = scalar_lea.vmem %s13, 64
  %v797 = vld [vmem:[%s796] sm:$0xff]
  %v798 = vld [vmem:[%s796 + $0x8] sm:$0xff]
  %v799 = vld [vmem:[%s796 + $0x10] sm:$0xff]
  %v800 = vld [vmem:[%s796 + $0x18] sm:$0xff]
  %v801 = vld [vmem:[%s796 + $0x20] sm:$0xff]
  %v802 = vld [vmem:[%s796 + $0x28] sm:$0xff]
  %v803 = vld [vmem:[%s796 + $0x30] sm:$0xff]
  %v804 = vld [vmem:[%s796 + $0x38] sm:$0xff]
  %s805 = scalar_lea.vmem %s19, 1
  %v806 = vld [vmem:[%s805] sm:$0x1]
  %v808 = vlaneseq
  %v809 = vshrl.u32 %v808, 7
  %v810 = vsub.s32 0, %v809
  %v811 = vrot.slane %v806, %v810
  %813 = vmatprep.subr.mxu0 0.0
  %814 = vmatpush1.msra.mxu0 %v797
  %815 = vmatprep.subr.mxu0 0.0
  %816 = vmatpush1.msra.mxu0 %v798
  %817 = vmatprep.subr.mxu0 0.0
  %818 = vmatpush1.msra.mxu0 %v799
  %819 = vmatprep.subr.mxu0 0.0
  %820 = vmatpush1.msra.mxu0 %v800
  %821 = vmatprep.subr.mxu0 0.0
  %822 = vmatpush1.msra.mxu0 %v801
  %823 = vmatprep.subr.mxu0 0.0
  %824 = vmatpush1.msra.mxu0 %v802
  %825 = vmatprep.subr.mxu0 0.0
  %826 = vmatpush1.msra.mxu0 %v803
  %827 = vmatprep.subr.mxu0 0.0
  %828 = vmatpush1.msra.mxu0 %v804
  %829 = vmatprep.subr.mxu0 0.0
  %830 = vmatpush1.msra.mxu0 0.0
  %831 = vmatprep.subr.mxu0 0.0
  %832 = vmatpush1.msra.mxu0 0.0
  %833 = vmatprep.subr.mxu0 0.0
  %834 = vmatpush1.msra.mxu0 0.0
  %835 = vmatprep.subr.mxu0 0.0
  %836 = vmatpush1.msra.mxu0 0.0
  %837 = vmatprep.subr.mxu0 0.0
  %838 = vmatpush1.msra.mxu0 0.0
  %839 = vmatprep.subr.mxu0 0.0
  %840 = vmatpush1.msra.mxu0 0.0
  %841 = vmatprep.subr.mxu0 0.0
  %842 = vmatpush1.msra.mxu0 0.0
  %843 = vmatprep.subr.mxu0 0.0
  %844 = vmatpush1.msra.mxu0 0.0
  %845 = vmatprep.subr.mxu0 0.0
  %846 = vmatpush1.msra.mxu0 0.0
  %847 = vmatprep.subr.mxu0 0.0
  %848 = vmatpush1.msra.mxu0 0.0
  %849 = vmatprep.subr.mxu0 0.0
  %850 = vmatpush1.msra.mxu0 0.0
  %851 = vmatprep.subr.mxu0 0.0
  %852 = vmatpush1.msra.mxu0 0.0
  %853 = vmatprep.subr.mxu0 0.0
  %854 = vmatpush1.msra.mxu0 0.0
  %855 = vmatprep.subr.mxu0 0.0
  %856 = vmatpush1.msra.mxu0 0.0
  %857 = vmatprep.subr.mxu0 0.0
  %858 = vmatpush1.msra.mxu0 0.0
  %859 = vmatprep.subr.mxu0 0.0
  %860 = vmatpush1.msra.mxu0 0.0
  %861 = vmatprep.subr.mxu0 0.0
  %862 = vmatpush1.msra.mxu0 0.0
  %863 = vmatprep.subr.mxu0 0.0
  %864 = vmatpush1.msra.mxu0 0.0
  %865 = vmatprep.subr.mxu0 0.0
  %866 = vmatpush1.msra.mxu0 0.0
  %867 = vmatprep.subr.mxu0 0.0
  %868 = vmatpush1.msra.mxu0 0.0
  %869 = vmatprep.subr.mxu0 0.0
  %870 = vmatpush1.msra.mxu0 0.0
  %871 = vmatprep.subr.mxu0 0.0
  %872 = vmatpush1.msra.mxu0 0.0
  %873 = vmatprep.subr.mxu0 0.0
  %874 = vmatpush1.msra.mxu0 0.0
  %875 = vmatprep.subr.mxu0 0.0
  %876 = vmatpush1.msra.mxu0 0.0
  %877 = vmatprep.mubr.f32.mxu0 0.0
  %878 = vmatmul.mubr.f32.gmra.mrb[0].mxu0 %v155
  %v879 = vpop.f32.mrb[0].mxu0
  %v880 = vadd.f32 %v811, %v879
  %v881 = vpop.f32.mrb[0].mxu0
  %882 = vmatprep.mubr.f32.mxu0 0.0
  %883 = vmatmul.mubr.f32.gmra.mrb[0].mxu0 %v158
  %v884 = vpop.f32.mrb[0].mxu0
  %v885 = vadd.f32 %v811, %v884
  %v886 = vpop.f32.mrb[0].mxu0
  %887 = vdwg.mxu0
  %v889 = vsel %vm417, %v702, 0
  %v892 = vsel %vm417, %v703, 0
  %v895 = vsel %vm417, %v788, 0
  %v898 = vsel %vm417, %v793, 0
  %900 = vmatprep.subr.mxu0 0.0
  %901 = vmatpush1.xpose.msra.mxu0 %v895
  %902 = vmatprep.subr.mxu0 0.0
  %903 = vmatpush1.xpose.msra.mxu0 %v898
  %904 = vmatprep.subr.mxu0 0.0
  %905 = vmatpush1.xpose.msra.mxu0 0.0
  %906 = vmatprep.subr.mxu0 0.0
  %907 = vmatpush1.xpose.msra.mxu0 0.0
  %908 = vmatprep.subr.mxu0 0.0
  %909 = vmatpush1.xpose.msra.mxu0 0.0
  %910 = vmatprep.subr.mxu0 0.0
  %911 = vmatpush1.xpose.msra.mxu0 0.0
  %912 = vmatprep.subr.mxu0 0.0
  %913 = vmatpush1.xpose.msra.mxu0 0.0
  %914 = vmatprep.subr.mxu0 0.0
  %915 = vmatpush1.xpose.msra.mxu0 0.0
  %916 = vmatprep.subr.mxu0 0.0
  %917 = vmatpush1.xpose.msra.mxu0 0.0
  %918 = vmatprep.subr.mxu0 0.0
  %919 = vmatpush1.xpose.msra.mxu0 0.0
  %920 = vmatprep.subr.mxu0 0.0
  %921 = vmatpush1.xpose.msra.mxu0 0.0
  %922 = vmatprep.subr.mxu0 0.0
  %923 = vmatpush1.xpose.msra.mxu0 0.0
  %924 = vmatprep.subr.mxu0 0.0
  %925 = vmatpush1.xpose.msra.mxu0 0.0
  %926 = vmatprep.subr.mxu0 0.0
  %927 = vmatpush1.xpose.msra.mxu0 0.0
  %928 = vmatprep.subr.mxu0 0.0
  %929 = vmatpush1.xpose.msra.mxu0 0.0
  %930 = vmatprep.subr.mxu0 0.0
  %931 = vmatpush1.xpose.msra.mxu0 0.0
  %932 = vmatprep.subr.mxu0 0.0
  %933 = vmatpush1.xpose.msra.mxu0 0.0
  %934 = vmatprep.subr.mxu0 0.0
  %935 = vmatpush1.xpose.msra.mxu0 0.0
  %936 = vmatprep.subr.mxu0 0.0
  %937 = vmatpush1.xpose.msra.mxu0 0.0
  %938 = vmatprep.subr.mxu0 0.0
  %939 = vmatpush1.xpose.msra.mxu0 0.0
  %940 = vmatprep.subr.mxu0 0.0
  %941 = vmatpush1.xpose.msra.mxu0 0.0
  %942 = vmatprep.subr.mxu0 0.0
  %943 = vmatpush1.xpose.msra.mxu0 0.0
  %944 = vmatprep.subr.mxu0 0.0
  %945 = vmatpush1.xpose.msra.mxu0 0.0
  %946 = vmatprep.subr.mxu0 0.0
  %947 = vmatpush1.xpose.msra.mxu0 0.0
  %948 = vmatprep.subr.mxu0 0.0
  %949 = vmatpush1.xpose.msra.mxu0 0.0
  %950 = vmatprep.subr.mxu0 0.0
  %951 = vmatpush1.xpose.msra.mxu0 0.0
  %952 = vmatprep.subr.mxu0 0.0
  %953 = vmatpush1.xpose.msra.mxu0 0.0
  %954 = vmatprep.subr.mxu0 0.0
  %955 = vmatpush1.xpose.msra.mxu0 0.0
  %956 = vmatprep.subr.mxu0 0.0
  %957 = vmatpush1.xpose.msra.mxu0 0.0
  %958 = vmatprep.subr.mxu0 0.0
  %959 = vmatpush1.xpose.msra.mxu0 0.0
  %960 = vmatprep.subr.mxu0 0.0
  %961 = vmatpush1.xpose.msra.mxu0 0.0
  %962 = vmatprep.subr.mxu0 0.0
  %963 = vmatpush1.xpose.msra.mxu0 0.0
  %964 = vmatprep.mubr.f32.mxu0 0.0
  %965 = vmatmul.mubr.f32.gmra.mrb[0].mxu0 %v889
  %v966 = vpop.f32.mrb[0].mxu0
  %v967 = vadd.f32 %v134, %v966
  %v968 = vpop.f32.mrb[0].mxu0
  %969 = vmatprep.mubr.f32.mxu0 0.0
  %970 = vmatmul.mubr.f32.gmra.mrb[0].mxu0 %v892
  %v971 = vpop.f32.mrb[0].mxu0
  %v972 = vadd.f32 %v135, %v971
  %v973 = vpop.f32.mrb[0].mxu0
  %974 = vdwg.mxu0
  %v975 = vsel %vm417, %v967, -inf
  %976 = vmax.xlane.f32.xlu0 %v975
  %v977 = vpop.xlane.xlu0 %976
  %v978 = vsel %vm417, %v972, -inf
  %979 = vmax.xlane.f32.xlu0 %v978
  %v980 = vpop.xlane.xlu0 %979
  %v981 = vsub.f32 %v967, %v977
  %v982 = vsub.f32 %v972, %v980
  %v983 = vmul.f32 %v981, 1.442695
  %v984 = vpow.pop %v983
  %v985 = vmul.f32 %v982, 1.442695
  %v986 = vpow.pop %v985
  %v987 = vsel %vm417, %v984, 0.0
  %988 = vadd.xlane.f32.xlu0 %v987
  %v989 = vpop.xlane.xlu0 %988
  %v990 = vsel %vm417, %v986, 0.0
  %991 = vadd.xlane.f32.xlu0 %v990
  %v992 = vpop.xlane.xlu0 %991
  %v993 = vrcp.pop %v989
  %v994 = vrcp.pop %v992
  %v995 = vmul.f32 %v984, %v993
  %v996 = vmul.f32 %v986, %v994
  %v998 = vsel %vm417, %v995, 0
  %v1001 = vsel %vm417, %v996, 0
  %1003 = vmatprep.subr.mxu0 0.0
  %1004 = vmatpush1.msra.mxu0 %v880
  %1005 = vmatprep.subr.mxu0 0.0
  %1006 = vmatpush1.msra.mxu0 %v885
  %1007 = vmatprep.subr.mxu0 0.0
  %1008 = vmatpush1.msra.mxu0 0.0
  %1009 = vmatprep.subr.mxu0 0.0
  %1010 = vmatpush1.msra.mxu0 0.0
  %1011 = vmatprep.subr.mxu0 0.0
  %1012 = vmatpush1.msra.mxu0 0.0
  %1013 = vmatprep.subr.mxu0 0.0
  %1014 = vmatpush1.msra.mxu0 0.0
  %1015 = vmatprep.subr.mxu0 0.0
  %1016 = vmatpush1.msra.mxu0 0.0
  %1017 = vmatprep.subr.mxu0 0.0
  %1018 = vmatpush1.msra.mxu0 0.0
  %1019 = vmatprep.subr.mxu0 0.0
  %1020 = vmatpush1.msra.mxu0 0.0
  %1021 = vmatprep.subr.mxu0 0.0
  %1022 = vmatpush1.msra.mxu0 0.0
  %1023 = vmatprep.subr.mxu0 0.0
  %1024 = vmatpush1.msra.mxu0 0.0
  %1025 = vmatprep.subr.mxu0 0.0
  %1026 = vmatpush1.msra.mxu0 0.0
  %1027 = vmatprep.subr.mxu0 0.0
  %1028 = vmatpush1.msra.mxu0 0.0
  %1029 = vmatprep.subr.mxu0 0.0
  %1030 = vmatpush1.msra.mxu0 0.0
  %1031 = vmatprep.subr.mxu0 0.0
  %1032 = vmatpush1.msra.mxu0 0.0
  %1033 = vmatprep.subr.mxu0 0.0
  %1034 = vmatpush1.msra.mxu0 0.0
  %1035 = vmatprep.subr.mxu0 0.0
  %1036 = vmatpush1.msra.mxu0 0.0
  %1037 = vmatprep.subr.mxu0 0.0
  %1038 = vmatpush1.msra.mxu0 0.0
  %1039 = vmatprep.subr.mxu0 0.0
  %1040 = vmatpush1.msra.mxu0 0.0
  %1041 = vmatprep.subr.mxu0 0.0
  %1042 = vmatpush1.msra.mxu0 0.0
  %1043 = vmatprep.subr.mxu0 0.0
  %1044 = vmatpush1.msra.mxu0 0.0
  %1045 = vmatprep.subr.mxu0 0.0
  %1046 = vmatpush1.msra.mxu0 0.0
  %1047 = vmatprep.subr.mxu0 0.0
  %1048 = vmatpush1.msra.mxu0 0.0
  %1049 = vmatprep.subr.mxu0 0.0
  %1050 = vmatpush1.msra.mxu0 0.0
  %1051 = vmatprep.subr.mxu0 0.0
  %1052 = vmatpush1.msra.mxu0 0.0
  %1053 = vmatprep.subr.mxu0 0.0
  %1054 = vmatpush1.msra.mxu0 0.0
  %1055 = vmatprep.subr.mxu0 0.0
  %1056 = vmatpush1.msra.mxu0 0.0
  %1057 = vmatprep.subr.mxu0 0.0
  %1058 = vmatpush1.msra.mxu0 0.0
  %1059 = vmatprep.subr.mxu0 0.0
  %1060 = vmatpush1.msra.mxu0 0.0
  %1061 = vmatprep.subr.mxu0 0.0
  %1062 = vmatpush1.msra.mxu0 0.0
  %1063 = vmatprep.subr.mxu0 0.0
  %1064 = vmatpush1.msra.mxu0 0.0
  %1065 = vmatprep.subr.mxu0 0.0
  %1066 = vmatpush1.msra.mxu0 0.0
  %1067 = vmatprep.mubr.f32.mxu0 0.0
  %1068 = vmatmul.mubr.f32.gmra.mrb[0].mxu0 %v998
  %v1069 = vpop.f32.mrb[0].mxu0
  %v1070 = vadd.f32 0.0, %v1069
  %v1071 = vpop.f32.mrb[0].mxu0
  %1072 = vmatprep.mubr.f32.mxu0 0.0
  %1073 = vmatmul.mubr.f32.gmra.mrb[0].mxu0 %v1001
  %v1074 = vpop.f32.mrb[0].mxu0
  %v1075 = vadd.f32 0.0, %v1074
  %v1076 = vpop.f32.mrb[0].mxu0
  %1077 = vdwg.mxu0
  %s1078 = scalar_lea.vmem %s21, 16
  %v1079 = vld [vmem:[%s1078] sm:$0xff]
  %v1080 = vld [vmem:[%s1078 + $0x8] sm:$0xff]
  %v1082 = vsel %vm417, %v1070, 0
  %v1085 = vsel %vm417, %v1075, 0
  %1087 = vmatprep.subr.mxu0 0.0
  %1088 = vmatpush1.msra.mxu0 %v1079
  %1089 = vmatprep.subr.mxu0 0.0
  %1090 = vmatpush1.msra.mxu0 %v1080
  %1091 = vmatprep.subr.mxu0 0.0
  %1092 = vmatpush1.msra.mxu0 0.0
  %1093 = vmatprep.subr.mxu0 0.0
  %1094 = vmatpush1.msra.mxu0 0.0
  %1095 = vmatprep.subr.mxu0 0.0
  %1096 = vmatpush1.msra.mxu0 0.0
  %1097 = vmatprep.subr.mxu0 0.0
  %1098 = vmatpush1.msra.mxu0 0.0
  %1099 = vmatprep.subr.mxu0 0.0
  %1100 = vmatpush1.msra.mxu0 0.0
  %1101 = vmatprep.subr.mxu0 0.0
  %1102 = vmatpush1.msra.mxu0 0.0
  %1103 = vmatprep.subr.mxu0 0.0
  %1104 = vmatpush1.msra.mxu0 0.0
  %1105 = vmatprep.subr.mxu0 0.0
  %1106 = vmatpush1.msra.mxu0 0.0
  %1107 = vmatprep.subr.mxu0 0.0
  %1108 = vmatpush1.msra.mxu0 0.0
  %1109 = vmatprep.subr.mxu0 0.0
  %1110 = vmatpush1.msra.mxu0 0.0
  %1111 = vmatprep.subr.mxu0 0.0
  %1112 = vmatpush1.msra.mxu0 0.0
  %1113 = vmatprep.subr.mxu0 0.0
  %1114 = vmatpush1.msra.mxu0 0.0
  %1115 = vmatprep.subr.mxu0 0.0
  %1116 = vmatpush1.msra.mxu0 0.0
  %1117 = vmatprep.subr.mxu0 0.0
  %1118 = vmatpush1.msra.mxu0 0.0
  %1119 = vmatprep.subr.mxu0 0.0
  %1120 = vmatpush1.msra.mxu0 0.0
  %1121 = vmatprep.subr.mxu0 0.0
  %1122 = vmatpush1.msra.mxu0 0.0
  %1123 = vmatprep.subr.mxu0 0.0
  %1124 = vmatpush1.msra.mxu0 0.0
  %1125 = vmatprep.subr.mxu0 0.0
  %1126 = vmatpush1.msra.mxu0 0.0
  %1127 = vmatprep.subr.mxu0 0.0
  %1128 = vmatpush1.msra.mxu0 0.0
  %1129 = vmatprep.subr.mxu0 0.0
  %1130 = vmatpush1.msra.mxu0 0.0
  %1131 = vmatprep.subr.mxu0 0.0
  %1132 = vmatpush1.msra.mxu0 0.0
  %1133 = vmatprep.subr.mxu0 0.0
  %1134 = vmatpush1.msra.mxu0 0.0
  %1135 = vmatprep.subr.mxu0 0.0
  %1136 = vmatpush1.msra.mxu0 0.0
  %1137 = vmatprep.subr.mxu0 0.0
  %1138 = vmatpush1.msra.mxu0 0.0
  %1139 = vmatprep.subr.mxu0 0.0
  %1140 = vmatpush1.msra.mxu0 0.0
  %1141 = vmatprep.subr.mxu0 0.0
  %1142 = vmatpush1.msra.mxu0 0.0
  %1143 = vmatprep.subr.mxu0 0.0
  %1144 = vmatpush1.msra.mxu0 0.0
  %1145 = vmatprep.subr.mxu0 0.0
  %1146 = vmatpush1.msra.mxu0 0.0
  %1147 = vmatprep.subr.mxu0 0.0
  %1148 = vmatpush1.msra.mxu0 0.0
  %1149 = vmatprep.subr.mxu0 0.0
  %1150 = vmatpush1.msra.mxu0 0.0
  %1151 = vmatprep.mubr.f32.mxu0 0.0
  %1152 = vmatmul.mubr.f32.gmra.mrb[0].mxu0 %v1082
  %v1153 = vpop.f32.mrb[0].mxu0
  %v1154 = vadd.f32 0.0, %v1153
  %v1155 = vpop.f32.mrb[0].mxu0
  %1156 = vmatprep.mubr.f32.mxu0 0.0
  %1157 = vmatmul.mubr.f32.gmra.mrb[0].mxu0 %v1085
  %v1158 = vpop.f32.mrb[0].mxu0
  %v1159 = vadd.f32 0.0, %v1158
  %v1160 = vpop.f32.mrb[0].mxu0
  %1161 = vdwg.mxu0
  %v1163 = vsel %vm417, %v600, 0
  %v1166 = vsel %vm417, %v605, 0
  %1168 = vmatprep.subr.mxu0 0.0
  %1169 = vmatpush1.msra.mxu0 %v608
  %1170 = vmatprep.subr.mxu0 0.0
  %1171 = vmatpush1.msra.mxu0 %v609
  %1172 = vmatprep.subr.mxu0 0.0
  %1173 = vmatpush1.msra.mxu0 0.0
  %1174 = vmatprep.subr.mxu0 0.0
  %1175 = vmatpush1.msra.mxu0 0.0
  %1176 = vmatprep.subr.mxu0 0.0
  %1177 = vmatpush1.msra.mxu0 0.0
  %1178 = vmatprep.subr.mxu0 0.0
  %1179 = vmatpush1.msra.mxu0 0.0
  %1180 = vmatprep.subr.mxu0 0.0
  %1181 = vmatpush1.msra.mxu0 0.0
  %1182 = vmatprep.subr.mxu0 0.0
  %1183 = vmatpush1.msra.mxu0 0.0
  %1184 = vmatprep.subr.mxu0 0.0
  %1185 = vmatpush1.msra.mxu0 0.0
  %1186 = vmatprep.subr.mxu0 0.0
  %1187 = vmatpush1.msra.mxu0 0.0
  %1188 = vmatprep.subr.mxu0 0.0
  %1189 = vmatpush1.msra.mxu0 0.0
  %1190 = vmatprep.subr.mxu0 0.0
  %1191 = vmatpush1.msra.mxu0 0.0
  %1192 = vmatprep.subr.mxu0 0.0
  %1193 = vmatpush1.msra.mxu0 0.0
  %1194 = vmatprep.subr.mxu0 0.0
  %1195 = vmatpush1.msra.mxu0 0.0
  %1196 = vmatprep.subr.mxu0 0.0
  %1197 = vmatpush1.msra.mxu0 0.0
  %1198 = vmatprep.subr.mxu0 0.0
  %1199 = vmatpush1.msra.mxu0 0.0
  %1200 = vmatprep.subr.mxu0 0.0
  %1201 = vmatpush1.msra.mxu0 0.0
  %1202 = vmatprep.subr.mxu0 0.0
  %1203 = vmatpush1.msra.mxu0 0.0
  %1204 = vmatprep.subr.mxu0 0.0
  %1205 = vmatpush1.msra.mxu0 0.0
  %1206 = vmatprep.subr.mxu0 0.0
  %1207 = vmatpush1.msra.mxu0 0.0
  %1208 = vmatprep.subr.mxu0 0.0
  %1209 = vmatpush1.msra.mxu0 0.0
  %1210 = vmatprep.subr.mxu0 0.0
  %1211 = vmatpush1.msra.mxu0 0.0
  %1212 = vmatprep.subr.mxu0 0.0
  %1213 = vmatpush1.msra.mxu0 0.0
  %1214 = vmatprep.subr.mxu0 0.0
  %1215 = vmatpush1.msra.mxu0 0.0
  %1216 = vmatprep.subr.mxu0 0.0
  %1217 = vmatpush1.msra.mxu0 0.0
  %1218 = vmatprep.subr.mxu0 0.0
  %1219 = vmatpush1.msra.mxu0 0.0
  %1220 = vmatprep.subr.mxu0 0.0
  %1221 = vmatpush1.msra.mxu0 0.0
  %1222 = vmatprep.subr.mxu0 0.0
  %1223 = vmatpush1.msra.mxu0 0.0
  %1224 = vmatprep.subr.mxu0 0.0
  %1225 = vmatpush1.msra.mxu0 0.0
  %1226 = vmatprep.subr.mxu0 0.0
  %1227 = vmatpush1.msra.mxu0 0.0
  %1228 = vmatprep.subr.mxu0 0.0
  %1229 = vmatpush1.msra.mxu0 0.0
  %1230 = vmatprep.subr.mxu0 0.0
  %1231 = vmatpush1.msra.mxu0 0.0
  %1232 = vmatprep.mubr.f32.mxu0 0.0
  %1233 = vmatmul.mubr.f32.gmra.mrb[0].mxu0 %v1163
  %v1234 = vpop.f32.mrb[0].mxu0
  %v1235 = vadd.f32 %v1154, %v1234
  %v1236 = vpop.f32.mrb[0].mxu0
  %1237 = vmatprep.mubr.f32.mxu0 0.0
  %1238 = vmatmul.mubr.f32.gmra.mrb[0].mxu0 %v1166
  %v1239 = vpop.f32.mrb[0].mxu0
  %v1240 = vadd.f32 %v1159, %v1239
  %v1241 = vpop.f32.mrb[0].mxu0
  %1242 = vdwg.mxu0
  %s1243 = scalar_lea.vmem %s9, 128
  %v1244 = vld [vmem:[%s1243] sm:$0xff]
  %v1245 = vld [vmem:[%s1243 + $0x8] sm:$0xff]
  %v1246 = vld [vmem:[%s1243 + $0x10] sm:$0xff]
  %v1247 = vld [vmem:[%s1243 + $0x18] sm:$0xff]
  %v1248 = vld [vmem:[%s1243 + $0x20] sm:$0xff]
  %v1249 = vld [vmem:[%s1243 + $0x28] sm:$0xff]
  %v1250 = vld [vmem:[%s1243 + $0x30] sm:$0xff]
  %v1251 = vld [vmem:[%s1243 + $0x38] sm:$0xff]
  %s1252 = scalar_lea.vmem %s15, 2
  %v1253 = vld [vmem:[%s1252] sm:$0x1]
  %v1255 = vlaneseq
  %v1256 = vshrl.u32 %v1255, 7
  %v1257 = vsub.s32 0, %v1256
  %v1258 = vrot.slane %v1253, %v1257
  %1260 = vmatprep.subr.mxu0 0.0
  %1261 = vmatpush1.msra.mxu0 %v1244
  %1262 = vmatprep.subr.mxu0 0.0
  %1263 = vmatpush1.msra.mxu0 %v1245
  %1264 = vmatprep.subr.mxu0 0.0
  %1265 = vmatpush1.msra.mxu0 %v1246
  %1266 = vmatprep.subr.mxu0 0.0
  %1267 = vmatpush1.msra.mxu0 %v1247
  %1268 = vmatprep.subr.mxu0 0.0
  %1269 = vmatpush1.msra.mxu0 %v1248
  %1270 = vmatprep.subr.mxu0 0.0
  %1271 = vmatpush1.msra.mxu0 %v1249
  %1272 = vmatprep.subr.mxu0 0.0
  %1273 = vmatpush1.msra.mxu0 %v1250
  %1274 = vmatprep.subr.mxu0 0.0
  %1275 = vmatpush1.msra.mxu0 %v1251
  %1276 = vmatprep.subr.mxu0 0.0
  %1277 = vmatpush1.msra.mxu0 0.0
  %1278 = vmatprep.subr.mxu0 0.0
  %1279 = vmatpush1.msra.mxu0 0.0
  %1280 = vmatprep.subr.mxu0 0.0
  %1281 = vmatpush1.msra.mxu0 0.0
  %1282 = vmatprep.subr.mxu0 0.0
  %1283 = vmatpush1.msra.mxu0 0.0
  %1284 = vmatprep.subr.mxu0 0.0
  %1285 = vmatpush1.msra.mxu0 0.0
  %1286 = vmatprep.subr.mxu0 0.0
  %1287 = vmatpush1.msra.mxu0 0.0
  %1288 = vmatprep.subr.mxu0 0.0
  %1289 = vmatpush1.msra.mxu0 0.0
  %1290 = vmatprep.subr.mxu0 0.0
  %1291 = vmatpush1.msra.mxu0 0.0
  %1292 = vmatprep.subr.mxu0 0.0
  %1293 = vmatpush1.msra.mxu0 0.0
  %1294 = vmatprep.subr.mxu0 0.0
  %1295 = vmatpush1.msra.mxu0 0.0
  %1296 = vmatprep.subr.mxu0 0.0
  %1297 = vmatpush1.msra.mxu0 0.0
  %1298 = vmatprep.subr.mxu0 0.0
  %1299 = vmatpush1.msra.mxu0 0.0
  %1300 = vmatprep.subr.mxu0 0.0
  %1301 = vmatpush1.msra.mxu0 0.0
  %1302 = vmatprep.subr.mxu0 0.0
  %1303 = vmatpush1.msra.mxu0 0.0
  %1304 = vmatprep.subr.mxu0 0.0
  %1305 = vmatpush1.msra.mxu0 0.0
  %1306 = vmatprep.subr.mxu0 0.0
  %1307 = vmatpush1.msra.mxu0 0.0
  %1308 = vmatprep.subr.mxu0 0.0
  %1309 = vmatpush1.msra.mxu0 0.0
  %1310 = vmatprep.subr.mxu0 0.0
  %1311 = vmatpush1.msra.mxu0 0.0
  %1312 = vmatprep.subr.mxu0 0.0
  %1313 = vmatpush1.msra.mxu0 0.0
  %1314 = vmatprep.subr.mxu0 0.0
  %1315 = vmatpush1.msra.mxu0 0.0
  %1316 = vmatprep.subr.mxu0 0.0
  %1317 = vmatpush1.msra.mxu0 0.0
  %1318 = vmatprep.subr.mxu0 0.0
  %1319 = vmatpush1.msra.mxu0 0.0
  %1320 = vmatprep.subr.mxu0 0.0
  %1321 = vmatpush1.msra.mxu0 0.0
  %1322 = vmatprep.subr.mxu0 0.0
  %1323 = vmatpush1.msra.mxu0 0.0
  %1324 = vmatprep.mubr.f32.mxu0 0.0
  %1325 = vmatmul.mubr.f32.gmra.mrb[0].mxu0 %v155
  %v1326 = vpop.f32.mrb[0].mxu0
  %v1327 = vadd.f32 %v1258, %v1326
  %v1328 = vpop.f32.mrb[0].mxu0
  %1329 = vmatprep.mubr.f32.mxu0 0.0
  %1330 = vmatmul.mubr.f32.gmra.mrb[0].mxu0 %v158
  %v1331 = vpop.f32.mrb[0].mxu0
  %v1332 = vadd.f32 %v1258, %v1331
  %v1333 = vpop.f32.mrb[0].mxu0
  %1334 = vdwg.mxu0
  %v1335 = vmul.f32 %v1327, 0.25
  %v1336 = vmul.f32 %v1332, 0.25
  %s1337 = scalar_lea.vmem %s11, 128
  %v1338 = vld [vmem:[%s1337] sm:$0xff]
  %v1339 = vld [vmem:[%s1337 + $0x8] sm:$0xff]
  %v1340 = vld [vmem:[%s1337 + $0x10] sm:$0xff]
  %v1341 = vld [vmem:[%s1337 + $0x18] sm:$0xff]
  %v1342 = vld [vmem:[%s1337 + $0x20] sm:$0xff]
  %v1343 = vld [vmem:[%s1337 + $0x28] sm:$0xff]
  %v1344 = vld [vmem:[%s1337 + $0x30] sm:$0xff]
  %v1345 = vld [vmem:[%s1337 + $0x38] sm:$0xff]
  %s1346 = scalar_lea.vmem %s17, 2
  %v1347 = vld [vmem:[%s1346] sm:$0x1]
  %v1349 = vlaneseq
  %v1350 = vshrl.u32 %v1349, 7
  %v1351 = vsub.s32 0, %v1350
  %v1352 = vrot.slane %v1347, %v1351
  %1354 = vmatprep.subr.mxu0 0.0
  %1355 = vmatpush1.msra.mxu0 %v1338
  %1356 = vmatprep.subr.mxu0 0.0
  %1357 = vmatpush1.msra.mxu0 %v1339
  %1358 = vmatprep.subr.mxu0 0.0
  %1359 = vmatpush1.msra.mxu0 %v1340
  %1360 = vmatprep.subr.mxu0 0.0
  %1361 = vmatpush1.msra.mxu0 %v1341
  %1362 = vmatprep.subr.mxu0 0.0
  %1363 = vmatpush1.msra.mxu0 %v1342
  %1364 = vmatprep.subr.mxu0 0.0
  %1365 = vmatpush1.msra.mxu0 %v1343
  %1366 = vmatprep.subr.mxu0 0.0
  %1367 = vmatpush1.msra.mxu0 %v1344
  %1368 = vmatprep.subr.mxu0 0.0
  %1369 = vmatpush1.msra.mxu0 %v1345
  %1370 = vmatprep.subr.mxu0 0.0
  %1371 = vmatpush1.msra.mxu0 0.0
  %1372 = vmatprep.subr.mxu0 0.0
  %1373 = vmatpush1.msra.mxu0 0.0
  %1374 = vmatprep.subr.mxu0 0.0
  %1375 = vmatpush1.msra.mxu0 0.0
  %1376 = vmatprep.subr.mxu0 0.0
  %1377 = vmatpush1.msra.mxu0 0.0
  %1378 = vmatprep.subr.mxu0 0.0
  %1379 = vmatpush1.msra.mxu0 0.0
  %1380 = vmatprep.subr.mxu0 0.0
  %1381 = vmatpush1.msra.mxu0 0.0
  %1382 = vmatprep.subr.mxu0 0.0
  %1383 = vmatpush1.msra.mxu0 0.0
  %1384 = vmatprep.subr.mxu0 0.0
  %1385 = vmatpush1.msra.mxu0 0.0
  %1386 = vmatprep.subr.mxu0 0.0
  %1387 = vmatpush1.msra.mxu0 0.0
  %1388 = vmatprep.subr.mxu0 0.0
  %1389 = vmatpush1.msra.mxu0 0.0
  %1390 = vmatprep.subr.mxu0 0.0
  %1391 = vmatpush1.msra.mxu0 0.0
  %1392 = vmatprep.subr.mxu0 0.0
  %1393 = vmatpush1.msra.mxu0 0.0
  %1394 = vmatprep.subr.mxu0 0.0
  %1395 = vmatpush1.msra.mxu0 0.0
  %1396 = vmatprep.subr.mxu0 0.0
  %1397 = vmatpush1.msra.mxu0 0.0
  %1398 = vmatprep.subr.mxu0 0.0
  %1399 = vmatpush1.msra.mxu0 0.0
  %1400 = vmatprep.subr.mxu0 0.0
  %1401 = vmatpush1.msra.mxu0 0.0
  %1402 = vmatprep.subr.mxu0 0.0
  %1403 = vmatpush1.msra.mxu0 0.0
  %1404 = vmatprep.subr.mxu0 0.0
  %1405 = vmatpush1.msra.mxu0 0.0
  %1406 = vmatprep.subr.mxu0 0.0
  %1407 = vmatpush1.msra.mxu0 0.0
  %1408 = vmatprep.subr.mxu0 0.0
  %1409 = vmatpush1.msra.mxu0 0.0
  %1410 = vmatprep.subr.mxu0 0.0
  %1411 = vmatpush1.msra.mxu0 0.0
  %1412 = vmatprep.subr.mxu0 0.0
  %1413 = vmatpush1.msra.mxu0 0.0
  %1414 = vmatprep.subr.mxu0 0.0
  %1415 = vmatpush1.msra.mxu0 0.0
  %1416 = vmatprep.subr.mxu0 0.0
  %1417 = vmatpush1.msra.mxu0 0.0
  %1418 = vmatprep.mubr.f32.mxu0 0.0
  %1419 = vmatmul.mubr.f32.gmra.mrb[0].mxu0 %v155
  %v1420 = vpop.f32.mrb[0].mxu0
  %v1421 = vadd.f32 %v1352, %v1420
  %v1422 = vpop.f32.mrb[0].mxu0
  %1423 = vmatprep.mubr.f32.mxu0 0.0
  %1424 = vmatmul.mubr.f32.gmra.mrb[0].mxu0 %v158
  %v1425 = vpop.f32.mrb[0].mxu0
  %v1426 = vadd.f32 %v1352, %v1425
  %v1427 = vpop.f32.mrb[0].mxu0
  %1428 = vdwg.mxu0
  %s1429 = scalar_lea.vmem %s13, 128
  %v1430 = vld [vmem:[%s1429] sm:$0xff]
  %v1431 = vld [vmem:[%s1429 + $0x8] sm:$0xff]
  %v1432 = vld [vmem:[%s1429 + $0x10] sm:$0xff]
  %v1433 = vld [vmem:[%s1429 + $0x18] sm:$0xff]
  %v1434 = vld [vmem:[%s1429 + $0x20] sm:$0xff]
  %v1435 = vld [vmem:[%s1429 + $0x28] sm:$0xff]
  %v1436 = vld [vmem:[%s1429 + $0x30] sm:$0xff]
  %v1437 = vld [vmem:[%s1429 + $0x38] sm:$0xff]
  %s1438 = scalar_lea.vmem %s19, 2
  %v1439 = vld [vmem:[%s1438] sm:$0x1]
  %v1441 = vlaneseq
  %v1442 = vshrl.u32 %v1441, 7
  %v1443 = vsub.s32 0, %v1442
  %v1444 = vrot.slane %v1439, %v1443
  %1446 = vmatprep.subr.mxu0 0.0
  %1447 = vmatpush1.msra.mxu0 %v1430
  %1448 = vmatprep.subr.mxu0 0.0
  %1449 = vmatpush1.msra.mxu0 %v1431
  %1450 = vmatprep.subr.mxu0 0.0
  %1451 = vmatpush1.msra.mxu0 %v1432
  %1452 = vmatprep.subr.mxu0 0.0
  %1453 = vmatpush1.msra.mxu0 %v1433
  %1454 = vmatprep.subr.mxu0 0.0
  %1455 = vmatpush1.msra.mxu0 %v1434
  %1456 = vmatprep.subr.mxu0 0.0
  %1457 = vmatpush1.msra.mxu0 %v1435
  %1458 = vmatprep.subr.mxu0 0.0
  %1459 = vmatpush1.msra.mxu0 %v1436
  %1460 = vmatprep.subr.mxu0 0.0
  %1461 = vmatpush1.msra.mxu0 %v1437
  %1462 = vmatprep.subr.mxu0 0.0
  %1463 = vmatpush1.msra.mxu0 0.0
  %1464 = vmatprep.subr.mxu0 0.0
  %1465 = vmatpush1.msra.mxu0 0.0
  %1466 = vmatprep.subr.mxu0 0.0
  %1467 = vmatpush1.msra.mxu0 0.0
  %1468 = vmatprep.subr.mxu0 0.0
  %1469 = vmatpush1.msra.mxu0 0.0
  %1470 = vmatprep.subr.mxu0 0.0
  %1471 = vmatpush1.msra.mxu0 0.0
  %1472 = vmatprep.subr.mxu0 0.0
  %1473 = vmatpush1.msra.mxu0 0.0
  %1474 = vmatprep.subr.mxu0 0.0
  %1475 = vmatpush1.msra.mxu0 0.0
  %1476 = vmatprep.subr.mxu0 0.0
  %1477 = vmatpush1.msra.mxu0 0.0
  %1478 = vmatprep.subr.mxu0 0.0
  %1479 = vmatpush1.msra.mxu0 0.0
  %1480 = vmatprep.subr.mxu0 0.0
  %1481 = vmatpush1.msra.mxu0 0.0
  %1482 = vmatprep.subr.mxu0 0.0
  %1483 = vmatpush1.msra.mxu0 0.0
  %1484 = vmatprep.subr.mxu0 0.0
  %1485 = vmatpush1.msra.mxu0 0.0
  %1486 = vmatprep.subr.mxu0 0.0
  %1487 = vmatpush1.msra.mxu0 0.0
  %1488 = vmatprep.subr.mxu0 0.0
  %1489 = vmatpush1.msra.mxu0 0.0
  %1490 = vmatprep.subr.mxu0 0.0
  %1491 = vmatpush1.msra.mxu0 0.0
  %1492 = vmatprep.subr.mxu0 0.0
  %1493 = vmatpush1.msra.mxu0 0.0
  %1494 = vmatprep.subr.mxu0 0.0
  %1495 = vmatpush1.msra.mxu0 0.0
  %1496 = vmatprep.subr.mxu0 0.0
  %1497 = vmatpush1.msra.mxu0 0.0
  %1498 = vmatprep.subr.mxu0 0.0
  %1499 = vmatpush1.msra.mxu0 0.0
  %1500 = vmatprep.subr.mxu0 0.0
  %1501 = vmatpush1.msra.mxu0 0.0
  %1502 = vmatprep.subr.mxu0 0.0
  %1503 = vmatpush1.msra.mxu0 0.0
  %1504 = vmatprep.subr.mxu0 0.0
  %1505 = vmatpush1.msra.mxu0 0.0
  %1506 = vmatprep.subr.mxu0 0.0
  %1507 = vmatpush1.msra.mxu0 0.0
  %1508 = vmatprep.subr.mxu0 0.0
  %1509 = vmatpush1.msra.mxu0 0.0
  %1510 = vmatprep.mubr.f32.mxu0 0.0
  %1511 = vmatmul.mubr.f32.gmra.mrb[0].mxu0 %v155
  %v1512 = vpop.f32.mrb[0].mxu0
  %v1513 = vadd.f32 %v1444, %v1512
  %v1514 = vpop.f32.mrb[0].mxu0
  %1515 = vmatprep.mubr.f32.mxu0 0.0
  %1516 = vmatmul.mubr.f32.gmra.mrb[0].mxu0 %v158
  %v1517 = vpop.f32.mrb[0].mxu0
  %v1518 = vadd.f32 %v1444, %v1517
  %v1519 = vpop.f32.mrb[0].mxu0
  %1520 = vdwg.mxu0
  %v1522 = vsel %vm417, %v1335, 0
  %v1525 = vsel %vm417, %v1336, 0
  %v1528 = vsel %vm417, %v1421, 0
  %v1531 = vsel %vm417, %v1426, 0
  %1533 = vmatprep.subr.mxu0 0.0
  %1534 = vmatpush1.xpose.msra.mxu0 %v1528
  %1535 = vmatprep.subr.mxu0 0.0
  %1536 = vmatpush1.xpose.msra.mxu0 %v1531
  %1537 = vmatprep.subr.mxu0 0.0
  %1538 = vmatpush1.xpose.msra.mxu0 0.0
  %1539 = vmatprep.subr.mxu0 0.0
  %1540 = vmatpush1.xpose.msra.mxu0 0.0
  %1541 = vmatprep.subr.mxu0 0.0
  %1542 = vmatpush1.xpose.msra.mxu0 0.0
  %1543 = vmatprep.subr.mxu0 0.0
  %1544 = vmatpush1.xpose.msra.mxu0 0.0
  %1545 = vmatprep.subr.mxu0 0.0
  %1546 = vmatpush1.xpose.msra.mxu0 0.0
  %1547 = vmatprep.subr.mxu0 0.0
  %1548 = vmatpush1.xpose.msra.mxu0 0.0
  %1549 = vmatprep.subr.mxu0 0.0
  %1550 = vmatpush1.xpose.msra.mxu0 0.0
  %1551 = vmatprep.subr.mxu0 0.0
  %1552 = vmatpush1.xpose.msra.mxu0 0.0
  %1553 = vmatprep.subr.mxu0 0.0
  %1554 = vmatpush1.xpose.msra.mxu0 0.0
  %1555 = vmatprep.subr.mxu0 0.0
  %1556 = vmatpush1.xpose.msra.mxu0 0.0
  %1557 = vmatprep.subr.mxu0 0.0
  %1558 = vmatpush1.xpose.msra.mxu0 0.0
  %1559 = vmatprep.subr.mxu0 0.0
  %1560 = vmatpush1.xpose.msra.mxu0 0.0
  %1561 = vmatprep.subr.mxu0 0.0
  %1562 = vmatpush1.xpose.msra.mxu0 0.0
  %1563 = vmatprep.subr.mxu0 0.0
  %1564 = vmatpush1.xpose.msra.mxu0 0.0
  %1565 = vmatprep.subr.mxu0 0.0
  %1566 = vmatpush1.xpose.msra.mxu0 0.0
  %1567 = vmatprep.subr.mxu0 0.0
  %1568 = vmatpush1.xpose.msra.mxu0 0.0
  %1569 = vmatprep.subr.mxu0 0.0
  %1570 = vmatpush1.xpose.msra.mxu0 0.0
  %1571 = vmatprep.subr.mxu0 0.0
  %1572 = vmatpush1.xpose.msra.mxu0 0.0
  %1573 = vmatprep.subr.mxu0 0.0
  %1574 = vmatpush1.xpose.msra.mxu0 0.0
  %1575 = vmatprep.subr.mxu0 0.0
  %1576 = vmatpush1.xpose.msra.mxu0 0.0
  %1577 = vmatprep.subr.mxu0 0.0
  %1578 = vmatpush1.xpose.msra.mxu0 0.0
  %1579 = vmatprep.subr.mxu0 0.0
  %1580 = vmatpush1.xpose.msra.mxu0 0.0
  %1581 = vmatprep.subr.mxu0 0.0
  %1582 = vmatpush1.xpose.msra.mxu0 0.0
  %1583 = vmatprep.subr.mxu0 0.0
  %1584 = vmatpush1.xpose.msra.mxu0 0.0
  %1585 = vmatprep.subr.mxu0 0.0
  %1586 = vmatpush1.xpose.msra.mxu0 0.0
  %1587 = vmatprep.subr.mxu0 0.0
  %1588 = vmatpush1.xpose.msra.mxu0 0.0
  %1589 = vmatprep.subr.mxu0 0.0
  %1590 = vmatpush1.xpose.msra.mxu0 0.0
  %1591 = vmatprep.subr.mxu0 0.0
  %1592 = vmatpush1.xpose.msra.mxu0 0.0
  %1593 = vmatprep.subr.mxu0 0.0
  %1594 = vmatpush1.xpose.msra.mxu0 0.0
  %1595 = vmatprep.subr.mxu0 0.0
  %1596 = vmatpush1.xpose.msra.mxu0 0.0
  %1597 = vmatprep.mubr.f32.mxu0 0.0
  %1598 = vmatmul.mubr.f32.gmra.mrb[0].mxu0 %v1522
  %v1599 = vpop.f32.mrb[0].mxu0
  %v1600 = vadd.f32 %v134, %v1599
  %v1601 = vpop.f32.mrb[0].mxu0
  %1602 = vmatprep.mubr.f32.mxu0 0.0
  %1603 = vmatmul.mubr.f32.gmra.mrb[0].mxu0 %v1525
  %v1604 = vpop.f32.mrb[0].mxu0
  %v1605 = vadd.f32 %v135, %v1604
  %v1606 = vpop.f32.mrb[0].mxu0
  %1607 = vdwg.mxu0
  %v1608 = vsel %vm417, %v1600, -inf
  %1609 = vmax.xlane.f32.xlu0 %v1608
  %v1610 = vpop.xlane.xlu0 %1609
  %v1611 = vsel %vm417, %v1605, -inf
  %1612 = vmax.xlane.f32.xlu0 %v1611
  %v1613 = vpop.xlane.xlu0 %1612
  %v1614 = vsub.f32 %v1600, %v1610
  %v1615 = vsub.f32 %v1605, %v1613
  %v1616 = vmul.f32 %v1614, 1.442695
  %v1617 = vpow.pop %v1616
  %v1618 = vmul.f32 %v1615, 1.442695
  %v1619 = vpow.pop %v1618
  %v1620 = vsel %vm417, %v1617, 0.0
  %1621 = vadd.xlane.f32.xlu0 %v1620
  %v1622 = vpop.xlane.xlu0 %1621
  %v1623 = vsel %vm417, %v1619, 0.0
  %1624 = vadd.xlane.f32.xlu0 %v1623
  %v1625 = vpop.xlane.xlu0 %1624
  %v1626 = vrcp.pop %v1622
  %v1627 = vrcp.pop %v1625
  %v1628 = vmul.f32 %v1617, %v1626
  %v1629 = vmul.f32 %v1619, %v1627
  %v1631 = vsel %vm417, %v1628, 0
  %v1634 = vsel %vm417, %v1629, 0
  %1636 = vmatprep.subr.mxu0 0.0
  %1637 = vmatpush1.msra.mxu0 %v1513
  %1638 = vmatprep.subr.mxu0 0.0
  %1639 = vmatpush1.msra.mxu0 %v1518
  %1640 = vmatprep.subr.mxu0 0.0
  %1641 = vmatpush1.msra.mxu0 0.0
  %1642 = vmatprep.subr.mxu0 0.0
  %1643 = vmatpush1.msra.mxu0 0.0
  %1644 = vmatprep.subr.mxu0 0.0
  %1645 = vmatpush1.msra.mxu0 0.0
  %1646 = vmatprep.subr.mxu0 0.0
  %1647 = vmatpush1.msra.mxu0 0.0
  %1648 = vmatprep.subr.mxu0 0.0
  %1649 = vmatpush1.msra.mxu0 0.0
  %1650 = vmatprep.subr.mxu0 0.0
  %1651 = vmatpush1.msra.mxu0 0.0
  %1652 = vmatprep.subr.mxu0 0.0
  %1653 = vmatpush1.msra.mxu0 0.0
  %1654 = vmatprep.subr.mxu0 0.0
  %1655 = vmatpush1.msra.mxu0 0.0
  %1656 = vmatprep.subr.mxu0 0.0
  %1657 = vmatpush1.msra.mxu0 0.0
  %1658 = vmatprep.subr.mxu0 0.0
  %1659 = vmatpush1.msra.mxu0 0.0
  %1660 = vmatprep.subr.mxu0 0.0
  %1661 = vmatpush1.msra.mxu0 0.0
  %1662 = vmatprep.subr.mxu0 0.0
  %1663 = vmatpush1.msra.mxu0 0.0
  %1664 = vmatprep.subr.mxu0 0.0
  %1665 = vmatpush1.msra.mxu0 0.0
  %1666 = vmatprep.subr.mxu0 0.0
  %1667 = vmatpush1.msra.mxu0 0.0
  %1668 = vmatprep.subr.mxu0 0.0
  %1669 = vmatpush1.msra.mxu0 0.0
  %1670 = vmatprep.subr.mxu0 0.0
  %1671 = vmatpush1.msra.mxu0 0.0
  %1672 = vmatprep.subr.mxu0 0.0
  %1673 = vmatpush1.msra.mxu0 0.0
  %1674 = vmatprep.subr.mxu0 0.0
  %1675 = vmatpush1.msra.mxu0 0.0
  %1676 = vmatprep.subr.mxu0 0.0
  %1677 = vmatpush1.msra.mxu0 0.0
  %1678 = vmatprep.subr.mxu0 0.0
  %1679 = vmatpush1.msra.mxu0 0.0
  %1680 = vmatprep.subr.mxu0 0.0
  %1681 = vmatpush1.msra.mxu0 0.0
  %1682 = vmatprep.subr.mxu0 0.0
  %1683 = vmatpush1.msra.mxu0 0.0
  %1684 = vmatprep.subr.mxu0 0.0
  %1685 = vmatpush1.msra.mxu0 0.0
  %1686 = vmatprep.subr.mxu0 0.0
  %1687 = vmatpush1.msra.mxu0 0.0
  %1688 = vmatprep.subr.mxu0 0.0
  %1689 = vmatpush1.msra.mxu0 0.0
  %1690 = vmatprep.subr.mxu0 0.0
  %1691 = vmatpush1.msra.mxu0 0.0
  %1692 = vmatprep.subr.mxu0 0.0
  %1693 = vmatpush1.msra.mxu0 0.0
  %1694 = vmatprep.subr.mxu0 0.0
  %1695 = vmatpush1.msra.mxu0 0.0
  %1696 = vmatprep.subr.mxu0 0.0
  %1697 = vmatpush1.msra.mxu0 0.0
  %1698 = vmatprep.subr.mxu0 0.0
  %1699 = vmatpush1.msra.mxu0 0.0
  %1700 = vmatprep.mubr.f32.mxu0 0.0
  %1701 = vmatmul.mubr.f32.gmra.mrb[0].mxu0 %v1631
  %v1702 = vpop.f32.mrb[0].mxu0
  %v1703 = vadd.f32 0.0, %v1702
  %v1704 = vpop.f32.mrb[0].mxu0
  %1705 = vmatprep.mubr.f32.mxu0 0.0
  %1706 = vmatmul.mubr.f32.gmra.mrb[0].mxu0 %v1634
  %v1707 = vpop.f32.mrb[0].mxu0
  %v1708 = vadd.f32 0.0, %v1707
  %v1709 = vpop.f32.mrb[0].mxu0
  %1710 = vdwg.mxu0
  %s1711 = scalar_lea.vmem %s21, 32
  %v1712 = vld [vmem:[%s1711] sm:$0xff]
  %v1713 = vld [vmem:[%s1711 + $0x8] sm:$0xff]
  %v1715 = vsel %vm417, %v1703, 0
  %v1718 = vsel %vm417, %v1708, 0
  %1720 = vmatprep.subr.mxu0 0.0
  %1721 = vmatpush1.msra.mxu0 %v1712
  %1722 = vmatprep.subr.mxu0 0.0
  %1723 = vmatpush1.msra.mxu0 %v1713
  %1724 = vmatprep.subr.mxu0 0.0
  %1725 = vmatpush1.msra.mxu0 0.0
  %1726 = vmatprep.subr.mxu0 0.0
  %1727 = vmatpush1.msra.mxu0 0.0
  %1728 = vmatprep.subr.mxu0 0.0
  %1729 = vmatpush1.msra.mxu0 0.0
  %1730 = vmatprep.subr.mxu0 0.0
  %1731 = vmatpush1.msra.mxu0 0.0
  %1732 = vmatprep.subr.mxu0 0.0
  %1733 = vmatpush1.msra.mxu0 0.0
  %1734 = vmatprep.subr.mxu0 0.0
  %1735 = vmatpush1.msra.mxu0 0.0
  %1736 = vmatprep.subr.mxu0 0.0
  %1737 = vmatpush1.msra.mxu0 0.0
  %1738 = vmatprep.subr.mxu0 0.0
  %1739 = vmatpush1.msra.mxu0 0.0
  %1740 = vmatprep.subr.mxu0 0.0
  %1741 = vmatpush1.msra.mxu0 0.0
  %1742 = vmatprep.subr.mxu0 0.0
  %1743 = vmatpush1.msra.mxu0 0.0
  %1744 = vmatprep.subr.mxu0 0.0
  %1745 = vmatpush1.msra.mxu0 0.0
  %1746 = vmatprep.subr.mxu0 0.0
  %1747 = vmatpush1.msra.mxu0 0.0
  %1748 = vmatprep.subr.mxu0 0.0
  %1749 = vmatpush1.msra.mxu0 0.0
  %1750 = vmatprep.subr.mxu0 0.0
  %1751 = vmatpush1.msra.mxu0 0.0
  %1752 = vmatprep.subr.mxu0 0.0
  %1753 = vmatpush1.msra.mxu0 0.0
  %1754 = vmatprep.subr.mxu0 0.0
  %1755 = vmatpush1.msra.mxu0 0.0
  %1756 = vmatprep.subr.mxu0 0.0
  %1757 = vmatpush1.msra.mxu0 0.0
  %1758 = vmatprep.subr.mxu0 0.0
  %1759 = vmatpush1.msra.mxu0 0.0
  %1760 = vmatprep.subr.mxu0 0.0
  %1761 = vmatpush1.msra.mxu0 0.0
  %1762 = vmatprep.subr.mxu0 0.0
  %1763 = vmatpush1.msra.mxu0 0.0
  %1764 = vmatprep.subr.mxu0 0.0
  %1765 = vmatpush1.msra.mxu0 0.0
  %1766 = vmatprep.subr.mxu0 0.0
  %1767 = vmatpush1.msra.mxu0 0.0
  %1768 = vmatprep.subr.mxu0 0.0
  %1769 = vmatpush1.msra.mxu0 0.0
  %1770 = vmatprep.subr.mxu0 0.0
  %1771 = vmatpush1.msra.mxu0 0.0
  %1772 = vmatprep.subr.mxu0 0.0
  %1773 = vmatpush1.msra.mxu0 0.0
  %1774 = vmatprep.subr.mxu0 0.0
  %1775 = vmatpush1.msra.mxu0 0.0
  %1776 = vmatprep.subr.mxu0 0.0
  %1777 = vmatpush1.msra.mxu0 0.0
  %1778 = vmatprep.subr.mxu0 0.0
  %1779 = vmatpush1.msra.mxu0 0.0
  %1780 = vmatprep.subr.mxu0 0.0
  %1781 = vmatpush1.msra.mxu0 0.0
  %1782 = vmatprep.subr.mxu0 0.0
  %1783 = vmatpush1.msra.mxu0 0.0
  %1784 = vmatprep.mubr.f32.mxu0 0.0
  %1785 = vmatmul.mubr.f32.gmra.mrb[0].mxu0 %v1715
  %v1786 = vpop.f32.mrb[0].mxu0
  %v1787 = vadd.f32 0.0, %v1786
  %v1788 = vpop.f32.mrb[0].mxu0
  %1789 = vmatprep.mubr.f32.mxu0 0.0
  %1790 = vmatmul.mubr.f32.gmra.mrb[0].mxu0 %v1718
  %v1791 = vpop.f32.mrb[0].mxu0
  %v1792 = vadd.f32 0.0, %v1791
  %v1793 = vpop.f32.mrb[0].mxu0
  %1794 = vdwg.mxu0
  %v1795 = vadd.f32 %v1235, %v1787
  %v1796 = vadd.f32 %v1240, %v1792
  %s1797 = scalar_lea.vmem %s9, 192
  %v1798 = vld [vmem:[%s1797] sm:$0xff]
  %v1799 = vld [vmem:[%s1797 + $0x8] sm:$0xff]
  %v1800 = vld [vmem:[%s1797 + $0x10] sm:$0xff]
  %v1801 = vld [vmem:[%s1797 + $0x18] sm:$0xff]
  %v1802 = vld [vmem:[%s1797 + $0x20] sm:$0xff]
  %v1803 = vld [vmem:[%s1797 + $0x28] sm:$0xff]
  %v1804 = vld [vmem:[%s1797 + $0x30] sm:$0xff]
  %v1805 = vld [vmem:[%s1797 + $0x38] sm:$0xff]
  %s1806 = scalar_lea.vmem %s15, 3
  %v1807 = vld [vmem:[%s1806] sm:$0x1]
  %v1809 = vlaneseq
  %v1810 = vshrl.u32 %v1809, 7
  %v1811 = vsub.s32 0, %v1810
  %v1812 = vrot.slane %v1807, %v1811
  %1814 = vmatprep.subr.mxu0 0.0
  %1815 = vmatpush1.msra.mxu0 %v1798
  %1816 = vmatprep.subr.mxu0 0.0
  %1817 = vmatpush1.msra.mxu0 %v1799
  %1818 = vmatprep.subr.mxu0 0.0
  %1819 = vmatpush1.msra.mxu0 %v1800
  %1820 = vmatprep.subr.mxu0 0.0
  %1821 = vmatpush1.msra.mxu0 %v1801
  %1822 = vmatprep.subr.mxu0 0.0
  %1823 = vmatpush1.msra.mxu0 %v1802
  %1824 = vmatprep.subr.mxu0 0.0
  %1825 = vmatpush1.msra.mxu0 %v1803
  %1826 = vmatprep.subr.mxu0 0.0
  %1827 = vmatpush1.msra.mxu0 %v1804
  %1828 = vmatprep.subr.mxu0 0.0
  %1829 = vmatpush1.msra.mxu0 %v1805
  %1830 = vmatprep.subr.mxu0 0.0
  %1831 = vmatpush1.msra.mxu0 0.0
  %1832 = vmatprep.subr.mxu0 0.0
  %1833 = vmatpush1.msra.mxu0 0.0
  %1834 = vmatprep.subr.mxu0 0.0
  %1835 = vmatpush1.msra.mxu0 0.0
  %1836 = vmatprep.subr.mxu0 0.0
  %1837 = vmatpush1.msra.mxu0 0.0
  %1838 = vmatprep.subr.mxu0 0.0
  %1839 = vmatpush1.msra.mxu0 0.0
  %1840 = vmatprep.subr.mxu0 0.0
  %1841 = vmatpush1.msra.mxu0 0.0
  %1842 = vmatprep.subr.mxu0 0.0
  %1843 = vmatpush1.msra.mxu0 0.0
  %1844 = vmatprep.subr.mxu0 0.0
  %1845 = vmatpush1.msra.mxu0 0.0
  %1846 = vmatprep.subr.mxu0 0.0
  %1847 = vmatpush1.msra.mxu0 0.0
  %1848 = vmatprep.subr.mxu0 0.0
  %1849 = vmatpush1.msra.mxu0 0.0
  %1850 = vmatprep.subr.mxu0 0.0
  %1851 = vmatpush1.msra.mxu0 0.0
  %1852 = vmatprep.subr.mxu0 0.0
  %1853 = vmatpush1.msra.mxu0 0.0
  %1854 = vmatprep.subr.mxu0 0.0
  %1855 = vmatpush1.msra.mxu0 0.0
  %1856 = vmatprep.subr.mxu0 0.0
  %1857 = vmatpush1.msra.mxu0 0.0
  %1858 = vmatprep.subr.mxu0 0.0
  %1859 = vmatpush1.msra.mxu0 0.0
  %1860 = vmatprep.subr.mxu0 0.0
  %1861 = vmatpush1.msra.mxu0 0.0
  %1862 = vmatprep.subr.mxu0 0.0
  %1863 = vmatpush1.msra.mxu0 0.0
  %1864 = vmatprep.subr.mxu0 0.0
  %1865 = vmatpush1.msra.mxu0 0.0
  %1866 = vmatprep.subr.mxu0 0.0
  %1867 = vmatpush1.msra.mxu0 0.0
  %1868 = vmatprep.subr.mxu0 0.0
  %1869 = vmatpush1.msra.mxu0 0.0
  %1870 = vmatprep.subr.mxu0 0.0
  %1871 = vmatpush1.msra.mxu0 0.0
  %1872 = vmatprep.subr.mxu0 0.0
  %1873 = vmatpush1.msra.mxu0 0.0
  %1874 = vmatprep.subr.mxu0 0.0
  %1875 = vmatpush1.msra.mxu0 0.0
  %1876 = vmatprep.subr.mxu0 0.0
  %1877 = vmatpush1.msra.mxu0 0.0
  %1878 = vmatprep.mubr.f32.mxu0 0.0
  %1879 = vmatmul.mubr.f32.gmra.mrb[0].mxu0 %v155
  %v1880 = vpop.f32.mrb[0].mxu0
  %v1881 = vadd.f32 %v1812, %v1880
  %v1882 = vpop.f32.mrb[0].mxu0
  %1883 = vmatprep.mubr.f32.mxu0 0.0
  %1884 = vmatmul.mubr.f32.gmra.mrb[0].mxu0 %v158
  %v1885 = vpop.f32.mrb[0].mxu0
  %v1886 = vadd.f32 %v1812, %v1885
  %v1887 = vpop.f32.mrb[0].mxu0
  %1888 = vdwg.mxu0
  %v1889 = vmul.f32 %v1881, 0.25
  %v1890 = vmul.f32 %v1886, 0.25
  %s1891 = scalar_lea.vmem %s11, 192
  %v1892 = vld [vmem:[%s1891] sm:$0xff]
  %v1893 = vld [vmem:[%s1891 + $0x8] sm:$0xff]
  %v1894 = vld [vmem:[%s1891 + $0x10] sm:$0xff]
  %v1895 = vld [vmem:[%s1891 + $0x18] sm:$0xff]
  %v1896 = vld [vmem:[%s1891 + $0x20] sm:$0xff]
  %v1897 = vld [vmem:[%s1891 + $0x28] sm:$0xff]
  %v1898 = vld [vmem:[%s1891 + $0x30] sm:$0xff]
  %v1899 = vld [vmem:[%s1891 + $0x38] sm:$0xff]
  %s1900 = scalar_lea.vmem %s17, 3
  %v1901 = vld [vmem:[%s1900] sm:$0x1]
  %v1903 = vlaneseq
  %v1904 = vshrl.u32 %v1903, 7
  %v1905 = vsub.s32 0, %v1904
  %v1906 = vrot.slane %v1901, %v1905
  %1908 = vmatprep.subr.mxu0 0.0
  %1909 = vmatpush1.msra.mxu0 %v1892
  %1910 = vmatprep.subr.mxu0 0.0
  %1911 = vmatpush1.msra.mxu0 %v1893
  %1912 = vmatprep.subr.mxu0 0.0
  %1913 = vmatpush1.msra.mxu0 %v1894
  %1914 = vmatprep.subr.mxu0 0.0
  %1915 = vmatpush1.msra.mxu0 %v1895
  %1916 = vmatprep.subr.mxu0 0.0
  %1917 = vmatpush1.msra.mxu0 %v1896
  %1918 = vmatprep.subr.mxu0 0.0
  %1919 = vmatpush1.msra.mxu0 %v1897
  %1920 = vmatprep.subr.mxu0 0.0
  %1921 = vmatpush1.msra.mxu0 %v1898
  %1922 = vmatprep.subr.mxu0 0.0
  %1923 = vmatpush1.msra.mxu0 %v1899
  %1924 = vmatprep.subr.mxu0 0.0
  %1925 = vmatpush1.msra.mxu0 0.0
  %1926 = vmatprep.subr.mxu0 0.0
  %1927 = vmatpush1.msra.mxu0 0.0
  %1928 = vmatprep.subr.mxu0 0.0
  %1929 = vmatpush1.msra.mxu0 0.0
  %1930 = vmatprep.subr.mxu0 0.0
  %1931 = vmatpush1.msra.mxu0 0.0
  %1932 = vmatprep.subr.mxu0 0.0
  %1933 = vmatpush1.msra.mxu0 0.0
  %1934 = vmatprep.subr.mxu0 0.0
  %1935 = vmatpush1.msra.mxu0 0.0
  %1936 = vmatprep.subr.mxu0 0.0
  %1937 = vmatpush1.msra.mxu0 0.0
  %1938 = vmatprep.subr.mxu0 0.0
  %1939 = vmatpush1.msra.mxu0 0.0
  %1940 = vmatprep.subr.mxu0 0.0
  %1941 = vmatpush1.msra.mxu0 0.0
  %1942 = vmatprep.subr.mxu0 0.0
  %1943 = vmatpush1.msra.mxu0 0.0
  %1944 = vmatprep.subr.mxu0 0.0
  %1945 = vmatpush1.msra.mxu0 0.0
  %1946 = vmatprep.subr.mxu0 0.0
  %1947 = vmatpush1.msra.mxu0 0.0
  %1948 = vmatprep.subr.mxu0 0.0
  %1949 = vmatpush1.msra.mxu0 0.0
  %1950 = vmatprep.subr.mxu0 0.0
  %1951 = vmatpush1.msra.mxu0 0.0
  %1952 = vmatprep.subr.mxu0 0.0
  %1953 = vmatpush1.msra.mxu0 0.0
  %1954 = vmatprep.subr.mxu0 0.0
  %1955 = vmatpush1.msra.mxu0 0.0
  %1956 = vmatprep.subr.mxu0 0.0
  %1957 = vmatpush1.msra.mxu0 0.0
  %1958 = vmatprep.subr.mxu0 0.0
  %1959 = vmatpush1.msra.mxu0 0.0
  %1960 = vmatprep.subr.mxu0 0.0
  %1961 = vmatpush1.msra.mxu0 0.0
  %1962 = vmatprep.subr.mxu0 0.0
  %1963 = vmatpush1.msra.mxu0 0.0
  %1964 = vmatprep.subr.mxu0 0.0
  %1965 = vmatpush1.msra.mxu0 0.0
  %1966 = vmatprep.subr.mxu0 0.0
  %1967 = vmatpush1.msra.mxu0 0.0
  %1968 = vmatprep.subr.mxu0 0.0
  %1969 = vmatpush1.msra.mxu0 0.0
  %1970 = vmatprep.subr.mxu0 0.0
  %1971 = vmatpush1.msra.mxu0 0.0
  %1972 = vmatprep.mubr.f32.mxu0 0.0
  %1973 = vmatmul.mubr.f32.gmra.mrb[0].mxu0 %v155
  %v1974 = vpop.f32.mrb[0].mxu0
  %v1975 = vadd.f32 %v1906, %v1974
  %v1976 = vpop.f32.mrb[0].mxu0
  %1977 = vmatprep.mubr.f32.mxu0 0.0
  %1978 = vmatmul.mubr.f32.gmra.mrb[0].mxu0 %v158
  %v1979 = vpop.f32.mrb[0].mxu0
  %v1980 = vadd.f32 %v1906, %v1979
  %v1981 = vpop.f32.mrb[0].mxu0
  %1982 = vdwg.mxu0
  %s1983 = scalar_lea.vmem %s13, 192
  %v1984 = vld [vmem:[%s1983] sm:$0xff]
  %v1985 = vld [vmem:[%s1983 + $0x8] sm:$0xff]
  %v1986 = vld [vmem:[%s1983 + $0x10] sm:$0xff]
  %v1987 = vld [vmem:[%s1983 + $0x18] sm:$0xff]
  %v1988 = vld [vmem:[%s1983 + $0x20] sm:$0xff]
  %v1989 = vld [vmem:[%s1983 + $0x28] sm:$0xff]
  %v1990 = vld [vmem:[%s1983 + $0x30] sm:$0xff]
  %v1991 = vld [vmem:[%s1983 + $0x38] sm:$0xff]
  %s1992 = scalar_lea.vmem %s19, 3
  %v1993 = vld [vmem:[%s1992] sm:$0x1]
  %v1995 = vlaneseq
  %v1996 = vshrl.u32 %v1995, 7
  %v1997 = vsub.s32 0, %v1996
  %v1998 = vrot.slane %v1993, %v1997
  %2000 = vmatprep.subr.mxu0 0.0
  %2001 = vmatpush1.msra.mxu0 %v1984
  %2002 = vmatprep.subr.mxu0 0.0
  %2003 = vmatpush1.msra.mxu0 %v1985
  %2004 = vmatprep.subr.mxu0 0.0
  %2005 = vmatpush1.msra.mxu0 %v1986
  %2006 = vmatprep.subr.mxu0 0.0
  %2007 = vmatpush1.msra.mxu0 %v1987
  %2008 = vmatprep.subr.mxu0 0.0
  %2009 = vmatpush1.msra.mxu0 %v1988
  %2010 = vmatprep.subr.mxu0 0.0
  %2011 = vmatpush1.msra.mxu0 %v1989
  %2012 = vmatprep.subr.mxu0 0.0
  %2013 = vmatpush1.msra.mxu0 %v1990
  %2014 = vmatprep.subr.mxu0 0.0
  %2015 = vmatpush1.msra.mxu0 %v1991
  %2016 = vmatprep.subr.mxu0 0.0
  %2017 = vmatpush1.msra.mxu0 0.0
  %2018 = vmatprep.subr.mxu0 0.0
  %2019 = vmatpush1.msra.mxu0 0.0
  %2020 = vmatprep.subr.mxu0 0.0
  %2021 = vmatpush1.msra.mxu0 0.0
  %2022 = vmatprep.subr.mxu0 0.0
  %2023 = vmatpush1.msra.mxu0 0.0
  %2024 = vmatprep.subr.mxu0 0.0
  %2025 = vmatpush1.msra.mxu0 0.0
  %2026 = vmatprep.subr.mxu0 0.0
  %2027 = vmatpush1.msra.mxu0 0.0
  %2028 = vmatprep.subr.mxu0 0.0
  %2029 = vmatpush1.msra.mxu0 0.0
  %2030 = vmatprep.subr.mxu0 0.0
  %2031 = vmatpush1.msra.mxu0 0.0
  %2032 = vmatprep.subr.mxu0 0.0
  %2033 = vmatpush1.msra.mxu0 0.0
  %2034 = vmatprep.subr.mxu0 0.0
  %2035 = vmatpush1.msra.mxu0 0.0
  %2036 = vmatprep.subr.mxu0 0.0
  %2037 = vmatpush1.msra.mxu0 0.0
  %2038 = vmatprep.subr.mxu0 0.0
  %2039 = vmatpush1.msra.mxu0 0.0
  %2040 = vmatprep.subr.mxu0 0.0
  %2041 = vmatpush1.msra.mxu0 0.0
  %2042 = vmatprep.subr.mxu0 0.0
  %2043 = vmatpush1.msra.mxu0 0.0
  %2044 = vmatprep.subr.mxu0 0.0
  %2045 = vmatpush1.msra.mxu0 0.0
  %2046 = vmatprep.subr.mxu0 0.0
  %2047 = vmatpush1.msra.mxu0 0.0
  %2048 = vmatprep.subr.mxu0 0.0
  %2049 = vmatpush1.msra.mxu0 0.0
  %2050 = vmatprep.subr.mxu0 0.0
  %2051 = vmatpush1.msra.mxu0 0.0
  %2052 = vmatprep.subr.mxu0 0.0
  %2053 = vmatpush1.msra.mxu0 0.0
  %2054 = vmatprep.subr.mxu0 0.0
  %2055 = vmatpush1.msra.mxu0 0.0
  %2056 = vmatprep.subr.mxu0 0.0
  %2057 = vmatpush1.msra.mxu0 0.0
  %2058 = vmatprep.subr.mxu0 0.0
  %2059 = vmatpush1.msra.mxu0 0.0
  %2060 = vmatprep.subr.mxu0 0.0
  %2061 = vmatpush1.msra.mxu0 0.0
  %2062 = vmatprep.subr.mxu0 0.0
  %2063 = vmatpush1.msra.mxu0 0.0
  %2064 = vmatprep.mubr.f32.mxu0 0.0
  %2065 = vmatmul.mubr.f32.gmra.mrb[0].mxu0 %v155
  %v2066 = vpop.f32.mrb[0].mxu0
  %v2067 = vadd.f32 %v1998, %v2066
  %v2068 = vpop.f32.mrb[0].mxu0
  %2069 = vmatprep.mubr.f32.mxu0 0.0
  %2070 = vmatmul.mubr.f32.gmra.mrb[0].mxu0 %v158
  %v2071 = vpop.f32.mrb[0].mxu0
  %v2072 = vadd.f32 %v1998, %v2071
  %v2073 = vpop.f32.mrb[0].mxu0
  %2074 = vdwg.mxu0
  %v2076 = vsel %vm417, %v1889, 0
  %v2079 = vsel %vm417, %v1890, 0
  %v2082 = vsel %vm417, %v1975, 0
  %v2085 = vsel %vm417, %v1980, 0
  %2087 = vmatprep.subr.mxu0 0.0
  %2088 = vmatpush1.xpose.msra.mxu0 %v2082
  %2089 = vmatprep.subr.mxu0 0.0
  %2090 = vmatpush1.xpose.msra.mxu0 %v2085
  %2091 = vmatprep.subr.mxu0 0.0
  %2092 = vmatpush1.xpose.msra.mxu0 0.0
  %2093 = vmatprep.subr.mxu0 0.0
  %2094 = vmatpush1.xpose.msra.mxu0 0.0
  %2095 = vmatprep.subr.mxu0 0.0
  %2096 = vmatpush1.xpose.msra.mxu0 0.0
  %2097 = vmatprep.subr.mxu0 0.0
  %2098 = vmatpush1.xpose.msra.mxu0 0.0
  %2099 = vmatprep.subr.mxu0 0.0
  %2100 = vmatpush1.xpose.msra.mxu0 0.0
  %2101 = vmatprep.subr.mxu0 0.0
  %2102 = vmatpush1.xpose.msra.mxu0 0.0
  %2103 = vmatprep.subr.mxu0 0.0
  %2104 = vmatpush1.xpose.msra.mxu0 0.0
  %2105 = vmatprep.subr.mxu0 0.0
  %2106 = vmatpush1.xpose.msra.mxu0 0.0
  %2107 = vmatprep.subr.mxu0 0.0
  %2108 = vmatpush1.xpose.msra.mxu0 0.0
  %2109 = vmatprep.subr.mxu0 0.0
  %2110 = vmatpush1.xpose.msra.mxu0 0.0
  %2111 = vmatprep.subr.mxu0 0.0
  %2112 = vmatpush1.xpose.msra.mxu0 0.0
  %2113 = vmatprep.subr.mxu0 0.0
  %2114 = vmatpush1.xpose.msra.mxu0 0.0
  %2115 = vmatprep.subr.mxu0 0.0
  %2116 = vmatpush1.xpose.msra.mxu0 0.0
  %2117 = vmatprep.subr.mxu0 0.0
  %2118 = vmatpush1.xpose.msra.mxu0 0.0
  %2119 = vmatprep.subr.mxu0 0.0
  %2120 = vmatpush1.xpose.msra.mxu0 0.0
  %2121 = vmatprep.subr.mxu0 0.0
  %2122 = vmatpush1.xpose.msra.mxu0 0.0
  %2123 = vmatprep.subr.mxu0 0.0
  %2124 = vmatpush1.xpose.msra.mxu0 0.0
  %2125 = vmatprep.subr.mxu0 0.0
  %2126 = vmatpush1.xpose.msra.mxu0 0.0
  %2127 = vmatprep.subr.mxu0 0.0
  %2128 = vmatpush1.xpose.msra.mxu0 0.0
  %2129 = vmatprep.subr.mxu0 0.0
  %2130 = vmatpush1.xpose.msra.mxu0 0.0
  %2131 = vmatprep.subr.mxu0 0.0
  %2132 = vmatpush1.xpose.msra.mxu0 0.0
  %2133 = vmatprep.subr.mxu0 0.0
  %2134 = vmatpush1.xpose.msra.mxu0 0.0
  %2135 = vmatprep.subr.mxu0 0.0
  %2136 = vmatpush1.xpose.msra.mxu0 0.0
  %2137 = vmatprep.subr.mxu0 0.0
  %2138 = vmatpush1.xpose.msra.mxu0 0.0
  %2139 = vmatprep.subr.mxu0 0.0
  %2140 = vmatpush1.xpose.msra.mxu0 0.0
  %2141 = vmatprep.subr.mxu0 0.0
  %2142 = vmatpush1.xpose.msra.mxu0 0.0
  %2143 = vmatprep.subr.mxu0 0.0
  %2144 = vmatpush1.xpose.msra.mxu0 0.0
  %2145 = vmatprep.subr.mxu0 0.0
  %2146 = vmatpush1.xpose.msra.mxu0 0.0
  %2147 = vmatprep.subr.mxu0 0.0
  %2148 = vmatpush1.xpose.msra.mxu0 0.0
  %2149 = vmatprep.subr.mxu0 0.0
  %2150 = vmatpush1.xpose.msra.mxu0 0.0
  %2151 = vmatprep.mubr.f32.mxu0 0.0
  %2152 = vmatmul.mubr.f32.gmra.mrb[0].mxu0 %v2076
  %v2153 = vpop.f32.mrb[0].mxu0
  %v2154 = vadd.f32 %v134, %v2153
  %v2155 = vpop.f32.mrb[0].mxu0
  %2156 = vmatprep.mubr.f32.mxu0 0.0
  %2157 = vmatmul.mubr.f32.gmra.mrb[0].mxu0 %v2079
  %v2158 = vpop.f32.mrb[0].mxu0
  %v2159 = vadd.f32 %v135, %v2158
  %v2160 = vpop.f32.mrb[0].mxu0
  %2161 = vdwg.mxu0
  %v2162 = vsel %vm417, %v2154, -inf
  %2163 = vmax.xlane.f32.xlu0 %v2162
  %v2164 = vpop.xlane.xlu0 %2163
  %v2165 = vsel %vm417, %v2159, -inf
  %2166 = vmax.xlane.f32.xlu0 %v2165
  %v2167 = vpop.xlane.xlu0 %2166
  %v2168 = vsub.f32 %v2154, %v2164
  %v2169 = vsub.f32 %v2159, %v2167
  %v2170 = vmul.f32 %v2168, 1.442695
  %v2171 = vpow.pop %v2170
  %v2172 = vmul.f32 %v2169, 1.442695
  %v2173 = vpow.pop %v2172
  %v2174 = vsel %vm417, %v2171, 0.0
  %2175 = vadd.xlane.f32.xlu0 %v2174
  %v2176 = vpop.xlane.xlu0 %2175
  %v2177 = vsel %vm417, %v2173, 0.0
  %2178 = vadd.xlane.f32.xlu0 %v2177
  %v2179 = vpop.xlane.xlu0 %2178
  %v2180 = vrcp.pop %v2176
  %v2181 = vrcp.pop %v2179
  %v2182 = vmul.f32 %v2171, %v2180
  %v2183 = vmul.f32 %v2173, %v2181
  %v2185 = vsel %vm417, %v2182, 0
  %v2188 = vsel %vm417, %v2183, 0
  %2190 = vmatprep.subr.mxu0 0.0
  %2191 = vmatpush1.msra.mxu0 %v2067
  %2192 = vmatprep.subr.mxu0 0.0
  %2193 = vmatpush1.msra.mxu0 %v2072
  %2194 = vmatprep.subr.mxu0 0.0
  %2195 = vmatpush1.msra.mxu0 0.0
  %2196 = vmatprep.subr.mxu0 0.0
  %2197 = vmatpush1.msra.mxu0 0.0
  %2198 = vmatprep.subr.mxu0 0.0
  %2199 = vmatpush1.msra.mxu0 0.0
  %2200 = vmatprep.subr.mxu0 0.0
  %2201 = vmatpush1.msra.mxu0 0.0
  %2202 = vmatprep.subr.mxu0 0.0
  %2203 = vmatpush1.msra.mxu0 0.0
  %2204 = vmatprep.subr.mxu0 0.0
  %2205 = vmatpush1.msra.mxu0 0.0
  %2206 = vmatprep.subr.mxu0 0.0
  %2207 = vmatpush1.msra.mxu0 0.0
  %2208 = vmatprep.subr.mxu0 0.0
  %2209 = vmatpush1.msra.mxu0 0.0
  %2210 = vmatprep.subr.mxu0 0.0
  %2211 = vmatpush1.msra.mxu0 0.0
  %2212 = vmatprep.subr.mxu0 0.0
  %2213 = vmatpush1.msra.mxu0 0.0
  %2214 = vmatprep.subr.mxu0 0.0
  %2215 = vmatpush1.msra.mxu0 0.0
  %2216 = vmatprep.subr.mxu0 0.0
  %2217 = vmatpush1.msra.mxu0 0.0
  %2218 = vmatprep.subr.mxu0 0.0
  %2219 = vmatpush1.msra.mxu0 0.0
  %2220 = vmatprep.subr.mxu0 0.0
  %2221 = vmatpush1.msra.mxu0 0.0
  %2222 = vmatprep.subr.mxu0 0.0
  %2223 = vmatpush1.msra.mxu0 0.0
  %2224 = vmatprep.subr.mxu0 0.0
  %2225 = vmatpush1.msra.mxu0 0.0
  %2226 = vmatprep.subr.mxu0 0.0
  %2227 = vmatpush1.msra.mxu0 0.0
  %2228 = vmatprep.subr.mxu0 0.0
  %2229 = vmatpush1.msra.mxu0 0.0
  %2230 = vmatprep.subr.mxu0 0.0
  %2231 = vmatpush1.msra.mxu0 0.0
  %2232 = vmatprep.subr.mxu0 0.0
  %2233 = vmatpush1.msra.mxu0 0.0
  %2234 = vmatprep.subr.mxu0 0.0
  %2235 = vmatpush1.msra.mxu0 0.0
  %2236 = vmatprep.subr.mxu0 0.0
  %2237 = vmatpush1.msra.mxu0 0.0
  %2238 = vmatprep.subr.mxu0 0.0
  %2239 = vmatpush1.msra.mxu0 0.0
  %2240 = vmatprep.subr.mxu0 0.0
  %2241 = vmatpush1.msra.mxu0 0.0
  %2242 = vmatprep.subr.mxu0 0.0
  %2243 = vmatpush1.msra.mxu0 0.0
  %2244 = vmatprep.subr.mxu0 0.0
  %2245 = vmatpush1.msra.mxu0 0.0
  %2246 = vmatprep.subr.mxu0 0.0
  %2247 = vmatpush1.msra.mxu0 0.0
  %2248 = vmatprep.subr.mxu0 0.0
  %2249 = vmatpush1.msra.mxu0 0.0
  %2250 = vmatprep.subr.mxu0 0.0
  %2251 = vmatpush1.msra.mxu0 0.0
  %2252 = vmatprep.subr.mxu0 0.0
  %2253 = vmatpush1.msra.mxu0 0.0
  %2254 = vmatprep.mubr.f32.mxu0 0.0
  %2255 = vmatmul.mubr.f32.gmra.mrb[0].mxu0 %v2185
  %v2256 = vpop.f32.mrb[0].mxu0
  %v2257 = vadd.f32 0.0, %v2256
  %v2258 = vpop.f32.mrb[0].mxu0
  %2259 = vmatprep.mubr.f32.mxu0 0.0
  %2260 = vmatmul.mubr.f32.gmra.mrb[0].mxu0 %v2188
  %v2261 = vpop.f32.mrb[0].mxu0
  %v2262 = vadd.f32 0.0, %v2261
  %v2263 = vpop.f32.mrb[0].mxu0
  %2264 = vdwg.mxu0
  %s2265 = scalar_lea.vmem %s21, 48
  %v2266 = vld [vmem:[%s2265] sm:$0xff]
  %v2267 = vld [vmem:[%s2265 + $0x8] sm:$0xff]
  %v2269 = vsel %vm417, %v2257, 0
  %v2272 = vsel %vm417, %v2262, 0
  %2274 = vmatprep.subr.mxu0 0.0
  %2275 = vmatpush1.msra.mxu0 %v2266
  %2276 = vmatprep.subr.mxu0 0.0
  %2277 = vmatpush1.msra.mxu0 %v2267
  %2278 = vmatprep.subr.mxu0 0.0
  %2279 = vmatpush1.msra.mxu0 0.0
  %2280 = vmatprep.subr.mxu0 0.0
  %2281 = vmatpush1.msra.mxu0 0.0
  %2282 = vmatprep.subr.mxu0 0.0
  %2283 = vmatpush1.msra.mxu0 0.0
  %2284 = vmatprep.subr.mxu0 0.0
  %2285 = vmatpush1.msra.mxu0 0.0
  %2286 = vmatprep.subr.mxu0 0.0
  %2287 = vmatpush1.msra.mxu0 0.0
  %2288 = vmatprep.subr.mxu0 0.0
  %2289 = vmatpush1.msra.mxu0 0.0
  %2290 = vmatprep.subr.mxu0 0.0
  %2291 = vmatpush1.msra.mxu0 0.0
  %2292 = vmatprep.subr.mxu0 0.0
  %2293 = vmatpush1.msra.mxu0 0.0
  %2294 = vmatprep.subr.mxu0 0.0
  %2295 = vmatpush1.msra.mxu0 0.0
  %2296 = vmatprep.subr.mxu0 0.0
  %2297 = vmatpush1.msra.mxu0 0.0
  %2298 = vmatprep.subr.mxu0 0.0
  %2299 = vmatpush1.msra.mxu0 0.0
  %2300 = vmatprep.subr.mxu0 0.0
  %2301 = vmatpush1.msra.mxu0 0.0
  %2302 = vmatprep.subr.mxu0 0.0
  %2303 = vmatpush1.msra.mxu0 0.0
  %2304 = vmatprep.subr.mxu0 0.0
  %2305 = vmatpush1.msra.mxu0 0.0
  %2306 = vmatprep.subr.mxu0 0.0
  %2307 = vmatpush1.msra.mxu0 0.0
  %2308 = vmatprep.subr.mxu0 0.0
  %2309 = vmatpush1.msra.mxu0 0.0
  %2310 = vmatprep.subr.mxu0 0.0
  %2311 = vmatpush1.msra.mxu0 0.0
  %2312 = vmatprep.subr.mxu0 0.0
  %2313 = vmatpush1.msra.mxu0 0.0
  %2314 = vmatprep.subr.mxu0 0.0
  %2315 = vmatpush1.msra.mxu0 0.0
  %2316 = vmatprep.subr.mxu0 0.0
  %2317 = vmatpush1.msra.mxu0 0.0
  %2318 = vmatprep.subr.mxu0 0.0
  %2319 = vmatpush1.msra.mxu0 0.0
  %2320 = vmatprep.subr.mxu0 0.0
  %2321 = vmatpush1.msra.mxu0 0.0
  %2322 = vmatprep.subr.mxu0 0.0
  %2323 = vmatpush1.msra.mxu0 0.0
  %2324 = vmatprep.subr.mxu0 0.0
  %2325 = vmatpush1.msra.mxu0 0.0
  %2326 = vmatprep.subr.mxu0 0.0
  %2327 = vmatpush1.msra.mxu0 0.0
  %2328 = vmatprep.subr.mxu0 0.0
  %2329 = vmatpush1.msra.mxu0 0.0
  %2330 = vmatprep.subr.mxu0 0.0
  %2331 = vmatpush1.msra.mxu0 0.0
  %2332 = vmatprep.subr.mxu0 0.0
  %2333 = vmatpush1.msra.mxu0 0.0
  %2334 = vmatprep.subr.mxu0 0.0
  %2335 = vmatpush1.msra.mxu0 0.0
  %2336 = vmatprep.subr.mxu0 0.0
  %2337 = vmatpush1.msra.mxu0 0.0
  %2338 = vmatprep.mubr.f32.mxu0 0.0
  %2339 = vmatmul.mubr.f32.gmra.mrb[0].mxu0 %v2269
  %v2340 = vpop.f32.mrb[0].mxu0
  %v2341 = vadd.f32 0.0, %v2340
  %v2342 = vpop.f32.mrb[0].mxu0
  %2343 = vmatprep.mubr.f32.mxu0 0.0
  %2344 = vmatmul.mubr.f32.gmra.mrb[0].mxu0 %v2272
  %v2345 = vpop.f32.mrb[0].mxu0
  %v2346 = vadd.f32 0.0, %v2345
  %v2347 = vpop.f32.mrb[0].mxu0
  %2348 = vdwg.mxu0
  %v2349 = vadd.f32 %v1795, %v2341
  %v2350 = vadd.f32 %v1796, %v2346
  %v2351 = vld [vmem:[%s23] sm:$0x1]
  %v2353 = vlaneseq
  %v2354 = vshrl.u32 %v2353, 7
  %v2355 = vsub.s32 0, %v2354
  %v2356 = vrot.slane %v2351, %v2355
  %v2358 = vadd.f32 %v2349, %v2356
  %v2359 = vadd.f32 %v2350, %v2356
  %v2360 = vadd.f32 %v132, %v2358
  %v2361 = vadd.f32 %v133, %v2359
  %v2362 = vld [vmem:[%s41] sm:$0x1]
  %v2363 = vld [vmem:[%s43] sm:$0x1]
  %v2364 = vsel %vm153, %v2360, 0.0
  %2365 = vadd.xlane.f32.xlu0 %v2364
  %v2366 = vpop.xlane.xlu0 %2365
  %v2367 = vsel %vm153, %v2361, 0.0
  %2368 = vadd.xlane.f32.xlu0 %v2367
  %v2369 = vpop.xlane.xlu0 %2368
  %v2370 = vrcp.pop 64.0
  %v2371 = vmul.f32 %v2366, %v2370
  %v2372 = vmul.f32 %v2369, %v2370
  %v2373 = vsub.f32 %v2360, %v2371
  %v2374 = vsub.f32 %v2361, %v2372
  %v2375 = vmul.f32 %v2373, %v2373
  %v2376 = vmul.f32 %v2374, %v2374
  %v2377 = vsel %vm153, %v2375, 0.0
  %2378 = vadd.xlane.f32.xlu0 %v2377
  %v2379 = vpop.xlane.xlu0 %2378
  %v2380 = vsel %vm153, %v2376, 0.0
  %2381 = vadd.xlane.f32.xlu0 %v2380
  %v2382 = vpop.xlane.xlu0 %2381
  %v2383 = vmul.f32 %v2379, %v2370
  %v2384 = vmul.f32 %v2382, %v2370
  %v2385 = vadd.f32 %v2383, 1e-05
  %v2386 = vadd.f32 %v2384, 1e-05
  %v2387 = vrsqrt.pop %v2385
  %v2388 = vrsqrt.pop %v2386
  %v2389 = vmul.f32 %v2373, %v2387
  %v2390 = vmul.f32 %v2374, %v2388
  %v2392 = vlaneseq
  %v2393 = vshrl.u32 %v2392, 7
  %v2394 = vsub.s32 0, %v2393
  %v2395 = vrot.slane %v2362, %v2394
  %v2397 = vmul.f32 %v2389, %v2395
  %v2398 = vmul.f32 %v2390, %v2395
  %v2400 = vlaneseq
  %v2401 = vshrl.u32 %v2400, 7
  %v2402 = vsub.s32 0, %v2401
  %v2403 = vrot.slane %v2363, %v2402
  %v2405 = vadd.f32 %v2397, %v2403
  %v2406 = vadd.f32 %v2398, %v2403
  %v2407 = vld [vmem:[%s25] sm:$0xff]
  %v2408 = vld [vmem:[%s25 + $0x8] sm:$0xff]
  %v2409 = vld [vmem:[%s25 + $0x10] sm:$0xff]
  %v2410 = vld [vmem:[%s25 + $0x18] sm:$0xff]
  %v2411 = vld [vmem:[%s25 + $0x20] sm:$0xff]
  %v2412 = vld [vmem:[%s25 + $0x28] sm:$0xff]
  %v2413 = vld [vmem:[%s25 + $0x30] sm:$0xff]
  %v2414 = vld [vmem:[%s25 + $0x38] sm:$0xff]
  %v2415 = vld [vmem:[%s31] sm:$0x1]
  %v2417 = vlaneseq
  %v2418 = vshrl.u32 %v2417, 7
  %v2419 = vsub.s32 0, %v2418
  %v2420 = vrot.slane %v2415, %v2419
  %v2423 = vsel %vm153, %v2405, 0
  %v2426 = vsel %vm153, %v2406, 0
  %2428 = vmatprep.subr.mxu0 0.0
  %2429 = vmatpush1.msra.mxu0 %v2407
  %2430 = vmatprep.subr.mxu0 0.0
  %2431 = vmatpush1.msra.mxu0 %v2408
  %2432 = vmatprep.subr.mxu0 0.0
  %2433 = vmatpush1.msra.mxu0 %v2409
  %2434 = vmatprep.subr.mxu0 0.0
  %2435 = vmatpush1.msra.mxu0 %v2410
  %2436 = vmatprep.subr.mxu0 0.0
  %2437 = vmatpush1.msra.mxu0 %v2411
  %2438 = vmatprep.subr.mxu0 0.0
  %2439 = vmatpush1.msra.mxu0 %v2412
  %2440 = vmatprep.subr.mxu0 0.0
  %2441 = vmatpush1.msra.mxu0 %v2413
  %2442 = vmatprep.subr.mxu0 0.0
  %2443 = vmatpush1.msra.mxu0 %v2414
  %2444 = vmatprep.subr.mxu0 0.0
  %2445 = vmatpush1.msra.mxu0 0.0
  %2446 = vmatprep.subr.mxu0 0.0
  %2447 = vmatpush1.msra.mxu0 0.0
  %2448 = vmatprep.subr.mxu0 0.0
  %2449 = vmatpush1.msra.mxu0 0.0
  %2450 = vmatprep.subr.mxu0 0.0
  %2451 = vmatpush1.msra.mxu0 0.0
  %2452 = vmatprep.subr.mxu0 0.0
  %2453 = vmatpush1.msra.mxu0 0.0
  %2454 = vmatprep.subr.mxu0 0.0
  %2455 = vmatpush1.msra.mxu0 0.0
  %2456 = vmatprep.subr.mxu0 0.0
  %2457 = vmatpush1.msra.mxu0 0.0
  %2458 = vmatprep.subr.mxu0 0.0
  %2459 = vmatpush1.msra.mxu0 0.0
  %2460 = vmatprep.subr.mxu0 0.0
  %2461 = vmatpush1.msra.mxu0 0.0
  %2462 = vmatprep.subr.mxu0 0.0
  %2463 = vmatpush1.msra.mxu0 0.0
  %2464 = vmatprep.subr.mxu0 0.0
  %2465 = vmatpush1.msra.mxu0 0.0
  %2466 = vmatprep.subr.mxu0 0.0
  %2467 = vmatpush1.msra.mxu0 0.0
  %2468 = vmatprep.subr.mxu0 0.0
  %2469 = vmatpush1.msra.mxu0 0.0
  %2470 = vmatprep.subr.mxu0 0.0
  %2471 = vmatpush1.msra.mxu0 0.0
  %2472 = vmatprep.subr.mxu0 0.0
  %2473 = vmatpush1.msra.mxu0 0.0
  %2474 = vmatprep.subr.mxu0 0.0
  %2475 = vmatpush1.msra.mxu0 0.0
  %2476 = vmatprep.subr.mxu0 0.0
  %2477 = vmatpush1.msra.mxu0 0.0
  %2478 = vmatprep.subr.mxu0 0.0
  %2479 = vmatpush1.msra.mxu0 0.0
  %2480 = vmatprep.subr.mxu0 0.0
  %2481 = vmatpush1.msra.mxu0 0.0
  %2482 = vmatprep.subr.mxu0 0.0
  %2483 = vmatpush1.msra.mxu0 0.0
  %2484 = vmatprep.subr.mxu0 0.0
  %2485 = vmatpush1.msra.mxu0 0.0
  %2486 = vmatprep.subr.mxu0 0.0
  %2487 = vmatpush1.msra.mxu0 0.0
  %2488 = vmatprep.subr.mxu0 0.0
  %2489 = vmatpush1.msra.mxu0 0.0
  %2490 = vmatprep.subr.mxu0 0.0
  %2491 = vmatpush1.msra.mxu0 0.0
  %2492 = vmatprep.mubr.f32.mxu0 0.0
  %2493 = vmatmul.mubr.f32.gmra.mrb[0].mxu0 %v2423
  %v2494 = vpop.f32.mrb[0].mxu0
  %v2495 = vadd.f32 %v2420, %v2494
  %v2496 = vpop.f32.mrb[0].mxu0
  %2497 = vmatprep.mubr.f32.mxu0 0.0
  %2498 = vmatmul.mubr.f32.gmra.mrb[0].mxu0 %v2426
  %v2499 = vpop.f32.mrb[0].mxu0
  %v2500 = vadd.f32 %v2420, %v2499
  %v2501 = vpop.f32.mrb[0].mxu0
  %2502 = vdwg.mxu0
  %v2503 = vmul.f32 %v2495, 0.25
  %v2504 = vmul.f32 %v2500, 0.25
  %v2505 = vld [vmem:[%s27] sm:$0xff]
  %v2506 = vld [vmem:[%s27 + $0x8] sm:$0xff]
  %v2507 = vld [vmem:[%s27 + $0x10] sm:$0xff]
  %v2508 = vld [vmem:[%s27 + $0x18] sm:$0xff]
  %v2509 = vld [vmem:[%s27 + $0x20] sm:$0xff]
  %v2510 = vld [vmem:[%s27 + $0x28] sm:$0xff]
  %v2511 = vld [vmem:[%s27 + $0x30] sm:$0xff]
  %v2512 = vld [vmem:[%s27 + $0x38] sm:$0xff]
  %v2513 = vld [vmem:[%s33] sm:$0x1]
  %v2515 = vlaneseq
  %v2516 = vshrl.u32 %v2515, 7
  %v2517 = vsub.s32 0, %v2516
  %v2518 = vrot.slane %v2513, %v2517
  %v2521 = vsel %vm153, %v126, 0
  %v2524 = vsel %vm153, %v127, 0
  %v2527 = vsel %vm153, %v128, 0
  %v2530 = vsel %vm153, %v129, 0
  %v2533 = vsel %vm153, %v130, 0
  %v2536 = vsel %vm153, %v131, 0
  %2538 = vmatprep.subr.mxu0 0.0
  %2539 = vmatpush1.msra.mxu0 %v2505
  %2540 = vmatprep.subr.mxu0 0.0
  %2541 = vmatpush1.msra.mxu0 %v2506
  %2542 = vmatprep.subr.mxu0 0.0
  %2543 = vmatpush1.msra.mxu0 %v2507
  %2544 = vmatprep.subr.mxu0 0.0
  %2545 = vmatpush1.msra.mxu0 %v2508
  %2546 = vmatprep.subr.mxu0 0.0
  %2547 = vmatpush1.msra.mxu0 %v2509
  %2548 = vmatprep.subr.mxu0 0.0
  %2549 = vmatpush1.msra.mxu0 %v2510
  %2550 = vmatprep.subr.mxu0 0.0
  %2551 = vmatpush1.msra.mxu0 %v2511
  %2552 = vmatprep.subr.mxu0 0.0
  %2553 = vmatpush1.msra.mxu0 %v2512
  %2554 = vmatprep.subr.mxu0 0.0
  %2555 = vmatpush1.msra.mxu0 0.0
  %2556 = vmatprep.subr.mxu0 0.0
  %2557 = vmatpush1.msra.mxu0 0.0
  %2558 = vmatprep.subr.mxu0 0.0
  %2559 = vmatpush1.msra.mxu0 0.0
  %2560 = vmatprep.subr.mxu0 0.0
  %2561 = vmatpush1.msra.mxu0 0.0
  %2562 = vmatprep.subr.mxu0 0.0
  %2563 = vmatpush1.msra.mxu0 0.0
  %2564 = vmatprep.subr.mxu0 0.0
  %2565 = vmatpush1.msra.mxu0 0.0
  %2566 = vmatprep.subr.mxu0 0.0
  %2567 = vmatpush1.msra.mxu0 0.0
  %2568 = vmatprep.subr.mxu0 0.0
  %2569 = vmatpush1.msra.mxu0 0.0
  %2570 = vmatprep.subr.mxu0 0.0
  %2571 = vmatpush1.msra.mxu0 0.0
  %2572 = vmatprep.subr.mxu0 0.0
  %2573 = vmatpush1.msra.mxu0 0.0
  %2574 = vmatprep.subr.mxu0 0.0
  %2575 = vmatpush1.msra.mxu0 0.0
  %2576 = vmatprep.subr.mxu0 0.0
  %2577 = vmatpush1.msra.mxu0 0.0
  %2578 = vmatprep.subr.mxu0 0.0
  %2579 = vmatpush1.msra.mxu0 0.0
  %2580 = vmatprep.subr.mxu0 0.0
  %2581 = vmatpush1.msra.mxu0 0.0
  %2582 = vmatprep.subr.mxu0 0.0
  %2583 = vmatpush1.msra.mxu0 0.0
  %2584 = vmatprep.subr.mxu0 0.0
  %2585 = vmatpush1.msra.mxu0 0.0
  %2586 = vmatprep.subr.mxu0 0.0
  %2587 = vmatpush1.msra.mxu0 0.0
  %2588 = vmatprep.subr.mxu0 0.0
  %2589 = vmatpush1.msra.mxu0 0.0
  %2590 = vmatprep.subr.mxu0 0.0
  %2591 = vmatpush1.msra.mxu0 0.0
  %2592 = vmatprep.subr.mxu0 0.0
  %2593 = vmatpush1.msra.mxu0 0.0
  %2594 = vmatprep.subr.mxu0 0.0
  %2595 = vmatpush1.msra.mxu0 0.0
  %2596 = vmatprep.subr.mxu0 0.0
  %2597 = vmatpush1.msra.mxu0 0.0
  %2598 = vmatprep.subr.mxu0 0.0
  %2599 = vmatpush1.msra.mxu0 0.0
  %2600 = vmatprep.subr.mxu0 0.0
  %2601 = vmatpush1.msra.mxu0 0.0
  %2602 = vmatprep.mubr.f32.mxu0 0.0
  %2603 = vmatmul.mubr.f32.gmra.mrb[0].mxu0 %v2521
  %v2604 = vpop.f32.mrb[0].mxu0
  %v2605 = vadd.f32 %v2518, %v2604
  %v2606 = vpop.f32.mrb[0].mxu0
  %2607 = vmatprep.mubr.f32.mxu0 0.0
  %2608 = vmatmul.mubr.f32.gmra.mrb[0].mxu0 %v2524
  %v2609 = vpop.f32.mrb[0].mxu0
  %v2610 = vadd.f32 %v2518, %v2609
  %v2611 = vpop.f32.mrb[0].mxu0
  %2612 = vmatprep.mubr.f32.mxu0 0.0
  %2613 = vmatmul.mubr.f32.gmra.mrb[0].mxu0 %v2527
  %v2614 = vpop.f32.mrb[0].mxu0
  %v2615 = vadd.f32 %v2518, %v2614
  %v2616 = vpop.f32.mrb[0].mxu0
  %2617 = vmatprep.mubr.f32.mxu0 0.0
  %2618 = vmatmul.mubr.f32.gmra.mrb[0].mxu0 %v2530
  %v2619 = vpop.f32.mrb[0].mxu0
  %v2620 = vadd.f32 %v2518, %v2619
  %v2621 = vpop.f32.mrb[0].mxu0
  %2622 = vmatprep.mubr.f32.mxu0 0.0
  %2623 = vmatmul.mubr.f32.gmra.mrb[0].mxu0 %v2533
  %v2624 = vpop.f32.mrb[0].mxu0
  %v2625 = vadd.f32 %v2518, %v2624
  %v2626 = vpop.f32.mrb[0].mxu0
  %2627 = vmatprep.mubr.f32.mxu0 0.0
  %2628 = vmatmul.mubr.f32.gmra.mrb[0].mxu0 %v2536
  %v2629 = vpop.f32.mrb[0].mxu0
  %v2630 = vadd.f32 %v2518, %v2629
  %v2631 = vpop.f32.mrb[0].mxu0
  %2632 = vdwg.mxu0
  %v2633 = vld [vmem:[%s29] sm:$0xff]
  %v2634 = vld [vmem:[%s29 + $0x8] sm:$0xff]
  %v2635 = vld [vmem:[%s29 + $0x10] sm:$0xff]
  %v2636 = vld [vmem:[%s29 + $0x18] sm:$0xff]
  %v2637 = vld [vmem:[%s29 + $0x20] sm:$0xff]
  %v2638 = vld [vmem:[%s29 + $0x28] sm:$0xff]
  %v2639 = vld [vmem:[%s29 + $0x30] sm:$0xff]
  %v2640 = vld [vmem:[%s29 + $0x38] sm:$0xff]
  %v2641 = vld [vmem:[%s35] sm:$0x1]
  %v2643 = vlaneseq
  %v2644 = vshrl.u32 %v2643, 7
  %v2645 = vsub.s32 0, %v2644
  %v2646 = vrot.slane %v2641, %v2645
  %2648 = vmatprep.subr.mxu0 0.0
  %2649 = vmatpush1.msra.mxu0 %v2633
  %2650 = vmatprep.subr.mxu0 0.0
  %2651 = vmatpush1.msra.mxu0 %v2634
  %2652 = vmatprep.subr.mxu0 0.0
  %2653 = vmatpush1.msra.mxu0 %v2635
  %2654 = vmatprep.subr.mxu0 0.0
  %2655 = vmatpush1.msra.mxu0 %v2636
  %2656 = vmatprep.subr.mxu0 0.0
  %2657 = vmatpush1.msra.mxu0 %v2637
  %2658 = vmatprep.subr.mxu0 0.0
  %2659 = vmatpush1.msra.mxu0 %v2638
  %2660 = vmatprep.subr.mxu0 0.0
  %2661 = vmatpush1.msra.mxu0 %v2639
  %2662 = vmatprep.subr.mxu0 0.0
  %2663 = vmatpush1.msra.mxu0 %v2640
  %2664 = vmatprep.subr.mxu0 0.0
  %2665 = vmatpush1.msra.mxu0 0.0
  %2666 = vmatprep.subr.mxu0 0.0
  %2667 = vmatpush1.msra.mxu0 0.0
  %2668 = vmatprep.subr.mxu0 0.0
  %2669 = vmatpush1.msra.mxu0 0.0
  %2670 = vmatprep.subr.mxu0 0.0
  %2671 = vmatpush1.msra.mxu0 0.0
  %2672 = vmatprep.subr.mxu0 0.0
  %2673 = vmatpush1.msra.mxu0 0.0
  %2674 = vmatprep.subr.mxu0 0.0
  %2675 = vmatpush1.msra.mxu0 0.0
  %2676 = vmatprep.subr.mxu0 0.0
  %2677 = vmatpush1.msra.mxu0 0.0
  %2678 = vmatprep.subr.mxu0 0.0
  %2679 = vmatpush1.msra.mxu0 0.0
  %2680 = vmatprep.subr.mxu0 0.0
  %2681 = vmatpush1.msra.mxu0 0.0
  %2682 = vmatprep.subr.mxu0 0.0
  %2683 = vmatpush1.msra.mxu0 0.0
  %2684 = vmatprep.subr.mxu0 0.0
  %2685 = vmatpush1.msra.mxu0 0.0
  %2686 = vmatprep.subr.mxu0 0.0
  %2687 = vmatpush1.msra.mxu0 0.0
  %2688 = vmatprep.subr.mxu0 0.0
  %2689 = vmatpush1.msra.mxu0 0.0
  %2690 = vmatprep.subr.mxu0 0.0
  %2691 = vmatpush1.msra.mxu0 0.0
  %2692 = vmatprep.subr.mxu0 0.0
  %2693 = vmatpush1.msra.mxu0 0.0
  %2694 = vmatprep.subr.mxu0 0.0
  %2695 = vmatpush1.msra.mxu0 0.0
  %2696 = vmatprep.subr.mxu0 0.0
  %2697 = vmatpush1.msra.mxu0 0.0
  %2698 = vmatprep.subr.mxu0 0.0
  %2699 = vmatpush1.msra.mxu0 0.0
  %2700 = vmatprep.subr.mxu0 0.0
  %2701 = vmatpush1.msra.mxu0 0.0
  %2702 = vmatprep.subr.mxu0 0.0
  %2703 = vmatpush1.msra.mxu0 0.0
  %2704 = vmatprep.subr.mxu0 0.0
  %2705 = vmatpush1.msra.mxu0 0.0
  %2706 = vmatprep.subr.mxu0 0.0
  %2707 = vmatpush1.msra.mxu0 0.0
  %2708 = vmatprep.subr.mxu0 0.0
  %2709 = vmatpush1.msra.mxu0 0.0
  %2710 = vmatprep.subr.mxu0 0.0
  %2711 = vmatpush1.msra.mxu0 0.0
  %2712 = vmatprep.mubr.f32.mxu0 0.0
  %2713 = vmatmul.mubr.f32.gmra.mrb[0].mxu0 %v2521
  %v2714 = vpop.f32.mrb[0].mxu0
  %v2715 = vadd.f32 %v2646, %v2714
  %v2716 = vpop.f32.mrb[0].mxu0
  %2717 = vmatprep.mubr.f32.mxu0 0.0
  %2718 = vmatmul.mubr.f32.gmra.mrb[0].mxu0 %v2524
  %v2719 = vpop.f32.mrb[0].mxu0
  %v2720 = vadd.f32 %v2646, %v2719
  %v2721 = vpop.f32.mrb[0].mxu0
  %2722 = vmatprep.mubr.f32.mxu0 0.0
  %2723 = vmatmul.mubr.f32.gmra.mrb[0].mxu0 %v2527
  %v2724 = vpop.f32.mrb[0].mxu0
  %v2725 = vadd.f32 %v2646, %v2724
  %v2726 = vpop.f32.mrb[0].mxu0
  %2727 = vmatprep.mubr.f32.mxu0 0.0
  %2728 = vmatmul.mubr.f32.gmra.mrb[0].mxu0 %v2530
  %v2729 = vpop.f32.mrb[0].mxu0
  %v2730 = vadd.f32 %v2646, %v2729
  %v2731 = vpop.f32.mrb[0].mxu0
  %2732 = vmatprep.mubr.f32.mxu0 0.0
  %2733 = vmatmul.mubr.f32.gmra.mrb[0].mxu0 %v2533
  %v2734 = vpop.f32.mrb[0].mxu0
  %v2735 = vadd.f32 %v2646, %v2734
  %v2736 = vpop.f32.mrb[0].mxu0
  %2737 = vmatprep.mubr.f32.mxu0 0.0
  %2738 = vmatmul.mubr.f32.gmra.mrb[0].mxu0 %v2536
  %v2739 = vpop.f32.mrb[0].mxu0
  %v2740 = vadd.f32 %v2646, %v2739
  %v2741 = vpop.f32.mrb[0].mxu0
  %2742 = vdwg.mxu0
  %v2744 = vsel %vm417, %v2503, 0
  %v2747 = vsel %vm417, %v2504, 0
  %v2750 = vsel %vm417, %v2605, 0
  %v2753 = vsel %vm417, %v2610, 0
  %v2756 = vsel %vm417, %v2615, 0
  %v2759 = vsel %vm417, %v2620, 0
  %v2762 = vsel %vm417, %v2625, 0
  %v2765 = vsel %vm417, %v2630, 0
  %2767 = vmatprep.subr.mxu0 0.0
  %2768 = vmatpush1.xpose.msra.mxu0 %v2750
  %2769 = vmatprep.subr.mxu0 0.0
  %2770 = vmatpush1.xpose.msra.mxu0 %v2753
  %2771 = vmatprep.subr.mxu0 0.0
  %2772 = vmatpush1.xpose.msra.mxu0 %v2756
  %2773 = vmatprep.subr.mxu0 0.0
  %2774 = vmatpush1.xpose.msra.mxu0 %v2759
  %2775 = vmatprep.subr.mxu0 0.0
  %2776 = vmatpush1.xpose.msra.mxu0 %v2762
  %2777 = vmatprep.subr.mxu0 0.0
  %2778 = vmatpush1.xpose.msra.mxu0 %v2765
  %2779 = vmatprep.subr.mxu0 0.0
  %2780 = vmatpush1.xpose.msra.mxu0 0.0
  %2781 = vmatprep.subr.mxu0 0.0
  %2782 = vmatpush1.xpose.msra.mxu0 0.0
  %2783 = vmatprep.subr.mxu0 0.0
  %2784 = vmatpush1.xpose.msra.mxu0 0.0
  %2785 = vmatprep.subr.mxu0 0.0
  %2786 = vmatpush1.xpose.msra.mxu0 0.0
  %2787 = vmatprep.subr.mxu0 0.0
  %2788 = vmatpush1.xpose.msra.mxu0 0.0
  %2789 = vmatprep.subr.mxu0 0.0
  %2790 = vmatpush1.xpose.msra.mxu0 0.0
  %2791 = vmatprep.subr.mxu0 0.0
  %2792 = vmatpush1.xpose.msra.mxu0 0.0
  %2793 = vmatprep.subr.mxu0 0.0
  %2794 = vmatpush1.xpose.msra.mxu0 0.0
  %2795 = vmatprep.subr.mxu0 0.0
  %2796 = vmatpush1.xpose.msra.mxu0 0.0
  %2797 = vmatprep.subr.mxu0 0.0
  %2798 = vmatpush1.xpose.msra.mxu0 0.0
  %2799 = vmatprep.subr.mxu0 0.0
  %2800 = vmatpush1.xpose.msra.mxu0 0.0
  %2801 = vmatprep.subr.mxu0 0.0
  %2802 = vmatpush1.xpose.msra.mxu0 0.0
  %2803 = vmatprep.subr.mxu0 0.0
  %2804 = vmatpush1.xpose.msra.mxu0 0.0
  %2805 = vmatprep.subr.mxu0 0.0
  %2806 = vmatpush1.xpose.msra.mxu0 0.0
  %2807 = vmatprep.subr.mxu0 0.0
  %2808 = vmatpush1.xpose.msra.mxu0 0.0
  %2809 = vmatprep.subr.mxu0 0.0
  %2810 = vmatpush1.xpose.msra.mxu0 0.0
  %2811 = vmatprep.subr.mxu0 0.0
  %2812 = vmatpush1.xpose.msra.mxu0 0.0
  %2813 = vmatprep.subr.mxu0 0.0
  %2814 = vmatpush1.xpose.msra.mxu0 0.0
  %2815 = vmatprep.subr.mxu0 0.0
  %2816 = vmatpush1.xpose.msra.mxu0 0.0
  %2817 = vmatprep.subr.mxu0 0.0
  %2818 = vmatpush1.xpose.msra.mxu0 0.0
  %2819 = vmatprep.subr.mxu0 0.0
  %2820 = vmatpush1.xpose.msra.mxu0 0.0
  %2821 = vmatprep.subr.mxu0 0.0
  %2822 = vmatpush1.xpose.msra.mxu0 0.0
  %2823 = vmatprep.subr.mxu0 0.0
  %2824 = vmatpush1.xpose.msra.mxu0 0.0
  %2825 = vmatprep.subr.mxu0 0.0
  %2826 = vmatpush1.xpose.msra.mxu0 0.0
  %2827 = vmatprep.subr.mxu0 0.0
  %2828 = vmatpush1.xpose.msra.mxu0 0.0
  %2829 = vmatprep.subr.mxu0 0.0
  %2830 = vmatpush1.xpose.msra.mxu0 0.0
  %2831 = vmatprep.mubr.f32.mxu0 0.0
  %2832 = vmatmul.mubr.f32.gmra.mrb[0].mxu0 %v2744
  %v2833 = vpop.f32.mrb[0].mxu0
  %v2834 = vadd.f32 %v136, %v2833
  %v2835 = vpop.f32.mrb[0].mxu0
  %2836 = vmatprep.mubr.f32.mxu0 0.0
  %2837 = vmatmul.mubr.f32.gmra.mrb[0].mxu0 %v2747
  %v2838 = vpop.f32.mrb[0].mxu0
  %v2839 = vadd.f32 %v137, %v2838
  %v2840 = vpop.f32.mrb[0].mxu0
  %2841 = vdwg.mxu0
  %vm2842 = vcmask 392192
  %v2843 = vsel %vm2842, %v2834, -inf
  %2844 = vmax.xlane.f32.xlu0 %v2843
  %v2845 = vpop.xlane.xlu0 %2844
  %v2846 = vsel %vm2842, %v2839, -inf
  %2847 = vmax.xlane.f32.xlu0 %v2846
  %v2848 = vpop.xlane.xlu0 %2847
  %v2849 = vsub.f32 %v2834, %v2845
  %v2850 = vsub.f32 %v2839, %v2848
  %v2851 = vmul.f32 %v2849, 1.442695
  %v2852 = vpow.pop %v2851
  %v2853 = vmul.f32 %v2850, 1.442695
  %v2854 = vpow.pop %v2853
  %v2855 = vsel %vm2842, %v2852, 0.0
  %2856 = vadd.xlane.f32.xlu0 %v2855
  %v2857 = vpop.xlane.xlu0 %2856
  %v2858 = vsel %vm2842, %v2854, 0.0
  %2859 = vadd.xlane.f32.xlu0 %v2858
  %v2860 = vpop.xlane.xlu0 %2859
  %v2861 = vrcp.pop %v2857
  %v2862 = vrcp.pop %v2860
  %v2863 = vmul.f32 %v2852, %v2861
  %v2864 = vmul.f32 %v2854, %v2862
  %v2866 = vsel %vm2842, %v2863, 0
  %v2869 = vsel %vm2842, %v2864, 0
  %2871 = vmatprep.subr.mxu0 0.0
  %2872 = vmatpush1.msra.mxu0 %v2715
  %2873 = vmatprep.subr.mxu0 0.0
  %2874 = vmatpush1.msra.mxu0 %v2720
  %2875 = vmatprep.subr.mxu0 0.0
  %2876 = vmatpush1.msra.mxu0 %v2725
  %2877 = vmatprep.subr.mxu0 0.0
  %2878 = vmatpush1.msra.mxu0 %v2730
  %2879 = vmatprep.subr.mxu0 0.0
  %2880 = vmatpush1.msra.mxu0 %v2735
  %2881 = vmatprep.subr.mxu0 0.0
  %2882 = vmatpush1.msra.mxu0 %v2740
  %2883 = vmatprep.subr.mxu0 0.0
  %2884 = vmatpush1.msra.mxu0 0.0
  %2885 = vmatprep.subr.mxu0 0.0
  %2886 = vmatpush1.msra.mxu0 0.0
  %2887 = vmatprep.subr.mxu0 0.0
  %2888 = vmatpush1.msra.mxu0 0.0
  %2889 = vmatprep.subr.mxu0 0.0
  %2890 = vmatpush1.msra.mxu0 0.0
  %2891 = vmatprep.subr.mxu0 0.0
  %2892 = vmatpush1.msra.mxu0 0.0
  %2893 = vmatprep.subr.mxu0 0.0
  %2894 = vmatpush1.msra.mxu0 0.0
  %2895 = vmatprep.subr.mxu0 0.0
  %2896 = vmatpush1.msra.mxu0 0.0
  %2897 = vmatprep.subr.mxu0 0.0
  %2898 = vmatpush1.msra.mxu0 0.0
  %2899 = vmatprep.subr.mxu0 0.0
  %2900 = vmatpush1.msra.mxu0 0.0
  %2901 = vmatprep.subr.mxu0 0.0
  %2902 = vmatpush1.msra.mxu0 0.0
  %2903 = vmatprep.subr.mxu0 0.0
  %2904 = vmatpush1.msra.mxu0 0.0
  %2905 = vmatprep.subr.mxu0 0.0
  %2906 = vmatpush1.msra.mxu0 0.0
  %2907 = vmatprep.subr.mxu0 0.0
  %2908 = vmatpush1.msra.mxu0 0.0
  %2909 = vmatprep.subr.mxu0 0.0
  %2910 = vmatpush1.msra.mxu0 0.0
  %2911 = vmatprep.subr.mxu0 0.0
  %2912 = vmatpush1.msra.mxu0 0.0
  %2913 = vmatprep.subr.mxu0 0.0
  %2914 = vmatpush1.msra.mxu0 0.0
  %2915 = vmatprep.subr.mxu0 0.0
  %2916 = vmatpush1.msra.mxu0 0.0
  %2917 = vmatprep.subr.mxu0 0.0
  %2918 = vmatpush1.msra.mxu0 0.0
  %2919 = vmatprep.subr.mxu0 0.0
  %2920 = vmatpush1.msra.mxu0 0.0
  %2921 = vmatprep.subr.mxu0 0.0
  %2922 = vmatpush1.msra.mxu0 0.0
  %2923 = vmatprep.subr.mxu0 0.0
  %2924 = vmatpush1.msra.mxu0 0.0
  %2925 = vmatprep.subr.mxu0 0.0
  %2926 = vmatpush1.msra.mxu0 0.0
  %2927 = vmatprep.subr.mxu0 0.0
  %2928 = vmatpush1.msra.mxu0 0.0
  %2929 = vmatprep.subr.mxu0 0.0
  %2930 = vmatpush1.msra.mxu0 0.0
  %2931 = vmatprep.subr.mxu0 0.0
  %2932 = vmatpush1.msra.mxu0 0.0
  %2933 = vmatprep.subr.mxu0 0.0
  %2934 = vmatpush1.msra.mxu0 0.0
  %2935 = vmatprep.mubr.f32.mxu0 0.0
  %2936 = vmatmul.mubr.f32.gmra.mrb[0].mxu0 %v2866
  %v2937 = vpop.f32.mrb[0].mxu0
  %v2938 = vadd.f32 0.0, %v2937
  %v2939 = vpop.f32.mrb[0].mxu0
  %2940 = vmatprep.mubr.f32.mxu0 0.0
  %2941 = vmatmul.mubr.f32.gmra.mrb[0].mxu0 %v2869
  %v2942 = vpop.f32.mrb[0].mxu0
  %v2943 = vadd.f32 0.0, %v2942
  %v2944 = vpop.f32.mrb[0].mxu0
  %2945 = vdwg.mxu0
  %v2946 = vld [vmem:[%s37] sm:$0xff]
  %v2947 = vld [vmem:[%s37 + $0x8] sm:$0xff]
  %s2948 = scalar_lea.vmem %s25, 64
  %v2949 = vld [vmem:[%s2948] sm:$0xff]
  %v2950 = vld [vmem:[%s2948 + $0x8] sm:$0xff]
  %v2951 = vld [vmem:[%s2948 + $0x10] sm:$0xff]
  %v2952 = vld [vmem:[%s2948 + $0x18] sm:$0xff]
  %v2953 = vld [vmem:[%s2948 + $0x20] sm:$0xff]
  %v2954 = vld [vmem:[%s2948 + $0x28] sm:$0xff]
  %v2955 = vld [vmem:[%s2948 + $0x30] sm:$0xff]
  %v2956 = vld [vmem:[%s2948 + $0x38] sm:$0xff]
  %s2957 = scalar_lea.vmem %s31, 1
  %v2958 = vld [vmem:[%s2957] sm:$0x1]
  %v2960 = vlaneseq
  %v2961 = vshrl.u32 %v2960, 7
  %v2962 = vsub.s32 0, %v2961
  %v2963 = vrot.slane %v2958, %v2962
  %2965 = vmatprep.subr.mxu0 0.0
  %2966 = vmatpush1.msra.mxu0 %v2949
  %2967 = vmatprep.subr.mxu0 0.0
  %2968 = vmatpush1.msra.mxu0 %v2950
  %2969 = vmatprep.subr.mxu0 0.0
  %2970 = vmatpush1.msra.mxu0 %v2951
  %2971 = vmatprep.subr.mxu0 0.0
  %2972 = vmatpush1.msra.mxu0 %v2952
  %2973 = vmatprep.subr.mxu0 0.0
  %2974 = vmatpush1.msra.mxu0 %v2953
  %2975 = vmatprep.subr.mxu0 0.0
  %2976 = vmatpush1.msra.mxu0 %v2954
  %2977 = vmatprep.subr.mxu0 0.0
  %2978 = vmatpush1.msra.mxu0 %v2955
  %2979 = vmatprep.subr.mxu0 0.0
  %2980 = vmatpush1.msra.mxu0 %v2956
  %2981 = vmatprep.subr.mxu0 0.0
  %2982 = vmatpush1.msra.mxu0 0.0
  %2983 = vmatprep.subr.mxu0 0.0
  %2984 = vmatpush1.msra.mxu0 0.0
  %2985 = vmatprep.subr.mxu0 0.0
  %2986 = vmatpush1.msra.mxu0 0.0
  %2987 = vmatprep.subr.mxu0 0.0
  %2988 = vmatpush1.msra.mxu0 0.0
  %2989 = vmatprep.subr.mxu0 0.0
  %2990 = vmatpush1.msra.mxu0 0.0
  %2991 = vmatprep.subr.mxu0 0.0
  %2992 = vmatpush1.msra.mxu0 0.0
  %2993 = vmatprep.subr.mxu0 0.0
  %2994 = vmatpush1.msra.mxu0 0.0
  %2995 = vmatprep.subr.mxu0 0.0
  %2996 = vmatpush1.msra.mxu0 0.0
  %2997 = vmatprep.subr.mxu0 0.0
  %2998 = vmatpush1.msra.mxu0 0.0
  %2999 = vmatprep.subr.mxu0 0.0
  %3000 = vmatpush1.msra.mxu0 0.0
  %3001 = vmatprep.subr.mxu0 0.0
  %3002 = vmatpush1.msra.mxu0 0.0
  %3003 = vmatprep.subr.mxu0 0.0
  %3004 = vmatpush1.msra.mxu0 0.0
  %3005 = vmatprep.subr.mxu0 0.0
  %3006 = vmatpush1.msra.mxu0 0.0
  %3007 = vmatprep.subr.mxu0 0.0
  %3008 = vmatpush1.msra.mxu0 0.0
  %3009 = vmatprep.subr.mxu0 0.0
  %3010 = vmatpush1.msra.mxu0 0.0
  %3011 = vmatprep.subr.mxu0 0.0
  %3012 = vmatpush1.msra.mxu0 0.0
  %3013 = vmatprep.subr.mxu0 0.0
  %3014 = vmatpush1.msra.mxu0 0.0
  %3015 = vmatprep.subr.mxu0 0.0
  %3016 = vmatpush1.msra.mxu0 0.0
  %3017 = vmatprep.subr.mxu0 0.0
  %3018 = vmatpush1.msra.mxu0 0.0
  %3019 = vmatprep.subr.mxu0 0.0
  %3020 = vmatpush1.msra.mxu0 0.0
  %3021 = vmatprep.subr.mxu0 0.0
  %3022 = vmatpush1.msra.mxu0 0.0
  %3023 = vmatprep.subr.mxu0 0.0
  %3024 = vmatpush1.msra.mxu0 0.0
  %3025 = vmatprep.subr.mxu0 0.0
  %3026 = vmatpush1.msra.mxu0 0.0
  %3027 = vmatprep.subr.mxu0 0.0
  %3028 = vmatpush1.msra.mxu0 0.0
  %3029 = vmatprep.mubr.f32.mxu0 0.0
  %3030 = vmatmul.mubr.f32.gmra.mrb[0].mxu0 %v2423
  %v3031 = vpop.f32.mrb[0].mxu0
  %v3032 = vadd.f32 %v2963, %v3031
  %v3033 = vpop.f32.mrb[0].mxu0
  %3034 = vmatprep.mubr.f32.mxu0 0.0
  %3035 = vmatmul.mubr.f32.gmra.mrb[0].mxu0 %v2426
  %v3036 = vpop.f32.mrb[0].mxu0
  %v3037 = vadd.f32 %v2963, %v3036
  %v3038 = vpop.f32.mrb[0].mxu0
  %3039 = vdwg.mxu0
  %v3040 = vmul.f32 %v3032, 0.25
  %v3041 = vmul.f32 %v3037, 0.25
  %s3042 = scalar_lea.vmem %s27, 64
  %v3043 = vld [vmem:[%s3042] sm:$0xff]
  %v3044 = vld [vmem:[%s3042 + $0x8] sm:$0xff]
  %v3045 = vld [vmem:[%s3042 + $0x10] sm:$0xff]
  %v3046 = vld [vmem:[%s3042 + $0x18] sm:$0xff]
  %v3047 = vld [vmem:[%s3042 + $0x20] sm:$0xff]
  %v3048 = vld [vmem:[%s3042 + $0x28] sm:$0xff]
  %v3049 = vld [vmem:[%s3042 + $0x30] sm:$0xff]
  %v3050 = vld [vmem:[%s3042 + $0x38] sm:$0xff]
  %s3051 = scalar_lea.vmem %s33, 1
  %v3052 = vld [vmem:[%s3051] sm:$0x1]
  %v3054 = vlaneseq
  %v3055 = vshrl.u32 %v3054, 7
  %v3056 = vsub.s32 0, %v3055
  %v3057 = vrot.slane %v3052, %v3056
  %3059 = vmatprep.subr.mxu0 0.0
  %3060 = vmatpush1.msra.mxu0 %v3043
  %3061 = vmatprep.subr.mxu0 0.0
  %3062 = vmatpush1.msra.mxu0 %v3044
  %3063 = vmatprep.subr.mxu0 0.0
  %3064 = vmatpush1.msra.mxu0 %v3045
  %3065 = vmatprep.subr.mxu0 0.0
  %3066 = vmatpush1.msra.mxu0 %v3046
  %3067 = vmatprep.subr.mxu0 0.0
  %3068 = vmatpush1.msra.mxu0 %v3047
  %3069 = vmatprep.subr.mxu0 0.0
  %3070 = vmatpush1.msra.mxu0 %v3048
  %3071 = vmatprep.subr.mxu0 0.0
  %3072 = vmatpush1.msra.mxu0 %v3049
  %3073 = vmatprep.subr.mxu0 0.0
  %3074 = vmatpush1.msra.mxu0 %v3050
  %3075 = vmatprep.subr.mxu0 0.0
  %3076 = vmatpush1.msra.mxu0 0.0
  %3077 = vmatprep.subr.mxu0 0.0
  %3078 = vmatpush1.msra.mxu0 0.0
  %3079 = vmatprep.subr.mxu0 0.0
  %3080 = vmatpush1.msra.mxu0 0.0
  %3081 = vmatprep.subr.mxu0 0.0
  %3082 = vmatpush1.msra.mxu0 0.0
  %3083 = vmatprep.subr.mxu0 0.0
  %3084 = vmatpush1.msra.mxu0 0.0
  %3085 = vmatprep.subr.mxu0 0.0
  %3086 = vmatpush1.msra.mxu0 0.0
  %3087 = vmatprep.subr.mxu0 0.0
  %3088 = vmatpush1.msra.mxu0 0.0
  %3089 = vmatprep.subr.mxu0 0.0
  %3090 = vmatpush1.msra.mxu0 0.0
  %3091 = vmatprep.subr.mxu0 0.0
  %3092 = vmatpush1.msra.mxu0 0.0
  %3093 = vmatprep.subr.mxu0 0.0
  %3094 = vmatpush1.msra.mxu0 0.0
  %3095 = vmatprep.subr.mxu0 0.0
  %3096 = vmatpush1.msra.mxu0 0.0
  %3097 = vmatprep.subr.mxu0 0.0
  %3098 = vmatpush1.msra.mxu0 0.0
  %3099 = vmatprep.subr.mxu0 0.0
  %3100 = vmatpush1.msra.mxu0 0.0
  %3101 = vmatprep.subr.mxu0 0.0
  %3102 = vmatpush1.msra.mxu0 0.0
  %3103 = vmatprep.subr.mxu0 0.0
  %3104 = vmatpush1.msra.mxu0 0.0
  %3105 = vmatprep.subr.mxu0 0.0
  %3106 = vmatpush1.msra.mxu0 0.0
  %3107 = vmatprep.subr.mxu0 0.0
  %3108 = vmatpush1.msra.mxu0 0.0
  %3109 = vmatprep.subr.mxu0 0.0
  %3110 = vmatpush1.msra.mxu0 0.0
  %3111 = vmatprep.subr.mxu0 0.0
  %3112 = vmatpush1.msra.mxu0 0.0
  %3113 = vmatprep.subr.mxu0 0.0
  %3114 = vmatpush1.msra.mxu0 0.0
  %3115 = vmatprep.subr.mxu0 0.0
  %3116 = vmatpush1.msra.mxu0 0.0
  %3117 = vmatprep.subr.mxu0 0.0
  %3118 = vmatpush1.msra.mxu0 0.0
  %3119 = vmatprep.subr.mxu0 0.0
  %3120 = vmatpush1.msra.mxu0 0.0
  %3121 = vmatprep.subr.mxu0 0.0
  %3122 = vmatpush1.msra.mxu0 0.0
  %3123 = vmatprep.mubr.f32.mxu0 0.0
  %3124 = vmatmul.mubr.f32.gmra.mrb[0].mxu0 %v2521
  %v3125 = vpop.f32.mrb[0].mxu0
  %v3126 = vadd.f32 %v3057, %v3125
  %v3127 = vpop.f32.mrb[0].mxu0
  %3128 = vmatprep.mubr.f32.mxu0 0.0
  %3129 = vmatmul.mubr.f32.gmra.mrb[0].mxu0 %v2524
  %v3130 = vpop.f32.mrb[0].mxu0
  %v3131 = vadd.f32 %v3057, %v3130
  %v3132 = vpop.f32.mrb[0].mxu0
  %3133 = vmatprep.mubr.f32.mxu0 0.0
  %3134 = vmatmul.mubr.f32.gmra.mrb[0].mxu0 %v2527
  %v3135 = vpop.f32.mrb[0].mxu0
  %v3136 = vadd.f32 %v3057, %v3135
  %v3137 = vpop.f32.mrb[0].mxu0
  %3138 = vmatprep.mubr.f32.mxu0 0.0
  %3139 = vmatmul.mubr.f32.gmra.mrb[0].mxu0 %v2530
  %v3140 = vpop.f32.mrb[0].mxu0
  %v3141 = vadd.f32 %v3057, %v3140
  %v3142 = vpop.f32.mrb[0].mxu0
  %3143 = vmatprep.mubr.f32.mxu0 0.0
  %3144 = vmatmul.mubr.f32.gmra.mrb[0].mxu0 %v2533
  %v3145 = vpop.f32.mrb[0].mxu0
  %v3146 = vadd.f32 %v3057, %v3145
  %v3147 = vpop.f32.mrb[0].mxu0
  %3148 = vmatprep.mubr.f32.mxu0 0.0
  %3149 = vmatmul.mubr.f32.gmra.mrb[0].mxu0 %v2536
  %v3150 = vpop.f32.mrb[0].mxu0
  %v3151 = vadd.f32 %v3057, %v3150
  %v3152 = vpop.f32.mrb[0].mxu0
  %3153 = vdwg.mxu0
  %s3154 = scalar_lea.vmem %s29, 64
  %v3155 = vld [vmem:[%s3154] sm:$0xff]
  %v3156 = vld [vmem:[%s3154 + $0x8] sm:$0xff]
  %v3157 = vld [vmem:[%s3154 + $0x10] sm:$0xff]
  %v3158 = vld [vmem:[%s3154 + $0x18] sm:$0xff]
  %v3159 = vld [vmem:[%s3154 + $0x20] sm:$0xff]
  %v3160 = vld [vmem:[%s3154 + $0x28] sm:$0xff]
  %v3161 = vld [vmem:[%s3154 + $0x30] sm:$0xff]
  %v3162 = vld [vmem:[%s3154 + $0x38] sm:$0xff]
  %s3163 = scalar_lea.vmem %s35, 1
  %v3164 = vld [vmem:[%s3163] sm:$0x1]
  %v3166 = vlaneseq
  %v3167 = vshrl.u32 %v3166, 7
  %v3168 = vsub.s32 0, %v3167
  %v3169 = vrot.slane %v3164, %v3168
  %3171 = vmatprep.subr.mxu0 0.0
  %3172 = vmatpush1.msra.mxu0 %v3155
  %3173 = vmatprep.subr.mxu0 0.0
  %3174 = vmatpush1.msra.mxu0 %v3156
  %3175 = vmatprep.subr.mxu0 0.0
  %3176 = vmatpush1.msra.mxu0 %v3157
  %3177 = vmatprep.subr.mxu0 0.0
  %3178 = vmatpush1.msra.mxu0 %v3158
  %3179 = vmatprep.subr.mxu0 0.0
  %3180 = vmatpush1.msra.mxu0 %v3159
  %3181 = vmatprep.subr.mxu0 0.0
  %3182 = vmatpush1.msra.mxu0 %v3160
  %3183 = vmatprep.subr.mxu0 0.0
  %3184 = vmatpush1.msra.mxu0 %v3161
  %3185 = vmatprep.subr.mxu0 0.0
  %3186 = vmatpush1.msra.mxu0 %v3162
  %3187 = vmatprep.subr.mxu0 0.0
  %3188 = vmatpush1.msra.mxu0 0.0
  %3189 = vmatprep.subr.mxu0 0.0
  %3190 = vmatpush1.msra.mxu0 0.0
  %3191 = vmatprep.subr.mxu0 0.0
  %3192 = vmatpush1.msra.mxu0 0.0
  %3193 = vmatprep.subr.mxu0 0.0
  %3194 = vmatpush1.msra.mxu0 0.0
  %3195 = vmatprep.subr.mxu0 0.0
  %3196 = vmatpush1.msra.mxu0 0.0
  %3197 = vmatprep.subr.mxu0 0.0
  %3198 = vmatpush1.msra.mxu0 0.0
  %3199 = vmatprep.subr.mxu0 0.0
  %3200 = vmatpush1.msra.mxu0 0.0
  %3201 = vmatprep.subr.mxu0 0.0
  %3202 = vmatpush1.msra.mxu0 0.0
  %3203 = vmatprep.subr.mxu0 0.0
  %3204 = vmatpush1.msra.mxu0 0.0
  %3205 = vmatprep.subr.mxu0 0.0
  %3206 = vmatpush1.msra.mxu0 0.0
  %3207 = vmatprep.subr.mxu0 0.0
  %3208 = vmatpush1.msra.mxu0 0.0
  %3209 = vmatprep.subr.mxu0 0.0
  %3210 = vmatpush1.msra.mxu0 0.0
  %3211 = vmatprep.subr.mxu0 0.0
  %3212 = vmatpush1.msra.mxu0 0.0
  %3213 = vmatprep.subr.mxu0 0.0
  %3214 = vmatpush1.msra.mxu0 0.0
  %3215 = vmatprep.subr.mxu0 0.0
  %3216 = vmatpush1.msra.mxu0 0.0
  %3217 = vmatprep.subr.mxu0 0.0
  %3218 = vmatpush1.msra.mxu0 0.0
  %3219 = vmatprep.subr.mxu0 0.0
  %3220 = vmatpush1.msra.mxu0 0.0
  %3221 = vmatprep.subr.mxu0 0.0
  %3222 = vmatpush1.msra.mxu0 0.0
  %3223 = vmatprep.subr.mxu0 0.0
  %3224 = vmatpush1.msra.mxu0 0.0
  %3225 = vmatprep.subr.mxu0 0.0
  %3226 = vmatpush1.msra.mxu0 0.0
  %3227 = vmatprep.subr.mxu0 0.0
  %3228 = vmatpush1.msra.mxu0 0.0
  %3229 = vmatprep.subr.mxu0 0.0
  %3230 = vmatpush1.msra.mxu0 0.0
  %3231 = vmatprep.subr.mxu0 0.0
  %3232 = vmatpush1.msra.mxu0 0.0
  %3233 = vmatprep.subr.mxu0 0.0
  %3234 = vmatpush1.msra.mxu0 0.0
  %3235 = vmatprep.mubr.f32.mxu0 0.0
  %3236 = vmatmul.mubr.f32.gmra.mrb[0].mxu0 %v2521
  %v3237 = vpop.f32.mrb[0].mxu0
  %v3238 = vadd.f32 %v3169, %v3237
  %v3239 = vpop.f32.mrb[0].mxu0
  %3240 = vmatprep.mubr.f32.mxu0 0.0
  %3241 = vmatmul.mubr.f32.gmra.mrb[0].mxu0 %v2524
  %v3242 = vpop.f32.mrb[0].mxu0
  %v3243 = vadd.f32 %v3169, %v3242
  %v3244 = vpop.f32.mrb[0].mxu0
  %3245 = vmatprep.mubr.f32.mxu0 0.0
  %3246 = vmatmul.mubr.f32.gmra.mrb[0].mxu0 %v2527
  %v3247 = vpop.f32.mrb[0].mxu0
  %v3248 = vadd.f32 %v3169, %v3247
  %v3249 = vpop.f32.mrb[0].mxu0
  %3250 = vmatprep.mubr.f32.mxu0 0.0
  %3251 = vmatmul.mubr.f32.gmra.mrb[0].mxu0 %v2530
  %v3252 = vpop.f32.mrb[0].mxu0
  %v3253 = vadd.f32 %v3169, %v3252
  %v3254 = vpop.f32.mrb[0].mxu0
  %3255 = vmatprep.mubr.f32.mxu0 0.0
  %3256 = vmatmul.mubr.f32.gmra.mrb[0].mxu0 %v2533
  %v3257 = vpop.f32.mrb[0].mxu0
  %v3258 = vadd.f32 %v3169, %v3257
  %v3259 = vpop.f32.mrb[0].mxu0
  %3260 = vmatprep.mubr.f32.mxu0 0.0
  %3261 = vmatmul.mubr.f32.gmra.mrb[0].mxu0 %v2536
  %v3262 = vpop.f32.mrb[0].mxu0
  %v3263 = vadd.f32 %v3169, %v3262
  %v3264 = vpop.f32.mrb[0].mxu0
  %3265 = vdwg.mxu0
  %v3267 = vsel %vm417, %v3040, 0
  %v3270 = vsel %vm417, %v3041, 0
  %v3273 = vsel %vm417, %v3126, 0
  %v3276 = vsel %vm417, %v3131, 0
  %v3279 = vsel %vm417, %v3136, 0
  %v3282 = vsel %vm417, %v3141, 0
  %v3285 = vsel %vm417, %v3146, 0
  %v3288 = vsel %vm417, %v3151, 0
  %3290 = vmatprep.subr.mxu0 0.0
  %3291 = vmatpush1.xpose.msra.mxu0 %v3273
  %3292 = vmatprep.subr.mxu0 0.0
  %3293 = vmatpush1.xpose.msra.mxu0 %v3276
  %3294 = vmatprep.subr.mxu0 0.0
  %3295 = vmatpush1.xpose.msra.mxu0 %v3279
  %3296 = vmatprep.subr.mxu0 0.0
  %3297 = vmatpush1.xpose.msra.mxu0 %v3282
  %3298 = vmatprep.subr.mxu0 0.0
  %3299 = vmatpush1.xpose.msra.mxu0 %v3285
  %3300 = vmatprep.subr.mxu0 0.0
  %3301 = vmatpush1.xpose.msra.mxu0 %v3288
  %3302 = vmatprep.subr.mxu0 0.0
  %3303 = vmatpush1.xpose.msra.mxu0 0.0
  %3304 = vmatprep.subr.mxu0 0.0
  %3305 = vmatpush1.xpose.msra.mxu0 0.0
  %3306 = vmatprep.subr.mxu0 0.0
  %3307 = vmatpush1.xpose.msra.mxu0 0.0
  %3308 = vmatprep.subr.mxu0 0.0
  %3309 = vmatpush1.xpose.msra.mxu0 0.0
  %3310 = vmatprep.subr.mxu0 0.0
  %3311 = vmatpush1.xpose.msra.mxu0 0.0
  %3312 = vmatprep.subr.mxu0 0.0
  %3313 = vmatpush1.xpose.msra.mxu0 0.0
  %3314 = vmatprep.subr.mxu0 0.0
  %3315 = vmatpush1.xpose.msra.mxu0 0.0
  %3316 = vmatprep.subr.mxu0 0.0
  %3317 = vmatpush1.xpose.msra.mxu0 0.0
  %3318 = vmatprep.subr.mxu0 0.0
  %3319 = vmatpush1.xpose.msra.mxu0 0.0
  %3320 = vmatprep.subr.mxu0 0.0
  %3321 = vmatpush1.xpose.msra.mxu0 0.0
  %3322 = vmatprep.subr.mxu0 0.0
  %3323 = vmatpush1.xpose.msra.mxu0 0.0
  %3324 = vmatprep.subr.mxu0 0.0
  %3325 = vmatpush1.xpose.msra.mxu0 0.0
  %3326 = vmatprep.subr.mxu0 0.0
  %3327 = vmatpush1.xpose.msra.mxu0 0.0
  %3328 = vmatprep.subr.mxu0 0.0
  %3329 = vmatpush1.xpose.msra.mxu0 0.0
  %3330 = vmatprep.subr.mxu0 0.0
  %3331 = vmatpush1.xpose.msra.mxu0 0.0
  %3332 = vmatprep.subr.mxu0 0.0
  %3333 = vmatpush1.xpose.msra.mxu0 0.0
  %3334 = vmatprep.subr.mxu0 0.0
  %3335 = vmatpush1.xpose.msra.mxu0 0.0
  %3336 = vmatprep.subr.mxu0 0.0
  %3337 = vmatpush1.xpose.msra.mxu0 0.0
  %3338 = vmatprep.subr.mxu0 0.0
  %3339 = vmatpush1.xpose.msra.mxu0 0.0
  %3340 = vmatprep.subr.mxu0 0.0
  %3341 = vmatpush1.xpose.msra.mxu0 0.0
  %3342 = vmatprep.subr.mxu0 0.0
  %3343 = vmatpush1.xpose.msra.mxu0 0.0
  %3344 = vmatprep.subr.mxu0 0.0
  %3345 = vmatpush1.xpose.msra.mxu0 0.0
  %3346 = vmatprep.subr.mxu0 0.0
  %3347 = vmatpush1.xpose.msra.mxu0 0.0
  %3348 = vmatprep.subr.mxu0 0.0
  %3349 = vmatpush1.xpose.msra.mxu0 0.0
  %3350 = vmatprep.subr.mxu0 0.0
  %3351 = vmatpush1.xpose.msra.mxu0 0.0
  %3352 = vmatprep.subr.mxu0 0.0
  %3353 = vmatpush1.xpose.msra.mxu0 0.0
  %3354 = vmatprep.mubr.f32.mxu0 0.0
  %3355 = vmatmul.mubr.f32.gmra.mrb[0].mxu0 %v3267
  %v3356 = vpop.f32.mrb[0].mxu0
  %v3357 = vadd.f32 %v136, %v3356
  %v3358 = vpop.f32.mrb[0].mxu0
  %3359 = vmatprep.mubr.f32.mxu0 0.0
  %3360 = vmatmul.mubr.f32.gmra.mrb[0].mxu0 %v3270
  %v3361 = vpop.f32.mrb[0].mxu0
  %v3362 = vadd.f32 %v137, %v3361
  %v3363 = vpop.f32.mrb[0].mxu0
  %3364 = vdwg.mxu0
  %v3365 = vsel %vm2842, %v3357, -inf
  %3366 = vmax.xlane.f32.xlu0 %v3365
  %v3367 = vpop.xlane.xlu0 %3366
  %v3368 = vsel %vm2842, %v3362, -inf
  %3369 = vmax.xlane.f32.xlu0 %v3368
  %v3370 = vpop.xlane.xlu0 %3369
  %v3371 = vsub.f32 %v3357, %v3367
  %v3372 = vsub.f32 %v3362, %v3370
  %v3373 = vmul.f32 %v3371, 1.442695
  %v3374 = vpow.pop %v3373
  %v3375 = vmul.f32 %v3372, 1.442695
  %v3376 = vpow.pop %v3375
  %v3377 = vsel %vm2842, %v3374, 0.0
  %3378 = vadd.xlane.f32.xlu0 %v3377
  %v3379 = vpop.xlane.xlu0 %3378
  %v3380 = vsel %vm2842, %v3376, 0.0
  %3381 = vadd.xlane.f32.xlu0 %v3380
  %v3382 = vpop.xlane.xlu0 %3381
  %v3383 = vrcp.pop %v3379
  %v3384 = vrcp.pop %v3382
  %v3385 = vmul.f32 %v3374, %v3383
  %v3386 = vmul.f32 %v3376, %v3384
  %v3388 = vsel %vm2842, %v3385, 0
  %v3391 = vsel %vm2842, %v3386, 0
  %3393 = vmatprep.subr.mxu0 0.0
  %3394 = vmatpush1.msra.mxu0 %v3238
  %3395 = vmatprep.subr.mxu0 0.0
  %3396 = vmatpush1.msra.mxu0 %v3243
  %3397 = vmatprep.subr.mxu0 0.0
  %3398 = vmatpush1.msra.mxu0 %v3248
  %3399 = vmatprep.subr.mxu0 0.0
  %3400 = vmatpush1.msra.mxu0 %v3253
  %3401 = vmatprep.subr.mxu0 0.0
  %3402 = vmatpush1.msra.mxu0 %v3258
  %3403 = vmatprep.subr.mxu0 0.0
  %3404 = vmatpush1.msra.mxu0 %v3263
  %3405 = vmatprep.subr.mxu0 0.0
  %3406 = vmatpush1.msra.mxu0 0.0
  %3407 = vmatprep.subr.mxu0 0.0
  %3408 = vmatpush1.msra.mxu0 0.0
  %3409 = vmatprep.subr.mxu0 0.0
  %3410 = vmatpush1.msra.mxu0 0.0
  %3411 = vmatprep.subr.mxu0 0.0
  %3412 = vmatpush1.msra.mxu0 0.0
  %3413 = vmatprep.subr.mxu0 0.0
  %3414 = vmatpush1.msra.mxu0 0.0
  %3415 = vmatprep.subr.mxu0 0.0
  %3416 = vmatpush1.msra.mxu0 0.0
  %3417 = vmatprep.subr.mxu0 0.0
  %3418 = vmatpush1.msra.mxu0 0.0
  %3419 = vmatprep.subr.mxu0 0.0
  %3420 = vmatpush1.msra.mxu0 0.0
  %3421 = vmatprep.subr.mxu0 0.0
  %3422 = vmatpush1.msra.mxu0 0.0
  %3423 = vmatprep.subr.mxu0 0.0
  %3424 = vmatpush1.msra.mxu0 0.0
  %3425 = vmatprep.subr.mxu0 0.0
  %3426 = vmatpush1.msra.mxu0 0.0
  %3427 = vmatprep.subr.mxu0 0.0
  %3428 = vmatpush1.msra.mxu0 0.0
  %3429 = vmatprep.subr.mxu0 0.0
  %3430 = vmatpush1.msra.mxu0 0.0
  %3431 = vmatprep.subr.mxu0 0.0
  %3432 = vmatpush1.msra.mxu0 0.0
  %3433 = vmatprep.subr.mxu0 0.0
  %3434 = vmatpush1.msra.mxu0 0.0
  %3435 = vmatprep.subr.mxu0 0.0
  %3436 = vmatpush1.msra.mxu0 0.0
  %3437 = vmatprep.subr.mxu0 0.0
  %3438 = vmatpush1.msra.mxu0 0.0
  %3439 = vmatprep.subr.mxu0 0.0
  %3440 = vmatpush1.msra.mxu0 0.0
  %3441 = vmatprep.subr.mxu0 0.0
  %3442 = vmatpush1.msra.mxu0 0.0
  %3443 = vmatprep.subr.mxu0 0.0
  %3444 = vmatpush1.msra.mxu0 0.0
  %3445 = vmatprep.subr.mxu0 0.0
  %3446 = vmatpush1.msra.mxu0 0.0
  %3447 = vmatprep.subr.mxu0 0.0
  %3448 = vmatpush1.msra.mxu0 0.0
  %3449 = vmatprep.subr.mxu0 0.0
  %3450 = vmatpush1.msra.mxu0 0.0
  %3451 = vmatprep.subr.mxu0 0.0
  %3452 = vmatpush1.msra.mxu0 0.0
  %3453 = vmatprep.subr.mxu0 0.0
  %3454 = vmatpush1.msra.mxu0 0.0
  %3455 = vmatprep.subr.mxu0 0.0
  %3456 = vmatpush1.msra.mxu0 0.0
  %3457 = vmatprep.mubr.f32.mxu0 0.0
  %3458 = vmatmul.mubr.f32.gmra.mrb[0].mxu0 %v3388
  %v3459 = vpop.f32.mrb[0].mxu0
  %v3460 = vadd.f32 0.0, %v3459
  %v3461 = vpop.f32.mrb[0].mxu0
  %3462 = vmatprep.mubr.f32.mxu0 0.0
  %3463 = vmatmul.mubr.f32.gmra.mrb[0].mxu0 %v3391
  %v3464 = vpop.f32.mrb[0].mxu0
  %v3465 = vadd.f32 0.0, %v3464
  %v3466 = vpop.f32.mrb[0].mxu0
  %3467 = vdwg.mxu0
  %s3468 = scalar_lea.vmem %s37, 16
  %v3469 = vld [vmem:[%s3468] sm:$0xff]
  %v3470 = vld [vmem:[%s3468 + $0x8] sm:$0xff]
  %v3472 = vsel %vm417, %v3460, 0
  %v3475 = vsel %vm417, %v3465, 0
  %3477 = vmatprep.subr.mxu0 0.0
  %3478 = vmatpush1.msra.mxu0 %v3469
  %3479 = vmatprep.subr.mxu0 0.0
  %3480 = vmatpush1.msra.mxu0 %v3470
  %3481 = vmatprep.subr.mxu0 0.0
  %3482 = vmatpush1.msra.mxu0 0.0
  %3483 = vmatprep.subr.mxu0 0.0
  %3484 = vmatpush1.msra.mxu0 0.0
  %3485 = vmatprep.subr.mxu0 0.0
  %3486 = vmatpush1.msra.mxu0 0.0
  %3487 = vmatprep.subr.mxu0 0.0
  %3488 = vmatpush1.msra.mxu0 0.0
  %3489 = vmatprep.subr.mxu0 0.0
  %3490 = vmatpush1.msra.mxu0 0.0
  %3491 = vmatprep.subr.mxu0 0.0
  %3492 = vmatpush1.msra.mxu0 0.0
  %3493 = vmatprep.subr.mxu0 0.0
  %3494 = vmatpush1.msra.mxu0 0.0
  %3495 = vmatprep.subr.mxu0 0.0
  %3496 = vmatpush1.msra.mxu0 0.0
  %3497 = vmatprep.subr.mxu0 0.0
  %3498 = vmatpush1.msra.mxu0 0.0
  %3499 = vmatprep.subr.mxu0 0.0
  %3500 = vmatpush1.msra.mxu0 0.0
  %3501 = vmatprep.subr.mxu0 0.0
  %3502 = vmatpush1.msra.mxu0 0.0
  %3503 = vmatprep.subr.mxu0 0.0
  %3504 = vmatpush1.msra.mxu0 0.0
  %3505 = vmatprep.subr.mxu0 0.0
  %3506 = vmatpush1.msra.mxu0 0.0
  %3507 = vmatprep.subr.mxu0 0.0
  %3508 = vmatpush1.msra.mxu0 0.0
  %3509 = vmatprep.subr.mxu0 0.0
  %3510 = vmatpush1.msra.mxu0 0.0
  %3511 = vmatprep.subr.mxu0 0.0
  %3512 = vmatpush1.msra.mxu0 0.0
  %3513 = vmatprep.subr.mxu0 0.0
  %3514 = vmatpush1.msra.mxu0 0.0
  %3515 = vmatprep.subr.mxu0 0.0
  %3516 = vmatpush1.msra.mxu0 0.0
  %3517 = vmatprep.subr.mxu0 0.0
  %3518 = vmatpush1.msra.mxu0 0.0
  %3519 = vmatprep.subr.mxu0 0.0
  %3520 = vmatpush1.msra.mxu0 0.0
  %3521 = vmatprep.subr.mxu0 0.0
  %3522 = vmatpush1.msra.mxu0 0.0
  %3523 = vmatprep.subr.mxu0 0.0
  %3524 = vmatpush1.msra.mxu0 0.0
  %3525 = vmatprep.subr.mxu0 0.0
  %3526 = vmatpush1.msra.mxu0 0.0
  %3527 = vmatprep.subr.mxu0 0.0
  %3528 = vmatpush1.msra.mxu0 0.0
  %3529 = vmatprep.subr.mxu0 0.0
  %3530 = vmatpush1.msra.mxu0 0.0
  %3531 = vmatprep.subr.mxu0 0.0
  %3532 = vmatpush1.msra.mxu0 0.0
  %3533 = vmatprep.subr.mxu0 0.0
  %3534 = vmatpush1.msra.mxu0 0.0
  %3535 = vmatprep.subr.mxu0 0.0
  %3536 = vmatpush1.msra.mxu0 0.0
  %3537 = vmatprep.subr.mxu0 0.0
  %3538 = vmatpush1.msra.mxu0 0.0
  %3539 = vmatprep.subr.mxu0 0.0
  %3540 = vmatpush1.msra.mxu0 0.0
  %3541 = vmatprep.mubr.f32.mxu0 0.0
  %3542 = vmatmul.mubr.f32.gmra.mrb[0].mxu0 %v3472
  %v3543 = vpop.f32.mrb[0].mxu0
  %v3544 = vadd.f32 0.0, %v3543
  %v3545 = vpop.f32.mrb[0].mxu0
  %3546 = vmatprep.mubr.f32.mxu0 0.0
  %3547 = vmatmul.mubr.f32.gmra.mrb[0].mxu0 %v3475
  %v3548 = vpop.f32.mrb[0].mxu0
  %v3549 = vadd.f32 0.0, %v3548
  %v3550 = vpop.f32.mrb[0].mxu0
  %3551 = vdwg.mxu0
  %v3553 = vsel %vm417, %v2938, 0
  %v3556 = vsel %vm417, %v2943, 0
  %3558 = vmatprep.subr.mxu0 0.0
  %3559 = vmatpush1.msra.mxu0 %v2946
  %3560 = vmatprep.subr.mxu0 0.0
  %3561 = vmatpush1.msra.mxu0 %v2947
  %3562 = vmatprep.subr.mxu0 0.0
  %3563 = vmatpush1.msra.mxu0 0.0
  %3564 = vmatprep.subr.mxu0 0.0
  %3565 = vmatpush1.msra.mxu0 0.0
  %3566 = vmatprep.subr.mxu0 0.0
  %3567 = vmatpush1.msra.mxu0 0.0
  %3568 = vmatprep.subr.mxu0 0.0
  %3569 = vmatpush1.msra.mxu0 0.0
  %3570 = vmatprep.subr.mxu0 0.0
  %3571 = vmatpush1.msra.mxu0 0.0
  %3572 = vmatprep.subr.mxu0 0.0
  %3573 = vmatpush1.msra.mxu0 0.0
  %3574 = vmatprep.subr.mxu0 0.0
  %3575 = vmatpush1.msra.mxu0 0.0
  %3576 = vmatprep.subr.mxu0 0.0
  %3577 = vmatpush1.msra.mxu0 0.0
  %3578 = vmatprep.subr.mxu0 0.0
  %3579 = vmatpush1.msra.mxu0 0.0
  %3580 = vmatprep.subr.mxu0 0.0
  %3581 = vmatpush1.msra.mxu0 0.0
  %3582 = vmatprep.subr.mxu0 0.0
  %3583 = vmatpush1.msra.mxu0 0.0
  %3584 = vmatprep.subr.mxu0 0.0
  %3585 = vmatpush1.msra.mxu0 0.0
  %3586 = vmatprep.subr.mxu0 0.0
  %3587 = vmatpush1.msra.mxu0 0.0
  %3588 = vmatprep.subr.mxu0 0.0
  %3589 = vmatpush1.msra.mxu0 0.0
  %3590 = vmatprep.subr.mxu0 0.0
  %3591 = vmatpush1.msra.mxu0 0.0
  %3592 = vmatprep.subr.mxu0 0.0
  %3593 = vmatpush1.msra.mxu0 0.0
  %3594 = vmatprep.subr.mxu0 0.0
  %3595 = vmatpush1.msra.mxu0 0.0
  %3596 = vmatprep.subr.mxu0 0.0
  %3597 = vmatpush1.msra.mxu0 0.0
  %3598 = vmatprep.subr.mxu0 0.0
  %3599 = vmatpush1.msra.mxu0 0.0
  %3600 = vmatprep.subr.mxu0 0.0
  %3601 = vmatpush1.msra.mxu0 0.0
  %3602 = vmatprep.subr.mxu0 0.0
  %3603 = vmatpush1.msra.mxu0 0.0
  %3604 = vmatprep.subr.mxu0 0.0
  %3605 = vmatpush1.msra.mxu0 0.0
  %3606 = vmatprep.subr.mxu0 0.0
  %3607 = vmatpush1.msra.mxu0 0.0
  %3608 = vmatprep.subr.mxu0 0.0
  %3609 = vmatpush1.msra.mxu0 0.0
  %3610 = vmatprep.subr.mxu0 0.0
  %3611 = vmatpush1.msra.mxu0 0.0
  %3612 = vmatprep.subr.mxu0 0.0
  %3613 = vmatpush1.msra.mxu0 0.0
  %3614 = vmatprep.subr.mxu0 0.0
  %3615 = vmatpush1.msra.mxu0 0.0
  %3616 = vmatprep.subr.mxu0 0.0
  %3617 = vmatpush1.msra.mxu0 0.0
  %3618 = vmatprep.subr.mxu0 0.0
  %3619 = vmatpush1.msra.mxu0 0.0
  %3620 = vmatprep.subr.mxu0 0.0
  %3621 = vmatpush1.msra.mxu0 0.0
  %3622 = vmatprep.mubr.f32.mxu0 0.0
  %3623 = vmatmul.mubr.f32.gmra.mrb[0].mxu0 %v3553
  %v3624 = vpop.f32.mrb[0].mxu0
  %v3625 = vadd.f32 %v3544, %v3624
  %v3626 = vpop.f32.mrb[0].mxu0
  %3627 = vmatprep.mubr.f32.mxu0 0.0
  %3628 = vmatmul.mubr.f32.gmra.mrb[0].mxu0 %v3556
  %v3629 = vpop.f32.mrb[0].mxu0
  %v3630 = vadd.f32 %v3549, %v3629
  %v3631 = vpop.f32.mrb[0].mxu0
  %3632 = vdwg.mxu0
  %s3633 = scalar_lea.vmem %s25, 128
  %v3634 = vld [vmem:[%s3633] sm:$0xff]
  %v3635 = vld [vmem:[%s3633 + $0x8] sm:$0xff]
  %v3636 = vld [vmem:[%s3633 + $0x10] sm:$0xff]
  %v3637 = vld [vmem:[%s3633 + $0x18] sm:$0xff]
  %v3638 = vld [vmem:[%s3633 + $0x20] sm:$0xff]
  %v3639 = vld [vmem:[%s3633 + $0x28] sm:$0xff]
  %v3640 = vld [vmem:[%s3633 + $0x30] sm:$0xff]
  %v3641 = vld [vmem:[%s3633 + $0x38] sm:$0xff]
  %s3642 = scalar_lea.vmem %s31, 2
  %v3643 = vld [vmem:[%s3642] sm:$0x1]
  %v3645 = vlaneseq
  %v3646 = vshrl.u32 %v3645, 7
  %v3647 = vsub.s32 0, %v3646
  %v3648 = vrot.slane %v3643, %v3647
  %3650 = vmatprep.subr.mxu0 0.0
  %3651 = vmatpush1.msra.mxu0 %v3634
  %3652 = vmatprep.subr.mxu0 0.0
  %3653 = vmatpush1.msra.mxu0 %v3635
  %3654 = vmatprep.subr.mxu0 0.0
  %3655 = vmatpush1.msra.mxu0 %v3636
  %3656 = vmatprep.subr.mxu0 0.0
  %3657 = vmatpush1.msra.mxu0 %v3637
  %3658 = vmatprep.subr.mxu0 0.0
  %3659 = vmatpush1.msra.mxu0 %v3638
  %3660 = vmatprep.subr.mxu0 0.0
  %3661 = vmatpush1.msra.mxu0 %v3639
  %3662 = vmatprep.subr.mxu0 0.0
  %3663 = vmatpush1.msra.mxu0 %v3640
  %3664 = vmatprep.subr.mxu0 0.0
  %3665 = vmatpush1.msra.mxu0 %v3641
  %3666 = vmatprep.subr.mxu0 0.0
  %3667 = vmatpush1.msra.mxu0 0.0
  %3668 = vmatprep.subr.mxu0 0.0
  %3669 = vmatpush1.msra.mxu0 0.0
  %3670 = vmatprep.subr.mxu0 0.0
  %3671 = vmatpush1.msra.mxu0 0.0
  %3672 = vmatprep.subr.mxu0 0.0
  %3673 = vmatpush1.msra.mxu0 0.0
  %3674 = vmatprep.subr.mxu0 0.0
  %3675 = vmatpush1.msra.mxu0 0.0
  %3676 = vmatprep.subr.mxu0 0.0
  %3677 = vmatpush1.msra.mxu0 0.0
  %3678 = vmatprep.subr.mxu0 0.0
  %3679 = vmatpush1.msra.mxu0 0.0
  %3680 = vmatprep.subr.mxu0 0.0
  %3681 = vmatpush1.msra.mxu0 0.0
  %3682 = vmatprep.subr.mxu0 0.0
  %3683 = vmatpush1.msra.mxu0 0.0
  %3684 = vmatprep.subr.mxu0 0.0
  %3685 = vmatpush1.msra.mxu0 0.0
  %3686 = vmatprep.subr.mxu0 0.0
  %3687 = vmatpush1.msra.mxu0 0.0
  %3688 = vmatprep.subr.mxu0 0.0
  %3689 = vmatpush1.msra.mxu0 0.0
  %3690 = vmatprep.subr.mxu0 0.0
  %3691 = vmatpush1.msra.mxu0 0.0
  %3692 = vmatprep.subr.mxu0 0.0
  %3693 = vmatpush1.msra.mxu0 0.0
  %3694 = vmatprep.subr.mxu0 0.0
  %3695 = vmatpush1.msra.mxu0 0.0
  %3696 = vmatprep.subr.mxu0 0.0
  %3697 = vmatpush1.msra.mxu0 0.0
  %3698 = vmatprep.subr.mxu0 0.0
  %3699 = vmatpush1.msra.mxu0 0.0
  %3700 = vmatprep.subr.mxu0 0.0
  %3701 = vmatpush1.msra.mxu0 0.0
  %3702 = vmatprep.subr.mxu0 0.0
  %3703 = vmatpush1.msra.mxu0 0.0
  %3704 = vmatprep.subr.mxu0 0.0
  %3705 = vmatpush1.msra.mxu0 0.0
  %3706 = vmatprep.subr.mxu0 0.0
  %3707 = vmatpush1.msra.mxu0 0.0
  %3708 = vmatprep.subr.mxu0 0.0
  %3709 = vmatpush1.msra.mxu0 0.0
  %3710 = vmatprep.subr.mxu0 0.0
  %3711 = vmatpush1.msra.mxu0 0.0
  %3712 = vmatprep.subr.mxu0 0.0
  %3713 = vmatpush1.msra.mxu0 0.0
  %3714 = vmatprep.mubr.f32.mxu0 0.0
  %3715 = vmatmul.mubr.f32.gmra.mrb[0].mxu0 %v2423
  %v3716 = vpop.f32.mrb[0].mxu0
  %v3717 = vadd.f32 %v3648, %v3716
  %v3718 = vpop.f32.mrb[0].mxu0
  %3719 = vmatprep.mubr.f32.mxu0 0.0
  %3720 = vmatmul.mubr.f32.gmra.mrb[0].mxu0 %v2426
  %v3721 = vpop.f32.mrb[0].mxu0
  %v3722 = vadd.f32 %v3648, %v3721
  %v3723 = vpop.f32.mrb[0].mxu0
  %3724 = vdwg.mxu0
  %v3725 = vmul.f32 %v3717, 0.25
  %v3726 = vmul.f32 %v3722, 0.25
  %s3727 = scalar_lea.vmem %s27, 128
  %v3728 = vld [vmem:[%s3727] sm:$0xff]
  %v3729 = vld [vmem:[%s3727 + $0x8] sm:$0xff]
  %v3730 = vld [vmem:[%s3727 + $0x10] sm:$0xff]
  %v3731 = vld [vmem:[%s3727 + $0x18] sm:$0xff]
  %v3732 = vld [vmem:[%s3727 + $0x20] sm:$0xff]
  %v3733 = vld [vmem:[%s3727 + $0x28] sm:$0xff]
  %v3734 = vld [vmem:[%s3727 + $0x30] sm:$0xff]
  %v3735 = vld [vmem:[%s3727 + $0x38] sm:$0xff]
  %s3736 = scalar_lea.vmem %s33, 2
  %v3737 = vld [vmem:[%s3736] sm:$0x1]
  %v3739 = vlaneseq
  %v3740 = vshrl.u32 %v3739, 7
  %v3741 = vsub.s32 0, %v3740
  %v3742 = vrot.slane %v3737, %v3741
  %3744 = vmatprep.subr.mxu0 0.0
  %3745 = vmatpush1.msra.mxu0 %v3728
  %3746 = vmatprep.subr.mxu0 0.0
  %3747 = vmatpush1.msra.mxu0 %v3729
  %3748 = vmatprep.subr.mxu0 0.0
  %3749 = vmatpush1.msra.mxu0 %v3730
  %3750 = vmatprep.subr.mxu0 0.0
  %3751 = vmatpush1.msra.mxu0 %v3731
  %3752 = vmatprep.subr.mxu0 0.0
  %3753 = vmatpush1.msra.mxu0 %v3732
  %3754 = vmatprep.subr.mxu0 0.0
  %3755 = vmatpush1.msra.mxu0 %v3733
  %3756 = vmatprep.subr.mxu0 0.0
  %3757 = vmatpush1.msra.mxu0 %v3734
  %3758 = vmatprep.subr.mxu0 0.0
  %3759 = vmatpush1.msra.mxu0 %v3735
  %3760 = vmatprep.subr.mxu0 0.0
  %3761 = vmatpush1.msra.mxu0 0.0
  %3762 = vmatprep.subr.mxu0 0.0
  %3763 = vmatpush1.msra.mxu0 0.0
  %3764 = vmatprep.subr.mxu0 0.0
  %3765 = vmatpush1.msra.mxu0 0.0
  %3766 = vmatprep.subr.mxu0 0.0
  %3767 = vmatpush1.msra.mxu0 0.0
  %3768 = vmatprep.subr.mxu0 0.0
  %3769 = vmatpush1.msra.mxu0 0.0
  %3770 = vmatprep.subr.mxu0 0.0
  %3771 = vmatpush1.msra.mxu0 0.0
  %3772 = vmatprep.subr.mxu0 0.0
  %3773 = vmatpush1.msra.mxu0 0.0
  %3774 = vmatprep.subr.mxu0 0.0
  %3775 = vmatpush1.msra.mxu0 0.0
  %3776 = vmatprep.subr.mxu0 0.0
  %3777 = vmatpush1.msra.mxu0 0.0
  %3778 = vmatprep.subr.mxu0 0.0
  %3779 = vmatpush1.msra.mxu0 0.0
  %3780 = vmatprep.subr.mxu0 0.0
  %3781 = vmatpush1.msra.mxu0 0.0
  %3782 = vmatprep.subr.mxu0 0.0
  %3783 = vmatpush1.msra.mxu0 0.0
  %3784 = vmatprep.subr.mxu0 0.0
  %3785 = vmatpush1.msra.mxu0 0.0
  %3786 = vmatprep.subr.mxu0 0.0
  %3787 = vmatpush1.msra.mxu0 0.0
  %3788 = vmatprep.subr.mxu0 0.0
  %3789 = vmatpush1.msra.mxu0 0.0
  %3790 = vmatprep.subr.mxu0 0.0
  %3791 = vmatpush1.msra.mxu0 0.0
  %3792 = vmatprep.subr.mxu0 0.0
  %3793 = vmatpush1.msra.mxu0 0.0
  %3794 = vmatprep.subr.mxu0 0.0
  %3795 = vmatpush1.msra.mxu0 0.0
  %3796 = vmatprep.subr.mxu0 0.0
  %3797 = vmatpush1.msra.mxu0 0.0
  %3798 = vmatprep.subr.mxu0 0.0
  %3799 = vmatpush1.msra.mxu0 0.0
  %3800 = vmatprep.subr.mxu0 0.0
  %3801 = vmatpush1.msra.mxu0 0.0
  %3802 = vmatprep.subr.mxu0 0.0
  %3803 = vmatpush1.msra.mxu0 0.0
  %3804 = vmatprep.subr.mxu0 0.0
  %3805 = vmatpush1.msra.mxu0 0.0
  %3806 = vmatprep.subr.mxu0 0.0
  %3807 = vmatpush1.msra.mxu0 0.0
  %3808 = vmatprep.mubr.f32.mxu0 0.0
  %3809 = vmatmul.mubr.f32.gmra.mrb[0].mxu0 %v2521
  %v3810 = vpop.f32.mrb[0].mxu0
  %v3811 = vadd.f32 %v3742, %v3810
  %v3812 = vpop.f32.mrb[0].mxu0
  %3813 = vmatprep.mubr.f32.mxu0 0.0
  %3814 = vmatmul.mubr.f32.gmra.mrb[0].mxu0 %v2524
  %v3815 = vpop.f32.mrb[0].mxu0
  %v3816 = vadd.f32 %v3742, %v3815
  %v3817 = vpop.f32.mrb[0].mxu0
  %3818 = vmatprep.mubr.f32.mxu0 0.0
  %3819 = vmatmul.mubr.f32.gmra.mrb[0].mxu0 %v2527
  %v3820 = vpop.f32.mrb[0].mxu0
  %v3821 = vadd.f32 %v3742, %v3820
  %v3822 = vpop.f32.mrb[0].mxu0
  %3823 = vmatprep.mubr.f32.mxu0 0.0
  %3824 = vmatmul.mubr.f32.gmra.mrb[0].mxu0 %v2530
  %v3825 = vpop.f32.mrb[0].mxu0
  %v3826 = vadd.f32 %v3742, %v3825
  %v3827 = vpop.f32.mrb[0].mxu0
  %3828 = vmatprep.mubr.f32.mxu0 0.0
  %3829 = vmatmul.mubr.f32.gmra.mrb[0].mxu0 %v2533
  %v3830 = vpop.f32.mrb[0].mxu0
  %v3831 = vadd.f32 %v3742, %v3830
  %v3832 = vpop.f32.mrb[0].mxu0
  %3833 = vmatprep.mubr.f32.mxu0 0.0
  %3834 = vmatmul.mubr.f32.gmra.mrb[0].mxu0 %v2536
  %v3835 = vpop.f32.mrb[0].mxu0
  %v3836 = vadd.f32 %v3742, %v3835
  %v3837 = vpop.f32.mrb[0].mxu0
  %3838 = vdwg.mxu0
  %s3839 = scalar_lea.vmem %s29, 128
  %v3840 = vld [vmem:[%s3839] sm:$0xff]
  %v3841 = vld [vmem:[%s3839 + $0x8] sm:$0xff]
  %v3842 = vld [vmem:[%s3839 + $0x10] sm:$0xff]
  %v3843 = vld [vmem:[%s3839 + $0x18] sm:$0xff]
  %v3844 = vld [vmem:[%s3839 + $0x20] sm:$0xff]
  %v3845 = vld [vmem:[%s3839 + $0x28] sm:$0xff]
  %v3846 = vld [vmem:[%s3839 + $0x30] sm:$0xff]
  %v3847 = vld [vmem:[%s3839 + $0x38] sm:$0xff]
  %s3848 = scalar_lea.vmem %s35, 2
  %v3849 = vld [vmem:[%s3848] sm:$0x1]
  %v3851 = vlaneseq
  %v3852 = vshrl.u32 %v3851, 7
  %v3853 = vsub.s32 0, %v3852
  %v3854 = vrot.slane %v3849, %v3853
  %3856 = vmatprep.subr.mxu0 0.0
  %3857 = vmatpush1.msra.mxu0 %v3840
  %3858 = vmatprep.subr.mxu0 0.0
  %3859 = vmatpush1.msra.mxu0 %v3841
  %3860 = vmatprep.subr.mxu0 0.0
  %3861 = vmatpush1.msra.mxu0 %v3842
  %3862 = vmatprep.subr.mxu0 0.0
  %3863 = vmatpush1.msra.mxu0 %v3843
  %3864 = vmatprep.subr.mxu0 0.0
  %3865 = vmatpush1.msra.mxu0 %v3844
  %3866 = vmatprep.subr.mxu0 0.0
  %3867 = vmatpush1.msra.mxu0 %v3845
  %3868 = vmatprep.subr.mxu0 0.0
  %3869 = vmatpush1.msra.mxu0 %v3846
  %3870 = vmatprep.subr.mxu0 0.0
  %3871 = vmatpush1.msra.mxu0 %v3847
  %3872 = vmatprep.subr.mxu0 0.0
  %3873 = vmatpush1.msra.mxu0 0.0
  %3874 = vmatprep.subr.mxu0 0.0
  %3875 = vmatpush1.msra.mxu0 0.0
  %3876 = vmatprep.subr.mxu0 0.0
  %3877 = vmatpush1.msra.mxu0 0.0
  %3878 = vmatprep.subr.mxu0 0.0
  %3879 = vmatpush1.msra.mxu0 0.0
  %3880 = vmatprep.subr.mxu0 0.0
  %3881 = vmatpush1.msra.mxu0 0.0
  %3882 = vmatprep.subr.mxu0 0.0
  %3883 = vmatpush1.msra.mxu0 0.0
  %3884 = vmatprep.subr.mxu0 0.0
  %3885 = vmatpush1.msra.mxu0 0.0
  %3886 = vmatprep.subr.mxu0 0.0
  %3887 = vmatpush1.msra.mxu0 0.0
  %3888 = vmatprep.subr.mxu0 0.0
  %3889 = vmatpush1.msra.mxu0 0.0
  %3890 = vmatprep.subr.mxu0 0.0
  %3891 = vmatpush1.msra.mxu0 0.0
  %3892 = vmatprep.subr.mxu0 0.0
  %3893 = vmatpush1.msra.mxu0 0.0
  %3894 = vmatprep.subr.mxu0 0.0
  %3895 = vmatpush1.msra.mxu0 0.0
  %3896 = vmatprep.subr.mxu0 0.0
  %3897 = vmatpush1.msra.mxu0 0.0
  %3898 = vmatprep.subr.mxu0 0.0
  %3899 = vmatpush1.msra.mxu0 0.0
  %3900 = vmatprep.subr.mxu0 0.0
  %3901 = vmatpush1.msra.mxu0 0.0
  %3902 = vmatprep.subr.mxu0 0.0
  %3903 = vmatpush1.msra.mxu0 0.0
  %3904 = vmatprep.subr.mxu0 0.0
  %3905 = vmatpush1.msra.mxu0 0.0
  %3906 = vmatprep.subr.mxu0 0.0
  %3907 = vmatpush1.msra.mxu0 0.0
  %3908 = vmatprep.subr.mxu0 0.0
  %3909 = vmatpush1.msra.mxu0 0.0
  %3910 = vmatprep.subr.mxu0 0.0
  %3911 = vmatpush1.msra.mxu0 0.0
  %3912 = vmatprep.subr.mxu0 0.0
  %3913 = vmatpush1.msra.mxu0 0.0
  %3914 = vmatprep.subr.mxu0 0.0
  %3915 = vmatpush1.msra.mxu0 0.0
  %3916 = vmatprep.subr.mxu0 0.0
  %3917 = vmatpush1.msra.mxu0 0.0
  %3918 = vmatprep.subr.mxu0 0.0
  %3919 = vmatpush1.msra.mxu0 0.0
  %3920 = vmatprep.mubr.f32.mxu0 0.0
  %3921 = vmatmul.mubr.f32.gmra.mrb[0].mxu0 %v2521
  %v3922 = vpop.f32.mrb[0].mxu0
  %v3923 = vadd.f32 %v3854, %v3922
  %v3924 = vpop.f32.mrb[0].mxu0
  %3925 = vmatprep.mubr.f32.mxu0 0.0
  %3926 = vmatmul.mubr.f32.gmra.mrb[0].mxu0 %v2524
  %v3927 = vpop.f32.mrb[0].mxu0
  %v3928 = vadd.f32 %v3854, %v3927
  %v3929 = vpop.f32.mrb[0].mxu0
  %3930 = vmatprep.mubr.f32.mxu0 0.0
  %3931 = vmatmul.mubr.f32.gmra.mrb[0].mxu0 %v2527
  %v3932 = vpop.f32.mrb[0].mxu0
  %v3933 = vadd.f32 %v3854, %v3932
  %v3934 = vpop.f32.mrb[0].mxu0
  %3935 = vmatprep.mubr.f32.mxu0 0.0
  %3936 = vmatmul.mubr.f32.gmra.mrb[0].mxu0 %v2530
  %v3937 = vpop.f32.mrb[0].mxu0
  %v3938 = vadd.f32 %v3854, %v3937
  %v3939 = vpop.f32.mrb[0].mxu0
  %3940 = vmatprep.mubr.f32.mxu0 0.0
  %3941 = vmatmul.mubr.f32.gmra.mrb[0].mxu0 %v2533
  %v3942 = vpop.f32.mrb[0].mxu0
  %v3943 = vadd.f32 %v3854, %v3942
  %v3944 = vpop.f32.mrb[0].mxu0
  %3945 = vmatprep.mubr.f32.mxu0 0.0
  %3946 = vmatmul.mubr.f32.gmra.mrb[0].mxu0 %v2536
  %v3947 = vpop.f32.mrb[0].mxu0
  %v3948 = vadd.f32 %v3854, %v3947
  %v3949 = vpop.f32.mrb[0].mxu0
  %3950 = vdwg.mxu0
  %v3952 = vsel %vm417, %v3725, 0
  %v3955 = vsel %vm417, %v3726, 0
  %v3958 = vsel %vm417, %v3811, 0
  %v3961 = vsel %vm417, %v3816, 0
  %v3964 = vsel %vm417, %v3821, 0
  %v3967 = vsel %vm417, %v3826, 0
  %v3970 = vsel %vm417, %v3831, 0
  %v3973 = vsel %vm417, %v3836, 0
  %3975 = vmatprep.subr.mxu0 0.0
  %3976 = vmatpush1.xpose.msra.mxu0 %v3958
  %3977 = vmatprep.subr.mxu0 0.0
  %3978 = vmatpush1.xpose.msra.mxu0 %v3961
  %3979 = vmatprep.subr.mxu0 0.0
  %3980 = vmatpush1.xpose.msra.mxu0 %v3964
  %3981 = vmatprep.subr.mxu0 0.0
  %3982 = vmatpush1.xpose.msra.mxu0 %v3967
  %3983 = vmatprep.subr.mxu0 0.0
  %3984 = vmatpush1.xpose.msra.mxu0 %v3970
  %3985 = vmatprep.subr.mxu0 0.0
  %3986 = vmatpush1.xpose.msra.mxu0 %v3973
  %3987 = vmatprep.subr.mxu0 0.0
  %3988 = vmatpush1.xpose.msra.mxu0 0.0
  %3989 = vmatprep.subr.mxu0 0.0
  %3990 = vmatpush1.xpose.msra.mxu0 0.0
  %3991 = vmatprep.subr.mxu0 0.0
  %3992 = vmatpush1.xpose.msra.mxu0 0.0
  %3993 = vmatprep.subr.mxu0 0.0
  %3994 = vmatpush1.xpose.msra.mxu0 0.0
  %3995 = vmatprep.subr.mxu0 0.0
  %3996 = vmatpush1.xpose.msra.mxu0 0.0
  %3997 = vmatprep.subr.mxu0 0.0
  %3998 = vmatpush1.xpose.msra.mxu0 0.0
  %3999 = vmatprep.subr.mxu0 0.0
  %4000 = vmatpush1.xpose.msra.mxu0 0.0
  %4001 = vmatprep.subr.mxu0 0.0
  %4002 = vmatpush1.xpose.msra.mxu0 0.0
  %4003 = vmatprep.subr.mxu0 0.0
  %4004 = vmatpush1.xpose.msra.mxu0 0.0
  %4005 = vmatprep.subr.mxu0 0.0
  %4006 = vmatpush1.xpose.msra.mxu0 0.0
  %4007 = vmatprep.subr.mxu0 0.0
  %4008 = vmatpush1.xpose.msra.mxu0 0.0
  %4009 = vmatprep.subr.mxu0 0.0
  %4010 = vmatpush1.xpose.msra.mxu0 0.0
  %4011 = vmatprep.subr.mxu0 0.0
  %4012 = vmatpush1.xpose.msra.mxu0 0.0
  %4013 = vmatprep.subr.mxu0 0.0
  %4014 = vmatpush1.xpose.msra.mxu0 0.0
  %4015 = vmatprep.subr.mxu0 0.0
  %4016 = vmatpush1.xpose.msra.mxu0 0.0
  %4017 = vmatprep.subr.mxu0 0.0
  %4018 = vmatpush1.xpose.msra.mxu0 0.0
  %4019 = vmatprep.subr.mxu0 0.0
  %4020 = vmatpush1.xpose.msra.mxu0 0.0
  %4021 = vmatprep.subr.mxu0 0.0
  %4022 = vmatpush1.xpose.msra.mxu0 0.0
  %4023 = vmatprep.subr.mxu0 0.0
  %4024 = vmatpush1.xpose.msra.mxu0 0.0
  %4025 = vmatprep.subr.mxu0 0.0
  %4026 = vmatpush1.xpose.msra.mxu0 0.0
  %4027 = vmatprep.subr.mxu0 0.0
  %4028 = vmatpush1.xpose.msra.mxu0 0.0
  %4029 = vmatprep.subr.mxu0 0.0
  %4030 = vmatpush1.xpose.msra.mxu0 0.0
  %4031 = vmatprep.subr.mxu0 0.0
  %4032 = vmatpush1.xpose.msra.mxu0 0.0
  %4033 = vmatprep.subr.mxu0 0.0
  %4034 = vmatpush1.xpose.msra.mxu0 0.0
  %4035 = vmatprep.subr.mxu0 0.0
  %4036 = vmatpush1.xpose.msra.mxu0 0.0
  %4037 = vmatprep.subr.mxu0 0.0
  %4038 = vmatpush1.xpose.msra.mxu0 0.0
  %4039 = vmatprep.mubr.f32.mxu0 0.0
  %4040 = vmatmul.mubr.f32.gmra.mrb[0].mxu0 %v3952
  %v4041 = vpop.f32.mrb[0].mxu0
  %v4042 = vadd.f32 %v136, %v4041
  %v4043 = vpop.f32.mrb[0].mxu0
  %4044 = vmatprep.mubr.f32.mxu0 0.0
  %4045 = vmatmul.mubr.f32.gmra.mrb[0].mxu0 %v3955
  %v4046 = vpop.f32.mrb[0].mxu0
  %v4047 = vadd.f32 %v137, %v4046
  %v4048 = vpop.f32.mrb[0].mxu0
  %4049 = vdwg.mxu0
  %v4050 = vsel %vm2842, %v4042, -inf
  %4051 = vmax.xlane.f32.xlu0 %v4050
  %v4052 = vpop.xlane.xlu0 %4051
  %v4053 = vsel %vm2842, %v4047, -inf
  %4054 = vmax.xlane.f32.xlu0 %v4053
  %v4055 = vpop.xlane.xlu0 %4054
  %v4056 = vsub.f32 %v4042, %v4052
  %v4057 = vsub.f32 %v4047, %v4055
  %v4058 = vmul.f32 %v4056, 1.442695
  %v4059 = vpow.pop %v4058
  %v4060 = vmul.f32 %v4057, 1.442695
  %v4061 = vpow.pop %v4060
  %v4062 = vsel %vm2842, %v4059, 0.0
  %4063 = vadd.xlane.f32.xlu0 %v4062
  %v4064 = vpop.xlane.xlu0 %4063
  %v4065 = vsel %vm2842, %v4061, 0.0
  %4066 = vadd.xlane.f32.xlu0 %v4065
  %v4067 = vpop.xlane.xlu0 %4066
  %v4068 = vrcp.pop %v4064
  %v4069 = vrcp.pop %v4067
  %v4070 = vmul.f32 %v4059, %v4068
  %v4071 = vmul.f32 %v4061, %v4069
  %v4073 = vsel %vm2842, %v4070, 0
  %v4076 = vsel %vm2842, %v4071, 0
  %4078 = vmatprep.subr.mxu0 0.0
  %4079 = vmatpush1.msra.mxu0 %v3923
  %4080 = vmatprep.subr.mxu0 0.0
  %4081 = vmatpush1.msra.mxu0 %v3928
  %4082 = vmatprep.subr.mxu0 0.0
  %4083 = vmatpush1.msra.mxu0 %v3933
  %4084 = vmatprep.subr.mxu0 0.0
  %4085 = vmatpush1.msra.mxu0 %v3938
  %4086 = vmatprep.subr.mxu0 0.0
  %4087 = vmatpush1.msra.mxu0 %v3943
  %4088 = vmatprep.subr.mxu0 0.0
  %4089 = vmatpush1.msra.mxu0 %v3948
  %4090 = vmatprep.subr.mxu0 0.0
  %4091 = vmatpush1.msra.mxu0 0.0
  %4092 = vmatprep.subr.mxu0 0.0
  %4093 = vmatpush1.msra.mxu0 0.0
  %4094 = vmatprep.subr.mxu0 0.0
  %4095 = vmatpush1.msra.mxu0 0.0
  %4096 = vmatprep.subr.mxu0 0.0
  %4097 = vmatpush1.msra.mxu0 0.0
  %4098 = vmatprep.subr.mxu0 0.0
  %4099 = vmatpush1.msra.mxu0 0.0
  %4100 = vmatprep.subr.mxu0 0.0
  %4101 = vmatpush1.msra.mxu0 0.0
  %4102 = vmatprep.subr.mxu0 0.0
  %4103 = vmatpush1.msra.mxu0 0.0
  %4104 = vmatprep.subr.mxu0 0.0
  %4105 = vmatpush1.msra.mxu0 0.0
  %4106 = vmatprep.subr.mxu0 0.0
  %4107 = vmatpush1.msra.mxu0 0.0
  %4108 = vmatprep.subr.mxu0 0.0
  %4109 = vmatpush1.msra.mxu0 0.0
  %4110 = vmatprep.subr.mxu0 0.0
  %4111 = vmatpush1.msra.mxu0 0.0
  %4112 = vmatprep.subr.mxu0 0.0
  %4113 = vmatpush1.msra.mxu0 0.0
  %4114 = vmatprep.subr.mxu0 0.0
  %4115 = vmatpush1.msra.mxu0 0.0
  %4116 = vmatprep.subr.mxu0 0.0
  %4117 = vmatpush1.msra.mxu0 0.0
  %4118 = vmatprep.subr.mxu0 0.0
  %4119 = vmatpush1.msra.mxu0 0.0
  %4120 = vmatprep.subr.mxu0 0.0
  %4121 = vmatpush1.msra.mxu0 0.0
  %4122 = vmatprep.subr.mxu0 0.0
  %4123 = vmatpush1.msra.mxu0 0.0
  %4124 = vmatprep.subr.mxu0 0.0
  %4125 = vmatpush1.msra.mxu0 0.0
  %4126 = vmatprep.subr.mxu0 0.0
  %4127 = vmatpush1.msra.mxu0 0.0
  %4128 = vmatprep.subr.mxu0 0.0
  %4129 = vmatpush1.msra.mxu0 0.0
  %4130 = vmatprep.subr.mxu0 0.0
  %4131 = vmatpush1.msra.mxu0 0.0
  %4132 = vmatprep.subr.mxu0 0.0
  %4133 = vmatpush1.msra.mxu0 0.0
  %4134 = vmatprep.subr.mxu0 0.0
  %4135 = vmatpush1.msra.mxu0 0.0
  %4136 = vmatprep.subr.mxu0 0.0
  %4137 = vmatpush1.msra.mxu0 0.0
  %4138 = vmatprep.subr.mxu0 0.0
  %4139 = vmatpush1.msra.mxu0 0.0
  %4140 = vmatprep.subr.mxu0 0.0
  %4141 = vmatpush1.msra.mxu0 0.0
  %4142 = vmatprep.mubr.f32.mxu0 0.0
  %4143 = vmatmul.mubr.f32.gmra.mrb[0].mxu0 %v4073
  %v4144 = vpop.f32.mrb[0].mxu0
  %v4145 = vadd.f32 0.0, %v4144
  %v4146 = vpop.f32.mrb[0].mxu0
  %4147 = vmatprep.mubr.f32.mxu0 0.0
  %4148 = vmatmul.mubr.f32.gmra.mrb[0].mxu0 %v4076
  %v4149 = vpop.f32.mrb[0].mxu0
  %v4150 = vadd.f32 0.0, %v4149
  %v4151 = vpop.f32.mrb[0].mxu0
  %4152 = vdwg.mxu0
  %s4153 = scalar_lea.vmem %s37, 32
  %v4154 = vld [vmem:[%s4153] sm:$0xff]
  %v4155 = vld [vmem:[%s4153 + $0x8] sm:$0xff]
  %v4157 = vsel %vm417, %v4145, 0
  %v4160 = vsel %vm417, %v4150, 0
  %4162 = vmatprep.subr.mxu0 0.0
  %4163 = vmatpush1.msra.mxu0 %v4154
  %4164 = vmatprep.subr.mxu0 0.0
  %4165 = vmatpush1.msra.mxu0 %v4155
  %4166 = vmatprep.subr.mxu0 0.0
  %4167 = vmatpush1.msra.mxu0 0.0
  %4168 = vmatprep.subr.mxu0 0.0
  %4169 = vmatpush1.msra.mxu0 0.0
  %4170 = vmatprep.subr.mxu0 0.0
  %4171 = vmatpush1.msra.mxu0 0.0
  %4172 = vmatprep.subr.mxu0 0.0
  %4173 = vmatpush1.msra.mxu0 0.0
  %4174 = vmatprep.subr.mxu0 0.0
  %4175 = vmatpush1.msra.mxu0 0.0
  %4176 = vmatprep.subr.mxu0 0.0
  %4177 = vmatpush1.msra.mxu0 0.0
  %4178 = vmatprep.subr.mxu0 0.0
  %4179 = vmatpush1.msra.mxu0 0.0
  %4180 = vmatprep.subr.mxu0 0.0
  %4181 = vmatpush1.msra.mxu0 0.0
  %4182 = vmatprep.subr.mxu0 0.0
  %4183 = vmatpush1.msra.mxu0 0.0
  %4184 = vmatprep.subr.mxu0 0.0
  %4185 = vmatpush1.msra.mxu0 0.0
  %4186 = vmatprep.subr.mxu0 0.0
  %4187 = vmatpush1.msra.mxu0 0.0
  %4188 = vmatprep.subr.mxu0 0.0
  %4189 = vmatpush1.msra.mxu0 0.0
  %4190 = vmatprep.subr.mxu0 0.0
  %4191 = vmatpush1.msra.mxu0 0.0
  %4192 = vmatprep.subr.mxu0 0.0
  %4193 = vmatpush1.msra.mxu0 0.0
  %4194 = vmatprep.subr.mxu0 0.0
  %4195 = vmatpush1.msra.mxu0 0.0
  %4196 = vmatprep.subr.mxu0 0.0
  %4197 = vmatpush1.msra.mxu0 0.0
  %4198 = vmatprep.subr.mxu0 0.0
  %4199 = vmatpush1.msra.mxu0 0.0
  %4200 = vmatprep.subr.mxu0 0.0
  %4201 = vmatpush1.msra.mxu0 0.0
  %4202 = vmatprep.subr.mxu0 0.0
  %4203 = vmatpush1.msra.mxu0 0.0
  %4204 = vmatprep.subr.mxu0 0.0
  %4205 = vmatpush1.msra.mxu0 0.0
  %4206 = vmatprep.subr.mxu0 0.0
  %4207 = vmatpush1.msra.mxu0 0.0
  %4208 = vmatprep.subr.mxu0 0.0
  %4209 = vmatpush1.msra.mxu0 0.0
  %4210 = vmatprep.subr.mxu0 0.0
  %4211 = vmatpush1.msra.mxu0 0.0
  %4212 = vmatprep.subr.mxu0 0.0
  %4213 = vmatpush1.msra.mxu0 0.0
  %4214 = vmatprep.subr.mxu0 0.0
  %4215 = vmatpush1.msra.mxu0 0.0
  %4216 = vmatprep.subr.mxu0 0.0
  %4217 = vmatpush1.msra.mxu0 0.0
  %4218 = vmatprep.subr.mxu0 0.0
  %4219 = vmatpush1.msra.mxu0 0.0
  %4220 = vmatprep.subr.mxu0 0.0
  %4221 = vmatpush1.msra.mxu0 0.0
  %4222 = vmatprep.subr.mxu0 0.0
  %4223 = vmatpush1.msra.mxu0 0.0
  %4224 = vmatprep.subr.mxu0 0.0
  %4225 = vmatpush1.msra.mxu0 0.0
  %4226 = vmatprep.mubr.f32.mxu0 0.0
  %4227 = vmatmul.mubr.f32.gmra.mrb[0].mxu0 %v4157
  %v4228 = vpop.f32.mrb[0].mxu0
  %v4229 = vadd.f32 0.0, %v4228
  %v4230 = vpop.f32.mrb[0].mxu0
  %4231 = vmatprep.mubr.f32.mxu0 0.0
  %4232 = vmatmul.mubr.f32.gmra.mrb[0].mxu0 %v4160
  %v4233 = vpop.f32.mrb[0].mxu0
  %v4234 = vadd.f32 0.0, %v4233
  %v4235 = vpop.f32.mrb[0].mxu0
  %4236 = vdwg.mxu0
  %v4237 = vadd.f32 %v3625, %v4229
  %v4238 = vadd.f32 %v3630, %v4234
  %s4239 = scalar_lea.vmem %s25, 192
  %v4240 = vld [vmem:[%s4239] sm:$0xff]
  %v4241 = vld [vmem:[%s4239 + $0x8] sm:$0xff]
  %v4242 = vld [vmem:[%s4239 + $0x10] sm:$0xff]
  %v4243 = vld [vmem:[%s4239 + $0x18] sm:$0xff]
  %v4244 = vld [vmem:[%s4239 + $0x20] sm:$0xff]
  %v4245 = vld [vmem:[%s4239 + $0x28] sm:$0xff]
  %v4246 = vld [vmem:[%s4239 + $0x30] sm:$0xff]
  %v4247 = vld [vmem:[%s4239 + $0x38] sm:$0xff]
  %s4248 = scalar_lea.vmem %s31, 3
  %v4249 = vld [vmem:[%s4248] sm:$0x1]
  %v4251 = vlaneseq
  %v4252 = vshrl.u32 %v4251, 7
  %v4253 = vsub.s32 0, %v4252
  %v4254 = vrot.slane %v4249, %v4253
  %4256 = vmatprep.subr.mxu0 0.0
  %4257 = vmatpush1.msra.mxu0 %v4240
  %4258 = vmatprep.subr.mxu0 0.0
  %4259 = vmatpush1.msra.mxu0 %v4241
  %4260 = vmatprep.subr.mxu0 0.0
  %4261 = vmatpush1.msra.mxu0 %v4242
  %4262 = vmatprep.subr.mxu0 0.0
  %4263 = vmatpush1.msra.mxu0 %v4243
  %4264 = vmatprep.subr.mxu0 0.0
  %4265 = vmatpush1.msra.mxu0 %v4244
  %4266 = vmatprep.subr.mxu0 0.0
  %4267 = vmatpush1.msra.mxu0 %v4245
  %4268 = vmatprep.subr.mxu0 0.0
  %4269 = vmatpush1.msra.mxu0 %v4246
  %4270 = vmatprep.subr.mxu0 0.0
  %4271 = vmatpush1.msra.mxu0 %v4247
  %4272 = vmatprep.subr.mxu0 0.0
  %4273 = vmatpush1.msra.mxu0 0.0
  %4274 = vmatprep.subr.mxu0 0.0
  %4275 = vmatpush1.msra.mxu0 0.0
  %4276 = vmatprep.subr.mxu0 0.0
  %4277 = vmatpush1.msra.mxu0 0.0
  %4278 = vmatprep.subr.mxu0 0.0
  %4279 = vmatpush1.msra.mxu0 0.0
  %4280 = vmatprep.subr.mxu0 0.0
  %4281 = vmatpush1.msra.mxu0 0.0
  %4282 = vmatprep.subr.mxu0 0.0
  %4283 = vmatpush1.msra.mxu0 0.0
  %4284 = vmatprep.subr.mxu0 0.0
  %4285 = vmatpush1.msra.mxu0 0.0
  %4286 = vmatprep.subr.mxu0 0.0
  %4287 = vmatpush1.msra.mxu0 0.0
  %4288 = vmatprep.subr.mxu0 0.0
  %4289 = vmatpush1.msra.mxu0 0.0
  %4290 = vmatprep.subr.mxu0 0.0
  %4291 = vmatpush1.msra.mxu0 0.0
  %4292 = vmatprep.subr.mxu0 0.0
  %4293 = vmatpush1.msra.mxu0 0.0
  %4294 = vmatprep.subr.mxu0 0.0
  %4295 = vmatpush1.msra.mxu0 0.0
  %4296 = vmatprep.subr.mxu0 0.0
  %4297 = vmatpush1.msra.mxu0 0.0
  %4298 = vmatprep.subr.mxu0 0.0
  %4299 = vmatpush1.msra.mxu0 0.0
  %4300 = vmatprep.subr.mxu0 0.0
  %4301 = vmatpush1.msra.mxu0 0.0
  %4302 = vmatprep.subr.mxu0 0.0
  %4303 = vmatpush1.msra.mxu0 0.0
  %4304 = vmatprep.subr.mxu0 0.0
  %4305 = vmatpush1.msra.mxu0 0.0
  %4306 = vmatprep.subr.mxu0 0.0
  %4307 = vmatpush1.msra.mxu0 0.0
  %4308 = vmatprep.subr.mxu0 0.0
  %4309 = vmatpush1.msra.mxu0 0.0
  %4310 = vmatprep.subr.mxu0 0.0
  %4311 = vmatpush1.msra.mxu0 0.0
  %4312 = vmatprep.subr.mxu0 0.0
  %4313 = vmatpush1.msra.mxu0 0.0
  %4314 = vmatprep.subr.mxu0 0.0
  %4315 = vmatpush1.msra.mxu0 0.0
  %4316 = vmatprep.subr.mxu0 0.0
  %4317 = vmatpush1.msra.mxu0 0.0
  %4318 = vmatprep.subr.mxu0 0.0
  %4319 = vmatpush1.msra.mxu0 0.0
  %4320 = vmatprep.mubr.f32.mxu0 0.0
  %4321 = vmatmul.mubr.f32.gmra.mrb[0].mxu0 %v2423
  %v4322 = vpop.f32.mrb[0].mxu0
  %v4323 = vadd.f32 %v4254, %v4322
  %v4324 = vpop.f32.mrb[0].mxu0
  %4325 = vmatprep.mubr.f32.mxu0 0.0
  %4326 = vmatmul.mubr.f32.gmra.mrb[0].mxu0 %v2426
  %v4327 = vpop.f32.mrb[0].mxu0
  %v4328 = vadd.f32 %v4254, %v4327
  %v4329 = vpop.f32.mrb[0].mxu0
  %4330 = vdwg.mxu0
  %v4331 = vmul.f32 %v4323, 0.25
  %v4332 = vmul.f32 %v4328, 0.25
  %s4333 = scalar_lea.vmem %s27, 192
  %v4334 = vld [vmem:[%s4333] sm:$0xff]
  %v4335 = vld [vmem:[%s4333 + $0x8] sm:$0xff]
  %v4336 = vld [vmem:[%s4333 + $0x10] sm:$0xff]
  %v4337 = vld [vmem:[%s4333 + $0x18] sm:$0xff]
  %v4338 = vld [vmem:[%s4333 + $0x20] sm:$0xff]
  %v4339 = vld [vmem:[%s4333 + $0x28] sm:$0xff]
  %v4340 = vld [vmem:[%s4333 + $0x30] sm:$0xff]
  %v4341 = vld [vmem:[%s4333 + $0x38] sm:$0xff]
  %s4342 = scalar_lea.vmem %s33, 3
  %v4343 = vld [vmem:[%s4342] sm:$0x1]
  %v4345 = vlaneseq
  %v4346 = vshrl.u32 %v4345, 7
  %v4347 = vsub.s32 0, %v4346
  %v4348 = vrot.slane %v4343, %v4347
  %4350 = vmatprep.subr.mxu0 0.0
  %4351 = vmatpush1.msra.mxu0 %v4334
  %4352 = vmatprep.subr.mxu0 0.0
  %4353 = vmatpush1.msra.mxu0 %v4335
  %4354 = vmatprep.subr.mxu0 0.0
  %4355 = vmatpush1.msra.mxu0 %v4336
  %4356 = vmatprep.subr.mxu0 0.0
  %4357 = vmatpush1.msra.mxu0 %v4337
  %4358 = vmatprep.subr.mxu0 0.0
  %4359 = vmatpush1.msra.mxu0 %v4338
  %4360 = vmatprep.subr.mxu0 0.0
  %4361 = vmatpush1.msra.mxu0 %v4339
  %4362 = vmatprep.subr.mxu0 0.0
  %4363 = vmatpush1.msra.mxu0 %v4340
  %4364 = vmatprep.subr.mxu0 0.0
  %4365 = vmatpush1.msra.mxu0 %v4341
  %4366 = vmatprep.subr.mxu0 0.0
  %4367 = vmatpush1.msra.mxu0 0.0
  %4368 = vmatprep.subr.mxu0 0.0
  %4369 = vmatpush1.msra.mxu0 0.0
  %4370 = vmatprep.subr.mxu0 0.0
  %4371 = vmatpush1.msra.mxu0 0.0
  %4372 = vmatprep.subr.mxu0 0.0
  %4373 = vmatpush1.msra.mxu0 0.0
  %4374 = vmatprep.subr.mxu0 0.0
  %4375 = vmatpush1.msra.mxu0 0.0
  %4376 = vmatprep.subr.mxu0 0.0
  %4377 = vmatpush1.msra.mxu0 0.0
  %4378 = vmatprep.subr.mxu0 0.0
  %4379 = vmatpush1.msra.mxu0 0.0
  %4380 = vmatprep.subr.mxu0 0.0
  %4381 = vmatpush1.msra.mxu0 0.0
  %4382 = vmatprep.subr.mxu0 0.0
  %4383 = vmatpush1.msra.mxu0 0.0
  %4384 = vmatprep.subr.mxu0 0.0
  %4385 = vmatpush1.msra.mxu0 0.0
  %4386 = vmatprep.subr.mxu0 0.0
  %4387 = vmatpush1.msra.mxu0 0.0
  %4388 = vmatprep.subr.mxu0 0.0
  %4389 = vmatpush1.msra.mxu0 0.0
  %4390 = vmatprep.subr.mxu0 0.0
  %4391 = vmatpush1.msra.mxu0 0.0
  %4392 = vmatprep.subr.mxu0 0.0
  %4393 = vmatpush1.msra.mxu0 0.0
  %4394 = vmatprep.subr.mxu0 0.0
  %4395 = vmatpush1.msra.mxu0 0.0
  %4396 = vmatprep.subr.mxu0 0.0
  %4397 = vmatpush1.msra.mxu0 0.0
  %4398 = vmatprep.subr.mxu0 0.0
  %4399 = vmatpush1.msra.mxu0 0.0
  %4400 = vmatprep.subr.mxu0 0.0
  %4401 = vmatpush1.msra.mxu0 0.0
  %4402 = vmatprep.subr.mxu0 0.0
  %4403 = vmatpush1.msra.mxu0 0.0
  %4404 = vmatprep.subr.mxu0 0.0
  %4405 = vmatpush1.msra.mxu0 0.0
  %4406 = vmatprep.subr.mxu0 0.0
  %4407 = vmatpush1.msra.mxu0 0.0
  %4408 = vmatprep.subr.mxu0 0.0
  %4409 = vmatpush1.msra.mxu0 0.0
  %4410 = vmatprep.subr.mxu0 0.0
  %4411 = vmatpush1.msra.mxu0 0.0
  %4412 = vmatprep.subr.mxu0 0.0
  %4413 = vmatpush1.msra.mxu0 0.0
  %4414 = vmatprep.mubr.f32.mxu0 0.0
  %4415 = vmatmul.mubr.f32.gmra.mrb[0].mxu0 %v2521
  %v4416 = vpop.f32.mrb[0].mxu0
  %v4417 = vadd.f32 %v4348, %v4416
  %v4418 = vpop.f32.mrb[0].mxu0
  %4419 = vmatprep.mubr.f32.mxu0 0.0
  %4420 = vmatmul.mubr.f32.gmra.mrb[0].mxu0 %v2524
  %v4421 = vpop.f32.mrb[0].mxu0
  %v4422 = vadd.f32 %v4348, %v4421
  %v4423 = vpop.f32.mrb[0].mxu0
  %4424 = vmatprep.mubr.f32.mxu0 0.0
  %4425 = vmatmul.mubr.f32.gmra.mrb[0].mxu0 %v2527
  %v4426 = vpop.f32.mrb[0].mxu0
  %v4427 = vadd.f32 %v4348, %v4426
  %v4428 = vpop.f32.mrb[0].mxu0
  %4429 = vmatprep.mubr.f32.mxu0 0.0
  %4430 = vmatmul.mubr.f32.gmra.mrb[0].mxu0 %v2530
  %v4431 = vpop.f32.mrb[0].mxu0
  %v4432 = vadd.f32 %v4348, %v4431
  %v4433 = vpop.f32.mrb[0].mxu0
  %4434 = vmatprep.mubr.f32.mxu0 0.0
  %4435 = vmatmul.mubr.f32.gmra.mrb[0].mxu0 %v2533
  %v4436 = vpop.f32.mrb[0].mxu0
  %v4437 = vadd.f32 %v4348, %v4436
  %v4438 = vpop.f32.mrb[0].mxu0
  %4439 = vmatprep.mubr.f32.mxu0 0.0
  %4440 = vmatmul.mubr.f32.gmra.mrb[0].mxu0 %v2536
  %v4441 = vpop.f32.mrb[0].mxu0
  %v4442 = vadd.f32 %v4348, %v4441
  %v4443 = vpop.f32.mrb[0].mxu0
  %4444 = vdwg.mxu0
  %s4445 = scalar_lea.vmem %s29, 192
  %v4446 = vld [vmem:[%s4445] sm:$0xff]
  %v4447 = vld [vmem:[%s4445 + $0x8] sm:$0xff]
  %v4448 = vld [vmem:[%s4445 + $0x10] sm:$0xff]
  %v4449 = vld [vmem:[%s4445 + $0x18] sm:$0xff]
  %v4450 = vld [vmem:[%s4445 + $0x20] sm:$0xff]
  %v4451 = vld [vmem:[%s4445 + $0x28] sm:$0xff]
  %v4452 = vld [vmem:[%s4445 + $0x30] sm:$0xff]
  %v4453 = vld [vmem:[%s4445 + $0x38] sm:$0xff]
  %s4454 = scalar_lea.vmem %s35, 3
  %v4455 = vld [vmem:[%s4454] sm:$0x1]
  %v4457 = vlaneseq
  %v4458 = vshrl.u32 %v4457, 7
  %v4459 = vsub.s32 0, %v4458
  %v4460 = vrot.slane %v4455, %v4459
  %4462 = vmatprep.subr.mxu0 0.0
  %4463 = vmatpush1.msra.mxu0 %v4446
  %4464 = vmatprep.subr.mxu0 0.0
  %4465 = vmatpush1.msra.mxu0 %v4447
  %4466 = vmatprep.subr.mxu0 0.0
  %4467 = vmatpush1.msra.mxu0 %v4448
  %4468 = vmatprep.subr.mxu0 0.0
  %4469 = vmatpush1.msra.mxu0 %v4449
  %4470 = vmatprep.subr.mxu0 0.0
  %4471 = vmatpush1.msra.mxu0 %v4450
  %4472 = vmatprep.subr.mxu0 0.0
  %4473 = vmatpush1.msra.mxu0 %v4451
  %4474 = vmatprep.subr.mxu0 0.0
  %4475 = vmatpush1.msra.mxu0 %v4452
  %4476 = vmatprep.subr.mxu0 0.0
  %4477 = vmatpush1.msra.mxu0 %v4453
  %4478 = vmatprep.subr.mxu0 0.0
  %4479 = vmatpush1.msra.mxu0 0.0
  %4480 = vmatprep.subr.mxu0 0.0
  %4481 = vmatpush1.msra.mxu0 0.0
  %4482 = vmatprep.subr.mxu0 0.0
  %4483 = vmatpush1.msra.mxu0 0.0
  %4484 = vmatprep.subr.mxu0 0.0
  %4485 = vmatpush1.msra.mxu0 0.0
  %4486 = vmatprep.subr.mxu0 0.0
  %4487 = vmatpush1.msra.mxu0 0.0
  %4488 = vmatprep.subr.mxu0 0.0
  %4489 = vmatpush1.msra.mxu0 0.0
  %4490 = vmatprep.subr.mxu0 0.0
  %4491 = vmatpush1.msra.mxu0 0.0
  %4492 = vmatprep.subr.mxu0 0.0
  %4493 = vmatpush1.msra.mxu0 0.0
  %4494 = vmatprep.subr.mxu0 0.0
  %4495 = vmatpush1.msra.mxu0 0.0
  %4496 = vmatprep.subr.mxu0 0.0
  %4497 = vmatpush1.msra.mxu0 0.0
  %4498 = vmatprep.subr.mxu0 0.0
  %4499 = vmatpush1.msra.mxu0 0.0
  %4500 = vmatprep.subr.mxu0 0.0
  %4501 = vmatpush1.msra.mxu0 0.0
  %4502 = vmatprep.subr.mxu0 0.0
  %4503 = vmatpush1.msra.mxu0 0.0
  %4504 = vmatprep.subr.mxu0 0.0
  %4505 = vmatpush1.msra.mxu0 0.0
  %4506 = vmatprep.subr.mxu0 0.0
  %4507 = vmatpush1.msra.mxu0 0.0
  %4508 = vmatprep.subr.mxu0 0.0
  %4509 = vmatpush1.msra.mxu0 0.0
  %4510 = vmatprep.subr.mxu0 0.0
  %4511 = vmatpush1.msra.mxu0 0.0
  %4512 = vmatprep.subr.mxu0 0.0
  %4513 = vmatpush1.msra.mxu0 0.0
  %4514 = vmatprep.subr.mxu0 0.0
  %4515 = vmatpush1.msra.mxu0 0.0
  %4516 = vmatprep.subr.mxu0 0.0
  %4517 = vmatpush1.msra.mxu0 0.0
  %4518 = vmatprep.subr.mxu0 0.0
  %4519 = vmatpush1.msra.mxu0 0.0
  %4520 = vmatprep.subr.mxu0 0.0
  %4521 = vmatpush1.msra.mxu0 0.0
  %4522 = vmatprep.subr.mxu0 0.0
  %4523 = vmatpush1.msra.mxu0 0.0
  %4524 = vmatprep.subr.mxu0 0.0
  %4525 = vmatpush1.msra.mxu0 0.0
  %4526 = vmatprep.mubr.f32.mxu0 0.0
  %4527 = vmatmul.mubr.f32.gmra.mrb[0].mxu0 %v2521
  %v4528 = vpop.f32.mrb[0].mxu0
  %v4529 = vadd.f32 %v4460, %v4528
  %v4530 = vpop.f32.mrb[0].mxu0
  %4531 = vmatprep.mubr.f32.mxu0 0.0
  %4532 = vmatmul.mubr.f32.gmra.mrb[0].mxu0 %v2524
  %v4533 = vpop.f32.mrb[0].mxu0
  %v4534 = vadd.f32 %v4460, %v4533
  %v4535 = vpop.f32.mrb[0].mxu0
  %4536 = vmatprep.mubr.f32.mxu0 0.0
  %4537 = vmatmul.mubr.f32.gmra.mrb[0].mxu0 %v2527
  %v4538 = vpop.f32.mrb[0].mxu0
  %v4539 = vadd.f32 %v4460, %v4538
  %v4540 = vpop.f32.mrb[0].mxu0
  %4541 = vmatprep.mubr.f32.mxu0 0.0
  %4542 = vmatmul.mubr.f32.gmra.mrb[0].mxu0 %v2530
  %v4543 = vpop.f32.mrb[0].mxu0
  %v4544 = vadd.f32 %v4460, %v4543
  %v4545 = vpop.f32.mrb[0].mxu0
  %4546 = vmatprep.mubr.f32.mxu0 0.0
  %4547 = vmatmul.mubr.f32.gmra.mrb[0].mxu0 %v2533
  %v4548 = vpop.f32.mrb[0].mxu0
  %v4549 = vadd.f32 %v4460, %v4548
  %v4550 = vpop.f32.mrb[0].mxu0
  %4551 = vmatprep.mubr.f32.mxu0 0.0
  %4552 = vmatmul.mubr.f32.gmra.mrb[0].mxu0 %v2536
  %v4553 = vpop.f32.mrb[0].mxu0
  %v4554 = vadd.f32 %v4460, %v4553
  %v4555 = vpop.f32.mrb[0].mxu0
  %4556 = vdwg.mxu0
  %v4558 = vsel %vm417, %v4331, 0
  %v4561 = vsel %vm417, %v4332, 0
  %v4564 = vsel %vm417, %v4417, 0
  %v4567 = vsel %vm417, %v4422, 0
  %v4570 = vsel %vm417, %v4427, 0
  %v4573 = vsel %vm417, %v4432, 0
  %v4576 = vsel %vm417, %v4437, 0
  %v4579 = vsel %vm417, %v4442, 0
  %4581 = vmatprep.subr.mxu0 0.0
  %4582 = vmatpush1.xpose.msra.mxu0 %v4564
  %4583 = vmatprep.subr.mxu0 0.0
  %4584 = vmatpush1.xpose.msra.mxu0 %v4567
  %4585 = vmatprep.subr.mxu0 0.0
  %4586 = vmatpush1.xpose.msra.mxu0 %v4570
  %4587 = vmatprep.subr.mxu0 0.0
  %4588 = vmatpush1.xpose.msra.mxu0 %v4573
  %4589 = vmatprep.subr.mxu0 0.0
  %4590 = vmatpush1.xpose.msra.mxu0 %v4576
  %4591 = vmatprep.subr.mxu0 0.0
  %4592 = vmatpush1.xpose.msra.mxu0 %v4579
  %4593 = vmatprep.subr.mxu0 0.0
  %4594 = vmatpush1.xpose.msra.mxu0 0.0
  %4595 = vmatprep.subr.mxu0 0.0
  %4596 = vmatpush1.xpose.msra.mxu0 0.0
  %4597 = vmatprep.subr.mxu0 0.0
  %4598 = vmatpush1.xpose.msra.mxu0 0.0
  %4599 = vmatprep.subr.mxu0 0.0
  %4600 = vmatpush1.xpose.msra.mxu0 0.0
  %4601 = vmatprep.subr.mxu0 0.0
  %4602 = vmatpush1.xpose.msra.mxu0 0.0
  %4603 = vmatprep.subr.mxu0 0.0
  %4604 = vmatpush1.xpose.msra.mxu0 0.0
  %4605 = vmatprep.subr.mxu0 0.0
  %4606 = vmatpush1.xpose.msra.mxu0 0.0
  %4607 = vmatprep.subr.mxu0 0.0
  %4608 = vmatpush1.xpose.msra.mxu0 0.0
  %4609 = vmatprep.subr.mxu0 0.0
  %4610 = vmatpush1.xpose.msra.mxu0 0.0
  %4611 = vmatprep.subr.mxu0 0.0
  %4612 = vmatpush1.xpose.msra.mxu0 0.0
  %4613 = vmatprep.subr.mxu0 0.0
  %4614 = vmatpush1.xpose.msra.mxu0 0.0
  %4615 = vmatprep.subr.mxu0 0.0
  %4616 = vmatpush1.xpose.msra.mxu0 0.0
  %4617 = vmatprep.subr.mxu0 0.0
  %4618 = vmatpush1.xpose.msra.mxu0 0.0
  %4619 = vmatprep.subr.mxu0 0.0
  %4620 = vmatpush1.xpose.msra.mxu0 0.0
  %4621 = vmatprep.subr.mxu0 0.0
  %4622 = vmatpush1.xpose.msra.mxu0 0.0
  %4623 = vmatprep.subr.mxu0 0.0
  %4624 = vmatpush1.xpose.msra.mxu0 0.0
  %4625 = vmatprep.subr.mxu0 0.0
  %4626 = vmatpush1.xpose.msra.mxu0 0.0
  %4627 = vmatprep.subr.mxu0 0.0
  %4628 = vmatpush1.xpose.msra.mxu0 0.0
  %4629 = vmatprep.subr.mxu0 0.0
  %4630 = vmatpush1.xpose.msra.mxu0 0.0
  %4631 = vmatprep.subr.mxu0 0.0
  %4632 = vmatpush1.xpose.msra.mxu0 0.0
  %4633 = vmatprep.subr.mxu0 0.0
  %4634 = vmatpush1.xpose.msra.mxu0 0.0
  %4635 = vmatprep.subr.mxu0 0.0
  %4636 = vmatpush1.xpose.msra.mxu0 0.0
  %4637 = vmatprep.subr.mxu0 0.0
  %4638 = vmatpush1.xpose.msra.mxu0 0.0
  %4639 = vmatprep.subr.mxu0 0.0
  %4640 = vmatpush1.xpose.msra.mxu0 0.0
  %4641 = vmatprep.subr.mxu0 0.0
  %4642 = vmatpush1.xpose.msra.mxu0 0.0
  %4643 = vmatprep.subr.mxu0 0.0
  %4644 = vmatpush1.xpose.msra.mxu0 0.0
  %4645 = vmatprep.mubr.f32.mxu0 0.0
  %4646 = vmatmul.mubr.f32.gmra.mrb[0].mxu0 %v4558
  %v4647 = vpop.f32.mrb[0].mxu0
  %v4648 = vadd.f32 %v136, %v4647
  %v4649 = vpop.f32.mrb[0].mxu0
  %4650 = vmatprep.mubr.f32.mxu0 0.0
  %4651 = vmatmul.mubr.f32.gmra.mrb[0].mxu0 %v4561
  %v4652 = vpop.f32.mrb[0].mxu0
  %v4653 = vadd.f32 %v137, %v4652
  %v4654 = vpop.f32.mrb[0].mxu0
  %4655 = vdwg.mxu0
  %v4656 = vsel %vm2842, %v4648, -inf
  %4657 = vmax.xlane.f32.xlu0 %v4656
  %v4658 = vpop.xlane.xlu0 %4657
  %v4659 = vsel %vm2842, %v4653, -inf
  %4660 = vmax.xlane.f32.xlu0 %v4659
  %v4661 = vpop.xlane.xlu0 %4660
  %v4662 = vsub.f32 %v4648, %v4658
  %v4663 = vsub.f32 %v4653, %v4661
  %v4664 = vmul.f32 %v4662, 1.442695
  %v4665 = vpow.pop %v4664
  %v4666 = vmul.f32 %v4663, 1.442695
  %v4667 = vpow.pop %v4666
  %v4668 = vsel %vm2842, %v4665, 0.0
  %4669 = vadd.xlane.f32.xlu0 %v4668
  %v4670 = vpop.xlane.xlu0 %4669
  %v4671 = vsel %vm2842, %v4667, 0.0
  %4672 = vadd.xlane.f32.xlu0 %v4671
  %v4673 = vpop.xlane.xlu0 %4672
  %v4674 = vrcp.pop %v4670
  %v4675 = vrcp.pop %v4673
  %v4676 = vmul.f32 %v4665, %v4674
  %v4677 = vmul.f32 %v4667, %v4675
  %v4679 = vsel %vm2842, %v4676, 0
  %v4682 = vsel %vm2842, %v4677, 0
  %4684 = vmatprep.subr.mxu0 0.0
  %4685 = vmatpush1.msra.mxu0 %v4529
  %4686 = vmatprep.subr.mxu0 0.0
  %4687 = vmatpush1.msra.mxu0 %v4534
  %4688 = vmatprep.subr.mxu0 0.0
  %4689 = vmatpush1.msra.mxu0 %v4539
  %4690 = vmatprep.subr.mxu0 0.0
  %4691 = vmatpush1.msra.mxu0 %v4544
  %4692 = vmatprep.subr.mxu0 0.0
  %4693 = vmatpush1.msra.mxu0 %v4549
  %4694 = vmatprep.subr.mxu0 0.0
  %4695 = vmatpush1.msra.mxu0 %v4554
  %4696 = vmatprep.subr.mxu0 0.0
  %4697 = vmatpush1.msra.mxu0 0.0
  %4698 = vmatprep.subr.mxu0 0.0
  %4699 = vmatpush1.msra.mxu0 0.0
  %4700 = vmatprep.subr.mxu0 0.0
  %4701 = vmatpush1.msra.mxu0 0.0
  %4702 = vmatprep.subr.mxu0 0.0
  %4703 = vmatpush1.msra.mxu0 0.0
  %4704 = vmatprep.subr.mxu0 0.0
  %4705 = vmatpush1.msra.mxu0 0.0
  %4706 = vmatprep.subr.mxu0 0.0
  %4707 = vmatpush1.msra.mxu0 0.0
  %4708 = vmatprep.subr.mxu0 0.0
  %4709 = vmatpush1.msra.mxu0 0.0
  %4710 = vmatprep.subr.mxu0 0.0
  %4711 = vmatpush1.msra.mxu0 0.0
  %4712 = vmatprep.subr.mxu0 0.0
  %4713 = vmatpush1.msra.mxu0 0.0
  %4714 = vmatprep.subr.mxu0 0.0
  %4715 = vmatpush1.msra.mxu0 0.0
  %4716 = vmatprep.subr.mxu0 0.0
  %4717 = vmatpush1.msra.mxu0 0.0
  %4718 = vmatprep.subr.mxu0 0.0
  %4719 = vmatpush1.msra.mxu0 0.0
  %4720 = vmatprep.subr.mxu0 0.0
  %4721 = vmatpush1.msra.mxu0 0.0
  %4722 = vmatprep.subr.mxu0 0.0
  %4723 = vmatpush1.msra.mxu0 0.0
  %4724 = vmatprep.subr.mxu0 0.0
  %4725 = vmatpush1.msra.mxu0 0.0
  %4726 = vmatprep.subr.mxu0 0.0
  %4727 = vmatpush1.msra.mxu0 0.0
  %4728 = vmatprep.subr.mxu0 0.0
  %4729 = vmatpush1.msra.mxu0 0.0
  %4730 = vmatprep.subr.mxu0 0.0
  %4731 = vmatpush1.msra.mxu0 0.0
  %4732 = vmatprep.subr.mxu0 0.0
  %4733 = vmatpush1.msra.mxu0 0.0
  %4734 = vmatprep.subr.mxu0 0.0
  %4735 = vmatpush1.msra.mxu0 0.0
  %4736 = vmatprep.subr.mxu0 0.0
  %4737 = vmatpush1.msra.mxu0 0.0
  %4738 = vmatprep.subr.mxu0 0.0
  %4739 = vmatpush1.msra.mxu0 0.0
  %4740 = vmatprep.subr.mxu0 0.0
  %4741 = vmatpush1.msra.mxu0 0.0
  %4742 = vmatprep.subr.mxu0 0.0
  %4743 = vmatpush1.msra.mxu0 0.0
  %4744 = vmatprep.subr.mxu0 0.0
  %4745 = vmatpush1.msra.mxu0 0.0
  %4746 = vmatprep.subr.mxu0 0.0
  %4747 = vmatpush1.msra.mxu0 0.0
  %4748 = vmatprep.mubr.f32.mxu0 0.0
  %4749 = vmatmul.mubr.f32.gmra.mrb[0].mxu0 %v4679
  %v4750 = vpop.f32.mrb[0].mxu0
  %v4751 = vadd.f32 0.0, %v4750
  %v4752 = vpop.f32.mrb[0].mxu0
  %4753 = vmatprep.mubr.f32.mxu0 0.0
  %4754 = vmatmul.mubr.f32.gmra.mrb[0].mxu0 %v4682
  %v4755 = vpop.f32.mrb[0].mxu0
  %v4756 = vadd.f32 0.0, %v4755
  %v4757 = vpop.f32.mrb[0].mxu0
  %4758 = vdwg.mxu0
  %s4759 = scalar_lea.vmem %s37, 48
  %v4760 = vld [vmem:[%s4759] sm:$0xff]
  %v4761 = vld [vmem:[%s4759 + $0x8] sm:$0xff]
  %v4763 = vsel %vm417, %v4751, 0
  %v4766 = vsel %vm417, %v4756, 0
  %4768 = vmatprep.subr.mxu0 0.0
  %4769 = vmatpush1.msra.mxu0 %v4760
  %4770 = vmatprep.subr.mxu0 0.0
  %4771 = vmatpush1.msra.mxu0 %v4761
  %4772 = vmatprep.subr.mxu0 0.0
  %4773 = vmatpush1.msra.mxu0 0.0
  %4774 = vmatprep.subr.mxu0 0.0
  %4775 = vmatpush1.msra.mxu0 0.0
  %4776 = vmatprep.subr.mxu0 0.0
  %4777 = vmatpush1.msra.mxu0 0.0
  %4778 = vmatprep.subr.mxu0 0.0
  %4779 = vmatpush1.msra.mxu0 0.0
  %4780 = vmatprep.subr.mxu0 0.0
  %4781 = vmatpush1.msra.mxu0 0.0
  %4782 = vmatprep.subr.mxu0 0.0
  %4783 = vmatpush1.msra.mxu0 0.0
  %4784 = vmatprep.subr.mxu0 0.0
  %4785 = vmatpush1.msra.mxu0 0.0
  %4786 = vmatprep.subr.mxu0 0.0
  %4787 = vmatpush1.msra.mxu0 0.0
  %4788 = vmatprep.subr.mxu0 0.0
  %4789 = vmatpush1.msra.mxu0 0.0
  %4790 = vmatprep.subr.mxu0 0.0
  %4791 = vmatpush1.msra.mxu0 0.0
  %4792 = vmatprep.subr.mxu0 0.0
  %4793 = vmatpush1.msra.mxu0 0.0
  %4794 = vmatprep.subr.mxu0 0.0
  %4795 = vmatpush1.msra.mxu0 0.0
  %4796 = vmatprep.subr.mxu0 0.0
  %4797 = vmatpush1.msra.mxu0 0.0
  %4798 = vmatprep.subr.mxu0 0.0
  %4799 = vmatpush1.msra.mxu0 0.0
  %4800 = vmatprep.subr.mxu0 0.0
  %4801 = vmatpush1.msra.mxu0 0.0
  %4802 = vmatprep.subr.mxu0 0.0
  %4803 = vmatpush1.msra.mxu0 0.0
  %4804 = vmatprep.subr.mxu0 0.0
  %4805 = vmatpush1.msra.mxu0 0.0
  %4806 = vmatprep.subr.mxu0 0.0
  %4807 = vmatpush1.msra.mxu0 0.0
  %4808 = vmatprep.subr.mxu0 0.0
  %4809 = vmatpush1.msra.mxu0 0.0
  %4810 = vmatprep.subr.mxu0 0.0
  %4811 = vmatpush1.msra.mxu0 0.0
  %4812 = vmatprep.subr.mxu0 0.0
  %4813 = vmatpush1.msra.mxu0 0.0
  %4814 = vmatprep.subr.mxu0 0.0
  %4815 = vmatpush1.msra.mxu0 0.0
  %4816 = vmatprep.subr.mxu0 0.0
  %4817 = vmatpush1.msra.mxu0 0.0
  %4818 = vmatprep.subr.mxu0 0.0
  %4819 = vmatpush1.msra.mxu0 0.0
  %4820 = vmatprep.subr.mxu0 0.0
  %4821 = vmatpush1.msra.mxu0 0.0
  %4822 = vmatprep.subr.mxu0 0.0
  %4823 = vmatpush1.msra.mxu0 0.0
  %4824 = vmatprep.subr.mxu0 0.0
  %4825 = vmatpush1.msra.mxu0 0.0
  %4826 = vmatprep.subr.mxu0 0.0
  %4827 = vmatpush1.msra.mxu0 0.0
  %4828 = vmatprep.subr.mxu0 0.0
  %4829 = vmatpush1.msra.mxu0 0.0
  %4830 = vmatprep.subr.mxu0 0.0
  %4831 = vmatpush1.msra.mxu0 0.0
  %4832 = vmatprep.mubr.f32.mxu0 0.0
  %4833 = vmatmul.mubr.f32.gmra.mrb[0].mxu0 %v4763
  %v4834 = vpop.f32.mrb[0].mxu0
  %v4835 = vadd.f32 0.0, %v4834
  %v4836 = vpop.f32.mrb[0].mxu0
  %4837 = vmatprep.mubr.f32.mxu0 0.0
  %4838 = vmatmul.mubr.f32.gmra.mrb[0].mxu0 %v4766
  %v4839 = vpop.f32.mrb[0].mxu0
  %v4840 = vadd.f32 0.0, %v4839
  %v4841 = vpop.f32.mrb[0].mxu0
  %4842 = vdwg.mxu0
  %v4843 = vadd.f32 %v4237, %v4835
  %v4844 = vadd.f32 %v4238, %v4840
  %v4845 = vld [vmem:[%s39] sm:$0x1]
  %v4847 = vlaneseq
  %v4848 = vshrl.u32 %v4847, 7
  %v4849 = vsub.s32 0, %v4848
  %v4850 = vrot.slane %v4845, %v4849
  %v4852 = vadd.f32 %v4843, %v4850
  %v4853 = vadd.f32 %v4844, %v4850
  %v4854 = vadd.f32 %v2405, %v4852
  %v4855 = vadd.f32 %v2406, %v4853
  %v4856 = vld [vmem:[%s45] sm:$0x1]
  %v4857 = vld [vmem:[%s47] sm:$0x1]
  %v4858 = vsel %vm153, %v4854, 0.0
  %4859 = vadd.xlane.f32.xlu0 %v4858
  %v4860 = vpop.xlane.xlu0 %4859
  %v4861 = vsel %vm153, %v4855, 0.0
  %4862 = vadd.xlane.f32.xlu0 %v4861
  %v4863 = vpop.xlane.xlu0 %4862
  %v4864 = vmul.f32 %v4860, %v2370
  %v4865 = vmul.f32 %v4863, %v2370
  %v4866 = vsub.f32 %v4854, %v4864
  %v4867 = vsub.f32 %v4855, %v4865
  %v4868 = vmul.f32 %v4866, %v4866
  %v4869 = vmul.f32 %v4867, %v4867
  %v4870 = vsel %vm153, %v4868, 0.0
  %4871 = vadd.xlane.f32.xlu0 %v4870
  %v4872 = vpop.xlane.xlu0 %4871
  %v4873 = vsel %vm153, %v4869, 0.0
  %4874 = vadd.xlane.f32.xlu0 %v4873
  %v4875 = vpop.xlane.xlu0 %4874
  %v4876 = vmul.f32 %v4872, %v2370
  %v4877 = vmul.f32 %v4875, %v2370
  %v4878 = vadd.f32 %v4876, 1e-05
  %v4879 = vadd.f32 %v4877, 1e-05
  %v4880 = vrsqrt.pop %v4878
  %v4881 = vrsqrt.pop %v4879
  %v4882 = vmul.f32 %v4866, %v4880
  %v4883 = vmul.f32 %v4867, %v4881
  %v4885 = vlaneseq
  %v4886 = vshrl.u32 %v4885, 7
  %v4887 = vsub.s32 0, %v4886
  %v4888 = vrot.slane %v4856, %v4887
  %v4890 = vmul.f32 %v4882, %v4888
  %v4891 = vmul.f32 %v4883, %v4888
  %v4893 = vlaneseq
  %v4894 = vshrl.u32 %v4893, 7
  %v4895 = vsub.s32 0, %v4894
  %v4896 = vrot.slane %v4857, %v4895
  %v4898 = vadd.f32 %v4890, %v4896
  %v4899 = vadd.f32 %v4891, %v4896
  %v4900 = vld [vmem:[%s53] sm:$0xff]
  %v4901 = vld [vmem:[%s53 + $0x8] sm:$0xff]
  %v4902 = vld [vmem:[%s53 + $0x10] sm:$0xff]
  %v4903 = vld [vmem:[%s53 + $0x18] sm:$0xff]
  %v4904 = vld [vmem:[%s53 + $0x20] sm:$0xff]
  %v4905 = vld [vmem:[%s53 + $0x28] sm:$0xff]
  %v4906 = vld [vmem:[%s53 + $0x30] sm:$0xff]
  %v4907 = vld [vmem:[%s53 + $0x38] sm:$0xff]
  %v4908 = vld [vmem:[%s53 + $0x40] sm:$0xff]
  %v4909 = vld [vmem:[%s53 + $0x48] sm:$0xff]
  %v4910 = vld [vmem:[%s53 + $0x50] sm:$0xff]
  %v4911 = vld [vmem:[%s53 + $0x58] sm:$0xff]
  %v4912 = vld [vmem:[%s53 + $0x60] sm:$0xff]
  %v4913 = vld [vmem:[%s53 + $0x68] sm:$0xff]
  %v4914 = vld [vmem:[%s53 + $0x70] sm:$0xff]
  %v4915 = vld [vmem:[%s53 + $0x78] sm:$0xff]
  %v4916 = vld [vmem:[%s55] sm:$0x3]
  %v4918 = vlaneseq
  %v4919 = vshrl.u32 %v4918, 7
  %v4920 = vsub.s32 0, %v4919
  %v4921 = vrot.slane %v4916, %v4920
  %v4922 = vlaneseq
  %v4923 = vshrl.u32 %v4922, 7
  %v4924 = vsub.s32 1, %v4923
  %v4925 = vrot.slane %v4916, %v4924
  %v4929 = vsel %vm153, %v4898, 0
  %v4932 = vsel %vm153, %v4899, 0
  %4934 = vmatprep.subr.mxu0 %v4901
  %4935 = vmatpush1.msra.mxu0 %v4900
  %4936 = vmatprep.subr.mxu0 %v4903
  %4937 = vmatpush1.msra.mxu0 %v4902
  %4938 = vmatprep.subr.mxu0 %v4905
  %4939 = vmatpush1.msra.mxu0 %v4904
  %4940 = vmatprep.subr.mxu0 %v4907
  %4941 = vmatpush1.msra.mxu0 %v4906
  %4942 = vmatprep.subr.mxu0 %v4909
  %4943 = vmatpush1.msra.mxu0 %v4908
  %4944 = vmatprep.subr.mxu0 %v4911
  %4945 = vmatpush1.msra.mxu0 %v4910
  %4946 = vmatprep.subr.mxu0 %v4913
  %4947 = vmatpush1.msra.mxu0 %v4912
  %4948 = vmatprep.subr.mxu0 %v4915
  %4949 = vmatpush1.msra.mxu0 %v4914
  %4950 = vmatprep.subr.mxu0 0.0
  %4951 = vmatpush1.msra.mxu0 0.0
  %4952 = vmatprep.subr.mxu0 0.0
  %4953 = vmatpush1.msra.mxu0 0.0
  %4954 = vmatprep.subr.mxu0 0.0
  %4955 = vmatpush1.msra.mxu0 0.0
  %4956 = vmatprep.subr.mxu0 0.0
  %4957 = vmatpush1.msra.mxu0 0.0
  %4958 = vmatprep.subr.mxu0 0.0
  %4959 = vmatpush1.msra.mxu0 0.0
  %4960 = vmatprep.subr.mxu0 0.0
  %4961 = vmatpush1.msra.mxu0 0.0
  %4962 = vmatprep.subr.mxu0 0.0
  %4963 = vmatpush1.msra.mxu0 0.0
  %4964 = vmatprep.subr.mxu0 0.0
  %4965 = vmatpush1.msra.mxu0 0.0
  %4966 = vmatprep.subr.mxu0 0.0
  %4967 = vmatpush1.msra.mxu0 0.0
  %4968 = vmatprep.subr.mxu0 0.0
  %4969 = vmatpush1.msra.mxu0 0.0
  %4970 = vmatprep.subr.mxu0 0.0
  %4971 = vmatpush1.msra.mxu0 0.0
  %4972 = vmatprep.subr.mxu0 0.0
  %4973 = vmatpush1.msra.mxu0 0.0
  %4974 = vmatprep.subr.mxu0 0.0
  %4975 = vmatpush1.msra.mxu0 0.0
  %4976 = vmatprep.subr.mxu0 0.0
  %4977 = vmatpush1.msra.mxu0 0.0
  %4978 = vmatprep.subr.mxu0 0.0
  %4979 = vmatpush1.msra.mxu0 0.0
  %4980 = vmatprep.subr.mxu0 0.0
  %4981 = vmatpush1.msra.mxu0 0.0
  %4982 = vmatprep.subr.mxu0 0.0
  %4983 = vmatpush1.msra.mxu0 0.0
  %4984 = vmatprep.subr.mxu0 0.0
  %4985 = vmatpush1.msra.mxu0 0.0
  %4986 = vmatprep.subr.mxu0 0.0
  %4987 = vmatpush1.msra.mxu0 0.0
  %4988 = vmatprep.subr.mxu0 0.0
  %4989 = vmatpush1.msra.mxu0 0.0
  %4990 = vmatprep.subr.mxu0 0.0
  %4991 = vmatpush1.msra.mxu0 0.0
  %4992 = vmatprep.subr.mxu0 0.0
  %4993 = vmatpush1.msra.mxu0 0.0
  %4994 = vmatprep.subr.mxu0 0.0
  %4995 = vmatpush1.msra.mxu0 0.0
  %4996 = vmatprep.subr.mxu0 0.0
  %4997 = vmatpush1.msra.mxu0 0.0
  %4998 = vmatprep.mubr.f32.mxu0 0.0
  %4999 = vmatmul.mubr.f32.gmra.mrb[0].mxu0 %v4929
  %v5000 = vpop.f32.mrb[0].mxu0
  %v5001 = vadd.f32 %v4921, %v5000
  %v5002 = vpop.f32.mrb[0].mxu0
  %v5003 = vadd.f32 %v4925, %v5002
  %5004 = vmatprep.mubr.f32.mxu0 0.0
  %5005 = vmatmul.mubr.f32.gmra.mrb[0].mxu0 %v4932
  %v5006 = vpop.f32.mrb[0].mxu0
  %v5007 = vadd.f32 %v4921, %v5006
  %v5008 = vpop.f32.mrb[0].mxu0
  %v5009 = vadd.f32 %v4925, %v5008
  %5010 = vdwg.mxu0
  %v5011 = vmax.f32 %v5001, 0.0
  %v5012 = vmax.f32 %v5003, 0.0
  %v5013 = vmax.f32 %v5007, 0.0
  %v5014 = vmax.f32 %v5009, 0.0
  %v5015 = vld [vmem:[%s57] sm:$0xff]
  %v5016 = vld [vmem:[%s57 + $0x8] sm:$0xff]
  %v5017 = vld [vmem:[%s57 + $0x10] sm:$0xff]
  %v5018 = vld [vmem:[%s57 + $0x18] sm:$0xff]
  %v5019 = vld [vmem:[%s57 + $0x20] sm:$0xff]
  %v5020 = vld [vmem:[%s57 + $0x28] sm:$0xff]
  %v5021 = vld [vmem:[%s57 + $0x30] sm:$0xff]
  %v5022 = vld [vmem:[%s57 + $0x38] sm:$0xff]
  %v5023 = vld [vmem:[%s57 + $0x40] sm:$0xff]
  %v5024 = vld [vmem:[%s57 + $0x48] sm:$0xff]
  %v5025 = vld [vmem:[%s57 + $0x50] sm:$0xff]
  %v5026 = vld [vmem:[%s57 + $0x58] sm:$0xff]
  %v5027 = vld [vmem:[%s57 + $0x60] sm:$0xff]
  %v5028 = vld [vmem:[%s57 + $0x68] sm:$0xff]
  %v5029 = vld [vmem:[%s57 + $0x70] sm:$0xff]
  %v5030 = vld [vmem:[%s57 + $0x78] sm:$0xff]
  %v5031 = vld [vmem:[%s57 + $0x80] sm:$0xff]
  %v5032 = vld [vmem:[%s57 + $0x88] sm:$0xff]
  %v5033 = vld [vmem:[%s57 + $0x90] sm:$0xff]
  %v5034 = vld [vmem:[%s57 + $0x98] sm:$0xff]
  %v5035 = vld [vmem:[%s57 + $0xa0] sm:$0xff]
  %v5036 = vld [vmem:[%s57 + $0xa8] sm:$0xff]
  %v5037 = vld [vmem:[%s57 + $0xb0] sm:$0xff]
  %v5038 = vld [vmem:[%s57 + $0xb8] sm:$0xff]
  %v5039 = vld [vmem:[%s57 + $0xc0] sm:$0xff]
  %v5040 = vld [vmem:[%s57 + $0xc8] sm:$0xff]
  %v5041 = vld [vmem:[%s57 + $0xd0] sm:$0xff]
  %v5042 = vld [vmem:[%s57 + $0xd8] sm:$0xff]
  %v5043 = vld [vmem:[%s57 + $0xe0] sm:$0xff]
  %v5044 = vld [vmem:[%s57 + $0xe8] sm:$0xff]
  %v5045 = vld [vmem:[%s57 + $0xf0] sm:$0xff]
  %v5046 = vld [vmem:[%s57 + $0xf8] sm:$0xff]
  %v5047 = vld [vmem:[%s59] sm:$0x1]
  %v5049 = vlaneseq
  %v5050 = vshrl.u32 %v5049, 7
  %v5051 = vsub.s32 0, %v5050
  %v5052 = vrot.slane %v5047, %v5051
  %5054 = vmatprep.subr.mxu0 0.0
  %5055 = vmatpush1.msra.mxu0 %v5015
  %5056 = vmatprep.subr.mxu0 0.0
  %5057 = vmatpush1.msra.mxu0 %v5016
  %5058 = vmatprep.subr.mxu0 0.0
  %5059 = vmatpush1.msra.mxu0 %v5017
  %5060 = vmatprep.subr.mxu0 0.0
  %5061 = vmatpush1.msra.mxu0 %v5018
  %5062 = vmatprep.subr.mxu0 0.0
  %5063 = vmatpush1.msra.mxu0 %v5019
  %5064 = vmatprep.subr.mxu0 0.0
  %5065 = vmatpush1.msra.mxu0 %v5020
  %5066 = vmatprep.subr.mxu0 0.0
  %5067 = vmatpush1.msra.mxu0 %v5021
  %5068 = vmatprep.subr.mxu0 0.0
  %5069 = vmatpush1.msra.mxu0 %v5022
  %5070 = vmatprep.subr.mxu0 0.0
  %5071 = vmatpush1.msra.mxu0 %v5023
  %5072 = vmatprep.subr.mxu0 0.0
  %5073 = vmatpush1.msra.mxu0 %v5024
  %5074 = vmatprep.subr.mxu0 0.0
  %5075 = vmatpush1.msra.mxu0 %v5025
  %5076 = vmatprep.subr.mxu0 0.0
  %5077 = vmatpush1.msra.mxu0 %v5026
  %5078 = vmatprep.subr.mxu0 0.0
  %5079 = vmatpush1.msra.mxu0 %v5027
  %5080 = vmatprep.subr.mxu0 0.0
  %5081 = vmatpush1.msra.mxu0 %v5028
  %5082 = vmatprep.subr.mxu0 0.0
  %5083 = vmatpush1.msra.mxu0 %v5029
  %5084 = vmatprep.subr.mxu0 0.0
  %5085 = vmatpush1.msra.mxu0 %v5030
  %5086 = vmatprep.subr.mxu0 0.0
  %5087 = vmatpush1.msra.mxu0 %v5031
  %5088 = vmatprep.subr.mxu0 0.0
  %5089 = vmatpush1.msra.mxu0 %v5032
  %5090 = vmatprep.subr.mxu0 0.0
  %5091 = vmatpush1.msra.mxu0 %v5033
  %5092 = vmatprep.subr.mxu0 0.0
  %5093 = vmatpush1.msra.mxu0 %v5034
  %5094 = vmatprep.subr.mxu0 0.0
  %5095 = vmatpush1.msra.mxu0 %v5035
  %5096 = vmatprep.subr.mxu0 0.0
  %5097 = vmatpush1.msra.mxu0 %v5036
  %5098 = vmatprep.subr.mxu0 0.0
  %5099 = vmatpush1.msra.mxu0 %v5037
  %5100 = vmatprep.subr.mxu0 0.0
  %5101 = vmatpush1.msra.mxu0 %v5038
  %5102 = vmatprep.subr.mxu0 0.0
  %5103 = vmatpush1.msra.mxu0 %v5039
  %5104 = vmatprep.subr.mxu0 0.0
  %5105 = vmatpush1.msra.mxu0 %v5040
  %5106 = vmatprep.subr.mxu0 0.0
  %5107 = vmatpush1.msra.mxu0 %v5041
  %5108 = vmatprep.subr.mxu0 0.0
  %5109 = vmatpush1.msra.mxu0 %v5042
  %5110 = vmatprep.subr.mxu0 0.0
  %5111 = vmatpush1.msra.mxu0 %v5043
  %5112 = vmatprep.subr.mxu0 0.0
  %5113 = vmatpush1.msra.mxu0 %v5044
  %5114 = vmatprep.subr.mxu0 0.0
  %5115 = vmatpush1.msra.mxu0 %v5045
  %5116 = vmatprep.subr.mxu0 0.0
  %5117 = vmatpush1.msra.mxu0 %v5046
  %5118 = vmatprep.mubr.f32.mxu0 %v5012
  %5119 = vmatmul.mubr.f32.gmra.mrb[0].mxu0 %v5011
  %v5120 = vpop.f32.mrb[0].mxu0
  %v5121 = vadd.f32 %v5052, %v5120
  %v5122 = vpop.f32.mrb[0].mxu0
  %5123 = vmatprep.mubr.f32.mxu0 %v5014
  %5124 = vmatmul.mubr.f32.gmra.mrb[0].mxu0 %v5013
  %v5125 = vpop.f32.mrb[0].mxu0
  %v5126 = vadd.f32 %v5052, %v5125
  %v5127 = vpop.f32.mrb[0].mxu0
  %5128 = vdwg.mxu0
  %v5129 = vadd.f32 %v4898, %v5121
  %v5130 = vadd.f32 %v4899, %v5126
  %v5131 = vld [vmem:[%s49] sm:$0x1]
  %v5132 = vld [vmem:[%s51] sm:$0x1]
  %v5133 = vsel %vm153, %v5129, 0.0
  %5134 = vadd.xlane.f32.xlu0 %v5133
  %v5135 = vpop.xlane.xlu0 %5134
  %v5136 = vsel %vm153, %v5130, 0.0
  %5137 = vadd.xlane.f32.xlu0 %v5136
  %v5138 = vpop.xlane.xlu0 %5137
  %v5139 = vmul.f32 %v5135, %v2370
  %v5140 = vmul.f32 %v5138, %v2370
  %v5141 = vsub.f32 %v5129, %v5139
  %v5142 = vsub.f32 %v5130, %v5140
  %v5143 = vmul.f32 %v5141, %v5141
  %v5144 = vmul.f32 %v5142, %v5142
  %v5145 = vsel %vm153, %v5143, 0.0
  %5146 = vadd.xlane.f32.xlu0 %v5145
  %v5147 = vpop.xlane.xlu0 %5146
  %v5148 = vsel %vm153, %v5144, 0.0
  %5149 = vadd.xlane.f32.xlu0 %v5148
  %v5150 = vpop.xlane.xlu0 %5149
  %v5151 = vmul.f32 %v5147, %v2370
  %v5152 = vmul.f32 %v5150, %v2370
  %v5153 = vadd.f32 %v5151, 1e-05
  %v5154 = vadd.f32 %v5152, 1e-05
  %v5155 = vrsqrt.pop %v5153
  %v5156 = vrsqrt.pop %v5154
  %v5157 = vmul.f32 %v5141, %v5155
  %v5158 = vmul.f32 %v5142, %v5156
  %v5160 = vlaneseq
  %v5161 = vshrl.u32 %v5160, 7
  %v5162 = vsub.s32 0, %v5161
  %v5163 = vrot.slane %v5131, %v5162
  %v5165 = vmul.f32 %v5157, %v5163
  %v5166 = vmul.f32 %v5158, %v5163
  %v5168 = vlaneseq
  %v5169 = vshrl.u32 %v5168, 7
  %v5170 = vsub.s32 0, %v5169
  %v5171 = vrot.slane %v5132, %v5170
  %v5173 = vadd.f32 %v5165, %v5171
  %v5174 = vadd.f32 %v5166, %v5171
  %s5175 = scalar_lea.vmem %s9, 256
  %v5176 = vld [vmem:[%s5175] sm:$0xff]
  %v5177 = vld [vmem:[%s5175 + $0x8] sm:$0xff]
  %v5178 = vld [vmem:[%s5175 + $0x10] sm:$0xff]
  %v5179 = vld [vmem:[%s5175 + $0x18] sm:$0xff]
  %v5180 = vld [vmem:[%s5175 + $0x20] sm:$0xff]
  %v5181 = vld [vmem:[%s5175 + $0x28] sm:$0xff]
  %v5182 = vld [vmem:[%s5175 + $0x30] sm:$0xff]
  %v5183 = vld [vmem:[%s5175 + $0x38] sm:$0xff]
  %s5184 = scalar_lea.vmem %s15, 4
  %v5185 = vld [vmem:[%s5184] sm:$0x1]
  %v5187 = vlaneseq
  %v5188 = vshrl.u32 %v5187, 7
  %v5189 = vsub.s32 0, %v5188
  %v5190 = vrot.slane %v5185, %v5189
  %v5193 = vsel %vm153, %v5173, 0
  %v5196 = vsel %vm153, %v5174, 0
  %5198 = vmatprep.subr.mxu0 0.0
  %5199 = vmatpush1.msra.mxu0 %v5176
  %5200 = vmatprep.subr.mxu0 0.0
  %5201 = vmatpush1.msra.mxu0 %v5177
  %5202 = vmatprep.subr.mxu0 0.0
  %5203 = vmatpush1.msra.mxu0 %v5178
  %5204 = vmatprep.subr.mxu0 0.0
  %5205 = vmatpush1.msra.mxu0 %v5179
  %5206 = vmatprep.subr.mxu0 0.0
  %5207 = vmatpush1.msra.mxu0 %v5180
  %5208 = vmatprep.subr.mxu0 0.0
  %5209 = vmatpush1.msra.mxu0 %v5181
  %5210 = vmatprep.subr.mxu0 0.0
  %5211 = vmatpush1.msra.mxu0 %v5182
  %5212 = vmatprep.subr.mxu0 0.0
  %5213 = vmatpush1.msra.mxu0 %v5183
  %5214 = vmatprep.subr.mxu0 0.0
  %5215 = vmatpush1.msra.mxu0 0.0
  %5216 = vmatprep.subr.mxu0 0.0
  %5217 = vmatpush1.msra.mxu0 0.0
  %5218 = vmatprep.subr.mxu0 0.0
  %5219 = vmatpush1.msra.mxu0 0.0
  %5220 = vmatprep.subr.mxu0 0.0
  %5221 = vmatpush1.msra.mxu0 0.0
  %5222 = vmatprep.subr.mxu0 0.0
  %5223 = vmatpush1.msra.mxu0 0.0
  %5224 = vmatprep.subr.mxu0 0.0
  %5225 = vmatpush1.msra.mxu0 0.0
  %5226 = vmatprep.subr.mxu0 0.0
  %5227 = vmatpush1.msra.mxu0 0.0
  %5228 = vmatprep.subr.mxu0 0.0
  %5229 = vmatpush1.msra.mxu0 0.0
  %5230 = vmatprep.subr.mxu0 0.0
  %5231 = vmatpush1.msra.mxu0 0.0
  %5232 = vmatprep.subr.mxu0 0.0
  %5233 = vmatpush1.msra.mxu0 0.0
  %5234 = vmatprep.subr.mxu0 0.0
  %5235 = vmatpush1.msra.mxu0 0.0
  %5236 = vmatprep.subr.mxu0 0.0
  %5237 = vmatpush1.msra.mxu0 0.0
  %5238 = vmatprep.subr.mxu0 0.0
  %5239 = vmatpush1.msra.mxu0 0.0
  %5240 = vmatprep.subr.mxu0 0.0
  %5241 = vmatpush1.msra.mxu0 0.0
  %5242 = vmatprep.subr.mxu0 0.0
  %5243 = vmatpush1.msra.mxu0 0.0
  %5244 = vmatprep.subr.mxu0 0.0
  %5245 = vmatpush1.msra.mxu0 0.0
  %5246 = vmatprep.subr.mxu0 0.0
  %5247 = vmatpush1.msra.mxu0 0.0
  %5248 = vmatprep.subr.mxu0 0.0
  %5249 = vmatpush1.msra.mxu0 0.0
  %5250 = vmatprep.subr.mxu0 0.0
  %5251 = vmatpush1.msra.mxu0 0.0
  %5252 = vmatprep.subr.mxu0 0.0
  %5253 = vmatpush1.msra.mxu0 0.0
  %5254 = vmatprep.subr.mxu0 0.0
  %5255 = vmatpush1.msra.mxu0 0.0
  %5256 = vmatprep.subr.mxu0 0.0
  %5257 = vmatpush1.msra.mxu0 0.0
  %5258 = vmatprep.subr.mxu0 0.0
  %5259 = vmatpush1.msra.mxu0 0.0
  %5260 = vmatprep.subr.mxu0 0.0
  %5261 = vmatpush1.msra.mxu0 0.0
  %5262 = vmatprep.mubr.f32.mxu0 0.0
  %5263 = vmatmul.mubr.f32.gmra.mrb[0].mxu0 %v5193
  %v5264 = vpop.f32.mrb[0].mxu0
  %v5265 = vadd.f32 %v5190, %v5264
  %v5266 = vpop.f32.mrb[0].mxu0
  %5267 = vmatprep.mubr.f32.mxu0 0.0
  %5268 = vmatmul.mubr.f32.gmra.mrb[0].mxu0 %v5196
  %v5269 = vpop.f32.mrb[0].mxu0
  %v5270 = vadd.f32 %v5190, %v5269
  %v5271 = vpop.f32.mrb[0].mxu0
  %5272 = vdwg.mxu0
  %v5273 = vmul.f32 %v5265, 0.25
  %v5274 = vmul.f32 %v5270, 0.25
  %s5275 = scalar_lea.vmem %s11, 256
  %v5276 = vld [vmem:[%s5275] sm:$0xff]
  %v5277 = vld [vmem:[%s5275 + $0x8] sm:$0xff]
  %v5278 = vld [vmem:[%s5275 + $0x10] sm:$0xff]
  %v5279 = vld [vmem:[%s5275 + $0x18] sm:$0xff]
  %v5280 = vld [vmem:[%s5275 + $0x20] sm:$0xff]
  %v5281 = vld [vmem:[%s5275 + $0x28] sm:$0xff]
  %v5282 = vld [vmem:[%s5275 + $0x30] sm:$0xff]
  %v5283 = vld [vmem:[%s5275 + $0x38] sm:$0xff]
  %s5284 = scalar_lea.vmem %s17, 4
  %v5285 = vld [vmem:[%s5284] sm:$0x1]
  %v5287 = vlaneseq
  %v5288 = vshrl.u32 %v5287, 7
  %v5289 = vsub.s32 0, %v5288
  %v5290 = vrot.slane %v5285, %v5289
  %5292 = vmatprep.subr.mxu0 0.0
  %5293 = vmatpush1.msra.mxu0 %v5276
  %5294 = vmatprep.subr.mxu0 0.0
  %5295 = vmatpush1.msra.mxu0 %v5277
  %5296 = vmatprep.subr.mxu0 0.0
  %5297 = vmatpush1.msra.mxu0 %v5278
  %5298 = vmatprep.subr.mxu0 0.0
  %5299 = vmatpush1.msra.mxu0 %v5279
  %5300 = vmatprep.subr.mxu0 0.0
  %5301 = vmatpush1.msra.mxu0 %v5280
  %5302 = vmatprep.subr.mxu0 0.0
  %5303 = vmatpush1.msra.mxu0 %v5281
  %5304 = vmatprep.subr.mxu0 0.0
  %5305 = vmatpush1.msra.mxu0 %v5282
  %5306 = vmatprep.subr.mxu0 0.0
  %5307 = vmatpush1.msra.mxu0 %v5283
  %5308 = vmatprep.subr.mxu0 0.0
  %5309 = vmatpush1.msra.mxu0 0.0
  %5310 = vmatprep.subr.mxu0 0.0
  %5311 = vmatpush1.msra.mxu0 0.0
  %5312 = vmatprep.subr.mxu0 0.0
  %5313 = vmatpush1.msra.mxu0 0.0
  %5314 = vmatprep.subr.mxu0 0.0
  %5315 = vmatpush1.msra.mxu0 0.0
  %5316 = vmatprep.subr.mxu0 0.0
  %5317 = vmatpush1.msra.mxu0 0.0
  %5318 = vmatprep.subr.mxu0 0.0
  %5319 = vmatpush1.msra.mxu0 0.0
  %5320 = vmatprep.subr.mxu0 0.0
  %5321 = vmatpush1.msra.mxu0 0.0
  %5322 = vmatprep.subr.mxu0 0.0
  %5323 = vmatpush1.msra.mxu0 0.0
  %5324 = vmatprep.subr.mxu0 0.0
  %5325 = vmatpush1.msra.mxu0 0.0
  %5326 = vmatprep.subr.mxu0 0.0
  %5327 = vmatpush1.msra.mxu0 0.0
  %5328 = vmatprep.subr.mxu0 0.0
  %5329 = vmatpush1.msra.mxu0 0.0
  %5330 = vmatprep.subr.mxu0 0.0
  %5331 = vmatpush1.msra.mxu0 0.0
  %5332 = vmatprep.subr.mxu0 0.0
  %5333 = vmatpush1.msra.mxu0 0.0
  %5334 = vmatprep.subr.mxu0 0.0
  %5335 = vmatpush1.msra.mxu0 0.0
  %5336 = vmatprep.subr.mxu0 0.0
  %5337 = vmatpush1.msra.mxu0 0.0
  %5338 = vmatprep.subr.mxu0 0.0
  %5339 = vmatpush1.msra.mxu0 0.0
  %5340 = vmatprep.subr.mxu0 0.0
  %5341 = vmatpush1.msra.mxu0 0.0
  %5342 = vmatprep.subr.mxu0 0.0
  %5343 = vmatpush1.msra.mxu0 0.0
  %5344 = vmatprep.subr.mxu0 0.0
  %5345 = vmatpush1.msra.mxu0 0.0
  %5346 = vmatprep.subr.mxu0 0.0
  %5347 = vmatpush1.msra.mxu0 0.0
  %5348 = vmatprep.subr.mxu0 0.0
  %5349 = vmatpush1.msra.mxu0 0.0
  %5350 = vmatprep.subr.mxu0 0.0
  %5351 = vmatpush1.msra.mxu0 0.0
  %5352 = vmatprep.subr.mxu0 0.0
  %5353 = vmatpush1.msra.mxu0 0.0
  %5354 = vmatprep.subr.mxu0 0.0
  %5355 = vmatpush1.msra.mxu0 0.0
  %5356 = vmatprep.mubr.f32.mxu0 0.0
  %5357 = vmatmul.mubr.f32.gmra.mrb[0].mxu0 %v5193
  %v5358 = vpop.f32.mrb[0].mxu0
  %v5359 = vadd.f32 %v5290, %v5358
  %v5360 = vpop.f32.mrb[0].mxu0
  %5361 = vmatprep.mubr.f32.mxu0 0.0
  %5362 = vmatmul.mubr.f32.gmra.mrb[0].mxu0 %v5196
  %v5363 = vpop.f32.mrb[0].mxu0
  %v5364 = vadd.f32 %v5290, %v5363
  %v5365 = vpop.f32.mrb[0].mxu0
  %5366 = vdwg.mxu0
  %s5367 = scalar_lea.vmem %s13, 256
  %v5368 = vld [vmem:[%s5367] sm:$0xff]
  %v5369 = vld [vmem:[%s5367 + $0x8] sm:$0xff]
  %v5370 = vld [vmem:[%s5367 + $0x10] sm:$0xff]
  %v5371 = vld [vmem:[%s5367 + $0x18] sm:$0xff]
  %v5372 = vld [vmem:[%s5367 + $0x20] sm:$0xff]
  %v5373 = vld [vmem:[%s5367 + $0x28] sm:$0xff]
  %v5374 = vld [vmem:[%s5367 + $0x30] sm:$0xff]
  %v5375 = vld [vmem:[%s5367 + $0x38] sm:$0xff]
  %s5376 = scalar_lea.vmem %s19, 4
  %v5377 = vld [vmem:[%s5376] sm:$0x1]
  %v5379 = vlaneseq
  %v5380 = vshrl.u32 %v5379, 7
  %v5381 = vsub.s32 0, %v5380
  %v5382 = vrot.slane %v5377, %v5381
  %5384 = vmatprep.subr.mxu0 0.0
  %5385 = vmatpush1.msra.mxu0 %v5368
  %5386 = vmatprep.subr.mxu0 0.0
  %5387 = vmatpush1.msra.mxu0 %v5369
  %5388 = vmatprep.subr.mxu0 0.0
  %5389 = vmatpush1.msra.mxu0 %v5370
  %5390 = vmatprep.subr.mxu0 0.0
  %5391 = vmatpush1.msra.mxu0 %v5371
  %5392 = vmatprep.subr.mxu0 0.0
  %5393 = vmatpush1.msra.mxu0 %v5372
  %5394 = vmatprep.subr.mxu0 0.0
  %5395 = vmatpush1.msra.mxu0 %v5373
  %5396 = vmatprep.subr.mxu0 0.0
  %5397 = vmatpush1.msra.mxu0 %v5374
  %5398 = vmatprep.subr.mxu0 0.0
  %5399 = vmatpush1.msra.mxu0 %v5375
  %5400 = vmatprep.subr.mxu0 0.0
  %5401 = vmatpush1.msra.mxu0 0.0
  %5402 = vmatprep.subr.mxu0 0.0
  %5403 = vmatpush1.msra.mxu0 0.0
  %5404 = vmatprep.subr.mxu0 0.0
  %5405 = vmatpush1.msra.mxu0 0.0
  %5406 = vmatprep.subr.mxu0 0.0
  %5407 = vmatpush1.msra.mxu0 0.0
  %5408 = vmatprep.subr.mxu0 0.0
  %5409 = vmatpush1.msra.mxu0 0.0
  %5410 = vmatprep.subr.mxu0 0.0
  %5411 = vmatpush1.msra.mxu0 0.0
  %5412 = vmatprep.subr.mxu0 0.0
  %5413 = vmatpush1.msra.mxu0 0.0
  %5414 = vmatprep.subr.mxu0 0.0
  %5415 = vmatpush1.msra.mxu0 0.0
  %5416 = vmatprep.subr.mxu0 0.0
  %5417 = vmatpush1.msra.mxu0 0.0
  %5418 = vmatprep.subr.mxu0 0.0
  %5419 = vmatpush1.msra.mxu0 0.0
  %5420 = vmatprep.subr.mxu0 0.0
  %5421 = vmatpush1.msra.mxu0 0.0
  %5422 = vmatprep.subr.mxu0 0.0
  %5423 = vmatpush1.msra.mxu0 0.0
  %5424 = vmatprep.subr.mxu0 0.0
  %5425 = vmatpush1.msra.mxu0 0.0
  %5426 = vmatprep.subr.mxu0 0.0
  %5427 = vmatpush1.msra.mxu0 0.0
  %5428 = vmatprep.subr.mxu0 0.0
  %5429 = vmatpush1.msra.mxu0 0.0
  %5430 = vmatprep.subr.mxu0 0.0
  %5431 = vmatpush1.msra.mxu0 0.0
  %5432 = vmatprep.subr.mxu0 0.0
  %5433 = vmatpush1.msra.mxu0 0.0
  %5434 = vmatprep.subr.mxu0 0.0
  %5435 = vmatpush1.msra.mxu0 0.0
  %5436 = vmatprep.subr.mxu0 0.0
  %5437 = vmatpush1.msra.mxu0 0.0
  %5438 = vmatprep.subr.mxu0 0.0
  %5439 = vmatpush1.msra.mxu0 0.0
  %5440 = vmatprep.subr.mxu0 0.0
  %5441 = vmatpush1.msra.mxu0 0.0
  %5442 = vmatprep.subr.mxu0 0.0
  %5443 = vmatpush1.msra.mxu0 0.0
  %5444 = vmatprep.subr.mxu0 0.0
  %5445 = vmatpush1.msra.mxu0 0.0
  %5446 = vmatprep.subr.mxu0 0.0
  %5447 = vmatpush1.msra.mxu0 0.0
  %5448 = vmatprep.mubr.f32.mxu0 0.0
  %5449 = vmatmul.mubr.f32.gmra.mrb[0].mxu0 %v5193
  %v5450 = vpop.f32.mrb[0].mxu0
  %v5451 = vadd.f32 %v5382, %v5450
  %v5452 = vpop.f32.mrb[0].mxu0
  %5453 = vmatprep.mubr.f32.mxu0 0.0
  %5454 = vmatmul.mubr.f32.gmra.mrb[0].mxu0 %v5196
  %v5455 = vpop.f32.mrb[0].mxu0
  %v5456 = vadd.f32 %v5382, %v5455
  %v5457 = vpop.f32.mrb[0].mxu0
  %5458 = vdwg.mxu0
  %v5460 = vsel %vm417, %v5273, 0
  %v5463 = vsel %vm417, %v5274, 0
  %v5466 = vsel %vm417, %v5359, 0
  %v5469 = vsel %vm417, %v5364, 0
  %5471 = vmatprep.subr.mxu0 0.0
  %5472 = vmatpush1.xpose.msra.mxu0 %v5466
  %5473 = vmatprep.subr.mxu0 0.0
  %5474 = vmatpush1.xpose.msra.mxu0 %v5469
  %5475 = vmatprep.subr.mxu0 0.0
  %5476 = vmatpush1.xpose.msra.mxu0 0.0
  %5477 = vmatprep.subr.mxu0 0.0
  %5478 = vmatpush1.xpose.msra.mxu0 0.0
  %5479 = vmatprep.subr.mxu0 0.0
  %5480 = vmatpush1.xpose.msra.mxu0 0.0
  %5481 = vmatprep.subr.mxu0 0.0
  %5482 = vmatpush1.xpose.msra.mxu0 0.0
  %5483 = vmatprep.subr.mxu0 0.0
  %5484 = vmatpush1.xpose.msra.mxu0 0.0
  %5485 = vmatprep.subr.mxu0 0.0
  %5486 = vmatpush1.xpose.msra.mxu0 0.0
  %5487 = vmatprep.subr.mxu0 0.0
  %5488 = vmatpush1.xpose.msra.mxu0 0.0
  %5489 = vmatprep.subr.mxu0 0.0
  %5490 = vmatpush1.xpose.msra.mxu0 0.0
  %5491 = vmatprep.subr.mxu0 0.0
  %5492 = vmatpush1.xpose.msra.mxu0 0.0
  %5493 = vmatprep.subr.mxu0 0.0
  %5494 = vmatpush1.xpose.msra.mxu0 0.0
  %5495 = vmatprep.subr.mxu0 0.0
  %5496 = vmatpush1.xpose.msra.mxu0 0.0
  %5497 = vmatprep.subr.mxu0 0.0
  %5498 = vmatpush1.xpose.msra.mxu0 0.0
  %5499 = vmatprep.subr.mxu0 0.0
  %5500 = vmatpush1.xpose.msra.mxu0 0.0
  %5501 = vmatprep.subr.mxu0 0.0
  %5502 = vmatpush1.xpose.msra.mxu0 0.0
  %5503 = vmatprep.subr.mxu0 0.0
  %5504 = vmatpush1.xpose.msra.mxu0 0.0
  %5505 = vmatprep.subr.mxu0 0.0
  %5506 = vmatpush1.xpose.msra.mxu0 0.0
  %5507 = vmatprep.subr.mxu0 0.0
  %5508 = vmatpush1.xpose.msra.mxu0 0.0
  %5509 = vmatprep.subr.mxu0 0.0
  %5510 = vmatpush1.xpose.msra.mxu0 0.0
  %5511 = vmatprep.subr.mxu0 0.0
  %5512 = vmatpush1.xpose.msra.mxu0 0.0
  %5513 = vmatprep.subr.mxu0 0.0
  %5514 = vmatpush1.xpose.msra.mxu0 0.0
  %5515 = vmatprep.subr.mxu0 0.0
  %5516 = vmatpush1.xpose.msra.mxu0 0.0
  %5517 = vmatprep.subr.mxu0 0.0
  %5518 = vmatpush1.xpose.msra.mxu0 0.0
  %5519 = vmatprep.subr.mxu0 0.0
  %5520 = vmatpush1.xpose.msra.mxu0 0.0
  %5521 = vmatprep.subr.mxu0 0.0
  %5522 = vmatpush1.xpose.msra.mxu0 0.0
  %5523 = vmatprep.subr.mxu0 0.0
  %5524 = vmatpush1.xpose.msra.mxu0 0.0
  %5525 = vmatprep.subr.mxu0 0.0
  %5526 = vmatpush1.xpose.msra.mxu0 0.0
  %5527 = vmatprep.subr.mxu0 0.0
  %5528 = vmatpush1.xpose.msra.mxu0 0.0
  %5529 = vmatprep.subr.mxu0 0.0
  %5530 = vmatpush1.xpose.msra.mxu0 0.0
  %5531 = vmatprep.subr.mxu0 0.0
  %5532 = vmatpush1.xpose.msra.mxu0 0.0
  %5533 = vmatprep.subr.mxu0 0.0
  %5534 = vmatpush1.xpose.msra.mxu0 0.0
  %5535 = vmatprep.mubr.f32.mxu0 0.0
  %5536 = vmatmul.mubr.f32.gmra.mrb[0].mxu0 %v5460
  %v5537 = vpop.f32.mrb[0].mxu0
  %v5538 = vadd.f32 %v134, %v5537
  %v5539 = vpop.f32.mrb[0].mxu0
  %5540 = vmatprep.mubr.f32.mxu0 0.0
  %5541 = vmatmul.mubr.f32.gmra.mrb[0].mxu0 %v5463
  %v5542 = vpop.f32.mrb[0].mxu0
  %v5543 = vadd.f32 %v135, %v5542
  %v5544 = vpop.f32.mrb[0].mxu0
  %5545 = vdwg.mxu0
  %v5546 = vsel %vm417, %v5538, -inf
  %5547 = vmax.xlane.f32.xlu0 %v5546
  %v5548 = vpop.xlane.xlu0 %5547
  %v5549 = vsel %vm417, %v5543, -inf
  %5550 = vmax.xlane.f32.xlu0 %v5549
  %v5551 = vpop.xlane.xlu0 %5550
  %v5552 = vsub.f32 %v5538, %v5548
  %v5553 = vsub.f32 %v5543, %v5551
  %v5554 = vmul.f32 %v5552, 1.442695
  %v5555 = vpow.pop %v5554
  %v5556 = vmul.f32 %v5553, 1.442695
  %v5557 = vpow.pop %v5556
  %v5558 = vsel %vm417, %v5555, 0.0
  %5559 = vadd.xlane.f32.xlu0 %v5558
  %v5560 = vpop.xlane.xlu0 %5559
  %v5561 = vsel %vm417, %v5557, 0.0
  %5562 = vadd.xlane.f32.xlu0 %v5561
  %v5563 = vpop.xlane.xlu0 %5562
  %v5564 = vrcp.pop %v5560
  %v5565 = vrcp.pop %v5563
  %v5566 = vmul.f32 %v5555, %v5564
  %v5567 = vmul.f32 %v5557, %v5565
  %v5569 = vsel %vm417, %v5566, 0
  %v5572 = vsel %vm417, %v5567, 0
  %5574 = vmatprep.subr.mxu0 0.0
  %5575 = vmatpush1.msra.mxu0 %v5451
  %5576 = vmatprep.subr.mxu0 0.0
  %5577 = vmatpush1.msra.mxu0 %v5456
  %5578 = vmatprep.subr.mxu0 0.0
  %5579 = vmatpush1.msra.mxu0 0.0
  %5580 = vmatprep.subr.mxu0 0.0
  %5581 = vmatpush1.msra.mxu0 0.0
  %5582 = vmatprep.subr.mxu0 0.0
  %5583 = vmatpush1.msra.mxu0 0.0
  %5584 = vmatprep.subr.mxu0 0.0
  %5585 = vmatpush1.msra.mxu0 0.0
  %5586 = vmatprep.subr.mxu0 0.0
  %5587 = vmatpush1.msra.mxu0 0.0
  %5588 = vmatprep.subr.mxu0 0.0
  %5589 = vmatpush1.msra.mxu0 0.0
  %5590 = vmatprep.subr.mxu0 0.0
  %5591 = vmatpush1.msra.mxu0 0.0
  %5592 = vmatprep.subr.mxu0 0.0
  %5593 = vmatpush1.msra.mxu0 0.0
  %5594 = vmatprep.subr.mxu0 0.0
  %5595 = vmatpush1.msra.mxu0 0.0
  %5596 = vmatprep.subr.mxu0 0.0
  %5597 = vmatpush1.msra.mxu0 0.0
  %5598 = vmatprep.subr.mxu0 0.0
  %5599 = vmatpush1.msra.mxu0 0.0
  %5600 = vmatprep.subr.mxu0 0.0
  %5601 = vmatpush1.msra.mxu0 0.0
  %5602 = vmatprep.subr.mxu0 0.0
  %5603 = vmatpush1.msra.mxu0 0.0
  %5604 = vmatprep.subr.mxu0 0.0
  %5605 = vmatpush1.msra.mxu0 0.0
  %5606 = vmatprep.subr.mxu0 0.0
  %5607 = vmatpush1.msra.mxu0 0.0
  %5608 = vmatprep.subr.mxu0 0.0
  %5609 = vmatpush1.msra.mxu0 0.0
  %5610 = vmatprep.subr.mxu0 0.0
  %5611 = vmatpush1.msra.mxu0 0.0
  %5612 = vmatprep.subr.mxu0 0.0
  %5613 = vmatpush1.msra.mxu0 0.0
  %5614 = vmatprep.subr.mxu0 0.0
  %5615 = vmatpush1.msra.mxu0 0.0
  %5616 = vmatprep.subr.mxu0 0.0
  %5617 = vmatpush1.msra.mxu0 0.0
  %5618 = vmatprep.subr.mxu0 0.0
  %5619 = vmatpush1.msra.mxu0 0.0
  %5620 = vmatprep.subr.mxu0 0.0
  %5621 = vmatpush1.msra.mxu0 0.0
  %5622 = vmatprep.subr.mxu0 0.0
  %5623 = vmatpush1.msra.mxu0 0.0
  %5624 = vmatprep.subr.mxu0 0.0
  %5625 = vmatpush1.msra.mxu0 0.0
  %5626 = vmatprep.subr.mxu0 0.0
  %5627 = vmatpush1.msra.mxu0 0.0
  %5628 = vmatprep.subr.mxu0 0.0
  %5629 = vmatpush1.msra.mxu0 0.0
  %5630 = vmatprep.subr.mxu0 0.0
  %5631 = vmatpush1.msra.mxu0 0.0
  %5632 = vmatprep.subr.mxu0 0.0
  %5633 = vmatpush1.msra.mxu0 0.0
  %5634 = vmatprep.subr.mxu0 0.0
  %5635 = vmatpush1.msra.mxu0 0.0
  %5636 = vmatprep.subr.mxu0 0.0
  %5637 = vmatpush1.msra.mxu0 0.0
  %5638 = vmatprep.mubr.f32.mxu0 0.0
  %5639 = vmatmul.mubr.f32.gmra.mrb[0].mxu0 %v5569
  %v5640 = vpop.f32.mrb[0].mxu0
  %v5641 = vadd.f32 0.0, %v5640
  %v5642 = vpop.f32.mrb[0].mxu0
  %5643 = vmatprep.mubr.f32.mxu0 0.0
  %5644 = vmatmul.mubr.f32.gmra.mrb[0].mxu0 %v5572
  %v5645 = vpop.f32.mrb[0].mxu0
  %v5646 = vadd.f32 0.0, %v5645
  %v5647 = vpop.f32.mrb[0].mxu0
  %5648 = vdwg.mxu0
  %s5649 = scalar_lea.vmem %s21, 64
  %v5650 = vld [vmem:[%s5649] sm:$0xff]
  %v5651 = vld [vmem:[%s5649 + $0x8] sm:$0xff]
  %s5652 = scalar_lea.vmem %s9, 320
  %v5653 = vld [vmem:[%s5652] sm:$0xff]
  %v5654 = vld [vmem:[%s5652 + $0x8] sm:$0xff]
  %v5655 = vld [vmem:[%s5652 + $0x10] sm:$0xff]
  %v5656 = vld [vmem:[%s5652 + $0x18] sm:$0xff]
  %v5657 = vld [vmem:[%s5652 + $0x20] sm:$0xff]
  %v5658 = vld [vmem:[%s5652 + $0x28] sm:$0xff]
  %v5659 = vld [vmem:[%s5652 + $0x30] sm:$0xff]
  %v5660 = vld [vmem:[%s5652 + $0x38] sm:$0xff]
  %s5661 = scalar_lea.vmem %s15, 5
  %v5662 = vld [vmem:[%s5661] sm:$0x1]
  %v5664 = vlaneseq
  %v5665 = vshrl.u32 %v5664, 7
  %v5666 = vsub.s32 0, %v5665
  %v5667 = vrot.slane %v5662, %v5666
  %5669 = vmatprep.subr.mxu0 0.0
  %5670 = vmatpush1.msra.mxu0 %v5653
  %5671 = vmatprep.subr.mxu0 0.0
  %5672 = vmatpush1.msra.mxu0 %v5654
  %5673 = vmatprep.subr.mxu0 0.0
  %5674 = vmatpush1.msra.mxu0 %v5655
  %5675 = vmatprep.subr.mxu0 0.0
  %5676 = vmatpush1.msra.mxu0 %v5656
  %5677 = vmatprep.subr.mxu0 0.0
  %5678 = vmatpush1.msra.mxu0 %v5657
  %5679 = vmatprep.subr.mxu0 0.0
  %5680 = vmatpush1.msra.mxu0 %v5658
  %5681 = vmatprep.subr.mxu0 0.0
  %5682 = vmatpush1.msra.mxu0 %v5659
  %5683 = vmatprep.subr.mxu0 0.0
  %5684 = vmatpush1.msra.mxu0 %v5660
  %5685 = vmatprep.subr.mxu0 0.0
  %5686 = vmatpush1.msra.mxu0 0.0
  %5687 = vmatprep.subr.mxu0 0.0
  %5688 = vmatpush1.msra.mxu0 0.0
  %5689 = vmatprep.subr.mxu0 0.0
  %5690 = vmatpush1.msra.mxu0 0.0
  %5691 = vmatprep.subr.mxu0 0.0
  %5692 = vmatpush1.msra.mxu0 0.0
  %5693 = vmatprep.subr.mxu0 0.0
  %5694 = vmatpush1.msra.mxu0 0.0
  %5695 = vmatprep.subr.mxu0 0.0
  %5696 = vmatpush1.msra.mxu0 0.0
  %5697 = vmatprep.subr.mxu0 0.0
  %5698 = vmatpush1.msra.mxu0 0.0
  %5699 = vmatprep.subr.mxu0 0.0
  %5700 = vmatpush1.msra.mxu0 0.0
  %5701 = vmatprep.subr.mxu0 0.0
  %5702 = vmatpush1.msra.mxu0 0.0
  %5703 = vmatprep.subr.mxu0 0.0
  %5704 = vmatpush1.msra.mxu0 0.0
  %5705 = vmatprep.subr.mxu0 0.0
  %5706 = vmatpush1.msra.mxu0 0.0
  %5707 = vmatprep.subr.mxu0 0.0
  %5708 = vmatpush1.msra.mxu0 0.0
  %5709 = vmatprep.subr.mxu0 0.0
  %5710 = vmatpush1.msra.mxu0 0.0
  %5711 = vmatprep.subr.mxu0 0.0
  %5712 = vmatpush1.msra.mxu0 0.0
  %5713 = vmatprep.subr.mxu0 0.0
  %5714 = vmatpush1.msra.mxu0 0.0
  %5715 = vmatprep.subr.mxu0 0.0
  %5716 = vmatpush1.msra.mxu0 0.0
  %5717 = vmatprep.subr.mxu0 0.0
  %5718 = vmatpush1.msra.mxu0 0.0
  %5719 = vmatprep.subr.mxu0 0.0
  %5720 = vmatpush1.msra.mxu0 0.0
  %5721 = vmatprep.subr.mxu0 0.0
  %5722 = vmatpush1.msra.mxu0 0.0
  %5723 = vmatprep.subr.mxu0 0.0
  %5724 = vmatpush1.msra.mxu0 0.0
  %5725 = vmatprep.subr.mxu0 0.0
  %5726 = vmatpush1.msra.mxu0 0.0
  %5727 = vmatprep.subr.mxu0 0.0
  %5728 = vmatpush1.msra.mxu0 0.0
  %5729 = vmatprep.subr.mxu0 0.0
  %5730 = vmatpush1.msra.mxu0 0.0
  %5731 = vmatprep.subr.mxu0 0.0
  %5732 = vmatpush1.msra.mxu0 0.0
  %5733 = vmatprep.mubr.f32.mxu0 0.0
  %5734 = vmatmul.mubr.f32.gmra.mrb[0].mxu0 %v5193
  %v5735 = vpop.f32.mrb[0].mxu0
  %v5736 = vadd.f32 %v5667, %v5735
  %v5737 = vpop.f32.mrb[0].mxu0
  %5738 = vmatprep.mubr.f32.mxu0 0.0
  %5739 = vmatmul.mubr.f32.gmra.mrb[0].mxu0 %v5196
  %v5740 = vpop.f32.mrb[0].mxu0
  %v5741 = vadd.f32 %v5667, %v5740
  %v5742 = vpop.f32.mrb[0].mxu0
  %5743 = vdwg.mxu0
  %v5744 = vmul.f32 %v5736, 0.25
  %v5745 = vmul.f32 %v5741, 0.25
  %s5746 = scalar_lea.vmem %s11, 320
  %v5747 = vld [vmem:[%s5746] sm:$0xff]
  %v5748 = vld [vmem:[%s5746 + $0x8] sm:$0xff]
  %v5749 = vld [vmem:[%s5746 + $0x10] sm:$0xff]
  %v5750 = vld [vmem:[%s5746 + $0x18] sm:$0xff]
  %v5751 = vld [vmem:[%s5746 + $0x20] sm:$0xff]
  %v5752 = vld [vmem:[%s5746 + $0x28] sm:$0xff]
  %v5753 = vld [vmem:[%s5746 + $0x30] sm:$0xff]
  %v5754 = vld [vmem:[%s5746 + $0x38] sm:$0xff]
  %s5755 = scalar_lea.vmem %s17, 5
  %v5756 = vld [vmem:[%s5755] sm:$0x1]
  %v5758 = vlaneseq
  %v5759 = vshrl.u32 %v5758, 7
  %v5760 = vsub.s32 0, %v5759
  %v5761 = vrot.slane %v5756, %v5760
  %5763 = vmatprep.subr.mxu0 0.0
  %5764 = vmatpush1.msra.mxu0 %v5747
  %5765 = vmatprep.subr.mxu0 0.0
  %5766 = vmatpush1.msra.mxu0 %v5748
  %5767 = vmatprep.subr.mxu0 0.0
  %5768 = vmatpush1.msra.mxu0 %v5749
  %5769 = vmatprep.subr.mxu0 0.0
  %5770 = vmatpush1.msra.mxu0 %v5750
  %5771 = vmatprep.subr.mxu0 0.0
  %5772 = vmatpush1.msra.mxu0 %v5751
  %5773 = vmatprep.subr.mxu0 0.0
  %5774 = vmatpush1.msra.mxu0 %v5752
  %5775 = vmatprep.subr.mxu0 0.0
  %5776 = vmatpush1.msra.mxu0 %v5753
  %5777 = vmatprep.subr.mxu0 0.0
  %5778 = vmatpush1.msra.mxu0 %v5754
  %5779 = vmatprep.subr.mxu0 0.0
  %5780 = vmatpush1.msra.mxu0 0.0
  %5781 = vmatprep.subr.mxu0 0.0
  %5782 = vmatpush1.msra.mxu0 0.0
  %5783 = vmatprep.subr.mxu0 0.0
  %5784 = vmatpush1.msra.mxu0 0.0
  %5785 = vmatprep.subr.mxu0 0.0
  %5786 = vmatpush1.msra.mxu0 0.0
  %5787 = vmatprep.subr.mxu0 0.0
  %5788 = vmatpush1.msra.mxu0 0.0
  %5789 = vmatprep.subr.mxu0 0.0
  %5790 = vmatpush1.msra.mxu0 0.0
  %5791 = vmatprep.subr.mxu0 0.0
  %5792 = vmatpush1.msra.mxu0 0.0
  %5793 = vmatprep.subr.mxu0 0.0
  %5794 = vmatpush1.msra.mxu0 0.0
  %5795 = vmatprep.subr.mxu0 0.0
  %5796 = vmatpush1.msra.mxu0 0.0
  %5797 = vmatprep.subr.mxu0 0.0
  %5798 = vmatpush1.msra.mxu0 0.0
  %5799 = vmatprep.subr.mxu0 0.0
  %5800 = vmatpush1.msra.mxu0 0.0
  %5801 = vmatprep.subr.mxu0 0.0
  %5802 = vmatpush1.msra.mxu0 0.0
  %5803 = vmatprep.subr.mxu0 0.0
  %5804 = vmatpush1.msra.mxu0 0.0
  %5805 = vmatprep.subr.mxu0 0.0
  %5806 = vmatpush1.msra.mxu0 0.0
  %5807 = vmatprep.subr.mxu0 0.0
  %5808 = vmatpush1.msra.mxu0 0.0
  %5809 = vmatprep.subr.mxu0 0.0
  %5810 = vmatpush1.msra.mxu0 0.0
  %5811 = vmatprep.subr.mxu0 0.0
  %5812 = vmatpush1.msra.mxu0 0.0
  %5813 = vmatprep.subr.mxu0 0.0
  %5814 = vmatpush1.msra.mxu0 0.0
  %5815 = vmatprep.subr.mxu0 0.0
  %5816 = vmatpush1.msra.mxu0 0.0
  %5817 = vmatprep.subr.mxu0 0.0
  %5818 = vmatpush1.msra.mxu0 0.0
  %5819 = vmatprep.subr.mxu0 0.0
  %5820 = vmatpush1.msra.mxu0 0.0
  %5821 = vmatprep.subr.mxu0 0.0
  %5822 = vmatpush1.msra.mxu0 0.0
  %5823 = vmatprep.subr.mxu0 0.0
  %5824 = vmatpush1.msra.mxu0 0.0
  %5825 = vmatprep.subr.mxu0 0.0
  %5826 = vmatpush1.msra.mxu0 0.0
  %5827 = vmatprep.mubr.f32.mxu0 0.0
  %5828 = vmatmul.mubr.f32.gmra.mrb[0].mxu0 %v5193
  %v5829 = vpop.f32.mrb[0].mxu0
  %v5830 = vadd.f32 %v5761, %v5829
  %v5831 = vpop.f32.mrb[0].mxu0
  %5832 = vmatprep.mubr.f32.mxu0 0.0
  %5833 = vmatmul.mubr.f32.gmra.mrb[0].mxu0 %v5196
  %v5834 = vpop.f32.mrb[0].mxu0
  %v5835 = vadd.f32 %v5761, %v5834
  %v5836 = vpop.f32.mrb[0].mxu0
  %5837 = vdwg.mxu0
  %s5838 = scalar_lea.vmem %s13, 320
  %v5839 = vld [vmem:[%s5838] sm:$0xff]
  %v5840 = vld [vmem:[%s5838 + $0x8] sm:$0xff]
  %v5841 = vld [vmem:[%s5838 + $0x10] sm:$0xff]
  %v5842 = vld [vmem:[%s5838 + $0x18] sm:$0xff]
  %v5843 = vld [vmem:[%s5838 + $0x20] sm:$0xff]
  %v5844 = vld [vmem:[%s5838 + $0x28] sm:$0xff]
  %v5845 = vld [vmem:[%s5838 + $0x30] sm:$0xff]
  %v5846 = vld [vmem:[%s5838 + $0x38] sm:$0xff]
  %s5847 = scalar_lea.vmem %s19, 5
  %v5848 = vld [vmem:[%s5847] sm:$0x1]
  %v5850 = vlaneseq
  %v5851 = vshrl.u32 %v5850, 7
  %v5852 = vsub.s32 0, %v5851
  %v5853 = vrot.slane %v5848, %v5852
  %5855 = vmatprep.subr.mxu0 0.0
  %5856 = vmatpush1.msra.mxu0 %v5839
  %5857 = vmatprep.subr.mxu0 0.0
  %5858 = vmatpush1.msra.mxu0 %v5840
  %5859 = vmatprep.subr.mxu0 0.0
  %5860 = vmatpush1.msra.mxu0 %v5841
  %5861 = vmatprep.subr.mxu0 0.0
  %5862 = vmatpush1.msra.mxu0 %v5842
  %5863 = vmatprep.subr.mxu0 0.0
  %5864 = vmatpush1.msra.mxu0 %v5843
  %5865 = vmatprep.subr.mxu0 0.0
  %5866 = vmatpush1.msra.mxu0 %v5844
  %5867 = vmatprep.subr.mxu0 0.0
  %5868 = vmatpush1.msra.mxu0 %v5845
  %5869 = vmatprep.subr.mxu0 0.0
  %5870 = vmatpush1.msra.mxu0 %v5846
  %5871 = vmatprep.subr.mxu0 0.0
  %5872 = vmatpush1.msra.mxu0 0.0
  %5873 = vmatprep.subr.mxu0 0.0
  %5874 = vmatpush1.msra.mxu0 0.0
  %5875 = vmatprep.subr.mxu0 0.0
  %5876 = vmatpush1.msra.mxu0 0.0
  %5877 = vmatprep.subr.mxu0 0.0
  %5878 = vmatpush1.msra.mxu0 0.0
  %5879 = vmatprep.subr.mxu0 0.0
  %5880 = vmatpush1.msra.mxu0 0.0
  %5881 = vmatprep.subr.mxu0 0.0
  %5882 = vmatpush1.msra.mxu0 0.0
  %5883 = vmatprep.subr.mxu0 0.0
  %5884 = vmatpush1.msra.mxu0 0.0
  %5885 = vmatprep.subr.mxu0 0.0
  %5886 = vmatpush1.msra.mxu0 0.0
  %5887 = vmatprep.subr.mxu0 0.0
  %5888 = vmatpush1.msra.mxu0 0.0
  %5889 = vmatprep.subr.mxu0 0.0
  %5890 = vmatpush1.msra.mxu0 0.0
  %5891 = vmatprep.subr.mxu0 0.0
  %5892 = vmatpush1.msra.mxu0 0.0
  %5893 = vmatprep.subr.mxu0 0.0
  %5894 = vmatpush1.msra.mxu0 0.0
  %5895 = vmatprep.subr.mxu0 0.0
  %5896 = vmatpush1.msra.mxu0 0.0
  %5897 = vmatprep.subr.mxu0 0.0
  %5898 = vmatpush1.msra.mxu0 0.0
  %5899 = vmatprep.subr.mxu0 0.0
  %5900 = vmatpush1.msra.mxu0 0.0
  %5901 = vmatprep.subr.mxu0 0.0
  %5902 = vmatpush1.msra.mxu0 0.0
  %5903 = vmatprep.subr.mxu0 0.0
  %5904 = vmatpush1.msra.mxu0 0.0
  %5905 = vmatprep.subr.mxu0 0.0
  %5906 = vmatpush1.msra.mxu0 0.0
  %5907 = vmatprep.subr.mxu0 0.0
  %5908 = vmatpush1.msra.mxu0 0.0
  %5909 = vmatprep.subr.mxu0 0.0
  %5910 = vmatpush1.msra.mxu0 0.0
  %5911 = vmatprep.subr.mxu0 0.0
  %5912 = vmatpush1.msra.mxu0 0.0
  %5913 = vmatprep.subr.mxu0 0.0
  %5914 = vmatpush1.msra.mxu0 0.0
  %5915 = vmatprep.subr.mxu0 0.0
  %5916 = vmatpush1.msra.mxu0 0.0
  %5917 = vmatprep.subr.mxu0 0.0
  %5918 = vmatpush1.msra.mxu0 0.0
  %5919 = vmatprep.mubr.f32.mxu0 0.0
  %5920 = vmatmul.mubr.f32.gmra.mrb[0].mxu0 %v5193
  %v5921 = vpop.f32.mrb[0].mxu0
  %v5922 = vadd.f32 %v5853, %v5921
  %v5923 = vpop.f32.mrb[0].mxu0
  %5924 = vmatprep.mubr.f32.mxu0 0.0
  %5925 = vmatmul.mubr.f32.gmra.mrb[0].mxu0 %v5196
  %v5926 = vpop.f32.mrb[0].mxu0
  %v5927 = vadd.f32 %v5853, %v5926
  %v5928 = vpop.f32.mrb[0].mxu0
  %5929 = vdwg.mxu0
  %v5931 = vsel %vm417, %v5744, 0
  %v5934 = vsel %vm417, %v5745, 0
  %v5937 = vsel %vm417, %v5830, 0
  %v5940 = vsel %vm417, %v5835, 0
  %5942 = vmatprep.subr.mxu0 0.0
  %5943 = vmatpush1.xpose.msra.mxu0 %v5937
  %5944 = vmatprep.subr.mxu0 0.0
  %5945 = vmatpush1.xpose.msra.mxu0 %v5940
  %5946 = vmatprep.subr.mxu0 0.0
  %5947 = vmatpush1.xpose.msra.mxu0 0.0
  %5948 = vmatprep.subr.mxu0 0.0
  %5949 = vmatpush1.xpose.msra.mxu0 0.0
  %5950 = vmatprep.subr.mxu0 0.0
  %5951 = vmatpush1.xpose.msra.mxu0 0.0
  %5952 = vmatprep.subr.mxu0 0.0
  %5953 = vmatpush1.xpose.msra.mxu0 0.0
  %5954 = vmatprep.subr.mxu0 0.0
  %5955 = vmatpush1.xpose.msra.mxu0 0.0
  %5956 = vmatprep.subr.mxu0 0.0
  %5957 = vmatpush1.xpose.msra.mxu0 0.0
  %5958 = vmatprep.subr.mxu0 0.0
  %5959 = vmatpush1.xpose.msra.mxu0 0.0
  %5960 = vmatprep.subr.mxu0 0.0
  %5961 = vmatpush1.xpose.msra.mxu0 0.0
  %5962 = vmatprep.subr.mxu0 0.0
  %5963 = vmatpush1.xpose.msra.mxu0 0.0
  %5964 = vmatprep.subr.mxu0 0.0
  %5965 = vmatpush1.xpose.msra.mxu0 0.0
  %5966 = vmatprep.subr.mxu0 0.0
  %5967 = vmatpush1.xpose.msra.mxu0 0.0
  %5968 = vmatprep.subr.mxu0 0.0
  %5969 = vmatpush1.xpose.msra.mxu0 0.0
  %5970 = vmatprep.subr.mxu0 0.0
  %5971 = vmatpush1.xpose.msra.mxu0 0.0
  %5972 = vmatprep.subr.mxu0 0.0
  %5973 = vmatpush1.xpose.msra.mxu0 0.0
  %5974 = vmatprep.subr.mxu0 0.0
  %5975 = vmatpush1.xpose.msra.mxu0 0.0
  %5976 = vmatprep.subr.mxu0 0.0
  %5977 = vmatpush1.xpose.msra.mxu0 0.0
  %5978 = vmatprep.subr.mxu0 0.0
  %5979 = vmatpush1.xpose.msra.mxu0 0.0
  %5980 = vmatprep.subr.mxu0 0.0
  %5981 = vmatpush1.xpose.msra.mxu0 0.0
  %5982 = vmatprep.subr.mxu0 0.0
  %5983 = vmatpush1.xpose.msra.mxu0 0.0
  %5984 = vmatprep.subr.mxu0 0.0
  %5985 = vmatpush1.xpose.msra.mxu0 0.0
  %5986 = vmatprep.subr.mxu0 0.0
  %5987 = vmatpush1.xpose.msra.mxu0 0.0
  %5988 = vmatprep.subr.mxu0 0.0
  %5989 = vmatpush1.xpose.msra.mxu0 0.0
  %5990 = vmatprep.subr.mxu0 0.0
  %5991 = vmatpush1.xpose.msra.mxu0 0.0
  %5992 = vmatprep.subr.mxu0 0.0
  %5993 = vmatpush1.xpose.msra.mxu0 0.0
  %5994 = vmatprep.subr.mxu0 0.0
  %5995 = vmatpush1.xpose.msra.mxu0 0.0
  %5996 = vmatprep.subr.mxu0 0.0
  %5997 = vmatpush1.xpose.msra.mxu0 0.0
  %5998 = vmatprep.subr.mxu0 0.0
  %5999 = vmatpush1.xpose.msra.mxu0 0.0
  %6000 = vmatprep.subr.mxu0 0.0
  %6001 = vmatpush1.xpose.msra.mxu0 0.0
  %6002 = vmatprep.subr.mxu0 0.0
  %6003 = vmatpush1.xpose.msra.mxu0 0.0
  %6004 = vmatprep.subr.mxu0 0.0
  %6005 = vmatpush1.xpose.msra.mxu0 0.0
  %6006 = vmatprep.mubr.f32.mxu0 0.0
  %6007 = vmatmul.mubr.f32.gmra.mrb[0].mxu0 %v5931
  %v6008 = vpop.f32.mrb[0].mxu0
  %v6009 = vadd.f32 %v134, %v6008
  %v6010 = vpop.f32.mrb[0].mxu0
  %6011 = vmatprep.mubr.f32.mxu0 0.0
  %6012 = vmatmul.mubr.f32.gmra.mrb[0].mxu0 %v5934
  %v6013 = vpop.f32.mrb[0].mxu0
  %v6014 = vadd.f32 %v135, %v6013
  %v6015 = vpop.f32.mrb[0].mxu0
  %6016 = vdwg.mxu0
  %v6017 = vsel %vm417, %v6009, -inf
  %6018 = vmax.xlane.f32.xlu0 %v6017
  %v6019 = vpop.xlane.xlu0 %6018
  %v6020 = vsel %vm417, %v6014, -inf
  %6021 = vmax.xlane.f32.xlu0 %v6020
  %v6022 = vpop.xlane.xlu0 %6021
  %v6023 = vsub.f32 %v6009, %v6019
  %v6024 = vsub.f32 %v6014, %v6022
  %v6025 = vmul.f32 %v6023, 1.442695
  %v6026 = vpow.pop %v6025
  %v6027 = vmul.f32 %v6024, 1.442695
  %v6028 = vpow.pop %v6027
  %v6029 = vsel %vm417, %v6026, 0.0
  %6030 = vadd.xlane.f32.xlu0 %v6029
  %v6031 = vpop.xlane.xlu0 %6030
  %v6032 = vsel %vm417, %v6028, 0.0
  %6033 = vadd.xlane.f32.xlu0 %v6032
  %v6034 = vpop.xlane.xlu0 %6033
  %v6035 = vrcp.pop %v6031
  %v6036 = vrcp.pop %v6034
  %v6037 = vmul.f32 %v6026, %v6035
  %v6038 = vmul.f32 %v6028, %v6036
  %v6040 = vsel %vm417, %v6037, 0
  %v6043 = vsel %vm417, %v6038, 0
  %6045 = vmatprep.subr.mxu0 0.0
  %6046 = vmatpush1.msra.mxu0 %v5922
  %6047 = vmatprep.subr.mxu0 0.0
  %6048 = vmatpush1.msra.mxu0 %v5927
  %6049 = vmatprep.subr.mxu0 0.0
  %6050 = vmatpush1.msra.mxu0 0.0
  %6051 = vmatprep.subr.mxu0 0.0
  %6052 = vmatpush1.msra.mxu0 0.0
  %6053 = vmatprep.subr.mxu0 0.0
  %6054 = vmatpush1.msra.mxu0 0.0
  %6055 = vmatprep.subr.mxu0 0.0
  %6056 = vmatpush1.msra.mxu0 0.0
  %6057 = vmatprep.subr.mxu0 0.0
  %6058 = vmatpush1.msra.mxu0 0.0
  %6059 = vmatprep.subr.mxu0 0.0
  %6060 = vmatpush1.msra.mxu0 0.0
  %6061 = vmatprep.subr.mxu0 0.0
  %6062 = vmatpush1.msra.mxu0 0.0
  %6063 = vmatprep.subr.mxu0 0.0
  %6064 = vmatpush1.msra.mxu0 0.0
  %6065 = vmatprep.subr.mxu0 0.0
  %6066 = vmatpush1.msra.mxu0 0.0
  %6067 = vmatprep.subr.mxu0 0.0
  %6068 = vmatpush1.msra.mxu0 0.0
  %6069 = vmatprep.subr.mxu0 0.0
  %6070 = vmatpush1.msra.mxu0 0.0
  %6071 = vmatprep.subr.mxu0 0.0
  %6072 = vmatpush1.msra.mxu0 0.0
  %6073 = vmatprep.subr.mxu0 0.0
  %6074 = vmatpush1.msra.mxu0 0.0
  %6075 = vmatprep.subr.mxu0 0.0
  %6076 = vmatpush1.msra.mxu0 0.0
  %6077 = vmatprep.subr.mxu0 0.0
  %6078 = vmatpush1.msra.mxu0 0.0
  %6079 = vmatprep.subr.mxu0 0.0
  %6080 = vmatpush1.msra.mxu0 0.0
  %6081 = vmatprep.subr.mxu0 0.0
  %6082 = vmatpush1.msra.mxu0 0.0
  %6083 = vmatprep.subr.mxu0 0.0
  %6084 = vmatpush1.msra.mxu0 0.0
  %6085 = vmatprep.subr.mxu0 0.0
  %6086 = vmatpush1.msra.mxu0 0.0
  %6087 = vmatprep.subr.mxu0 0.0
  %6088 = vmatpush1.msra.mxu0 0.0
  %6089 = vmatprep.subr.mxu0 0.0
  %6090 = vmatpush1.msra.mxu0 0.0
  %6091 = vmatprep.subr.mxu0 0.0
  %6092 = vmatpush1.msra.mxu0 0.0
  %6093 = vmatprep.subr.mxu0 0.0
  %6094 = vmatpush1.msra.mxu0 0.0
  %6095 = vmatprep.subr.mxu0 0.0
  %6096 = vmatpush1.msra.mxu0 0.0
  %6097 = vmatprep.subr.mxu0 0.0
  %6098 = vmatpush1.msra.mxu0 0.0
  %6099 = vmatprep.subr.mxu0 0.0
  %6100 = vmatpush1.msra.mxu0 0.0
  %6101 = vmatprep.subr.mxu0 0.0
  %6102 = vmatpush1.msra.mxu0 0.0
  %6103 = vmatprep.subr.mxu0 0.0
  %6104 = vmatpush1.msra.mxu0 0.0
  %6105 = vmatprep.subr.mxu0 0.0
  %6106 = vmatpush1.msra.mxu0 0.0
  %6107 = vmatprep.subr.mxu0 0.0
  %6108 = vmatpush1.msra.mxu0 0.0
  %6109 = vmatprep.mubr.f32.mxu0 0.0
  %6110 = vmatmul.mubr.f32.gmra.mrb[0].mxu0 %v6040
  %v6111 = vpop.f32.mrb[0].mxu0
  %v6112 = vadd.f32 0.0, %v6111
  %v6113 = vpop.f32.mrb[0].mxu0
  %6114 = vmatprep.mubr.f32.mxu0 0.0
  %6115 = vmatmul.mubr.f32.gmra.mrb[0].mxu0 %v6043
  %v6116 = vpop.f32.mrb[0].mxu0
  %v6117 = vadd.f32 0.0, %v6116
  %v6118 = vpop.f32.mrb[0].mxu0
  %6119 = vdwg.mxu0
  %s6120 = scalar_lea.vmem %s21, 80
  %v6121 = vld [vmem:[%s6120] sm:$0xff]
  %v6122 = vld [vmem:[%s6120 + $0x8] sm:$0xff]
  %v6124 = vsel %vm417, %v6112, 0
  %v6127 = vsel %vm417, %v6117, 0
  %6129 = vmatprep.subr.mxu0 0.0
  %6130 = vmatpush1.msra.mxu0 %v6121
  %6131 = vmatprep.subr.mxu0 0.0
  %6132 = vmatpush1.msra.mxu0 %v6122
  %6133 = vmatprep.subr.mxu0 0.0
  %6134 = vmatpush1.msra.mxu0 0.0
  %6135 = vmatprep.subr.mxu0 0.0
  %6136 = vmatpush1.msra.mxu0 0.0
  %6137 = vmatprep.subr.mxu0 0.0
  %6138 = vmatpush1.msra.mxu0 0.0
  %6139 = vmatprep.subr.mxu0 0.0
  %6140 = vmatpush1.msra.mxu0 0.0
  %6141 = vmatprep.subr.mxu0 0.0
  %6142 = vmatpush1.msra.mxu0 0.0
  %6143 = vmatprep.subr.mxu0 0.0
  %6144 = vmatpush1.msra.mxu0 0.0
  %6145 = vmatprep.subr.mxu0 0.0
  %6146 = vmatpush1.msra.mxu0 0.0
  %6147 = vmatprep.subr.mxu0 0.0
  %6148 = vmatpush1.msra.mxu0 0.0
  %6149 = vmatprep.subr.mxu0 0.0
  %6150 = vmatpush1.msra.mxu0 0.0
  %6151 = vmatprep.subr.mxu0 0.0
  %6152 = vmatpush1.msra.mxu0 0.0
  %6153 = vmatprep.subr.mxu0 0.0
  %6154 = vmatpush1.msra.mxu0 0.0
  %6155 = vmatprep.subr.mxu0 0.0
  %6156 = vmatpush1.msra.mxu0 0.0
  %6157 = vmatprep.subr.mxu0 0.0
  %6158 = vmatpush1.msra.mxu0 0.0
  %6159 = vmatprep.subr.mxu0 0.0
  %6160 = vmatpush1.msra.mxu0 0.0
  %6161 = vmatprep.subr.mxu0 0.0
  %6162 = vmatpush1.msra.mxu0 0.0
  %6163 = vmatprep.subr.mxu0 0.0
  %6164 = vmatpush1.msra.mxu0 0.0
  %6165 = vmatprep.subr.mxu0 0.0
  %6166 = vmatpush1.msra.mxu0 0.0
  %6167 = vmatprep.subr.mxu0 0.0
  %6168 = vmatpush1.msra.mxu0 0.0
  %6169 = vmatprep.subr.mxu0 0.0
  %6170 = vmatpush1.msra.mxu0 0.0
  %6171 = vmatprep.subr.mxu0 0.0
  %6172 = vmatpush1.msra.mxu0 0.0
  %6173 = vmatprep.subr.mxu0 0.0
  %6174 = vmatpush1.msra.mxu0 0.0
  %6175 = vmatprep.subr.mxu0 0.0
  %6176 = vmatpush1.msra.mxu0 0.0
  %6177 = vmatprep.subr.mxu0 0.0
  %6178 = vmatpush1.msra.mxu0 0.0
  %6179 = vmatprep.subr.mxu0 0.0
  %6180 = vmatpush1.msra.mxu0 0.0
  %6181 = vmatprep.subr.mxu0 0.0
  %6182 = vmatpush1.msra.mxu0 0.0
  %6183 = vmatprep.subr.mxu0 0.0
  %6184 = vmatpush1.msra.mxu0 0.0
  %6185 = vmatprep.subr.mxu0 0.0
  %6186 = vmatpush1.msra.mxu0 0.0
  %6187 = vmatprep.subr.mxu0 0.0
  %6188 = vmatpush1.msra.mxu0 0.0
  %6189 = vmatprep.subr.mxu0 0.0
  %6190 = vmatpush1.msra.mxu0 0.0
  %6191 = vmatprep.subr.mxu0 0.0
  %6192 = vmatpush1.msra.mxu0 0.0
  %6193 = vmatprep.mubr.f32.mxu0 0.0
  %6194 = vmatmul.mubr.f32.gmra.mrb[0].mxu0 %v6124
  %v6195 = vpop.f32.mrb[0].mxu0
  %v6196 = vadd.f32 0.0, %v6195
  %v6197 = vpop.f32.mrb[0].mxu0
  %6198 = vmatprep.mubr.f32.mxu0 0.0
  %6199 = vmatmul.mubr.f32.gmra.mrb[0].mxu0 %v6127
  %v6200 = vpop.f32.mrb[0].mxu0
  %v6201 = vadd.f32 0.0, %v6200
  %v6202 = vpop.f32.mrb[0].mxu0
  %6203 = vdwg.mxu0
  %v6205 = vsel %vm417, %v5641, 0
  %v6208 = vsel %vm417, %v5646, 0
  %6210 = vmatprep.subr.mxu0 0.0
  %6211 = vmatpush1.msra.mxu0 %v5650
  %6212 = vmatprep.subr.mxu0 0.0
  %6213 = vmatpush1.msra.mxu0 %v5651
  %6214 = vmatprep.subr.mxu0 0.0
  %6215 = vmatpush1.msra.mxu0 0.0
  %6216 = vmatprep.subr.mxu0 0.0
  %6217 = vmatpush1.msra.mxu0 0.0
  %6218 = vmatprep.subr.mxu0 0.0
  %6219 = vmatpush1.msra.mxu0 0.0
  %6220 = vmatprep.subr.mxu0 0.0
  %6221 = vmatpush1.msra.mxu0 0.0
  %6222 = vmatprep.subr.mxu0 0.0
  %6223 = vmatpush1.msra.mxu0 0.0
  %6224 = vmatprep.subr.mxu0 0.0
  %6225 = vmatpush1.msra.mxu0 0.0
  %6226 = vmatprep.subr.mxu0 0.0
  %6227 = vmatpush1.msra.mxu0 0.0
  %6228 = vmatprep.subr.mxu0 0.0
  %6229 = vmatpush1.msra.mxu0 0.0
  %6230 = vmatprep.subr.mxu0 0.0
  %6231 = vmatpush1.msra.mxu0 0.0
  %6232 = vmatprep.subr.mxu0 0.0
  %6233 = vmatpush1.msra.mxu0 0.0
  %6234 = vmatprep.subr.mxu0 0.0
  %6235 = vmatpush1.msra.mxu0 0.0
  %6236 = vmatprep.subr.mxu0 0.0
  %6237 = vmatpush1.msra.mxu0 0.0
  %6238 = vmatprep.subr.mxu0 0.0
  %6239 = vmatpush1.msra.mxu0 0.0
  %6240 = vmatprep.subr.mxu0 0.0
  %6241 = vmatpush1.msra.mxu0 0.0
  %6242 = vmatprep.subr.mxu0 0.0
  %6243 = vmatpush1.msra.mxu0 0.0
  %6244 = vmatprep.subr.mxu0 0.0
  %6245 = vmatpush1.msra.mxu0 0.0
  %6246 = vmatprep.subr.mxu0 0.0
  %6247 = vmatpush1.msra.mxu0 0.0
  %6248 = vmatprep.subr.mxu0 0.0
  %6249 = vmatpush1.msra.mxu0 0.0
  %6250 = vmatprep.subr.mxu0 0.0
  %6251 = vmatpush1.msra.mxu0 0.0
  %6252 = vmatprep.subr.mxu0 0.0
  %6253 = vmatpush1.msra.mxu0 0.0
  %6254 = vmatprep.subr.mxu0 0.0
  %6255 = vmatpush1.msra.mxu0 0.0
  %6256 = vmatprep.subr.mxu0 0.0
  %6257 = vmatpush1.msra.mxu0 0.0
  %6258 = vmatprep.subr.mxu0 0.0
  %6259 = vmatpush1.msra.mxu0 0.0
  %6260 = vmatprep.subr.mxu0 0.0
  %6261 = vmatpush1.msra.mxu0 0.0
  %6262 = vmatprep.subr.mxu0 0.0
  %6263 = vmatpush1.msra.mxu0 0.0
  %6264 = vmatprep.subr.mxu0 0.0
  %6265 = vmatpush1.msra.mxu0 0.0
  %6266 = vmatprep.subr.mxu0 0.0
  %6267 = vmatpush1.msra.mxu0 0.0
  %6268 = vmatprep.subr.mxu0 0.0
  %6269 = vmatpush1.msra.mxu0 0.0
  %6270 = vmatprep.subr.mxu0 0.0
  %6271 = vmatpush1.msra.mxu0 0.0
  %6272 = vmatprep.subr.mxu0 0.0
  %6273 = vmatpush1.msra.mxu0 0.0
  %6274 = vmatprep.mubr.f32.mxu0 0.0
  %6275 = vmatmul.mubr.f32.gmra.mrb[0].mxu0 %v6205
  %v6276 = vpop.f32.mrb[0].mxu0
  %v6277 = vadd.f32 %v6196, %v6276
  %v6278 = vpop.f32.mrb[0].mxu0
  %6279 = vmatprep.mubr.f32.mxu0 0.0
  %6280 = vmatmul.mubr.f32.gmra.mrb[0].mxu0 %v6208
  %v6281 = vpop.f32.mrb[0].mxu0
  %v6282 = vadd.f32 %v6201, %v6281
  %v6283 = vpop.f32.mrb[0].mxu0
  %6284 = vdwg.mxu0
  %s6285 = scalar_lea.vmem %s9, 384
  %v6286 = vld [vmem:[%s6285] sm:$0xff]
  %v6287 = vld [vmem:[%s6285 + $0x8] sm:$0xff]
  %v6288 = vld [vmem:[%s6285 + $0x10] sm:$0xff]
  %v6289 = vld [vmem:[%s6285 + $0x18] sm:$0xff]
  %v6290 = vld [vmem:[%s6285 + $0x20] sm:$0xff]
  %v6291 = vld [vmem:[%s6285 + $0x28] sm:$0xff]
  %v6292 = vld [vmem:[%s6285 + $0x30] sm:$0xff]
  %v6293 = vld [vmem:[%s6285 + $0x38] sm:$0xff]
  %s6294 = scalar_lea.vmem %s15, 6
  %v6295 = vld [vmem:[%s6294] sm:$0x1]
  %v6297 = vlaneseq
  %v6298 = vshrl.u32 %v6297, 7
  %v6299 = vsub.s32 0, %v6298
  %v6300 = vrot.slane %v6295, %v6299
  %6302 = vmatprep.subr.mxu0 0.0
  %6303 = vmatpush1.msra.mxu0 %v6286
  %6304 = vmatprep.subr.mxu0 0.0
  %6305 = vmatpush1.msra.mxu0 %v6287
  %6306 = vmatprep.subr.mxu0 0.0
  %6307 = vmatpush1.msra.mxu0 %v6288
  %6308 = vmatprep.subr.mxu0 0.0
  %6309 = vmatpush1.msra.mxu0 %v6289
  %6310 = vmatprep.subr.mxu0 0.0
  %6311 = vmatpush1.msra.mxu0 %v6290
  %6312 = vmatprep.subr.mxu0 0.0
  %6313 = vmatpush1.msra.mxu0 %v6291
  %6314 = vmatprep.subr.mxu0 0.0
  %6315 = vmatpush1.msra.mxu0 %v6292
  %6316 = vmatprep.subr.mxu0 0.0
  %6317 = vmatpush1.msra.mxu0 %v6293
  %6318 = vmatprep.subr.mxu0 0.0
  %6319 = vmatpush1.msra.mxu0 0.0
  %6320 = vmatprep.subr.mxu0 0.0
  %6321 = vmatpush1.msra.mxu0 0.0
  %6322 = vmatprep.subr.mxu0 0.0
  %6323 = vmatpush1.msra.mxu0 0.0
  %6324 = vmatprep.subr.mxu0 0.0
  %6325 = vmatpush1.msra.mxu0 0.0
  %6326 = vmatprep.subr.mxu0 0.0
  %6327 = vmatpush1.msra.mxu0 0.0
  %6328 = vmatprep.subr.mxu0 0.0
  %6329 = vmatpush1.msra.mxu0 0.0
  %6330 = vmatprep.subr.mxu0 0.0
  %6331 = vmatpush1.msra.mxu0 0.0
  %6332 = vmatprep.subr.mxu0 0.0
  %6333 = vmatpush1.msra.mxu0 0.0
  %6334 = vmatprep.subr.mxu0 0.0
  %6335 = vmatpush1.msra.mxu0 0.0
  %6336 = vmatprep.subr.mxu0 0.0
  %6337 = vmatpush1.msra.mxu0 0.0
  %6338 = vmatprep.subr.mxu0 0.0
  %6339 = vmatpush1.msra.mxu0 0.0
  %6340 = vmatprep.subr.mxu0 0.0
  %6341 = vmatpush1.msra.mxu0 0.0
  %6342 = vmatprep.subr.mxu0 0.0
  %6343 = vmatpush1.msra.mxu0 0.0
  %6344 = vmatprep.subr.mxu0 0.0
  %6345 = vmatpush1.msra.mxu0 0.0
  %6346 = vmatprep.subr.mxu0 0.0
  %6347 = vmatpush1.msra.mxu0 0.0
  %6348 = vmatprep.subr.mxu0 0.0
  %6349 = vmatpush1.msra.mxu0 0.0
  %6350 = vmatprep.subr.mxu0 0.0
  %6351 = vmatpush1.msra.mxu0 0.0
  %6352 = vmatprep.subr.mxu0 0.0
  %6353 = vmatpush1.msra.mxu0 0.0
  %6354 = vmatprep.subr.mxu0 0.0
  %6355 = vmatpush1.msra.mxu0 0.0
  %6356 = vmatprep.subr.mxu0 0.0
  %6357 = vmatpush1.msra.mxu0 0.0
  %6358 = vmatprep.subr.mxu0 0.0
  %6359 = vmatpush1.msra.mxu0 0.0
  %6360 = vmatprep.subr.mxu0 0.0
  %6361 = vmatpush1.msra.mxu0 0.0
  %6362 = vmatprep.subr.mxu0 0.0
  %6363 = vmatpush1.msra.mxu0 0.0
  %6364 = vmatprep.subr.mxu0 0.0
  %6365 = vmatpush1.msra.mxu0 0.0
  %6366 = vmatprep.mubr.f32.mxu0 0.0
  %6367 = vmatmul.mubr.f32.gmra.mrb[0].mxu0 %v5193
  %v6368 = vpop.f32.mrb[0].mxu0
  %v6369 = vadd.f32 %v6300, %v6368
  %v6370 = vpop.f32.mrb[0].mxu0
  %6371 = vmatprep.mubr.f32.mxu0 0.0
  %6372 = vmatmul.mubr.f32.gmra.mrb[0].mxu0 %v5196
  %v6373 = vpop.f32.mrb[0].mxu0
  %v6374 = vadd.f32 %v6300, %v6373
  %v6375 = vpop.f32.mrb[0].mxu0
  %6376 = vdwg.mxu0
  %v6377 = vmul.f32 %v6369, 0.25
  %v6378 = vmul.f32 %v6374, 0.25
  %s6379 = scalar_lea.vmem %s11, 384
  %v6380 = vld [vmem:[%s6379] sm:$0xff]
  %v6381 = vld [vmem:[%s6379 + $0x8] sm:$0xff]
  %v6382 = vld [vmem:[%s6379 + $0x10] sm:$0xff]
  %v6383 = vld [vmem:[%s6379 + $0x18] sm:$0xff]
  %v6384 = vld [vmem:[%s6379 + $0x20] sm:$0xff]
  %v6385 = vld [vmem:[%s6379 + $0x28] sm:$0xff]
  %v6386 = vld [vmem:[%s6379 + $0x30] sm:$0xff]
  %v6387 = vld [vmem:[%s6379 + $0x38] sm:$0xff]
  %s6388 = scalar_lea.vmem %s17, 6
  %v6389 = vld [vmem:[%s6388] sm:$0x1]
  %v6391 = vlaneseq
  %v6392 = vshrl.u32 %v6391, 7
  %v6393 = vsub.s32 0, %v6392
  %v6394 = vrot.slane %v6389, %v6393
  %6396 = vmatprep.subr.mxu0 0.0
  %6397 = vmatpush1.msra.mxu0 %v6380
  %6398 = vmatprep.subr.mxu0 0.0
  %6399 = vmatpush1.msra.mxu0 %v6381
  %6400 = vmatprep.subr.mxu0 0.0
  %6401 = vmatpush1.msra.mxu0 %v6382
  %6402 = vmatprep.subr.mxu0 0.0
  %6403 = vmatpush1.msra.mxu0 %v6383
  %6404 = vmatprep.subr.mxu0 0.0
  %6405 = vmatpush1.msra.mxu0 %v6384
  %6406 = vmatprep.subr.mxu0 0.0
  %6407 = vmatpush1.msra.mxu0 %v6385
  %6408 = vmatprep.subr.mxu0 0.0
  %6409 = vmatpush1.msra.mxu0 %v6386
  %6410 = vmatprep.subr.mxu0 0.0
  %6411 = vmatpush1.msra.mxu0 %v6387
  %6412 = vmatprep.subr.mxu0 0.0
  %6413 = vmatpush1.msra.mxu0 0.0
  %6414 = vmatprep.subr.mxu0 0.0
  %6415 = vmatpush1.msra.mxu0 0.0
  %6416 = vmatprep.subr.mxu0 0.0
  %6417 = vmatpush1.msra.mxu0 0.0
  %6418 = vmatprep.subr.mxu0 0.0
  %6419 = vmatpush1.msra.mxu0 0.0
  %6420 = vmatprep.subr.mxu0 0.0
  %6421 = vmatpush1.msra.mxu0 0.0
  %6422 = vmatprep.subr.mxu0 0.0
  %6423 = vmatpush1.msra.mxu0 0.0
  %6424 = vmatprep.subr.mxu0 0.0
  %6425 = vmatpush1.msra.mxu0 0.0
  %6426 = vmatprep.subr.mxu0 0.0
  %6427 = vmatpush1.msra.mxu0 0.0
  %6428 = vmatprep.subr.mxu0 0.0
  %6429 = vmatpush1.msra.mxu0 0.0
  %6430 = vmatprep.subr.mxu0 0.0
  %6431 = vmatpush1.msra.mxu0 0.0
  %6432 = vmatprep.subr.mxu0 0.0
  %6433 = vmatpush1.msra.mxu0 0.0
  %6434 = vmatprep.subr.mxu0 0.0
  %6435 = vmatpush1.msra.mxu0 0.0
  %6436 = vmatprep.subr.mxu0 0.0
  %6437 = vmatpush1.msra.mxu0 0.0
  %6438 = vmatprep.subr.mxu0 0.0
  %6439 = vmatpush1.msra.mxu0 0.0
  %6440 = vmatprep.subr.mxu0 0.0
  %6441 = vmatpush1.msra.mxu0 0.0
  %6442 = vmatprep.subr.mxu0 0.0
  %6443 = vmatpush1.msra.mxu0 0.0
  %6444 = vmatprep.subr.mxu0 0.0
  %6445 = vmatpush1.msra.mxu0 0.0
  %6446 = vmatprep.subr.mxu0 0.0
  %6447 = vmatpush1.msra.mxu0 0.0
  %6448 = vmatprep.subr.mxu0 0.0
  %6449 = vmatpush1.msra.mxu0 0.0
  %6450 = vmatprep.subr.mxu0 0.0
  %6451 = vmatpush1.msra.mxu0 0.0
  %6452 = vmatprep.subr.mxu0 0.0
  %6453 = vmatpush1.msra.mxu0 0.0
  %6454 = vmatprep.subr.mxu0 0.0
  %6455 = vmatpush1.msra.mxu0 0.0
  %6456 = vmatprep.subr.mxu0 0.0
  %6457 = vmatpush1.msra.mxu0 0.0
  %6458 = vmatprep.subr.mxu0 0.0
  %6459 = vmatpush1.msra.mxu0 0.0
  %6460 = vmatprep.mubr.f32.mxu0 0.0
  %6461 = vmatmul.mubr.f32.gmra.mrb[0].mxu0 %v5193
  %v6462 = vpop.f32.mrb[0].mxu0
  %v6463 = vadd.f32 %v6394, %v6462
  %v6464 = vpop.f32.mrb[0].mxu0
  %6465 = vmatprep.mubr.f32.mxu0 0.0
  %6466 = vmatmul.mubr.f32.gmra.mrb[0].mxu0 %v5196
  %v6467 = vpop.f32.mrb[0].mxu0
  %v6468 = vadd.f32 %v6394, %v6467
  %v6469 = vpop.f32.mrb[0].mxu0
  %6470 = vdwg.mxu0
  %s6471 = scalar_lea.vmem %s13, 384
  %v6472 = vld [vmem:[%s6471] sm:$0xff]
  %v6473 = vld [vmem:[%s6471 + $0x8] sm:$0xff]
  %v6474 = vld [vmem:[%s6471 + $0x10] sm:$0xff]
  %v6475 = vld [vmem:[%s6471 + $0x18] sm:$0xff]
  %v6476 = vld [vmem:[%s6471 + $0x20] sm:$0xff]
  %v6477 = vld [vmem:[%s6471 + $0x28] sm:$0xff]
  %v6478 = vld [vmem:[%s6471 + $0x30] sm:$0xff]
  %v6479 = vld [vmem:[%s6471 + $0x38] sm:$0xff]
  %s6480 = scalar_lea.vmem %s19, 6
  %v6481 = vld [vmem:[%s6480] sm:$0x1]
  %v6483 = vlaneseq
  %v6484 = vshrl.u32 %v6483, 7
  %v6485 = vsub.s32 0, %v6484
  %v6486 = vrot.slane %v6481, %v6485
  %6488 = vmatprep.subr.mxu0 0.0
  %6489 = vmatpush1.msra.mxu0 %v6472
  %6490 = vmatprep.subr.mxu0 0.0
  %6491 = vmatpush1.msra.mxu0 %v6473
  %6492 = vmatprep.subr.mxu0 0.0
  %6493 = vmatpush1.msra.mxu0 %v6474
  %6494 = vmatprep.subr.mxu0 0.0
  %6495 = vmatpush1.msra.mxu0 %v6475
  %6496 = vmatprep.subr.mxu0 0.0
  %6497 = vmatpush1.msra.mxu0 %v6476
  %6498 = vmatprep.subr.mxu0 0.0
  %6499 = vmatpush1.msra.mxu0 %v6477
  %6500 = vmatprep.subr.mxu0 0.0
  %6501 = vmatpush1.msra.mxu0 %v6478
  %6502 = vmatprep.subr.mxu0 0.0
  %6503 = vmatpush1.msra.mxu0 %v6479
  %6504 = vmatprep.subr.mxu0 0.0
  %6505 = vmatpush1.msra.mxu0 0.0
  %6506 = vmatprep.subr.mxu0 0.0
  %6507 = vmatpush1.msra.mxu0 0.0
  %6508 = vmatprep.subr.mxu0 0.0
  %6509 = vmatpush1.msra.mxu0 0.0
  %6510 = vmatprep.subr.mxu0 0.0
  %6511 = vmatpush1.msra.mxu0 0.0
  %6512 = vmatprep.subr.mxu0 0.0
  %6513 = vmatpush1.msra.mxu0 0.0
  %6514 = vmatprep.subr.mxu0 0.0
  %6515 = vmatpush1.msra.mxu0 0.0
  %6516 = vmatprep.subr.mxu0 0.0
  %6517 = vmatpush1.msra.mxu0 0.0
  %6518 = vmatprep.subr.mxu0 0.0
  %6519 = vmatpush1.msra.mxu0 0.0
  %6520 = vmatprep.subr.mxu0 0.0
  %6521 = vmatpush1.msra.mxu0 0.0
  %6522 = vmatprep.subr.mxu0 0.0
  %6523 = vmatpush1.msra.mxu0 0.0
  %6524 = vmatprep.subr.mxu0 0.0
  %6525 = vmatpush1.msra.mxu0 0.0
  %6526 = vmatprep.subr.mxu0 0.0
  %6527 = vmatpush1.msra.mxu0 0.0
  %6528 = vmatprep.subr.mxu0 0.0
  %6529 = vmatpush1.msra.mxu0 0.0
  %6530 = vmatprep.subr.mxu0 0.0
  %6531 = vmatpush1.msra.mxu0 0.0
  %6532 = vmatprep.subr.mxu0 0.0
  %6533 = vmatpush1.msra.mxu0 0.0
  %6534 = vmatprep.subr.mxu0 0.0
  %6535 = vmatpush1.msra.mxu0 0.0
  %6536 = vmatprep.subr.mxu0 0.0
  %6537 = vmatpush1.msra.mxu0 0.0
  %6538 = vmatprep.subr.mxu0 0.0
  %6539 = vmatpush1.msra.mxu0 0.0
  %6540 = vmatprep.subr.mxu0 0.0
  %6541 = vmatpush1.msra.mxu0 0.0
  %6542 = vmatprep.subr.mxu0 0.0
  %6543 = vmatpush1.msra.mxu0 0.0
  %6544 = vmatprep.subr.mxu0 0.0
  %6545 = vmatpush1.msra.mxu0 0.0
  %6546 = vmatprep.subr.mxu0 0.0
  %6547 = vmatpush1.msra.mxu0 0.0
  %6548 = vmatprep.subr.mxu0 0.0
  %6549 = vmatpush1.msra.mxu0 0.0
  %6550 = vmatprep.subr.mxu0 0.0
  %6551 = vmatpush1.msra.mxu0 0.0
  %6552 = vmatprep.mubr.f32.mxu0 0.0
  %6553 = vmatmul.mubr.f32.gmra.mrb[0].mxu0 %v5193
  %v6554 = vpop.f32.mrb[0].mxu0
  %v6555 = vadd.f32 %v6486, %v6554
  %v6556 = vpop.f32.mrb[0].mxu0
  %6557 = vmatprep.mubr.f32.mxu0 0.0
  %6558 = vmatmul.mubr.f32.gmra.mrb[0].mxu0 %v5196
  %v6559 = vpop.f32.mrb[0].mxu0
  %v6560 = vadd.f32 %v6486, %v6559
  %v6561 = vpop.f32.mrb[0].mxu0
  %6562 = vdwg.mxu0
  %v6564 = vsel %vm417, %v6377, 0
  %v6567 = vsel %vm417, %v6378, 0
  %v6570 = vsel %vm417, %v6463, 0
  %v6573 = vsel %vm417, %v6468, 0
  %6575 = vmatprep.subr.mxu0 0.0
  %6576 = vmatpush1.xpose.msra.mxu0 %v6570
  %6577 = vmatprep.subr.mxu0 0.0
  %6578 = vmatpush1.xpose.msra.mxu0 %v6573
  %6579 = vmatprep.subr.mxu0 0.0
  %6580 = vmatpush1.xpose.msra.mxu0 0.0
  %6581 = vmatprep.subr.mxu0 0.0
  %6582 = vmatpush1.xpose.msra.mxu0 0.0
  %6583 = vmatprep.subr.mxu0 0.0
  %6584 = vmatpush1.xpose.msra.mxu0 0.0
  %6585 = vmatprep.subr.mxu0 0.0
  %6586 = vmatpush1.xpose.msra.mxu0 0.0
  %6587 = vmatprep.subr.mxu0 0.0
  %6588 = vmatpush1.xpose.msra.mxu0 0.0
  %6589 = vmatprep.subr.mxu0 0.0
  %6590 = vmatpush1.xpose.msra.mxu0 0.0
  %6591 = vmatprep.subr.mxu0 0.0
  %6592 = vmatpush1.xpose.msra.mxu0 0.0
  %6593 = vmatprep.subr.mxu0 0.0
  %6594 = vmatpush1.xpose.msra.mxu0 0.0
  %6595 = vmatprep.subr.mxu0 0.0
  %6596 = vmatpush1.xpose.msra.mxu0 0.0
  %6597 = vmatprep.subr.mxu0 0.0
  %6598 = vmatpush1.xpose.msra.mxu0 0.0
  %6599 = vmatprep.subr.mxu0 0.0
  %6600 = vmatpush1.xpose.msra.mxu0 0.0
  %6601 = vmatprep.subr.mxu0 0.0
  %6602 = vmatpush1.xpose.msra.mxu0 0.0
  %6603 = vmatprep.subr.mxu0 0.0
  %6604 = vmatpush1.xpose.msra.mxu0 0.0
  %6605 = vmatprep.subr.mxu0 0.0
  %6606 = vmatpush1.xpose.msra.mxu0 0.0
  %6607 = vmatprep.subr.mxu0 0.0
  %6608 = vmatpush1.xpose.msra.mxu0 0.0
  %6609 = vmatprep.subr.mxu0 0.0
  %6610 = vmatpush1.xpose.msra.mxu0 0.0
  %6611 = vmatprep.subr.mxu0 0.0
  %6612 = vmatpush1.xpose.msra.mxu0 0.0
  %6613 = vmatprep.subr.mxu0 0.0
  %6614 = vmatpush1.xpose.msra.mxu0 0.0
  %6615 = vmatprep.subr.mxu0 0.0
  %6616 = vmatpush1.xpose.msra.mxu0 0.0
  %6617 = vmatprep.subr.mxu0 0.0
  %6618 = vmatpush1.xpose.msra.mxu0 0.0
  %6619 = vmatprep.subr.mxu0 0.0
  %6620 = vmatpush1.xpose.msra.mxu0 0.0
  %6621 = vmatprep.subr.mxu0 0.0
  %6622 = vmatpush1.xpose.msra.mxu0 0.0
  %6623 = vmatprep.subr.mxu0 0.0
  %6624 = vmatpush1.xpose.msra.mxu0 0.0
  %6625 = vmatprep.subr.mxu0 0.0
  %6626 = vmatpush1.xpose.msra.mxu0 0.0
  %6627 = vmatprep.subr.mxu0 0.0
  %6628 = vmatpush1.xpose.msra.mxu0 0.0
  %6629 = vmatprep.subr.mxu0 0.0
  %6630 = vmatpush1.xpose.msra.mxu0 0.0
  %6631 = vmatprep.subr.mxu0 0.0
  %6632 = vmatpush1.xpose.msra.mxu0 0.0
  %6633 = vmatprep.subr.mxu0 0.0
  %6634 = vmatpush1.xpose.msra.mxu0 0.0
  %6635 = vmatprep.subr.mxu0 0.0
  %6636 = vmatpush1.xpose.msra.mxu0 0.0
  %6637 = vmatprep.subr.mxu0 0.0
  %6638 = vmatpush1.xpose.msra.mxu0 0.0
  %6639 = vmatprep.mubr.f32.mxu0 0.0
  %6640 = vmatmul.mubr.f32.gmra.mrb[0].mxu0 %v6564
  %v6641 = vpop.f32.mrb[0].mxu0
  %v6642 = vadd.f32 %v134, %v6641
  %v6643 = vpop.f32.mrb[0].mxu0
  %6644 = vmatprep.mubr.f32.mxu0 0.0
  %6645 = vmatmul.mubr.f32.gmra.mrb[0].mxu0 %v6567
  %v6646 = vpop.f32.mrb[0].mxu0
  %v6647 = vadd.f32 %v135, %v6646
  %v6648 = vpop.f32.mrb[0].mxu0
  %6649 = vdwg.mxu0
  %v6650 = vsel %vm417, %v6642, -inf
  %6651 = vmax.xlane.f32.xlu0 %v6650
  %v6652 = vpop.xlane.xlu0 %6651
  %v6653 = vsel %vm417, %v6647, -inf
  %6654 = vmax.xlane.f32.xlu0 %v6653
  %v6655 = vpop.xlane.xlu0 %6654
  %v6656 = vsub.f32 %v6642, %v6652
  %v6657 = vsub.f32 %v6647, %v6655
  %v6658 = vmul.f32 %v6656, 1.442695
  %v6659 = vpow.pop %v6658
  %v6660 = vmul.f32 %v6657, 1.442695
  %v6661 = vpow.pop %v6660
  %v6662 = vsel %vm417, %v6659, 0.0
  %6663 = vadd.xlane.f32.xlu0 %v6662
  %v6664 = vpop.xlane.xlu0 %6663
  %v6665 = vsel %vm417, %v6661, 0.0
  %6666 = vadd.xlane.f32.xlu0 %v6665
  %v6667 = vpop.xlane.xlu0 %6666
  %v6668 = vrcp.pop %v6664
  %v6669 = vrcp.pop %v6667
  %v6670 = vmul.f32 %v6659, %v6668
  %v6671 = vmul.f32 %v6661, %v6669
  %v6673 = vsel %vm417, %v6670, 0
  %v6676 = vsel %vm417, %v6671, 0
  %6678 = vmatprep.subr.mxu0 0.0
  %6679 = vmatpush1.msra.mxu0 %v6555
  %6680 = vmatprep.subr.mxu0 0.0
  %6681 = vmatpush1.msra.mxu0 %v6560
  %6682 = vmatprep.subr.mxu0 0.0
  %6683 = vmatpush1.msra.mxu0 0.0
  %6684 = vmatprep.subr.mxu0 0.0
  %6685 = vmatpush1.msra.mxu0 0.0
  %6686 = vmatprep.subr.mxu0 0.0
  %6687 = vmatpush1.msra.mxu0 0.0
  %6688 = vmatprep.subr.mxu0 0.0
  %6689 = vmatpush1.msra.mxu0 0.0
  %6690 = vmatprep.subr.mxu0 0.0
  %6691 = vmatpush1.msra.mxu0 0.0
  %6692 = vmatprep.subr.mxu0 0.0
  %6693 = vmatpush1.msra.mxu0 0.0
  %6694 = vmatprep.subr.mxu0 0.0
  %6695 = vmatpush1.msra.mxu0 0.0
  %6696 = vmatprep.subr.mxu0 0.0
  %6697 = vmatpush1.msra.mxu0 0.0
  %6698 = vmatprep.subr.mxu0 0.0
  %6699 = vmatpush1.msra.mxu0 0.0
  %6700 = vmatprep.subr.mxu0 0.0
  %6701 = vmatpush1.msra.mxu0 0.0
  %6702 = vmatprep.subr.mxu0 0.0
  %6703 = vmatpush1.msra.mxu0 0.0
  %6704 = vmatprep.subr.mxu0 0.0
  %6705 = vmatpush1.msra.mxu0 0.0
  %6706 = vmatprep.subr.mxu0 0.0
  %6707 = vmatpush1.msra.mxu0 0.0
  %6708 = vmatprep.subr.mxu0 0.0
  %6709 = vmatpush1.msra.mxu0 0.0
  %6710 = vmatprep.subr.mxu0 0.0
  %6711 = vmatpush1.msra.mxu0 0.0
  %6712 = vmatprep.subr.mxu0 0.0
  %6713 = vmatpush1.msra.mxu0 0.0
  %6714 = vmatprep.subr.mxu0 0.0
  %6715 = vmatpush1.msra.mxu0 0.0
  %6716 = vmatprep.subr.mxu0 0.0
  %6717 = vmatpush1.msra.mxu0 0.0
  %6718 = vmatprep.subr.mxu0 0.0
  %6719 = vmatpush1.msra.mxu0 0.0
  %6720 = vmatprep.subr.mxu0 0.0
  %6721 = vmatpush1.msra.mxu0 0.0
  %6722 = vmatprep.subr.mxu0 0.0
  %6723 = vmatpush1.msra.mxu0 0.0
  %6724 = vmatprep.subr.mxu0 0.0
  %6725 = vmatpush1.msra.mxu0 0.0
  %6726 = vmatprep.subr.mxu0 0.0
  %6727 = vmatpush1.msra.mxu0 0.0
  %6728 = vmatprep.subr.mxu0 0.0
  %6729 = vmatpush1.msra.mxu0 0.0
  %6730 = vmatprep.subr.mxu0 0.0
  %6731 = vmatpush1.msra.mxu0 0.0
  %6732 = vmatprep.subr.mxu0 0.0
  %6733 = vmatpush1.msra.mxu0 0.0
  %6734 = vmatprep.subr.mxu0 0.0
  %6735 = vmatpush1.msra.mxu0 0.0
  %6736 = vmatprep.subr.mxu0 0.0
  %6737 = vmatpush1.msra.mxu0 0.0
  %6738 = vmatprep.subr.mxu0 0.0
  %6739 = vmatpush1.msra.mxu0 0.0
  %6740 = vmatprep.subr.mxu0 0.0
  %6741 = vmatpush1.msra.mxu0 0.0
  %6742 = vmatprep.mubr.f32.mxu0 0.0
  %6743 = vmatmul.mubr.f32.gmra.mrb[0].mxu0 %v6673
  %v6744 = vpop.f32.mrb[0].mxu0
  %v6745 = vadd.f32 0.0, %v6744
  %v6746 = vpop.f32.mrb[0].mxu0
  %6747 = vmatprep.mubr.f32.mxu0 0.0
  %6748 = vmatmul.mubr.f32.gmra.mrb[0].mxu0 %v6676
  %v6749 = vpop.f32.mrb[0].mxu0
  %v6750 = vadd.f32 0.0, %v6749
  %v6751 = vpop.f32.mrb[0].mxu0
  %6752 = vdwg.mxu0
  %s6753 = scalar_lea.vmem %s21, 96
  %v6754 = vld [vmem:[%s6753] sm:$0xff]
  %v6755 = vld [vmem:[%s6753 + $0x8] sm:$0xff]
  %v6757 = vsel %vm417, %v6745, 0
  %v6760 = vsel %vm417, %v6750, 0
  %6762 = vmatprep.subr.mxu0 0.0
  %6763 = vmatpush1.msra.mxu0 %v6754
  %6764 = vmatprep.subr.mxu0 0.0
  %6765 = vmatpush1.msra.mxu0 %v6755
  %6766 = vmatprep.subr.mxu0 0.0
  %6767 = vmatpush1.msra.mxu0 0.0
  %6768 = vmatprep.subr.mxu0 0.0
  %6769 = vmatpush1.msra.mxu0 0.0
  %6770 = vmatprep.subr.mxu0 0.0
  %6771 = vmatpush1.msra.mxu0 0.0
  %6772 = vmatprep.subr.mxu0 0.0
  %6773 = vmatpush1.msra.mxu0 0.0
  %6774 = vmatprep.subr.mxu0 0.0
  %6775 = vmatpush1.msra.mxu0 0.0
  %6776 = vmatprep.subr.mxu0 0.0
  %6777 = vmatpush1.msra.mxu0 0.0
  %6778 = vmatprep.subr.mxu0 0.0
  %6779 = vmatpush1.msra.mxu0 0.0
  %6780 = vmatprep.subr.mxu0 0.0
  %6781 = vmatpush1.msra.mxu0 0.0
  %6782 = vmatprep.subr.mxu0 0.0
  %6783 = vmatpush1.msra.mxu0 0.0
  %6784 = vmatprep.subr.mxu0 0.0
  %6785 = vmatpush1.msra.mxu0 0.0
  %6786 = vmatprep.subr.mxu0 0.0
  %6787 = vmatpush1.msra.mxu0 0.0
  %6788 = vmatprep.subr.mxu0 0.0
  %6789 = vmatpush1.msra.mxu0 0.0
  %6790 = vmatprep.subr.mxu0 0.0
  %6791 = vmatpush1.msra.mxu0 0.0
  %6792 = vmatprep.subr.mxu0 0.0
  %6793 = vmatpush1.msra.mxu0 0.0
  %6794 = vmatprep.subr.mxu0 0.0
  %6795 = vmatpush1.msra.mxu0 0.0
  %6796 = vmatprep.subr.mxu0 0.0
  %6797 = vmatpush1.msra.mxu0 0.0
  %6798 = vmatprep.subr.mxu0 0.0
  %6799 = vmatpush1.msra.mxu0 0.0
  %6800 = vmatprep.subr.mxu0 0.0
  %6801 = vmatpush1.msra.mxu0 0.0
  %6802 = vmatprep.subr.mxu0 0.0
  %6803 = vmatpush1.msra.mxu0 0.0
  %6804 = vmatprep.subr.mxu0 0.0
  %6805 = vmatpush1.msra.mxu0 0.0
  %6806 = vmatprep.subr.mxu0 0.0
  %6807 = vmatpush1.msra.mxu0 0.0
  %6808 = vmatprep.subr.mxu0 0.0
  %6809 = vmatpush1.msra.mxu0 0.0
  %6810 = vmatprep.subr.mxu0 0.0
  %6811 = vmatpush1.msra.mxu0 0.0
  %6812 = vmatprep.subr.mxu0 0.0
  %6813 = vmatpush1.msra.mxu0 0.0
  %6814 = vmatprep.subr.mxu0 0.0
  %6815 = vmatpush1.msra.mxu0 0.0
  %6816 = vmatprep.subr.mxu0 0.0
  %6817 = vmatpush1.msra.mxu0 0.0
  %6818 = vmatprep.subr.mxu0 0.0
  %6819 = vmatpush1.msra.mxu0 0.0
  %6820 = vmatprep.subr.mxu0 0.0
  %6821 = vmatpush1.msra.mxu0 0.0
  %6822 = vmatprep.subr.mxu0 0.0
  %6823 = vmatpush1.msra.mxu0 0.0
  %6824 = vmatprep.subr.mxu0 0.0
  %6825 = vmatpush1.msra.mxu0 0.0
  %6826 = vmatprep.mubr.f32.mxu0 0.0
  %6827 = vmatmul.mubr.f32.gmra.mrb[0].mxu0 %v6757
  %v6828 = vpop.f32.mrb[0].mxu0
  %v6829 = vadd.f32 0.0, %v6828
  %v6830 = vpop.f32.mrb[0].mxu0
  %6831 = vmatprep.mubr.f32.mxu0 0.0
  %6832 = vmatmul.mubr.f32.gmra.mrb[0].mxu0 %v6760
  %v6833 = vpop.f32.mrb[0].mxu0
  %v6834 = vadd.f32 0.0, %v6833
  %v6835 = vpop.f32.mrb[0].mxu0
  %6836 = vdwg.mxu0
  %v6837 = vadd.f32 %v6277, %v6829
  %v6838 = vadd.f32 %v6282, %v6834
  %s6839 = scalar_lea.vmem %s9, 448
  %v6840 = vld [vmem:[%s6839] sm:$0xff]
  %v6841 = vld [vmem:[%s6839 + $0x8] sm:$0xff]
  %v6842 = vld [vmem:[%s6839 + $0x10] sm:$0xff]
  %v6843 = vld [vmem:[%s6839 + $0x18] sm:$0xff]
  %v6844 = vld [vmem:[%s6839 + $0x20] sm:$0xff]
  %v6845 = vld [vmem:[%s6839 + $0x28] sm:$0xff]
  %v6846 = vld [vmem:[%s6839 + $0x30] sm:$0xff]
  %v6847 = vld [vmem:[%s6839 + $0x38] sm:$0xff]
  %s6848 = scalar_lea.vmem %s15, 7
  %v6849 = vld [vmem:[%s6848] sm:$0x1]
  %v6851 = vlaneseq
  %v6852 = vshrl.u32 %v6851, 7
  %v6853 = vsub.s32 0, %v6852
  %v6854 = vrot.slane %v6849, %v6853
  %6856 = vmatprep.subr.mxu0 0.0
  %6857 = vmatpush1.msra.mxu0 %v6840
  %6858 = vmatprep.subr.mxu0 0.0
  %6859 = vmatpush1.msra.mxu0 %v6841
  %6860 = vmatprep.subr.mxu0 0.0
  %6861 = vmatpush1.msra.mxu0 %v6842
  %6862 = vmatprep.subr.mxu0 0.0
  %6863 = vmatpush1.msra.mxu0 %v6843
  %6864 = vmatprep.subr.mxu0 0.0
  %6865 = vmatpush1.msra.mxu0 %v6844
  %6866 = vmatprep.subr.mxu0 0.0
  %6867 = vmatpush1.msra.mxu0 %v6845
  %6868 = vmatprep.subr.mxu0 0.0
  %6869 = vmatpush1.msra.mxu0 %v6846
  %6870 = vmatprep.subr.mxu0 0.0
  %6871 = vmatpush1.msra.mxu0 %v6847
  %6872 = vmatprep.subr.mxu0 0.0
  %6873 = vmatpush1.msra.mxu0 0.0
  %6874 = vmatprep.subr.mxu0 0.0
  %6875 = vmatpush1.msra.mxu0 0.0
  %6876 = vmatprep.subr.mxu0 0.0
  %6877 = vmatpush1.msra.mxu0 0.0
  %6878 = vmatprep.subr.mxu0 0.0
  %6879 = vmatpush1.msra.mxu0 0.0
  %6880 = vmatprep.subr.mxu0 0.0
  %6881 = vmatpush1.msra.mxu0 0.0
  %6882 = vmatprep.subr.mxu0 0.0
  %6883 = vmatpush1.msra.mxu0 0.0
  %6884 = vmatprep.subr.mxu0 0.0
  %6885 = vmatpush1.msra.mxu0 0.0
  %6886 = vmatprep.subr.mxu0 0.0
  %6887 = vmatpush1.msra.mxu0 0.0
  %6888 = vmatprep.subr.mxu0 0.0
  %6889 = vmatpush1.msra.mxu0 0.0
  %6890 = vmatprep.subr.mxu0 0.0
  %6891 = vmatpush1.msra.mxu0 0.0
  %6892 = vmatprep.subr.mxu0 0.0
  %6893 = vmatpush1.msra.mxu0 0.0
  %6894 = vmatprep.subr.mxu0 0.0
  %6895 = vmatpush1.msra.mxu0 0.0
  %6896 = vmatprep.subr.mxu0 0.0
  %6897 = vmatpush1.msra.mxu0 0.0
  %6898 = vmatprep.subr.mxu0 0.0
  %6899 = vmatpush1.msra.mxu0 0.0
  %6900 = vmatprep.subr.mxu0 0.0
  %6901 = vmatpush1.msra.mxu0 0.0
  %6902 = vmatprep.subr.mxu0 0.0
  %6903 = vmatpush1.msra.mxu0 0.0
  %6904 = vmatprep.subr.mxu0 0.0
  %6905 = vmatpush1.msra.mxu0 0.0
  %6906 = vmatprep.subr.mxu0 0.0
  %6907 = vmatpush1.msra.mxu0 0.0
  %6908 = vmatprep.subr.mxu0 0.0
  %6909 = vmatpush1.msra.mxu0 0.0
  %6910 = vmatprep.subr.mxu0 0.0
  %6911 = vmatpush1.msra.mxu0 0.0
  %6912 = vmatprep.subr.mxu0 0.0
  %6913 = vmatpush1.msra.mxu0 0.0
  %6914 = vmatprep.subr.mxu0 0.0
  %6915 = vmatpush1.msra.mxu0 0.0
  %6916 = vmatprep.subr.mxu0 0.0
  %6917 = vmatpush1.msra.mxu0 0.0
  %6918 = vmatprep.subr.mxu0 0.0
  %6919 = vmatpush1.msra.mxu0 0.0
  %6920 = vmatprep.mubr.f32.mxu0 0.0
  %6921 = vmatmul.mubr.f32.gmra.mrb[0].mxu0 %v5193
  %v6922 = vpop.f32.mrb[0].mxu0
  %v6923 = vadd.f32 %v6854, %v6922
  %v6924 = vpop.f32.mrb[0].mxu0
  %6925 = vmatprep.mubr.f32.mxu0 0.0
  %6926 = vmatmul.mubr.f32.gmra.mrb[0].mxu0 %v5196
  %v6927 = vpop.f32.mrb[0].mxu0
  %v6928 = vadd.f32 %v6854, %v6927
  %v6929 = vpop.f32.mrb[0].mxu0
  %6930 = vdwg.mxu0
  %v6931 = vmul.f32 %v6923, 0.25
  %v6932 = vmul.f32 %v6928, 0.25
  %s6933 = scalar_lea.vmem %s11, 448
  %v6934 = vld [vmem:[%s6933] sm:$0xff]
  %v6935 = vld [vmem:[%s6933 + $0x8] sm:$0xff]
  %v6936 = vld [vmem:[%s6933 + $0x10] sm:$0xff]
  %v6937 = vld [vmem:[%s6933 + $0x18] sm:$0xff]
  %v6938 = vld [vmem:[%s6933 + $0x20] sm:$0xff]
  %v6939 = vld [vmem:[%s6933 + $0x28] sm:$0xff]
  %v6940 = vld [vmem:[%s6933 + $0x30] sm:$0xff]
  %v6941 = vld [vmem:[%s6933 + $0x38] sm:$0xff]
  %s6942 = scalar_lea.vmem %s17, 7
  %v6943 = vld [vmem:[%s6942] sm:$0x1]
  %v6945 = vlaneseq
  %v6946 = vshrl.u32 %v6945, 7
  %v6947 = vsub.s32 0, %v6946
  %v6948 = vrot.slane %v6943, %v6947
  %6950 = vmatprep.subr.mxu0 0.0
  %6951 = vmatpush1.msra.mxu0 %v6934
  %6952 = vmatprep.subr.mxu0 0.0
  %6953 = vmatpush1.msra.mxu0 %v6935
  %6954 = vmatprep.subr.mxu0 0.0
  %6955 = vmatpush1.msra.mxu0 %v6936
  %6956 = vmatprep.subr.mxu0 0.0
  %6957 = vmatpush1.msra.mxu0 %v6937
  %6958 = vmatprep.subr.mxu0 0.0
  %6959 = vmatpush1.msra.mxu0 %v6938
  %6960 = vmatprep.subr.mxu0 0.0
  %6961 = vmatpush1.msra.mxu0 %v6939
  %6962 = vmatprep.subr.mxu0 0.0
  %6963 = vmatpush1.msra.mxu0 %v6940
  %6964 = vmatprep.subr.mxu0 0.0
  %6965 = vmatpush1.msra.mxu0 %v6941
  %6966 = vmatprep.subr.mxu0 0.0
  %6967 = vmatpush1.msra.mxu0 0.0
  %6968 = vmatprep.subr.mxu0 0.0
  %6969 = vmatpush1.msra.mxu0 0.0
  %6970 = vmatprep.subr.mxu0 0.0
  %6971 = vmatpush1.msra.mxu0 0.0
  %6972 = vmatprep.subr.mxu0 0.0
  %6973 = vmatpush1.msra.mxu0 0.0
  %6974 = vmatprep.subr.mxu0 0.0
  %6975 = vmatpush1.msra.mxu0 0.0
  %6976 = vmatprep.subr.mxu0 0.0
  %6977 = vmatpush1.msra.mxu0 0.0
  %6978 = vmatprep.subr.mxu0 0.0
  %6979 = vmatpush1.msra.mxu0 0.0
  %6980 = vmatprep.subr.mxu0 0.0
  %6981 = vmatpush1.msra.mxu0 0.0
  %6982 = vmatprep.subr.mxu0 0.0
  %6983 = vmatpush1.msra.mxu0 0.0
  %6984 = vmatprep.subr.mxu0 0.0
  %6985 = vmatpush1.msra.mxu0 0.0
  %6986 = vmatprep.subr.mxu0 0.0
  %6987 = vmatpush1.msra.mxu0 0.0
  %6988 = vmatprep.subr.mxu0 0.0
  %6989 = vmatpush1.msra.mxu0 0.0
  %6990 = vmatprep.subr.mxu0 0.0
  %6991 = vmatpush1.msra.mxu0 0.0
  %6992 = vmatprep.subr.mxu0 0.0
  %6993 = vmatpush1.msra.mxu0 0.0
  %6994 = vmatprep.subr.mxu0 0.0
  %6995 = vmatpush1.msra.mxu0 0.0
  %6996 = vmatprep.subr.mxu0 0.0
  %6997 = vmatpush1.msra.mxu0 0.0
  %6998 = vmatprep.subr.mxu0 0.0
  %6999 = vmatpush1.msra.mxu0 0.0
  %7000 = vmatprep.subr.mxu0 0.0
  %7001 = vmatpush1.msra.mxu0 0.0
  %7002 = vmatprep.subr.mxu0 0.0
  %7003 = vmatpush1.msra.mxu0 0.0
  %7004 = vmatprep.subr.mxu0 0.0
  %7005 = vmatpush1.msra.mxu0 0.0
  %7006 = vmatprep.subr.mxu0 0.0
  %7007 = vmatpush1.msra.mxu0 0.0
  %7008 = vmatprep.subr.mxu0 0.0
  %7009 = vmatpush1.msra.mxu0 0.0
  %7010 = vmatprep.subr.mxu0 0.0
  %7011 = vmatpush1.msra.mxu0 0.0
  %7012 = vmatprep.subr.mxu0 0.0
  %7013 = vmatpush1.msra.mxu0 0.0
  %7014 = vmatprep.mubr.f32.mxu0 0.0
  %7015 = vmatmul.mubr.f32.gmra.mrb[0].mxu0 %v5193
  %v7016 = vpop.f32.mrb[0].mxu0
  %v7017 = vadd.f32 %v6948, %v7016
  %v7018 = vpop.f32.mrb[0].mxu0
  %7019 = vmatprep.mubr.f32.mxu0 0.0
  %7020 = vmatmul.mubr.f32.gmra.mrb[0].mxu0 %v5196
  %v7021 = vpop.f32.mrb[0].mxu0
  %v7022 = vadd.f32 %v6948, %v7021
  %v7023 = vpop.f32.mrb[0].mxu0
  %7024 = vdwg.mxu0
  %s7025 = scalar_lea.vmem %s13, 448
  %v7026 = vld [vmem:[%s7025] sm:$0xff]
  %v7027 = vld [vmem:[%s7025 + $0x8] sm:$0xff]
  %v7028 = vld [vmem:[%s7025 + $0x10] sm:$0xff]
  %v7029 = vld [vmem:[%s7025 + $0x18] sm:$0xff]
  %v7030 = vld [vmem:[%s7025 + $0x20] sm:$0xff]
  %v7031 = vld [vmem:[%s7025 + $0x28] sm:$0xff]
  %v7032 = vld [vmem:[%s7025 + $0x30] sm:$0xff]
  %v7033 = vld [vmem:[%s7025 + $0x38] sm:$0xff]
  %s7034 = scalar_lea.vmem %s19, 7
  %v7035 = vld [vmem:[%s7034] sm:$0x1]
  %v7037 = vlaneseq
  %v7038 = vshrl.u32 %v7037, 7
  %v7039 = vsub.s32 0, %v7038
  %v7040 = vrot.slane %v7035, %v7039
  %7042 = vmatprep.subr.mxu0 0.0
  %7043 = vmatpush1.msra.mxu0 %v7026
  %7044 = vmatprep.subr.mxu0 0.0
  %7045 = vmatpush1.msra.mxu0 %v7027
  %7046 = vmatprep.subr.mxu0 0.0
  %7047 = vmatpush1.msra.mxu0 %v7028
  %7048 = vmatprep.subr.mxu0 0.0
  %7049 = vmatpush1.msra.mxu0 %v7029
  %7050 = vmatprep.subr.mxu0 0.0
  %7051 = vmatpush1.msra.mxu0 %v7030
  %7052 = vmatprep.subr.mxu0 0.0
  %7053 = vmatpush1.msra.mxu0 %v7031
  %7054 = vmatprep.subr.mxu0 0.0
  %7055 = vmatpush1.msra.mxu0 %v7032
  %7056 = vmatprep.subr.mxu0 0.0
  %7057 = vmatpush1.msra.mxu0 %v7033
  %7058 = vmatprep.subr.mxu0 0.0
  %7059 = vmatpush1.msra.mxu0 0.0
  %7060 = vmatprep.subr.mxu0 0.0
  %7061 = vmatpush1.msra.mxu0 0.0
  %7062 = vmatprep.subr.mxu0 0.0
  %7063 = vmatpush1.msra.mxu0 0.0
  %7064 = vmatprep.subr.mxu0 0.0
  %7065 = vmatpush1.msra.mxu0 0.0
  %7066 = vmatprep.subr.mxu0 0.0
  %7067 = vmatpush1.msra.mxu0 0.0
  %7068 = vmatprep.subr.mxu0 0.0
  %7069 = vmatpush1.msra.mxu0 0.0
  %7070 = vmatprep.subr.mxu0 0.0
  %7071 = vmatpush1.msra.mxu0 0.0
  %7072 = vmatprep.subr.mxu0 0.0
  %7073 = vmatpush1.msra.mxu0 0.0
  %7074 = vmatprep.subr.mxu0 0.0
  %7075 = vmatpush1.msra.mxu0 0.0
  %7076 = vmatprep.subr.mxu0 0.0
  %7077 = vmatpush1.msra.mxu0 0.0
  %7078 = vmatprep.subr.mxu0 0.0
  %7079 = vmatpush1.msra.mxu0 0.0
  %7080 = vmatprep.subr.mxu0 0.0
  %7081 = vmatpush1.msra.mxu0 0.0
  %7082 = vmatprep.subr.mxu0 0.0
  %7083 = vmatpush1.msra.mxu0 0.0
  %7084 = vmatprep.subr.mxu0 0.0
  %7085 = vmatpush1.msra.mxu0 0.0
  %7086 = vmatprep.subr.mxu0 0.0
  %7087 = vmatpush1.msra.mxu0 0.0
  %7088 = vmatprep.subr.mxu0 0.0
  %7089 = vmatpush1.msra.mxu0 0.0
  %7090 = vmatprep.subr.mxu0 0.0
  %7091 = vmatpush1.msra.mxu0 0.0
  %7092 = vmatprep.subr.mxu0 0.0
  %7093 = vmatpush1.msra.mxu0 0.0
  %7094 = vmatprep.subr.mxu0 0.0
  %7095 = vmatpush1.msra.mxu0 0.0
  %7096 = vmatprep.subr.mxu0 0.0
  %7097 = vmatpush1.msra.mxu0 0.0
  %7098 = vmatprep.subr.mxu0 0.0
  %7099 = vmatpush1.msra.mxu0 0.0
  %7100 = vmatprep.subr.mxu0 0.0
  %7101 = vmatpush1.msra.mxu0 0.0
  %7102 = vmatprep.subr.mxu0 0.0
  %7103 = vmatpush1.msra.mxu0 0.0
  %7104 = vmatprep.subr.mxu0 0.0
  %7105 = vmatpush1.msra.mxu0 0.0
  %7106 = vmatprep.mubr.f32.mxu0 0.0
  %7107 = vmatmul.mubr.f32.gmra.mrb[0].mxu0 %v5193
  %v7108 = vpop.f32.mrb[0].mxu0
  %v7109 = vadd.f32 %v7040, %v7108
  %v7110 = vpop.f32.mrb[0].mxu0
  %7111 = vmatprep.mubr.f32.mxu0 0.0
  %7112 = vmatmul.mubr.f32.gmra.mrb[0].mxu0 %v5196
  %v7113 = vpop.f32.mrb[0].mxu0
  %v7114 = vadd.f32 %v7040, %v7113
  %v7115 = vpop.f32.mrb[0].mxu0
  %7116 = vdwg.mxu0
  %v7118 = vsel %vm417, %v6931, 0
  %v7121 = vsel %vm417, %v6932, 0
  %v7124 = vsel %vm417, %v7017, 0
  %v7127 = vsel %vm417, %v7022, 0
  %7129 = vmatprep.subr.mxu0 0.0
  %7130 = vmatpush1.xpose.msra.mxu0 %v7124
  %7131 = vmatprep.subr.mxu0 0.0
  %7132 = vmatpush1.xpose.msra.mxu0 %v7127
  %7133 = vmatprep.subr.mxu0 0.0
  %7134 = vmatpush1.xpose.msra.mxu0 0.0
  %7135 = vmatprep.subr.mxu0 0.0
  %7136 = vmatpush1.xpose.msra.mxu0 0.0
  %7137 = vmatprep.subr.mxu0 0.0
  %7138 = vmatpush1.xpose.msra.mxu0 0.0
  %7139 = vmatprep.subr.mxu0 0.0
  %7140 = vmatpush1.xpose.msra.mxu0 0.0
  %7141 = vmatprep.subr.mxu0 0.0
  %7142 = vmatpush1.xpose.msra.mxu0 0.0
  %7143 = vmatprep.subr.mxu0 0.0
  %7144 = vmatpush1.xpose.msra.mxu0 0.0
  %7145 = vmatprep.subr.mxu0 0.0
  %7146 = vmatpush1.xpose.msra.mxu0 0.0
  %7147 = vmatprep.subr.mxu0 0.0
  %7148 = vmatpush1.xpose.msra.mxu0 0.0
  %7149 = vmatprep.subr.mxu0 0.0
  %7150 = vmatpush1.xpose.msra.mxu0 0.0
  %7151 = vmatprep.subr.mxu0 0.0
  %7152 = vmatpush1.xpose.msra.mxu0 0.0
  %7153 = vmatprep.subr.mxu0 0.0
  %7154 = vmatpush1.xpose.msra.mxu0 0.0
  %7155 = vmatprep.subr.mxu0 0.0
  %7156 = vmatpush1.xpose.msra.mxu0 0.0
  %7157 = vmatprep.subr.mxu0 0.0
  %7158 = vmatpush1.xpose.msra.mxu0 0.0
  %7159 = vmatprep.subr.mxu0 0.0
  %7160 = vmatpush1.xpose.msra.mxu0 0.0
  %7161 = vmatprep.subr.mxu0 0.0
  %7162 = vmatpush1.xpose.msra.mxu0 0.0
  %7163 = vmatprep.subr.mxu0 0.0
  %7164 = vmatpush1.xpose.msra.mxu0 0.0
  %7165 = vmatprep.subr.mxu0 0.0
  %7166 = vmatpush1.xpose.msra.mxu0 0.0
  %7167 = vmatprep.subr.mxu0 0.0
  %7168 = vmatpush1.xpose.msra.mxu0 0.0
  %7169 = vmatprep.subr.mxu0 0.0
  %7170 = vmatpush1.xpose.msra.mxu0 0.0
  %7171 = vmatprep.subr.mxu0 0.0
  %7172 = vmatpush1.xpose.msra.mxu0 0.0
  %7173 = vmatprep.subr.mxu0 0.0
  %7174 = vmatpush1.xpose.msra.mxu0 0.0
  %7175 = vmatprep.subr.mxu0 0.0
  %7176 = vmatpush1.xpose.msra.mxu0 0.0
  %7177 = vmatprep.subr.mxu0 0.0
  %7178 = vmatpush1.xpose.msra.mxu0 0.0
  %7179 = vmatprep.subr.mxu0 0.0
  %7180 = vmatpush1.xpose.msra.mxu0 0.0
  %7181 = vmatprep.subr.mxu0 0.0
  %7182 = vmatpush1.xpose.msra.mxu0 0.0
  %7183 = vmatprep.subr.mxu0 0.0
  %7184 = vmatpush1.xpose.msra.mxu0 0.0
  %7185 = vmatprep.subr.mxu0 0.0
  %7186 = vmatpush1.xpose.msra.mxu0 0.0
  %7187 = vmatprep.subr.mxu0 0.0
  %7188 = vmatpush1.xpose.msra.mxu0 0.0
  %7189 = vmatprep.subr.mxu0 0.0
  %7190 = vmatpush1.xpose.msra.mxu0 0.0
  %7191 = vmatprep.subr.mxu0 0.0
  %7192 = vmatpush1.xpose.msra.mxu0 0.0
  %7193 = vmatprep.mubr.f32.mxu0 0.0
  %7194 = vmatmul.mubr.f32.gmra.mrb[0].mxu0 %v7118
  %v7195 = vpop.f32.mrb[0].mxu0
  %v7196 = vadd.f32 %v134, %v7195
  %v7197 = vpop.f32.mrb[0].mxu0
  %7198 = vmatprep.mubr.f32.mxu0 0.0
  %7199 = vmatmul.mubr.f32.gmra.mrb[0].mxu0 %v7121
  %v7200 = vpop.f32.mrb[0].mxu0
  %v7201 = vadd.f32 %v135, %v7200
  %v7202 = vpop.f32.mrb[0].mxu0
  %7203 = vdwg.mxu0
  %v7204 = vsel %vm417, %v7196, -inf
  %7205 = vmax.xlane.f32.xlu0 %v7204
  %v7206 = vpop.xlane.xlu0 %7205
  %v7207 = vsel %vm417, %v7201, -inf
  %7208 = vmax.xlane.f32.xlu0 %v7207
  %v7209 = vpop.xlane.xlu0 %7208
  %v7210 = vsub.f32 %v7196, %v7206
  %v7211 = vsub.f32 %v7201, %v7209
  %v7212 = vmul.f32 %v7210, 1.442695
  %v7213 = vpow.pop %v7212
  %v7214 = vmul.f32 %v7211, 1.442695
  %v7215 = vpow.pop %v7214
  %v7216 = vsel %vm417, %v7213, 0.0
  %7217 = vadd.xlane.f32.xlu0 %v7216
  %v7218 = vpop.xlane.xlu0 %7217
  %v7219 = vsel %vm417, %v7215, 0.0
  %7220 = vadd.xlane.f32.xlu0 %v7219
  %v7221 = vpop.xlane.xlu0 %7220
  %v7222 = vrcp.pop %v7218
  %v7223 = vrcp.pop %v7221
  %v7224 = vmul.f32 %v7213, %v7222
  %v7225 = vmul.f32 %v7215, %v7223
  %v7227 = vsel %vm417, %v7224, 0
  %v7230 = vsel %vm417, %v7225, 0
  %7232 = vmatprep.subr.mxu0 0.0
  %7233 = vmatpush1.msra.mxu0 %v7109
  %7234 = vmatprep.subr.mxu0 0.0
  %7235 = vmatpush1.msra.mxu0 %v7114
  %7236 = vmatprep.subr.mxu0 0.0
  %7237 = vmatpush1.msra.mxu0 0.0
  %7238 = vmatprep.subr.mxu0 0.0
  %7239 = vmatpush1.msra.mxu0 0.0
  %7240 = vmatprep.subr.mxu0 0.0
  %7241 = vmatpush1.msra.mxu0 0.0
  %7242 = vmatprep.subr.mxu0 0.0
  %7243 = vmatpush1.msra.mxu0 0.0
  %7244 = vmatprep.subr.mxu0 0.0
  %7245 = vmatpush1.msra.mxu0 0.0
  %7246 = vmatprep.subr.mxu0 0.0
  %7247 = vmatpush1.msra.mxu0 0.0
  %7248 = vmatprep.subr.mxu0 0.0
  %7249 = vmatpush1.msra.mxu0 0.0
  %7250 = vmatprep.subr.mxu0 0.0
  %7251 = vmatpush1.msra.mxu0 0.0
  %7252 = vmatprep.subr.mxu0 0.0
  %7253 = vmatpush1.msra.mxu0 0.0
  %7254 = vmatprep.subr.mxu0 0.0
  %7255 = vmatpush1.msra.mxu0 0.0
  %7256 = vmatprep.subr.mxu0 0.0
  %7257 = vmatpush1.msra.mxu0 0.0
  %7258 = vmatprep.subr.mxu0 0.0
  %7259 = vmatpush1.msra.mxu0 0.0
  %7260 = vmatprep.subr.mxu0 0.0
  %7261 = vmatpush1.msra.mxu0 0.0
  %7262 = vmatprep.subr.mxu0 0.0
  %7263 = vmatpush1.msra.mxu0 0.0
  %7264 = vmatprep.subr.mxu0 0.0
  %7265 = vmatpush1.msra.mxu0 0.0
  %7266 = vmatprep.subr.mxu0 0.0
  %7267 = vmatpush1.msra.mxu0 0.0
  %7268 = vmatprep.subr.mxu0 0.0
  %7269 = vmatpush1.msra.mxu0 0.0
  %7270 = vmatprep.subr.mxu0 0.0
  %7271 = vmatpush1.msra.mxu0 0.0
  %7272 = vmatprep.subr.mxu0 0.0
  %7273 = vmatpush1.msra.mxu0 0.0
  %7274 = vmatprep.subr.mxu0 0.0
  %7275 = vmatpush1.msra.mxu0 0.0
  %7276 = vmatprep.subr.mxu0 0.0
  %7277 = vmatpush1.msra.mxu0 0.0
  %7278 = vmatprep.subr.mxu0 0.0
  %7279 = vmatpush1.msra.mxu0 0.0
  %7280 = vmatprep.subr.mxu0 0.0
  %7281 = vmatpush1.msra.mxu0 0.0
  %7282 = vmatprep.subr.mxu0 0.0
  %7283 = vmatpush1.msra.mxu0 0.0
  %7284 = vmatprep.subr.mxu0 0.0
  %7285 = vmatpush1.msra.mxu0 0.0
  %7286 = vmatprep.subr.mxu0 0.0
  %7287 = vmatpush1.msra.mxu0 0.0
  %7288 = vmatprep.subr.mxu0 0.0
  %7289 = vmatpush1.msra.mxu0 0.0
  %7290 = vmatprep.subr.mxu0 0.0
  %7291 = vmatpush1.msra.mxu0 0.0
  %7292 = vmatprep.subr.mxu0 0.0
  %7293 = vmatpush1.msra.mxu0 0.0
  %7294 = vmatprep.subr.mxu0 0.0
  %7295 = vmatpush1.msra.mxu0 0.0
  %7296 = vmatprep.mubr.f32.mxu0 0.0
  %7297 = vmatmul.mubr.f32.gmra.mrb[0].mxu0 %v7227
  %v7298 = vpop.f32.mrb[0].mxu0
  %v7299 = vadd.f32 0.0, %v7298
  %v7300 = vpop.f32.mrb[0].mxu0
  %7301 = vmatprep.mubr.f32.mxu0 0.0
  %7302 = vmatmul.mubr.f32.gmra.mrb[0].mxu0 %v7230
  %v7303 = vpop.f32.mrb[0].mxu0
  %v7304 = vadd.f32 0.0, %v7303
  %v7305 = vpop.f32.mrb[0].mxu0
  %7306 = vdwg.mxu0
  %s7307 = scalar_lea.vmem %s21, 112
  %v7308 = vld [vmem:[%s7307] sm:$0xff]
  %v7309 = vld [vmem:[%s7307 + $0x8] sm:$0xff]
  %v7311 = vsel %vm417, %v7299, 0
  %v7314 = vsel %vm417, %v7304, 0
  %7316 = vmatprep.subr.mxu0 0.0
  %7317 = vmatpush1.msra.mxu0 %v7308
  %7318 = vmatprep.subr.mxu0 0.0
  %7319 = vmatpush1.msra.mxu0 %v7309
  %7320 = vmatprep.subr.mxu0 0.0
  %7321 = vmatpush1.msra.mxu0 0.0
  %7322 = vmatprep.subr.mxu0 0.0
  %7323 = vmatpush1.msra.mxu0 0.0
  %7324 = vmatprep.subr.mxu0 0.0
  %7325 = vmatpush1.msra.mxu0 0.0
  %7326 = vmatprep.subr.mxu0 0.0
  %7327 = vmatpush1.msra.mxu0 0.0
  %7328 = vmatprep.subr.mxu0 0.0
  %7329 = vmatpush1.msra.mxu0 0.0
  %7330 = vmatprep.subr.mxu0 0.0
  %7331 = vmatpush1.msra.mxu0 0.0
  %7332 = vmatprep.subr.mxu0 0.0
  %7333 = vmatpush1.msra.mxu0 0.0
  %7334 = vmatprep.subr.mxu0 0.0
  %7335 = vmatpush1.msra.mxu0 0.0
  %7336 = vmatprep.subr.mxu0 0.0
  %7337 = vmatpush1.msra.mxu0 0.0
  %7338 = vmatprep.subr.mxu0 0.0
  %7339 = vmatpush1.msra.mxu0 0.0
  %7340 = vmatprep.subr.mxu0 0.0
  %7341 = vmatpush1.msra.mxu0 0.0
  %7342 = vmatprep.subr.mxu0 0.0
  %7343 = vmatpush1.msra.mxu0 0.0
  %7344 = vmatprep.subr.mxu0 0.0
  %7345 = vmatpush1.msra.mxu0 0.0
  %7346 = vmatprep.subr.mxu0 0.0
  %7347 = vmatpush1.msra.mxu0 0.0
  %7348 = vmatprep.subr.mxu0 0.0
  %7349 = vmatpush1.msra.mxu0 0.0
  %7350 = vmatprep.subr.mxu0 0.0
  %7351 = vmatpush1.msra.mxu0 0.0
  %7352 = vmatprep.subr.mxu0 0.0
  %7353 = vmatpush1.msra.mxu0 0.0
  %7354 = vmatprep.subr.mxu0 0.0
  %7355 = vmatpush1.msra.mxu0 0.0
  %7356 = vmatprep.subr.mxu0 0.0
  %7357 = vmatpush1.msra.mxu0 0.0
  %7358 = vmatprep.subr.mxu0 0.0
  %7359 = vmatpush1.msra.mxu0 0.0
  %7360 = vmatprep.subr.mxu0 0.0
  %7361 = vmatpush1.msra.mxu0 0.0
  %7362 = vmatprep.subr.mxu0 0.0
  %7363 = vmatpush1.msra.mxu0 0.0
  %7364 = vmatprep.subr.mxu0 0.0
  %7365 = vmatpush1.msra.mxu0 0.0
  %7366 = vmatprep.subr.mxu0 0.0
  %7367 = vmatpush1.msra.mxu0 0.0
  %7368 = vmatprep.subr.mxu0 0.0
  %7369 = vmatpush1.msra.mxu0 0.0
  %7370 = vmatprep.subr.mxu0 0.0
  %7371 = vmatpush1.msra.mxu0 0.0
  %7372 = vmatprep.subr.mxu0 0.0
  %7373 = vmatpush1.msra.mxu0 0.0
  %7374 = vmatprep.subr.mxu0 0.0
  %7375 = vmatpush1.msra.mxu0 0.0
  %7376 = vmatprep.subr.mxu0 0.0
  %7377 = vmatpush1.msra.mxu0 0.0
  %7378 = vmatprep.subr.mxu0 0.0
  %7379 = vmatpush1.msra.mxu0 0.0
  %7380 = vmatprep.mubr.f32.mxu0 0.0
  %7381 = vmatmul.mubr.f32.gmra.mrb[0].mxu0 %v7311
  %v7382 = vpop.f32.mrb[0].mxu0
  %v7383 = vadd.f32 0.0, %v7382
  %v7384 = vpop.f32.mrb[0].mxu0
  %7385 = vmatprep.mubr.f32.mxu0 0.0
  %7386 = vmatmul.mubr.f32.gmra.mrb[0].mxu0 %v7314
  %v7387 = vpop.f32.mrb[0].mxu0
  %v7388 = vadd.f32 0.0, %v7387
  %v7389 = vpop.f32.mrb[0].mxu0
  %7390 = vdwg.mxu0
  %v7391 = vadd.f32 %v6837, %v7383
  %v7392 = vadd.f32 %v6838, %v7388
  %s7393 = scalar_lea.vmem %s23, 1
  %v7394 = vld [vmem:[%s7393] sm:$0x1]
  %v7396 = vlaneseq
  %v7397 = vshrl.u32 %v7396, 7
  %v7398 = vsub.s32 0, %v7397
  %v7399 = vrot.slane %v7394, %v7398
  %v7401 = vadd.f32 %v7391, %v7399
  %v7402 = vadd.f32 %v7392, %v7399
  %v7403 = vadd.f32 %v5173, %v7401
  %v7404 = vadd.f32 %v5174, %v7402
  %s7405 = scalar_lea.vmem %s41, 1
  %v7406 = vld [vmem:[%s7405] sm:$0x1]
  %s7407 = scalar_lea.vmem %s43, 1
  %v7408 = vld [vmem:[%s7407] sm:$0x1]
  %v7409 = vsel %vm153, %v7403, 0.0
  %7410 = vadd.xlane.f32.xlu0 %v7409
  %v7411 = vpop.xlane.xlu0 %7410
  %v7412 = vsel %vm153, %v7404, 0.0
  %7413 = vadd.xlane.f32.xlu0 %v7412
  %v7414 = vpop.xlane.xlu0 %7413
  %v7415 = vmul.f32 %v7411, %v2370
  %v7416 = vmul.f32 %v7414, %v2370
  %v7417 = vsub.f32 %v7403, %v7415
  %v7418 = vsub.f32 %v7404, %v7416
  %v7419 = vmul.f32 %v7417, %v7417
  %v7420 = vmul.f32 %v7418, %v7418
  %v7421 = vsel %vm153, %v7419, 0.0
  %7422 = vadd.xlane.f32.xlu0 %v7421
  %v7423 = vpop.xlane.xlu0 %7422
  %v7424 = vsel %vm153, %v7420, 0.0
  %7425 = vadd.xlane.f32.xlu0 %v7424
  %v7426 = vpop.xlane.xlu0 %7425
  %v7427 = vmul.f32 %v7423, %v2370
  %v7428 = vmul.f32 %v7426, %v2370
  %v7429 = vadd.f32 %v7427, 1e-05
  %v7430 = vadd.f32 %v7428, 1e-05
  %v7431 = vrsqrt.pop %v7429
  %v7432 = vrsqrt.pop %v7430
  %v7433 = vmul.f32 %v7417, %v7431
  %v7434 = vmul.f32 %v7418, %v7432
  %v7436 = vlaneseq
  %v7437 = vshrl.u32 %v7436, 7
  %v7438 = vsub.s32 0, %v7437
  %v7439 = vrot.slane %v7406, %v7438
  %v7441 = vmul.f32 %v7433, %v7439
  %v7442 = vmul.f32 %v7434, %v7439
  %v7444 = vlaneseq
  %v7445 = vshrl.u32 %v7444, 7
  %v7446 = vsub.s32 0, %v7445
  %v7447 = vrot.slane %v7408, %v7446
  %v7449 = vadd.f32 %v7441, %v7447
  %v7450 = vadd.f32 %v7442, %v7447
  %s7451 = scalar_lea.vmem %s25, 256
  %v7452 = vld [vmem:[%s7451] sm:$0xff]
  %v7453 = vld [vmem:[%s7451 + $0x8] sm:$0xff]
  %v7454 = vld [vmem:[%s7451 + $0x10] sm:$0xff]
  %v7455 = vld [vmem:[%s7451 + $0x18] sm:$0xff]
  %v7456 = vld [vmem:[%s7451 + $0x20] sm:$0xff]
  %v7457 = vld [vmem:[%s7451 + $0x28] sm:$0xff]
  %v7458 = vld [vmem:[%s7451 + $0x30] sm:$0xff]
  %v7459 = vld [vmem:[%s7451 + $0x38] sm:$0xff]
  %s7460 = scalar_lea.vmem %s31, 4
  %v7461 = vld [vmem:[%s7460] sm:$0x1]
  %v7463 = vlaneseq
  %v7464 = vshrl.u32 %v7463, 7
  %v7465 = vsub.s32 0, %v7464
  %v7466 = vrot.slane %v7461, %v7465
  %v7469 = vsel %vm153, %v7449, 0
  %v7472 = vsel %vm153, %v7450, 0
  %7474 = vmatprep.subr.mxu0 0.0
  %7475 = vmatpush1.msra.mxu0 %v7452
  %7476 = vmatprep.subr.mxu0 0.0
  %7477 = vmatpush1.msra.mxu0 %v7453
  %7478 = vmatprep.subr.mxu0 0.0
  %7479 = vmatpush1.msra.mxu0 %v7454
  %7480 = vmatprep.subr.mxu0 0.0
  %7481 = vmatpush1.msra.mxu0 %v7455
  %7482 = vmatprep.subr.mxu0 0.0
  %7483 = vmatpush1.msra.mxu0 %v7456
  %7484 = vmatprep.subr.mxu0 0.0
  %7485 = vmatpush1.msra.mxu0 %v7457
  %7486 = vmatprep.subr.mxu0 0.0
  %7487 = vmatpush1.msra.mxu0 %v7458
  %7488 = vmatprep.subr.mxu0 0.0
  %7489 = vmatpush1.msra.mxu0 %v7459
  %7490 = vmatprep.subr.mxu0 0.0
  %7491 = vmatpush1.msra.mxu0 0.0
  %7492 = vmatprep.subr.mxu0 0.0
  %7493 = vmatpush1.msra.mxu0 0.0
  %7494 = vmatprep.subr.mxu0 0.0
  %7495 = vmatpush1.msra.mxu0 0.0
  %7496 = vmatprep.subr.mxu0 0.0
  %7497 = vmatpush1.msra.mxu0 0.0
  %7498 = vmatprep.subr.mxu0 0.0
  %7499 = vmatpush1.msra.mxu0 0.0
  %7500 = vmatprep.subr.mxu0 0.0
  %7501 = vmatpush1.msra.mxu0 0.0
  %7502 = vmatprep.subr.mxu0 0.0
  %7503 = vmatpush1.msra.mxu0 0.0
  %7504 = vmatprep.subr.mxu0 0.0
  %7505 = vmatpush1.msra.mxu0 0.0
  %7506 = vmatprep.subr.mxu0 0.0
  %7507 = vmatpush1.msra.mxu0 0.0
  %7508 = vmatprep.subr.mxu0 0.0
  %7509 = vmatpush1.msra.mxu0 0.0
  %7510 = vmatprep.subr.mxu0 0.0
  %7511 = vmatpush1.msra.mxu0 0.0
  %7512 = vmatprep.subr.mxu0 0.0
  %7513 = vmatpush1.msra.mxu0 0.0
  %7514 = vmatprep.subr.mxu0 0.0
  %7515 = vmatpush1.msra.mxu0 0.0
  %7516 = vmatprep.subr.mxu0 0.0
  %7517 = vmatpush1.msra.mxu0 0.0
  %7518 = vmatprep.subr.mxu0 0.0
  %7519 = vmatpush1.msra.mxu0 0.0
  %7520 = vmatprep.subr.mxu0 0.0
  %7521 = vmatpush1.msra.mxu0 0.0
  %7522 = vmatprep.subr.mxu0 0.0
  %7523 = vmatpush1.msra.mxu0 0.0
  %7524 = vmatprep.subr.mxu0 0.0
  %7525 = vmatpush1.msra.mxu0 0.0
  %7526 = vmatprep.subr.mxu0 0.0
  %7527 = vmatpush1.msra.mxu0 0.0
  %7528 = vmatprep.subr.mxu0 0.0
  %7529 = vmatpush1.msra.mxu0 0.0
  %7530 = vmatprep.subr.mxu0 0.0
  %7531 = vmatpush1.msra.mxu0 0.0
  %7532 = vmatprep.subr.mxu0 0.0
  %7533 = vmatpush1.msra.mxu0 0.0
  %7534 = vmatprep.subr.mxu0 0.0
  %7535 = vmatpush1.msra.mxu0 0.0
  %7536 = vmatprep.subr.mxu0 0.0
  %7537 = vmatpush1.msra.mxu0 0.0
  %7538 = vmatprep.mubr.f32.mxu0 0.0
  %7539 = vmatmul.mubr.f32.gmra.mrb[0].mxu0 %v7469
  %v7540 = vpop.f32.mrb[0].mxu0
  %v7541 = vadd.f32 %v7466, %v7540
  %v7542 = vpop.f32.mrb[0].mxu0
  %7543 = vmatprep.mubr.f32.mxu0 0.0
  %7544 = vmatmul.mubr.f32.gmra.mrb[0].mxu0 %v7472
  %v7545 = vpop.f32.mrb[0].mxu0
  %v7546 = vadd.f32 %v7466, %v7545
  %v7547 = vpop.f32.mrb[0].mxu0
  %7548 = vdwg.mxu0
  %v7549 = vmul.f32 %v7541, 0.25
  %v7550 = vmul.f32 %v7546, 0.25
  %s7551 = scalar_lea.vmem %s27, 256
  %v7552 = vld [vmem:[%s7551] sm:$0xff]
  %v7553 = vld [vmem:[%s7551 + $0x8] sm:$0xff]
  %v7554 = vld [vmem:[%s7551 + $0x10] sm:$0xff]
  %v7555 = vld [vmem:[%s7551 + $0x18] sm:$0xff]
  %v7556 = vld [vmem:[%s7551 + $0x20] sm:$0xff]
  %v7557 = vld [vmem:[%s7551 + $0x28] sm:$0xff]
  %v7558 = vld [vmem:[%s7551 + $0x30] sm:$0xff]
  %v7559 = vld [vmem:[%s7551 + $0x38] sm:$0xff]
  %s7560 = scalar_lea.vmem %s33, 4
  %v7561 = vld [vmem:[%s7560] sm:$0x1]
  %v7563 = vlaneseq
  %v7564 = vshrl.u32 %v7563, 7
  %v7565 = vsub.s32 0, %v7564
  %v7566 = vrot.slane %v7561, %v7565
  %7568 = vmatprep.subr.mxu0 0.0
  %7569 = vmatpush1.msra.mxu0 %v7552
  %7570 = vmatprep.subr.mxu0 0.0
  %7571 = vmatpush1.msra.mxu0 %v7553
  %7572 = vmatprep.subr.mxu0 0.0
  %7573 = vmatpush1.msra.mxu0 %v7554
  %7574 = vmatprep.subr.mxu0 0.0
  %7575 = vmatpush1.msra.mxu0 %v7555
  %7576 = vmatprep.subr.mxu0 0.0
  %7577 = vmatpush1.msra.mxu0 %v7556
  %7578 = vmatprep.subr.mxu0 0.0
  %7579 = vmatpush1.msra.mxu0 %v7557
  %7580 = vmatprep.subr.mxu0 0.0
  %7581 = vmatpush1.msra.mxu0 %v7558
  %7582 = vmatprep.subr.mxu0 0.0
  %7583 = vmatpush1.msra.mxu0 %v7559
  %7584 = vmatprep.subr.mxu0 0.0
  %7585 = vmatpush1.msra.mxu0 0.0
  %7586 = vmatprep.subr.mxu0 0.0
  %7587 = vmatpush1.msra.mxu0 0.0
  %7588 = vmatprep.subr.mxu0 0.0
  %7589 = vmatpush1.msra.mxu0 0.0
  %7590 = vmatprep.subr.mxu0 0.0
  %7591 = vmatpush1.msra.mxu0 0.0
  %7592 = vmatprep.subr.mxu0 0.0
  %7593 = vmatpush1.msra.mxu0 0.0
  %7594 = vmatprep.subr.mxu0 0.0
  %7595 = vmatpush1.msra.mxu0 0.0
  %7596 = vmatprep.subr.mxu0 0.0
  %7597 = vmatpush1.msra.mxu0 0.0
  %7598 = vmatprep.subr.mxu0 0.0
  %7599 = vmatpush1.msra.mxu0 0.0
  %7600 = vmatprep.subr.mxu0 0.0
  %7601 = vmatpush1.msra.mxu0 0.0
  %7602 = vmatprep.subr.mxu0 0.0
  %7603 = vmatpush1.msra.mxu0 0.0
  %7604 = vmatprep.subr.mxu0 0.0
  %7605 = vmatpush1.msra.mxu0 0.0
  %7606 = vmatprep.subr.mxu0 0.0
  %7607 = vmatpush1.msra.mxu0 0.0
  %7608 = vmatprep.subr.mxu0 0.0
  %7609 = vmatpush1.msra.mxu0 0.0
  %7610 = vmatprep.subr.mxu0 0.0
  %7611 = vmatpush1.msra.mxu0 0.0
  %7612 = vmatprep.subr.mxu0 0.0
  %7613 = vmatpush1.msra.mxu0 0.0
  %7614 = vmatprep.subr.mxu0 0.0
  %7615 = vmatpush1.msra.mxu0 0.0
  %7616 = vmatprep.subr.mxu0 0.0
  %7617 = vmatpush1.msra.mxu0 0.0
  %7618 = vmatprep.subr.mxu0 0.0
  %7619 = vmatpush1.msra.mxu0 0.0
  %7620 = vmatprep.subr.mxu0 0.0
  %7621 = vmatpush1.msra.mxu0 0.0
  %7622 = vmatprep.subr.mxu0 0.0
  %7623 = vmatpush1.msra.mxu0 0.0
  %7624 = vmatprep.subr.mxu0 0.0
  %7625 = vmatpush1.msra.mxu0 0.0
  %7626 = vmatprep.subr.mxu0 0.0
  %7627 = vmatpush1.msra.mxu0 0.0
  %7628 = vmatprep.subr.mxu0 0.0
  %7629 = vmatpush1.msra.mxu0 0.0
  %7630 = vmatprep.subr.mxu0 0.0
  %7631 = vmatpush1.msra.mxu0 0.0
  %7632 = vmatprep.mubr.f32.mxu0 0.0
  %7633 = vmatmul.mubr.f32.gmra.mrb[0].mxu0 %v2521
  %v7634 = vpop.f32.mrb[0].mxu0
  %v7635 = vadd.f32 %v7566, %v7634
  %v7636 = vpop.f32.mrb[0].mxu0
  %7637 = vmatprep.mubr.f32.mxu0 0.0
  %7638 = vmatmul.mubr.f32.gmra.mrb[0].mxu0 %v2524
  %v7639 = vpop.f32.mrb[0].mxu0
  %v7640 = vadd.f32 %v7566, %v7639
  %v7641 = vpop.f32.mrb[0].mxu0
  %7642 = vmatprep.mubr.f32.mxu0 0.0
  %7643 = vmatmul.mubr.f32.gmra.mrb[0].mxu0 %v2527
  %v7644 = vpop.f32.mrb[0].mxu0
  %v7645 = vadd.f32 %v7566, %v7644
  %v7646 = vpop.f32.mrb[0].mxu0
  %7647 = vmatprep.mubr.f32.mxu0 0.0
  %7648 = vmatmul.mubr.f32.gmra.mrb[0].mxu0 %v2530
  %v7649 = vpop.f32.mrb[0].mxu0
  %v7650 = vadd.f32 %v7566, %v7649
  %v7651 = vpop.f32.mrb[0].mxu0
  %7652 = vmatprep.mubr.f32.mxu0 0.0
  %7653 = vmatmul.mubr.f32.gmra.mrb[0].mxu0 %v2533
  %v7654 = vpop.f32.mrb[0].mxu0
  %v7655 = vadd.f32 %v7566, %v7654
  %v7656 = vpop.f32.mrb[0].mxu0
  %7657 = vmatprep.mubr.f32.mxu0 0.0
  %7658 = vmatmul.mubr.f32.gmra.mrb[0].mxu0 %v2536
  %v7659 = vpop.f32.mrb[0].mxu0
  %v7660 = vadd.f32 %v7566, %v7659
  %v7661 = vpop.f32.mrb[0].mxu0
  %7662 = vdwg.mxu0
  %s7663 = scalar_lea.vmem %s29, 256
  %v7664 = vld [vmem:[%s7663] sm:$0xff]
  %v7665 = vld [vmem:[%s7663 + $0x8] sm:$0xff]
  %v7666 = vld [vmem:[%s7663 + $0x10] sm:$0xff]
  %v7667 = vld [vmem:[%s7663 + $0x18] sm:$0xff]
  %v7668 = vld [vmem:[%s7663 + $0x20] sm:$0xff]
  %v7669 = vld [vmem:[%s7663 + $0x28] sm:$0xff]
  %v7670 = vld [vmem:[%s7663 + $0x30] sm:$0xff]
  %v7671 = vld [vmem:[%s7663 + $0x38] sm:$0xff]
  %s7672 = scalar_lea.vmem %s35, 4
  %v7673 = vld [vmem:[%s7672] sm:$0x1]
  %v7675 = vlaneseq
  %v7676 = vshrl.u32 %v7675, 7
  %v7677 = vsub.s32 0, %v7676
  %v7678 = vrot.slane %v7673, %v7677
  %7680 = vmatprep.subr.mxu0 0.0
  %7681 = vmatpush1.msra.mxu0 %v7664
  %7682 = vmatprep.subr.mxu0 0.0
  %7683 = vmatpush1.msra.mxu0 %v7665
  %7684 = vmatprep.subr.mxu0 0.0
  %7685 = vmatpush1.msra.mxu0 %v7666
  %7686 = vmatprep.subr.mxu0 0.0
  %7687 = vmatpush1.msra.mxu0 %v7667
  %7688 = vmatprep.subr.mxu0 0.0
  %7689 = vmatpush1.msra.mxu0 %v7668
  %7690 = vmatprep.subr.mxu0 0.0
  %7691 = vmatpush1.msra.mxu0 %v7669
  %7692 = vmatprep.subr.mxu0 0.0
  %7693 = vmatpush1.msra.mxu0 %v7670
  %7694 = vmatprep.subr.mxu0 0.0
  %7695 = vmatpush1.msra.mxu0 %v7671
  %7696 = vmatprep.subr.mxu0 0.0
  %7697 = vmatpush1.msra.mxu0 0.0
  %7698 = vmatprep.subr.mxu0 0.0
  %7699 = vmatpush1.msra.mxu0 0.0
  %7700 = vmatprep.subr.mxu0 0.0
  %7701 = vmatpush1.msra.mxu0 0.0
  %7702 = vmatprep.subr.mxu0 0.0
  %7703 = vmatpush1.msra.mxu0 0.0
  %7704 = vmatprep.subr.mxu0 0.0
  %7705 = vmatpush1.msra.mxu0 0.0
  %7706 = vmatprep.subr.mxu0 0.0
  %7707 = vmatpush1.msra.mxu0 0.0
  %7708 = vmatprep.subr.mxu0 0.0
  %7709 = vmatpush1.msra.mxu0 0.0
  %7710 = vmatprep.subr.mxu0 0.0
  %7711 = vmatpush1.msra.mxu0 0.0
  %7712 = vmatprep.subr.mxu0 0.0
  %7713 = vmatpush1.msra.mxu0 0.0
  %7714 = vmatprep.subr.mxu0 0.0
  %7715 = vmatpush1.msra.mxu0 0.0
  %7716 = vmatprep.subr.mxu0 0.0
  %7717 = vmatpush1.msra.mxu0 0.0
  %7718 = vmatprep.subr.mxu0 0.0
  %7719 = vmatpush1.msra.mxu0 0.0
  %7720 = vmatprep.subr.mxu0 0.0
  %7721 = vmatpush1.msra.mxu0 0.0
  %7722 = vmatprep.subr.mxu0 0.0
  %7723 = vmatpush1.msra.mxu0 0.0
  %7724 = vmatprep.subr.mxu0 0.0
  %7725 = vmatpush1.msra.mxu0 0.0
  %7726 = vmatprep.subr.mxu0 0.0
  %7727 = vmatpush1.msra.mxu0 0.0
  %7728 = vmatprep.subr.mxu0 0.0
  %7729 = vmatpush1.msra.mxu0 0.0
  %7730 = vmatprep.subr.mxu0 0.0
  %7731 = vmatpush1.msra.mxu0 0.0
  %7732 = vmatprep.subr.mxu0 0.0
  %7733 = vmatpush1.msra.mxu0 0.0
  %7734 = vmatprep.subr.mxu0 0.0
  %7735 = vmatpush1.msra.mxu0 0.0
  %7736 = vmatprep.subr.mxu0 0.0
  %7737 = vmatpush1.msra.mxu0 0.0
  %7738 = vmatprep.subr.mxu0 0.0
  %7739 = vmatpush1.msra.mxu0 0.0
  %7740 = vmatprep.subr.mxu0 0.0
  %7741 = vmatpush1.msra.mxu0 0.0
  %7742 = vmatprep.subr.mxu0 0.0
  %7743 = vmatpush1.msra.mxu0 0.0
  %7744 = vmatprep.mubr.f32.mxu0 0.0
  %7745 = vmatmul.mubr.f32.gmra.mrb[0].mxu0 %v2521
  %v7746 = vpop.f32.mrb[0].mxu0
  %v7747 = vadd.f32 %v7678, %v7746
  %v7748 = vpop.f32.mrb[0].mxu0
  %7749 = vmatprep.mubr.f32.mxu0 0.0
  %7750 = vmatmul.mubr.f32.gmra.mrb[0].mxu0 %v2524
  %v7751 = vpop.f32.mrb[0].mxu0
  %v7752 = vadd.f32 %v7678, %v7751
  %v7753 = vpop.f32.mrb[0].mxu0
  %7754 = vmatprep.mubr.f32.mxu0 0.0
  %7755 = vmatmul.mubr.f32.gmra.mrb[0].mxu0 %v2527
  %v7756 = vpop.f32.mrb[0].mxu0
  %v7757 = vadd.f32 %v7678, %v7756
  %v7758 = vpop.f32.mrb[0].mxu0
  %7759 = vmatprep.mubr.f32.mxu0 0.0
  %7760 = vmatmul.mubr.f32.gmra.mrb[0].mxu0 %v2530
  %v7761 = vpop.f32.mrb[0].mxu0
  %v7762 = vadd.f32 %v7678, %v7761
  %v7763 = vpop.f32.mrb[0].mxu0
  %7764 = vmatprep.mubr.f32.mxu0 0.0
  %7765 = vmatmul.mubr.f32.gmra.mrb[0].mxu0 %v2533
  %v7766 = vpop.f32.mrb[0].mxu0
  %v7767 = vadd.f32 %v7678, %v7766
  %v7768 = vpop.f32.mrb[0].mxu0
  %7769 = vmatprep.mubr.f32.mxu0 0.0
  %7770 = vmatmul.mubr.f32.gmra.mrb[0].mxu0 %v2536
  %v7771 = vpop.f32.mrb[0].mxu0
  %v7772 = vadd.f32 %v7678, %v7771
  %v7773 = vpop.f32.mrb[0].mxu0
  %7774 = vdwg.mxu0
  %v7776 = vsel %vm417, %v7549, 0
  %v7779 = vsel %vm417, %v7550, 0
  %v7782 = vsel %vm417, %v7635, 0
  %v7785 = vsel %vm417, %v7640, 0
  %v7788 = vsel %vm417, %v7645, 0
  %v7791 = vsel %vm417, %v7650, 0
  %v7794 = vsel %vm417, %v7655, 0
  %v7797 = vsel %vm417, %v7660, 0
  %7799 = vmatprep.subr.mxu0 0.0
  %7800 = vmatpush1.xpose.msra.mxu0 %v7782
  %7801 = vmatprep.subr.mxu0 0.0
  %7802 = vmatpush1.xpose.msra.mxu0 %v7785
  %7803 = vmatprep.subr.mxu0 0.0
  %7804 = vmatpush1.xpose.msra.mxu0 %v7788
  %7805 = vmatprep.subr.mxu0 0.0
  %7806 = vmatpush1.xpose.msra.mxu0 %v7791
  %7807 = vmatprep.subr.mxu0 0.0
  %7808 = vmatpush1.xpose.msra.mxu0 %v7794
  %7809 = vmatprep.subr.mxu0 0.0
  %7810 = vmatpush1.xpose.msra.mxu0 %v7797
  %7811 = vmatprep.subr.mxu0 0.0
  %7812 = vmatpush1.xpose.msra.mxu0 0.0
  %7813 = vmatprep.subr.mxu0 0.0
  %7814 = vmatpush1.xpose.msra.mxu0 0.0
  %7815 = vmatprep.subr.mxu0 0.0
  %7816 = vmatpush1.xpose.msra.mxu0 0.0
  %7817 = vmatprep.subr.mxu0 0.0
  %7818 = vmatpush1.xpose.msra.mxu0 0.0
  %7819 = vmatprep.subr.mxu0 0.0
  %7820 = vmatpush1.xpose.msra.mxu0 0.0
  %7821 = vmatprep.subr.mxu0 0.0
  %7822 = vmatpush1.xpose.msra.mxu0 0.0
  %7823 = vmatprep.subr.mxu0 0.0
  %7824 = vmatpush1.xpose.msra.mxu0 0.0
  %7825 = vmatprep.subr.mxu0 0.0
  %7826 = vmatpush1.xpose.msra.mxu0 0.0
  %7827 = vmatprep.subr.mxu0 0.0
  %7828 = vmatpush1.xpose.msra.mxu0 0.0
  %7829 = vmatprep.subr.mxu0 0.0
  %7830 = vmatpush1.xpose.msra.mxu0 0.0
  %7831 = vmatprep.subr.mxu0 0.0
  %7832 = vmatpush1.xpose.msra.mxu0 0.0
  %7833 = vmatprep.subr.mxu0 0.0
  %7834 = vmatpush1.xpose.msra.mxu0 0.0
  %7835 = vmatprep.subr.mxu0 0.0
  %7836 = vmatpush1.xpose.msra.mxu0 0.0
  %7837 = vmatprep.subr.mxu0 0.0
  %7838 = vmatpush1.xpose.msra.mxu0 0.0
  %7839 = vmatprep.subr.mxu0 0.0
  %7840 = vmatpush1.xpose.msra.mxu0 0.0
  %7841 = vmatprep.subr.mxu0 0.0
  %7842 = vmatpush1.xpose.msra.mxu0 0.0
  %7843 = vmatprep.subr.mxu0 0.0
  %7844 = vmatpush1.xpose.msra.mxu0 0.0
  %7845 = vmatprep.subr.mxu0 0.0
  %7846 = vmatpush1.xpose.msra.mxu0 0.0
  %7847 = vmatprep.subr.mxu0 0.0
  %7848 = vmatpush1.xpose.msra.mxu0 0.0
  %7849 = vmatprep.subr.mxu0 0.0
  %7850 = vmatpush1.xpose.msra.mxu0 0.0
  %7851 = vmatprep.subr.mxu0 0.0
  %7852 = vmatpush1.xpose.msra.mxu0 0.0
  %7853 = vmatprep.subr.mxu0 0.0
  %7854 = vmatpush1.xpose.msra.mxu0 0.0
  %7855 = vmatprep.subr.mxu0 0.0
  %7856 = vmatpush1.xpose.msra.mxu0 0.0
  %7857 = vmatprep.subr.mxu0 0.0
  %7858 = vmatpush1.xpose.msra.mxu0 0.0
  %7859 = vmatprep.subr.mxu0 0.0
  %7860 = vmatpush1.xpose.msra.mxu0 0.0
  %7861 = vmatprep.subr.mxu0 0.0
  %7862 = vmatpush1.xpose.msra.mxu0 0.0
  %7863 = vmatprep.mubr.f32.mxu0 0.0
  %7864 = vmatmul.mubr.f32.gmra.mrb[0].mxu0 %v7776
  %v7865 = vpop.f32.mrb[0].mxu0
  %v7866 = vadd.f32 %v136, %v7865
  %v7867 = vpop.f32.mrb[0].mxu0
  %7868 = vmatprep.mubr.f32.mxu0 0.0
  %7869 = vmatmul.mubr.f32.gmra.mrb[0].mxu0 %v7779
  %v7870 = vpop.f32.mrb[0].mxu0
  %v7871 = vadd.f32 %v137, %v7870
  %v7872 = vpop.f32.mrb[0].mxu0
  %7873 = vdwg.mxu0
  %v7874 = vsel %vm2842, %v7866, -inf
  %7875 = vmax.xlane.f32.xlu0 %v7874
  %v7876 = vpop.xlane.xlu0 %7875
  %v7877 = vsel %vm2842, %v7871, -inf
  %7878 = vmax.xlane.f32.xlu0 %v7877
  %v7879 = vpop.xlane.xlu0 %7878
  %v7880 = vsub.f32 %v7866, %v7876
  %v7881 = vsub.f32 %v7871, %v7879
  %v7882 = vmul.f32 %v7880, 1.442695
  %v7883 = vpow.pop %v7882
  %v7884 = vmul.f32 %v7881, 1.442695
  %v7885 = vpow.pop %v7884
  %v7886 = vsel %vm2842, %v7883, 0.0
  %7887 = vadd.xlane.f32.xlu0 %v7886
  %v7888 = vpop.xlane.xlu0 %7887
  %v7889 = vsel %vm2842, %v7885, 0.0
  %7890 = vadd.xlane.f32.xlu0 %v7889
  %v7891 = vpop.xlane.xlu0 %7890
  %v7892 = vrcp.pop %v7888
  %v7893 = vrcp.pop %v7891
  %v7894 = vmul.f32 %v7883, %v7892
  %v7895 = vmul.f32 %v7885, %v7893
  %v7897 = vsel %vm2842, %v7894, 0
  %v7900 = vsel %vm2842, %v7895, 0
  %7902 = vmatprep.subr.mxu0 0.0
  %7903 = vmatpush1.msra.mxu0 %v7747
  %7904 = vmatprep.subr.mxu0 0.0
  %7905 = vmatpush1.msra.mxu0 %v7752
  %7906 = vmatprep.subr.mxu0 0.0
  %7907 = vmatpush1.msra.mxu0 %v7757
  %7908 = vmatprep.subr.mxu0 0.0
  %7909 = vmatpush1.msra.mxu0 %v7762
  %7910 = vmatprep.subr.mxu0 0.0
  %7911 = vmatpush1.msra.mxu0 %v7767
  %7912 = vmatprep.subr.mxu0 0.0
  %7913 = vmatpush1.msra.mxu0 %v7772
  %7914 = vmatprep.subr.mxu0 0.0
  %7915 = vmatpush1.msra.mxu0 0.0
  %7916 = vmatprep.subr.mxu0 0.0
  %7917 = vmatpush1.msra.mxu0 0.0
  %7918 = vmatprep.subr.mxu0 0.0
  %7919 = vmatpush1.msra.mxu0 0.0
  %7920 = vmatprep.subr.mxu0 0.0
  %7921 = vmatpush1.msra.mxu0 0.0
  %7922 = vmatprep.subr.mxu0 0.0
  %7923 = vmatpush1.msra.mxu0 0.0
  %7924 = vmatprep.subr.mxu0 0.0
  %7925 = vmatpush1.msra.mxu0 0.0
  %7926 = vmatprep.subr.mxu0 0.0
  %7927 = vmatpush1.msra.mxu0 0.0
  %7928 = vmatprep.subr.mxu0 0.0
  %7929 = vmatpush1.msra.mxu0 0.0
  %7930 = vmatprep.subr.mxu0 0.0
  %7931 = vmatpush1.msra.mxu0 0.0
  %7932 = vmatprep.subr.mxu0 0.0
  %7933 = vmatpush1.msra.mxu0 0.0
  %7934 = vmatprep.subr.mxu0 0.0
  %7935 = vmatpush1.msra.mxu0 0.0
  %7936 = vmatprep.subr.mxu0 0.0
  %7937 = vmatpush1.msra.mxu0 0.0
  %7938 = vmatprep.subr.mxu0 0.0
  %7939 = vmatpush1.msra.mxu0 0.0
  %7940 = vmatprep.subr.mxu0 0.0
  %7941 = vmatpush1.msra.mxu0 0.0
  %7942 = vmatprep.subr.mxu0 0.0
  %7943 = vmatpush1.msra.mxu0 0.0
  %7944 = vmatprep.subr.mxu0 0.0
  %7945 = vmatpush1.msra.mxu0 0.0
  %7946 = vmatprep.subr.mxu0 0.0
  %7947 = vmatpush1.msra.mxu0 0.0
  %7948 = vmatprep.subr.mxu0 0.0
  %7949 = vmatpush1.msra.mxu0 0.0
  %7950 = vmatprep.subr.mxu0 0.0
  %7951 = vmatpush1.msra.mxu0 0.0
  %7952 = vmatprep.subr.mxu0 0.0
  %7953 = vmatpush1.msra.mxu0 0.0
  %7954 = vmatprep.subr.mxu0 0.0
  %7955 = vmatpush1.msra.mxu0 0.0
  %7956 = vmatprep.subr.mxu0 0.0
  %7957 = vmatpush1.msra.mxu0 0.0
  %7958 = vmatprep.subr.mxu0 0.0
  %7959 = vmatpush1.msra.mxu0 0.0
  %7960 = vmatprep.subr.mxu0 0.0
  %7961 = vmatpush1.msra.mxu0 0.0
  %7962 = vmatprep.subr.mxu0 0.0
  %7963 = vmatpush1.msra.mxu0 0.0
  %7964 = vmatprep.subr.mxu0 0.0
  %7965 = vmatpush1.msra.mxu0 0.0
  %7966 = vmatprep.mubr.f32.mxu0 0.0
  %7967 = vmatmul.mubr.f32.gmra.mrb[0].mxu0 %v7897
  %v7968 = vpop.f32.mrb[0].mxu0
  %v7969 = vadd.f32 0.0, %v7968
  %v7970 = vpop.f32.mrb[0].mxu0
  %7971 = vmatprep.mubr.f32.mxu0 0.0
  %7972 = vmatmul.mubr.f32.gmra.mrb[0].mxu0 %v7900
  %v7973 = vpop.f32.mrb[0].mxu0
  %v7974 = vadd.f32 0.0, %v7973
  %v7975 = vpop.f32.mrb[0].mxu0
  %7976 = vdwg.mxu0
  %s7977 = scalar_lea.vmem %s37, 64
  %v7978 = vld [vmem:[%s7977] sm:$0xff]
  %v7979 = vld [vmem:[%s7977 + $0x8] sm:$0xff]
  %s7980 = scalar_lea.vmem %s25, 320
  %v7981 = vld [vmem:[%s7980] sm:$0xff]
  %v7982 = vld [vmem:[%s7980 + $0x8] sm:$0xff]
  %v7983 = vld [vmem:[%s7980 + $0x10] sm:$0xff]
  %v7984 = vld [vmem:[%s7980 + $0x18] sm:$0xff]
  %v7985 = vld [vmem:[%s7980 + $0x20] sm:$0xff]
  %v7986 = vld [vmem:[%s7980 + $0x28] sm:$0xff]
  %v7987 = vld [vmem:[%s7980 + $0x30] sm:$0xff]
  %v7988 = vld [vmem:[%s7980 + $0x38] sm:$0xff]
  %s7989 = scalar_lea.vmem %s31, 5
  %v7990 = vld [vmem:[%s7989] sm:$0x1]
  %v7992 = vlaneseq
  %v7993 = vshrl.u32 %v7992, 7
  %v7994 = vsub.s32 0, %v7993
  %v7995 = vrot.slane %v7990, %v7994
  %7997 = vmatprep.subr.mxu0 0.0
  %7998 = vmatpush1.msra.mxu0 %v7981
  %7999 = vmatprep.subr.mxu0 0.0
  %8000 = vmatpush1.msra.mxu0 %v7982
  %8001 = vmatprep.subr.mxu0 0.0
  %8002 = vmatpush1.msra.mxu0 %v7983
  %8003 = vmatprep.subr.mxu0 0.0
  %8004 = vmatpush1.msra.mxu0 %v7984
  %8005 = vmatprep.subr.mxu0 0.0
  %8006 = vmatpush1.msra.mxu0 %v7985
  %8007 = vmatprep.subr.mxu0 0.0
  %8008 = vmatpush1.msra.mxu0 %v7986
  %8009 = vmatprep.subr.mxu0 0.0
  %8010 = vmatpush1.msra.mxu0 %v7987
  %8011 = vmatprep.subr.mxu0 0.0
  %8012 = vmatpush1.msra.mxu0 %v7988
  %8013 = vmatprep.subr.mxu0 0.0
  %8014 = vmatpush1.msra.mxu0 0.0
  %8015 = vmatprep.subr.mxu0 0.0
  %8016 = vmatpush1.msra.mxu0 0.0
  %8017 = vmatprep.subr.mxu0 0.0
  %8018 = vmatpush1.msra.mxu0 0.0
  %8019 = vmatprep.subr.mxu0 0.0
  %8020 = vmatpush1.msra.mxu0 0.0
  %8021 = vmatprep.subr.mxu0 0.0
  %8022 = vmatpush1.msra.mxu0 0.0
  %8023 = vmatprep.subr.mxu0 0.0
  %8024 = vmatpush1.msra.mxu0 0.0
  %8025 = vmatprep.subr.mxu0 0.0
  %8026 = vmatpush1.msra.mxu0 0.0
  %8027 = vmatprep.subr.mxu0 0.0
  %8028 = vmatpush1.msra.mxu0 0.0
  %8029 = vmatprep.subr.mxu0 0.0
  %8030 = vmatpush1.msra.mxu0 0.0
  %8031 = vmatprep.subr.mxu0 0.0
  %8032 = vmatpush1.msra.mxu0 0.0
  %8033 = vmatprep.subr.mxu0 0.0
  %8034 = vmatpush1.msra.mxu0 0.0
  %8035 = vmatprep.subr.mxu0 0.0
  %8036 = vmatpush1.msra.mxu0 0.0
  %8037 = vmatprep.subr.mxu0 0.0
  %8038 = vmatpush1.msra.mxu0 0.0
  %8039 = vmatprep.subr.mxu0 0.0
  %8040 = vmatpush1.msra.mxu0 0.0
  %8041 = vmatprep.subr.mxu0 0.0
  %8042 = vmatpush1.msra.mxu0 0.0
  %8043 = vmatprep.subr.mxu0 0.0
  %8044 = vmatpush1.msra.mxu0 0.0
  %8045 = vmatprep.subr.mxu0 0.0
  %8046 = vmatpush1.msra.mxu0 0.0
  %8047 = vmatprep.subr.mxu0 0.0
  %8048 = vmatpush1.msra.mxu0 0.0
  %8049 = vmatprep.subr.mxu0 0.0
  %8050 = vmatpush1.msra.mxu0 0.0
  %8051 = vmatprep.subr.mxu0 0.0
  %8052 = vmatpush1.msra.mxu0 0.0
  %8053 = vmatprep.subr.mxu0 0.0
  %8054 = vmatpush1.msra.mxu0 0.0
  %8055 = vmatprep.subr.mxu0 0.0
  %8056 = vmatpush1.msra.mxu0 0.0
  %8057 = vmatprep.subr.mxu0 0.0
  %8058 = vmatpush1.msra.mxu0 0.0
  %8059 = vmatprep.subr.mxu0 0.0
  %8060 = vmatpush1.msra.mxu0 0.0
  %8061 = vmatprep.mubr.f32.mxu0 0.0
  %8062 = vmatmul.mubr.f32.gmra.mrb[0].mxu0 %v7469
  %v8063 = vpop.f32.mrb[0].mxu0
  %v8064 = vadd.f32 %v7995, %v8063
  %v8065 = vpop.f32.mrb[0].mxu0
  %8066 = vmatprep.mubr.f32.mxu0 0.0
  %8067 = vmatmul.mubr.f32.gmra.mrb[0].mxu0 %v7472
  %v8068 = vpop.f32.mrb[0].mxu0
  %v8069 = vadd.f32 %v7995, %v8068
  %v8070 = vpop.f32.mrb[0].mxu0
  %8071 = vdwg.mxu0
  %v8072 = vmul.f32 %v8064, 0.25
  %v8073 = vmul.f32 %v8069, 0.25
  %s8074 = scalar_lea.vmem %s27, 320
  %v8075 = vld [vmem:[%s8074] sm:$0xff]
  %v8076 = vld [vmem:[%s8074 + $0x8] sm:$0xff]
  %v8077 = vld [vmem:[%s8074 + $0x10] sm:$0xff]
  %v8078 = vld [vmem:[%s8074 + $0x18] sm:$0xff]
  %v8079 = vld [vmem:[%s8074 + $0x20] sm:$0xff]
  %v8080 = vld [vmem:[%s8074 + $0x28] sm:$0xff]
  %v8081 = vld [vmem:[%s8074 + $0x30] sm:$0xff]
  %v8082 = vld [vmem:[%s8074 + $0x38] sm:$0xff]
  %s8083 = scalar_lea.vmem %s33, 5
  %v8084 = vld [vmem:[%s8083] sm:$0x1]
  %v8086 = vlaneseq
  %v8087 = vshrl.u32 %v8086, 7
  %v8088 = vsub.s32 0, %v8087
  %v8089 = vrot.slane %v8084, %v8088
  %8091 = vmatprep.subr.mxu0 0.0
  %8092 = vmatpush1.msra.mxu0 %v8075
  %8093 = vmatprep.subr.mxu0 0.0
  %8094 = vmatpush1.msra.mxu0 %v8076
  %8095 = vmatprep.subr.mxu0 0.0
  %8096 = vmatpush1.msra.mxu0 %v8077
  %8097 = vmatprep.subr.mxu0 0.0
  %8098 = vmatpush1.msra.mxu0 %v8078
  %8099 = vmatprep.subr.mxu0 0.0
  %8100 = vmatpush1.msra.mxu0 %v8079
  %8101 = vmatprep.subr.mxu0 0.0
  %8102 = vmatpush1.msra.mxu0 %v8080
  %8103 = vmatprep.subr.mxu0 0.0
  %8104 = vmatpush1.msra.mxu0 %v8081
  %8105 = vmatprep.subr.mxu0 0.0
  %8106 = vmatpush1.msra.mxu0 %v8082
  %8107 = vmatprep.subr.mxu0 0.0
  %8108 = vmatpush1.msra.mxu0 0.0
  %8109 = vmatprep.subr.mxu0 0.0
  %8110 = vmatpush1.msra.mxu0 0.0
  %8111 = vmatprep.subr.mxu0 0.0
  %8112 = vmatpush1.msra.mxu0 0.0
  %8113 = vmatprep.subr.mxu0 0.0
  %8114 = vmatpush1.msra.mxu0 0.0
  %8115 = vmatprep.subr.mxu0 0.0
  %8116 = vmatpush1.msra.mxu0 0.0
  %8117 = vmatprep.subr.mxu0 0.0
  %8118 = vmatpush1.msra.mxu0 0.0
  %8119 = vmatprep.subr.mxu0 0.0
  %8120 = vmatpush1.msra.mxu0 0.0
  %8121 = vmatprep.subr.mxu0 0.0
  %8122 = vmatpush1.msra.mxu0 0.0
  %8123 = vmatprep.subr.mxu0 0.0
  %8124 = vmatpush1.msra.mxu0 0.0
  %8125 = vmatprep.subr.mxu0 0.0
  %8126 = vmatpush1.msra.mxu0 0.0
  %8127 = vmatprep.subr.mxu0 0.0
  %8128 = vmatpush1.msra.mxu0 0.0
  %8129 = vmatprep.subr.mxu0 0.0
  %8130 = vmatpush1.msra.mxu0 0.0
  %8131 = vmatprep.subr.mxu0 0.0
  %8132 = vmatpush1.msra.mxu0 0.0
  %8133 = vmatprep.subr.mxu0 0.0
  %8134 = vmatpush1.msra.mxu0 0.0
  %8135 = vmatprep.subr.mxu0 0.0
  %8136 = vmatpush1.msra.mxu0 0.0
  %8137 = vmatprep.subr.mxu0 0.0
  %8138 = vmatpush1.msra.mxu0 0.0
  %8139 = vmatprep.subr.mxu0 0.0
  %8140 = vmatpush1.msra.mxu0 0.0
  %8141 = vmatprep.subr.mxu0 0.0
  %8142 = vmatpush1.msra.mxu0 0.0
  %8143 = vmatprep.subr.mxu0 0.0
  %8144 = vmatpush1.msra.mxu0 0.0
  %8145 = vmatprep.subr.mxu0 0.0
  %8146 = vmatpush1.msra.mxu0 0.0
  %8147 = vmatprep.subr.mxu0 0.0
  %8148 = vmatpush1.msra.mxu0 0.0
  %8149 = vmatprep.subr.mxu0 0.0
  %8150 = vmatpush1.msra.mxu0 0.0
  %8151 = vmatprep.subr.mxu0 0.0
  %8152 = vmatpush1.msra.mxu0 0.0
  %8153 = vmatprep.subr.mxu0 0.0
  %8154 = vmatpush1.msra.mxu0 0.0
  %8155 = vmatprep.mubr.f32.mxu0 0.0
  %8156 = vmatmul.mubr.f32.gmra.mrb[0].mxu0 %v2521
  %v8157 = vpop.f32.mrb[0].mxu0
  %v8158 = vadd.f32 %v8089, %v8157
  %v8159 = vpop.f32.mrb[0].mxu0
  %8160 = vmatprep.mubr.f32.mxu0 0.0
  %8161 = vmatmul.mubr.f32.gmra.mrb[0].mxu0 %v2524
  %v8162 = vpop.f32.mrb[0].mxu0
  %v8163 = vadd.f32 %v8089, %v8162
  %v8164 = vpop.f32.mrb[0].mxu0
  %8165 = vmatprep.mubr.f32.mxu0 0.0
  %8166 = vmatmul.mubr.f32.gmra.mrb[0].mxu0 %v2527
  %v8167 = vpop.f32.mrb[0].mxu0
  %v8168 = vadd.f32 %v8089, %v8167
  %v8169 = vpop.f32.mrb[0].mxu0
  %8170 = vmatprep.mubr.f32.mxu0 0.0
  %8171 = vmatmul.mubr.f32.gmra.mrb[0].mxu0 %v2530
  %v8172 = vpop.f32.mrb[0].mxu0
  %v8173 = vadd.f32 %v8089, %v8172
  %v8174 = vpop.f32.mrb[0].mxu0
  %8175 = vmatprep.mubr.f32.mxu0 0.0
  %8176 = vmatmul.mubr.f32.gmra.mrb[0].mxu0 %v2533
  %v8177 = vpop.f32.mrb[0].mxu0
  %v8178 = vadd.f32 %v8089, %v8177
  %v8179 = vpop.f32.mrb[0].mxu0
  %8180 = vmatprep.mubr.f32.mxu0 0.0
  %8181 = vmatmul.mubr.f32.gmra.mrb[0].mxu0 %v2536
  %v8182 = vpop.f32.mrb[0].mxu0
  %v8183 = vadd.f32 %v8089, %v8182
  %v8184 = vpop.f32.mrb[0].mxu0
  %8185 = vdwg.mxu0
  %s8186 = scalar_lea.vmem %s29, 320
  %v8187 = vld [vmem:[%s8186] sm:$0xff]
  %v8188 = vld [vmem:[%s8186 + $0x8] sm:$0xff]
  %v8189 = vld [vmem:[%s8186 + $0x10] sm:$0xff]
  %v8190 = vld [vmem:[%s8186 + $0x18] sm:$0xff]
  %v8191 = vld [vmem:[%s8186 + $0x20] sm:$0xff]
  %v8192 = vld [vmem:[%s8186 + $0x28] sm:$0xff]
  %v8193 = vld [vmem:[%s8186 + $0x30] sm:$0xff]
  %v8194 = vld [vmem:[%s8186 + $0x38] sm:$0xff]
  %s8195 = scalar_lea.vmem %s35, 5
  %v8196 = vld [vmem:[%s8195] sm:$0x1]
  %v8198 = vlaneseq
  %v8199 = vshrl.u32 %v8198, 7
  %v8200 = vsub.s32 0, %v8199
  %v8201 = vrot.slane %v8196, %v8200
  %8203 = vmatprep.subr.mxu0 0.0
  %8204 = vmatpush1.msra.mxu0 %v8187
  %8205 = vmatprep.subr.mxu0 0.0
  %8206 = vmatpush1.msra.mxu0 %v8188
  %8207 = vmatprep.subr.mxu0 0.0
  %8208 = vmatpush1.msra.mxu0 %v8189
  %8209 = vmatprep.subr.mxu0 0.0
  %8210 = vmatpush1.msra.mxu0 %v8190
  %8211 = vmatprep.subr.mxu0 0.0
  %8212 = vmatpush1.msra.mxu0 %v8191
  %8213 = vmatprep.subr.mxu0 0.0
  %8214 = vmatpush1.msra.mxu0 %v8192
  %8215 = vmatprep.subr.mxu0 0.0
  %8216 = vmatpush1.msra.mxu0 %v8193
  %8217 = vmatprep.subr.mxu0 0.0
  %8218 = vmatpush1.msra.mxu0 %v8194
  %8219 = vmatprep.subr.mxu0 0.0
  %8220 = vmatpush1.msra.mxu0 0.0
  %8221 = vmatprep.subr.mxu0 0.0
  %8222 = vmatpush1.msra.mxu0 0.0
  %8223 = vmatprep.subr.mxu0 0.0
  %8224 = vmatpush1.msra.mxu0 0.0
  %8225 = vmatprep.subr.mxu0 0.0
  %8226 = vmatpush1.msra.mxu0 0.0
  %8227 = vmatprep.subr.mxu0 0.0
  %8228 = vmatpush1.msra.mxu0 0.0
  %8229 = vmatprep.subr.mxu0 0.0
  %8230 = vmatpush1.msra.mxu0 0.0
  %8231 = vmatprep.subr.mxu0 0.0
  %8232 = vmatpush1.msra.mxu0 0.0
  %8233 = vmatprep.subr.mxu0 0.0
  %8234 = vmatpush1.msra.mxu0 0.0
  %8235 = vmatprep.subr.mxu0 0.0
  %8236 = vmatpush1.msra.mxu0 0.0
  %8237 = vmatprep.subr.mxu0 0.0
  %8238 = vmatpush1.msra.mxu0 0.0
  %8239 = vmatprep.subr.mxu0 0.0
  %8240 = vmatpush1.msra.mxu0 0.0
  %8241 = vmatprep.subr.mxu0 0.0
  %8242 = vmatpush1.msra.mxu0 0.0
  %8243 = vmatprep.subr.mxu0 0.0
  %8244 = vmatpush1.msra.mxu0 0.0
  %8245 = vmatprep.subr.mxu0 0.0
  %8246 = vmatpush1.msra.mxu0 0.0
  %8247 = vmatprep.subr.mxu0 0.0
  %8248 = vmatpush1.msra.mxu0 0.0
  %8249 = vmatprep.subr.mxu0 0.0
  %8250 = vmatpush1.msra.mxu0 0.0
  %8251 = vmatprep.subr.mxu0 0.0
  %8252 = vmatpush1.msra.mxu0 0.0
  %8253 = vmatprep.subr.mxu0 0.0
  %8254 = vmatpush1.msra.mxu0 0.0
  %8255 = vmatprep.subr.mxu0 0.0
  %8256 = vmatpush1.msra.mxu0 0.0
  %8257 = vmatprep.subr.mxu0 0.0
  %8258 = vmatpush1.msra.mxu0 0.0
  %8259 = vmatprep.subr.mxu0 0.0
  %8260 = vmatpush1.msra.mxu0 0.0
  %8261 = vmatprep.subr.mxu0 0.0
  %8262 = vmatpush1.msra.mxu0 0.0
  %8263 = vmatprep.subr.mxu0 0.0
  %8264 = vmatpush1.msra.mxu0 0.0
  %8265 = vmatprep.subr.mxu0 0.0
  %8266 = vmatpush1.msra.mxu0 0.0
  %8267 = vmatprep.mubr.f32.mxu0 0.0
  %8268 = vmatmul.mubr.f32.gmra.mrb[0].mxu0 %v2521
  %v8269 = vpop.f32.mrb[0].mxu0
  %v8270 = vadd.f32 %v8201, %v8269
  %v8271 = vpop.f32.mrb[0].mxu0
  %8272 = vmatprep.mubr.f32.mxu0 0.0
  %8273 = vmatmul.mubr.f32.gmra.mrb[0].mxu0 %v2524
  %v8274 = vpop.f32.mrb[0].mxu0
  %v8275 = vadd.f32 %v8201, %v8274
  %v8276 = vpop.f32.mrb[0].mxu0
  %8277 = vmatprep.mubr.f32.mxu0 0.0
  %8278 = vmatmul.mubr.f32.gmra.mrb[0].mxu0 %v2527
  %v8279 = vpop.f32.mrb[0].mxu0
  %v8280 = vadd.f32 %v8201, %v8279
  %v8281 = vpop.f32.mrb[0].mxu0
  %8282 = vmatprep.mubr.f32.mxu0 0.0
  %8283 = vmatmul.mubr.f32.gmra.mrb[0].mxu0 %v2530
  %v8284 = vpop.f32.mrb[0].mxu0
  %v8285 = vadd.f32 %v8201, %v8284
  %v8286 = vpop.f32.mrb[0].mxu0
  %8287 = vmatprep.mubr.f32.mxu0 0.0
  %8288 = vmatmul.mubr.f32.gmra.mrb[0].mxu0 %v2533
  %v8289 = vpop.f32.mrb[0].mxu0
  %v8290 = vadd.f32 %v8201, %v8289
  %v8291 = vpop.f32.mrb[0].mxu0
  %8292 = vmatprep.mubr.f32.mxu0 0.0
  %8293 = vmatmul.mubr.f32.gmra.mrb[0].mxu0 %v2536
  %v8294 = vpop.f32.mrb[0].mxu0
  %v8295 = vadd.f32 %v8201, %v8294
  %v8296 = vpop.f32.mrb[0].mxu0
  %8297 = vdwg.mxu0
  %v8299 = vsel %vm417, %v8072, 0
  %v8302 = vsel %vm417, %v8073, 0
  %v8305 = vsel %vm417, %v8158, 0
  %v8308 = vsel %vm417, %v8163, 0
  %v8311 = vsel %vm417, %v8168, 0
  %v8314 = vsel %vm417, %v8173, 0
  %v8317 = vsel %vm417, %v8178, 0
  %v8320 = vsel %vm417, %v8183, 0
  %8322 = vmatprep.subr.mxu0 0.0
  %8323 = vmatpush1.xpose.msra.mxu0 %v8305
  %8324 = vmatprep.subr.mxu0 0.0
  %8325 = vmatpush1.xpose.msra.mxu0 %v8308
  %8326 = vmatprep.subr.mxu0 0.0
  %8327 = vmatpush1.xpose.msra.mxu0 %v8311
  %8328 = vmatprep.subr.mxu0 0.0
  %8329 = vmatpush1.xpose.msra.mxu0 %v8314
  %8330 = vmatprep.subr.mxu0 0.0
  %8331 = vmatpush1.xpose.msra.mxu0 %v8317
  %8332 = vmatprep.subr.mxu0 0.0
  %8333 = vmatpush1.xpose.msra.mxu0 %v8320
  %8334 = vmatprep.subr.mxu0 0.0
  %8335 = vmatpush1.xpose.msra.mxu0 0.0
  %8336 = vmatprep.subr.mxu0 0.0
  %8337 = vmatpush1.xpose.msra.mxu0 0.0
  %8338 = vmatprep.subr.mxu0 0.0
  %8339 = vmatpush1.xpose.msra.mxu0 0.0
  %8340 = vmatprep.subr.mxu0 0.0
  %8341 = vmatpush1.xpose.msra.mxu0 0.0
  %8342 = vmatprep.subr.mxu0 0.0
  %8343 = vmatpush1.xpose.msra.mxu0 0.0
  %8344 = vmatprep.subr.mxu0 0.0
  %8345 = vmatpush1.xpose.msra.mxu0 0.0
  %8346 = vmatprep.subr.mxu0 0.0
  %8347 = vmatpush1.xpose.msra.mxu0 0.0
  %8348 = vmatprep.subr.mxu0 0.0
  %8349 = vmatpush1.xpose.msra.mxu0 0.0
  %8350 = vmatprep.subr.mxu0 0.0
  %8351 = vmatpush1.xpose.msra.mxu0 0.0
  %8352 = vmatprep.subr.mxu0 0.0
  %8353 = vmatpush1.xpose.msra.mxu0 0.0
  %8354 = vmatprep.subr.mxu0 0.0
  %8355 = vmatpush1.xpose.msra.mxu0 0.0
  %8356 = vmatprep.subr.mxu0 0.0
  %8357 = vmatpush1.xpose.msra.mxu0 0.0
  %8358 = vmatprep.subr.mxu0 0.0
  %8359 = vmatpush1.xpose.msra.mxu0 0.0
  %8360 = vmatprep.subr.mxu0 0.0
  %8361 = vmatpush1.xpose.msra.mxu0 0.0
  %8362 = vmatprep.subr.mxu0 0.0
  %8363 = vmatpush1.xpose.msra.mxu0 0.0
  %8364 = vmatprep.subr.mxu0 0.0
  %8365 = vmatpush1.xpose.msra.mxu0 0.0
  %8366 = vmatprep.subr.mxu0 0.0
  %8367 = vmatpush1.xpose.msra.mxu0 0.0
  %8368 = vmatprep.subr.mxu0 0.0
  %8369 = vmatpush1.xpose.msra.mxu0 0.0
  %8370 = vmatprep.subr.mxu0 0.0
  %8371 = vmatpush1.xpose.msra.mxu0 0.0
  %8372 = vmatprep.subr.mxu0 0.0
  %8373 = vmatpush1.xpose.msra.mxu0 0.0
  %8374 = vmatprep.subr.mxu0 0.0
  %8375 = vmatpush1.xpose.msra.mxu0 0.0
  %8376 = vmatprep.subr.mxu0 0.0
  %8377 = vmatpush1.xpose.msra.mxu0 0.0
  %8378 = vmatprep.subr.mxu0 0.0
  %8379 = vmatpush1.xpose.msra.mxu0 0.0
  %8380 = vmatprep.subr.mxu0 0.0
  %8381 = vmatpush1.xpose.msra.mxu0 0.0
  %8382 = vmatprep.subr.mxu0 0.0
  %8383 = vmatpush1.xpose.msra.mxu0 0.0
  %8384 = vmatprep.subr.mxu0 0.0
  %8385 = vmatpush1.xpose.msra.mxu0 0.0
  %8386 = vmatprep.mubr.f32.mxu0 0.0
  %8387 = vmatmul.mubr.f32.gmra.mrb[0].mxu0 %v8299
  %v8388 = vpop.f32.mrb[0].mxu0
  %v8389 = vadd.f32 %v136, %v8388
  %v8390 = vpop.f32.mrb[0].mxu0
  %8391 = vmatprep.mubr.f32.mxu0 0.0
  %8392 = vmatmul.mubr.f32.gmra.mrb[0].mxu0 %v8302
  %v8393 = vpop.f32.mrb[0].mxu0
  %v8394 = vadd.f32 %v137, %v8393
  %v8395 = vpop.f32.mrb[0].mxu0
  %8396 = vdwg.mxu0
  %v8397 = vsel %vm2842, %v8389, -inf
  %8398 = vmax.xlane.f32.xlu0 %v8397
  %v8399 = vpop.xlane.xlu0 %8398
  %v8400 = vsel %vm2842, %v8394, -inf
  %8401 = vmax.xlane.f32.xlu0 %v8400
  %v8402 = vpop.xlane.xlu0 %8401
  %v8403 = vsub.f32 %v8389, %v8399
  %v8404 = vsub.f32 %v8394, %v8402
  %v8405 = vmul.f32 %v8403, 1.442695
  %v8406 = vpow.pop %v8405
  %v8407 = vmul.f32 %v8404, 1.442695
  %v8408 = vpow.pop %v8407
  %v8409 = vsel %vm2842, %v8406, 0.0
  %8410 = vadd.xlane.f32.xlu0 %v8409
  %v8411 = vpop.xlane.xlu0 %8410
  %v8412 = vsel %vm2842, %v8408, 0.0
  %8413 = vadd.xlane.f32.xlu0 %v8412
  %v8414 = vpop.xlane.xlu0 %8413
  %v8415 = vrcp.pop %v8411
  %v8416 = vrcp.pop %v8414
  %v8417 = vmul.f32 %v8406, %v8415
  %v8418 = vmul.f32 %v8408, %v8416
  %v8420 = vsel %vm2842, %v8417, 0
  %v8423 = vsel %vm2842, %v8418, 0
  %8425 = vmatprep.subr.mxu0 0.0
  %8426 = vmatpush1.msra.mxu0 %v8270
  %8427 = vmatprep.subr.mxu0 0.0
  %8428 = vmatpush1.msra.mxu0 %v8275
  %8429 = vmatprep.subr.mxu0 0.0
  %8430 = vmatpush1.msra.mxu0 %v8280
  %8431 = vmatprep.subr.mxu0 0.0
  %8432 = vmatpush1.msra.mxu0 %v8285
  %8433 = vmatprep.subr.mxu0 0.0
  %8434 = vmatpush1.msra.mxu0 %v8290
  %8435 = vmatprep.subr.mxu0 0.0
  %8436 = vmatpush1.msra.mxu0 %v8295
  %8437 = vmatprep.subr.mxu0 0.0
  %8438 = vmatpush1.msra.mxu0 0.0
  %8439 = vmatprep.subr.mxu0 0.0
  %8440 = vmatpush1.msra.mxu0 0.0
  %8441 = vmatprep.subr.mxu0 0.0
  %8442 = vmatpush1.msra.mxu0 0.0
  %8443 = vmatprep.subr.mxu0 0.0
  %8444 = vmatpush1.msra.mxu0 0.0
  %8445 = vmatprep.subr.mxu0 0.0
  %8446 = vmatpush1.msra.mxu0 0.0
  %8447 = vmatprep.subr.mxu0 0.0
  %8448 = vmatpush1.msra.mxu0 0.0
  %8449 = vmatprep.subr.mxu0 0.0
  %8450 = vmatpush1.msra.mxu0 0.0
  %8451 = vmatprep.subr.mxu0 0.0
  %8452 = vmatpush1.msra.mxu0 0.0
  %8453 = vmatprep.subr.mxu0 0.0
  %8454 = vmatpush1.msra.mxu0 0.0
  %8455 = vmatprep.subr.mxu0 0.0
  %8456 = vmatpush1.msra.mxu0 0.0
  %8457 = vmatprep.subr.mxu0 0.0
  %8458 = vmatpush1.msra.mxu0 0.0
  %8459 = vmatprep.subr.mxu0 0.0
  %8460 = vmatpush1.msra.mxu0 0.0
  %8461 = vmatprep.subr.mxu0 0.0
  %8462 = vmatpush1.msra.mxu0 0.0
  %8463 = vmatprep.subr.mxu0 0.0
  %8464 = vmatpush1.msra.mxu0 0.0
  %8465 = vmatprep.subr.mxu0 0.0
  %8466 = vmatpush1.msra.mxu0 0.0
  %8467 = vmatprep.subr.mxu0 0.0
  %8468 = vmatpush1.msra.mxu0 0.0
  %8469 = vmatprep.subr.mxu0 0.0
  %8470 = vmatpush1.msra.mxu0 0.0
  %8471 = vmatprep.subr.mxu0 0.0
  %8472 = vmatpush1.msra.mxu0 0.0
  %8473 = vmatprep.subr.mxu0 0.0
  %8474 = vmatpush1.msra.mxu0 0.0
  %8475 = vmatprep.subr.mxu0 0.0
  %8476 = vmatpush1.msra.mxu0 0.0
  %8477 = vmatprep.subr.mxu0 0.0
  %8478 = vmatpush1.msra.mxu0 0.0
  %8479 = vmatprep.subr.mxu0 0.0
  %8480 = vmatpush1.msra.mxu0 0.0
  %8481 = vmatprep.subr.mxu0 0.0
  %8482 = vmatpush1.msra.mxu0 0.0
  %8483 = vmatprep.subr.mxu0 0.0
  %8484 = vmatpush1.msra.mxu0 0.0
  %8485 = vmatprep.subr.mxu0 0.0
  %8486 = vmatpush1.msra.mxu0 0.0
  %8487 = vmatprep.subr.mxu0 0.0
  %8488 = vmatpush1.msra.mxu0 0.0
  %8489 = vmatprep.mubr.f32.mxu0 0.0
  %8490 = vmatmul.mubr.f32.gmra.mrb[0].mxu0 %v8420
  %v8491 = vpop.f32.mrb[0].mxu0
  %v8492 = vadd.f32 0.0, %v8491
  %v8493 = vpop.f32.mrb[0].mxu0
  %8494 = vmatprep.mubr.f32.mxu0 0.0
  %8495 = vmatmul.mubr.f32.gmra.mrb[0].mxu0 %v8423
  %v8496 = vpop.f32.mrb[0].mxu0
  %v8497 = vadd.f32 0.0, %v8496
  %v8498 = vpop.f32.mrb[0].mxu0
  %8499 = vdwg.mxu0
  %s8500 = scalar_lea.vmem %s37, 80
  %v8501 = vld [vmem:[%s8500] sm:$0xff]
  %v8502 = vld [vmem:[%s8500 + $0x8] sm:$0xff]
  %v8504 = vsel %vm417, %v8492, 0
  %v8507 = vsel %vm417, %v8497, 0
  %8509 = vmatprep.subr.mxu0 0.0
  %8510 = vmatpush1.msra.mxu0 %v8501
  %8511 = vmatprep.subr.mxu0 0.0
  %8512 = vmatpush1.msra.mxu0 %v8502
  %8513 = vmatprep.subr.mxu0 0.0
  %8514 = vmatpush1.msra.mxu0 0.0
  %8515 = vmatprep.subr.mxu0 0.0
  %8516 = vmatpush1.msra.mxu0 0.0
  %8517 = vmatprep.subr.mxu0 0.0
  %8518 = vmatpush1.msra.mxu0 0.0
  %8519 = vmatprep.subr.mxu0 0.0
  %8520 = vmatpush1.msra.mxu0 0.0
  %8521 = vmatprep.subr.mxu0 0.0
  %8522 = vmatpush1.msra.mxu0 0.0
  %8523 = vmatprep.subr.mxu0 0.0
  %8524 = vmatpush1.msra.mxu0 0.0
  %8525 = vmatprep.subr.mxu0 0.0
  %8526 = vmatpush1.msra.mxu0 0.0
  %8527 = vmatprep.subr.mxu0 0.0
  %8528 = vmatpush1.msra.mxu0 0.0
  %8529 = vmatprep.subr.mxu0 0.0
  %8530 = vmatpush1.msra.mxu0 0.0
  %8531 = vmatprep.subr.mxu0 0.0
  %8532 = vmatpush1.msra.mxu0 0.0
  %8533 = vmatprep.subr.mxu0 0.0
  %8534 = vmatpush1.msra.mxu0 0.0
  %8535 = vmatprep.subr.mxu0 0.0
  %8536 = vmatpush1.msra.mxu0 0.0
  %8537 = vmatprep.subr.mxu0 0.0
  %8538 = vmatpush1.msra.mxu0 0.0
  %8539 = vmatprep.subr.mxu0 0.0
  %8540 = vmatpush1.msra.mxu0 0.0
  %8541 = vmatprep.subr.mxu0 0.0
  %8542 = vmatpush1.msra.mxu0 0.0
  %8543 = vmatprep.subr.mxu0 0.0
  %8544 = vmatpush1.msra.mxu0 0.0
  %8545 = vmatprep.subr.mxu0 0.0
  %8546 = vmatpush1.msra.mxu0 0.0
  %8547 = vmatprep.subr.mxu0 0.0
  %8548 = vmatpush1.msra.mxu0 0.0
  %8549 = vmatprep.subr.mxu0 0.0
  %8550 = vmatpush1.msra.mxu0 0.0
  %8551 = vmatprep.subr.mxu0 0.0
  %8552 = vmatpush1.msra.mxu0 0.0
  %8553 = vmatprep.subr.mxu0 0.0
  %8554 = vmatpush1.msra.mxu0 0.0
  %8555 = vmatprep.subr.mxu0 0.0
  %8556 = vmatpush1.msra.mxu0 0.0
  %8557 = vmatprep.subr.mxu0 0.0
  %8558 = vmatpush1.msra.mxu0 0.0
  %8559 = vmatprep.subr.mxu0 0.0
  %8560 = vmatpush1.msra.mxu0 0.0
  %8561 = vmatprep.subr.mxu0 0.0
  %8562 = vmatpush1.msra.mxu0 0.0
  %8563 = vmatprep.subr.mxu0 0.0
  %8564 = vmatpush1.msra.mxu0 0.0
  %8565 = vmatprep.subr.mxu0 0.0
  %8566 = vmatpush1.msra.mxu0 0.0
  %8567 = vmatprep.subr.mxu0 0.0
  %8568 = vmatpush1.msra.mxu0 0.0
  %8569 = vmatprep.subr.mxu0 0.0
  %8570 = vmatpush1.msra.mxu0 0.0
  %8571 = vmatprep.subr.mxu0 0.0
  %8572 = vmatpush1.msra.mxu0 0.0
  %8573 = vmatprep.mubr.f32.mxu0 0.0
  %8574 = vmatmul.mubr.f32.gmra.mrb[0].mxu0 %v8504
  %v8575 = vpop.f32.mrb[0].mxu0
  %v8576 = vadd.f32 0.0, %v8575
  %v8577 = vpop.f32.mrb[0].mxu0
  %8578 = vmatprep.mubr.f32.mxu0 0.0
  %8579 = vmatmul.mubr.f32.gmra.mrb[0].mxu0 %v8507
  %v8580 = vpop.f32.mrb[0].mxu0
  %v8581 = vadd.f32 0.0, %v8580
  %v8582 = vpop.f32.mrb[0].mxu0
  %8583 = vdwg.mxu0
  %v8585 = vsel %vm417, %v7969, 0
  %v8588 = vsel %vm417, %v7974, 0
  %8590 = vmatprep.subr.mxu0 0.0
  %8591 = vmatpush1.msra.mxu0 %v7978
  %8592 = vmatprep.subr.mxu0 0.0
  %8593 = vmatpush1.msra.mxu0 %v7979
  %8594 = vmatprep.subr.mxu0 0.0
  %8595 = vmatpush1.msra.mxu0 0.0
  %8596 = vmatprep.subr.mxu0 0.0
  %8597 = vmatpush1.msra.mxu0 0.0
  %8598 = vmatprep.subr.mxu0 0.0
  %8599 = vmatpush1.msra.mxu0 0.0
  %8600 = vmatprep.subr.mxu0 0.0
  %8601 = vmatpush1.msra.mxu0 0.0
  %8602 = vmatprep.subr.mxu0 0.0
  %8603 = vmatpush1.msra.mxu0 0.0
  %8604 = vmatprep.subr.mxu0 0.0
  %8605 = vmatpush1.msra.mxu0 0.0
  %8606 = vmatprep.subr.mxu0 0.0
  %8607 = vmatpush1.msra.mxu0 0.0
  %8608 = vmatprep.subr.mxu0 0.0
  %8609 = vmatpush1.msra.mxu0 0.0
  %8610 = vmatprep.subr.mxu0 0.0
  %8611 = vmatpush1.msra.mxu0 0.0
  %8612 = vmatprep.subr.mxu0 0.0
  %8613 = vmatpush1.msra.mxu0 0.0
  %8614 = vmatprep.subr.mxu0 0.0
  %8615 = vmatpush1.msra.mxu0 0.0
  %8616 = vmatprep.subr.mxu0 0.0
  %8617 = vmatpush1.msra.mxu0 0.0
  %8618 = vmatprep.subr.mxu0 0.0
  %8619 = vmatpush1.msra.mxu0 0.0
  %8620 = vmatprep.subr.mxu0 0.0
  %8621 = vmatpush1.msra.mxu0 0.0
  %8622 = vmatprep.subr.mxu0 0.0
  %8623 = vmatpush1.msra.mxu0 0.0
  %8624 = vmatprep.subr.mxu0 0.0
  %8625 = vmatpush1.msra.mxu0 0.0
  %8626 = vmatprep.subr.mxu0 0.0
  %8627 = vmatpush1.msra.mxu0 0.0
  %8628 = vmatprep.subr.mxu0 0.0
  %8629 = vmatpush1.msra.mxu0 0.0
  %8630 = vmatprep.subr.mxu0 0.0
  %8631 = vmatpush1.msra.mxu0 0.0
  %8632 = vmatprep.subr.mxu0 0.0
  %8633 = vmatpush1.msra.mxu0 0.0
  %8634 = vmatprep.subr.mxu0 0.0
  %8635 = vmatpush1.msra.mxu0 0.0
  %8636 = vmatprep.subr.mxu0 0.0
  %8637 = vmatpush1.msra.mxu0 0.0
  %8638 = vmatprep.subr.mxu0 0.0
  %8639 = vmatpush1.msra.mxu0 0.0
  %8640 = vmatprep.subr.mxu0 0.0
  %8641 = vmatpush1.msra.mxu0 0.0
  %8642 = vmatprep.subr.mxu0 0.0
  %8643 = vmatpush1.msra.mxu0 0.0
  %8644 = vmatprep.subr.mxu0 0.0
  %8645 = vmatpush1.msra.mxu0 0.0
  %8646 = vmatprep.subr.mxu0 0.0
  %8647 = vmatpush1.msra.mxu0 0.0
  %8648 = vmatprep.subr.mxu0 0.0
  %8649 = vmatpush1.msra.mxu0 0.0
  %8650 = vmatprep.subr.mxu0 0.0
  %8651 = vmatpush1.msra.mxu0 0.0
  %8652 = vmatprep.subr.mxu0 0.0
  %8653 = vmatpush1.msra.mxu0 0.0
  %8654 = vmatprep.mubr.f32.mxu0 0.0
  %8655 = vmatmul.mubr.f32.gmra.mrb[0].mxu0 %v8585
  %v8656 = vpop.f32.mrb[0].mxu0
  %v8657 = vadd.f32 %v8576, %v8656
  %v8658 = vpop.f32.mrb[0].mxu0
  %8659 = vmatprep.mubr.f32.mxu0 0.0
  %8660 = vmatmul.mubr.f32.gmra.mrb[0].mxu0 %v8588
  %v8661 = vpop.f32.mrb[0].mxu0
  %v8662 = vadd.f32 %v8581, %v8661
  %v8663 = vpop.f32.mrb[0].mxu0
  %8664 = vdwg.mxu0
  %s8665 = scalar_lea.vmem %s25, 384
  %v8666 = vld [vmem:[%s8665] sm:$0xff]
  %v8667 = vld [vmem:[%s8665 + $0x8] sm:$0xff]
  %v8668 = vld [vmem:[%s8665 + $0x10] sm:$0xff]
  %v8669 = vld [vmem:[%s8665 + $0x18] sm:$0xff]
  %v8670 = vld [vmem:[%s8665 + $0x20] sm:$0xff]
  %v8671 = vld [vmem:[%s8665 + $0x28] sm:$0xff]
  %v8672 = vld [vmem:[%s8665 + $0x30] sm:$0xff]
  %v8673 = vld [vmem:[%s8665 + $0x38] sm:$0xff]
  %s8674 = scalar_lea.vmem %s31, 6
  %v8675 = vld [vmem:[%s8674] sm:$0x1]
  %v8677 = vlaneseq
  %v8678 = vshrl.u32 %v8677, 7
  %v8679 = vsub.s32 0, %v8678
  %v8680 = vrot.slane %v8675, %v8679
  %8682 = vmatprep.subr.mxu0 0.0
  %8683 = vmatpush1.msra.mxu0 %v8666
  %8684 = vmatprep.subr.mxu0 0.0
  %8685 = vmatpush1.msra.mxu0 %v8667
  %8686 = vmatprep.subr.mxu0 0.0
  %8687 = vmatpush1.msra.mxu0 %v8668
  %8688 = vmatprep.subr.mxu0 0.0
  %8689 = vmatpush1.msra.mxu0 %v8669
  %8690 = vmatprep.subr.mxu0 0.0
  %8691 = vmatpush1.msra.mxu0 %v8670
  %8692 = vmatprep.subr.mxu0 0.0
  %8693 = vmatpush1.msra.mxu0 %v8671
  %8694 = vmatprep.subr.mxu0 0.0
  %8695 = vmatpush1.msra.mxu0 %v8672
  %8696 = vmatprep.subr.mxu0 0.0
  %8697 = vmatpush1.msra.mxu0 %v8673
  %8698 = vmatprep.subr.mxu0 0.0
  %8699 = vmatpush1.msra.mxu0 0.0
  %8700 = vmatprep.subr.mxu0 0.0
  %8701 = vmatpush1.msra.mxu0 0.0
  %8702 = vmatprep.subr.mxu0 0.0
  %8703 = vmatpush1.msra.mxu0 0.0
  %8704 = vmatprep.subr.mxu0 0.0
  %8705 = vmatpush1.msra.mxu0 0.0
  %8706 = vmatprep.subr.mxu0 0.0
  %8707 = vmatpush1.msra.mxu0 0.0
  %8708 = vmatprep.subr.mxu0 0.0
  %8709 = vmatpush1.msra.mxu0 0.0
  %8710 = vmatprep.subr.mxu0 0.0
  %8711 = vmatpush1.msra.mxu0 0.0
  %8712 = vmatprep.subr.mxu0 0.0
  %8713 = vmatpush1.msra.mxu0 0.0
  %8714 = vmatprep.subr.mxu0 0.0
  %8715 = vmatpush1.msra.mxu0 0.0
  %8716 = vmatprep.subr.mxu0 0.0
  %8717 = vmatpush1.msra.mxu0 0.0
  %8718 = vmatprep.subr.mxu0 0.0
  %8719 = vmatpush1.msra.mxu0 0.0
  %8720 = vmatprep.subr.mxu0 0.0
  %8721 = vmatpush1.msra.mxu0 0.0
  %8722 = vmatprep.subr.mxu0 0.0
  %8723 = vmatpush1.msra.mxu0 0.0
  %8724 = vmatprep.subr.mxu0 0.0
  %8725 = vmatpush1.msra.mxu0 0.0
  %8726 = vmatprep.subr.mxu0 0.0
  %8727 = vmatpush1.msra.mxu0 0.0
  %8728 = vmatprep.subr.mxu0 0.0
  %8729 = vmatpush1.msra.mxu0 0.0
  %8730 = vmatprep.subr.mxu0 0.0
  %8731 = vmatpush1.msra.mxu0 0.0
  %8732 = vmatprep.subr.mxu0 0.0
  %8733 = vmatpush1.msra.mxu0 0.0
  %8734 = vmatprep.subr.mxu0 0.0
  %8735 = vmatpush1.msra.mxu0 0.0
  %8736 = vmatprep.subr.mxu0 0.0
  %8737 = vmatpush1.msra.mxu0 0.0
  %8738 = vmatprep.subr.mxu0 0.0
  %8739 = vmatpush1.msra.mxu0 0.0
  %8740 = vmatprep.subr.mxu0 0.0
  %8741 = vmatpush1.msra.mxu0 0.0
  %8742 = vmatprep.subr.mxu0 0.0
  %8743 = vmatpush1.msra.mxu0 0.0
  %8744 = vmatprep.subr.mxu0 0.0
  %8745 = vmatpush1.msra.mxu0 0.0
  %8746 = vmatprep.mubr.f32.mxu0 0.0
  %8747 = vmatmul.mubr.f32.gmra.mrb[0].mxu0 %v7469
  %v8748 = vpop.f32.mrb[0].mxu0
  %v8749 = vadd.f32 %v8680, %v8748
  %v8750 = vpop.f32.mrb[0].mxu0
  %8751 = vmatprep.mubr.f32.mxu0 0.0
  %8752 = vmatmul.mubr.f32.gmra.mrb[0].mxu0 %v7472
  %v8753 = vpop.f32.mrb[0].mxu0
  %v8754 = vadd.f32 %v8680, %v8753
  %v8755 = vpop.f32.mrb[0].mxu0
  %8756 = vdwg.mxu0
  %v8757 = vmul.f32 %v8749, 0.25
  %v8758 = vmul.f32 %v8754, 0.25
  %s8759 = scalar_lea.vmem %s27, 384
  %v8760 = vld [vmem:[%s8759] sm:$0xff]
  %v8761 = vld [vmem:[%s8759 + $0x8] sm:$0xff]
  %v8762 = vld [vmem:[%s8759 + $0x10] sm:$0xff]
  %v8763 = vld [vmem:[%s8759 + $0x18] sm:$0xff]
  %v8764 = vld [vmem:[%s8759 + $0x20] sm:$0xff]
  %v8765 = vld [vmem:[%s8759 + $0x28] sm:$0xff]
  %v8766 = vld [vmem:[%s8759 + $0x30] sm:$0xff]
  %v8767 = vld [vmem:[%s8759 + $0x38] sm:$0xff]
  %s8768 = scalar_lea.vmem %s33, 6
  %v8769 = vld [vmem:[%s8768] sm:$0x1]
  %v8771 = vlaneseq
  %v8772 = vshrl.u32 %v8771, 7
  %v8773 = vsub.s32 0, %v8772
  %v8774 = vrot.slane %v8769, %v8773
  %8776 = vmatprep.subr.mxu0 0.0
  %8777 = vmatpush1.msra.mxu0 %v8760
  %8778 = vmatprep.subr.mxu0 0.0
  %8779 = vmatpush1.msra.mxu0 %v8761
  %8780 = vmatprep.subr.mxu0 0.0
  %8781 = vmatpush1.msra.mxu0 %v8762
  %8782 = vmatprep.subr.mxu0 0.0
  %8783 = vmatpush1.msra.mxu0 %v8763
  %8784 = vmatprep.subr.mxu0 0.0
  %8785 = vmatpush1.msra.mxu0 %v8764
  %8786 = vmatprep.subr.mxu0 0.0
  %8787 = vmatpush1.msra.mxu0 %v8765
  %8788 = vmatprep.subr.mxu0 0.0
  %8789 = vmatpush1.msra.mxu0 %v8766
  %8790 = vmatprep.subr.mxu0 0.0
  %8791 = vmatpush1.msra.mxu0 %v8767
  %8792 = vmatprep.subr.mxu0 0.0
  %8793 = vmatpush1.msra.mxu0 0.0
  %8794 = vmatprep.subr.mxu0 0.0
  %8795 = vmatpush1.msra.mxu0 0.0
  %8796 = vmatprep.subr.mxu0 0.0
  %8797 = vmatpush1.msra.mxu0 0.0
  %8798 = vmatprep.subr.mxu0 0.0
  %8799 = vmatpush1.msra.mxu0 0.0
  %8800 = vmatprep.subr.mxu0 0.0
  %8801 = vmatpush1.msra.mxu0 0.0
  %8802 = vmatprep.subr.mxu0 0.0
  %8803 = vmatpush1.msra.mxu0 0.0
  %8804 = vmatprep.subr.mxu0 0.0
  %8805 = vmatpush1.msra.mxu0 0.0
  %8806 = vmatprep.subr.mxu0 0.0
  %8807 = vmatpush1.msra.mxu0 0.0
  %8808 = vmatprep.subr.mxu0 0.0
  %8809 = vmatpush1.msra.mxu0 0.0
  %8810 = vmatprep.subr.mxu0 0.0
  %8811 = vmatpush1.msra.mxu0 0.0
  %8812 = vmatprep.subr.mxu0 0.0
  %8813 = vmatpush1.msra.mxu0 0.0
  %8814 = vmatprep.subr.mxu0 0.0
  %8815 = vmatpush1.msra.mxu0 0.0
  %8816 = vmatprep.subr.mxu0 0.0
  %8817 = vmatpush1.msra.mxu0 0.0
  %8818 = vmatprep.subr.mxu0 0.0
  %8819 = vmatpush1.msra.mxu0 0.0
  %8820 = vmatprep.subr.mxu0 0.0
  %8821 = vmatpush1.msra.mxu0 0.0
  %8822 = vmatprep.subr.mxu0 0.0
  %8823 = vmatpush1.msra.mxu0 0.0
  %8824 = vmatprep.subr.mxu0 0.0
  %8825 = vmatpush1.msra.mxu0 0.0
  %8826 = vmatprep.subr.mxu0 0.0
  %8827 = vmatpush1.msra.mxu0 0.0
  %8828 = vmatprep.subr.mxu0 0.0
  %8829 = vmatpush1.msra.mxu0 0.0
  %8830 = vmatprep.subr.mxu0 0.0
  %8831 = vmatpush1.msra.mxu0 0.0
  %8832 = vmatprep.subr.mxu0 0.0
  %8833 = vmatpush1.msra.mxu0 0.0
  %8834 = vmatprep.subr.mxu0 0.0
  %8835 = vmatpush1.msra.mxu0 0.0
  %8836 = vmatprep.subr.mxu0 0.0
  %8837 = vmatpush1.msra.mxu0 0.0
  %8838 = vmatprep.subr.mxu0 0.0
  %8839 = vmatpush1.msra.mxu0 0.0
  %8840 = vmatprep.mubr.f32.mxu0 0.0
  %8841 = vmatmul.mubr.f32.gmra.mrb[0].mxu0 %v2521
  %v8842 = vpop.f32.mrb[0].mxu0
  %v8843 = vadd.f32 %v8774, %v8842
  %v8844 = vpop.f32.mrb[0].mxu0
  %8845 = vmatprep.mubr.f32.mxu0 0.0
  %8846 = vmatmul.mubr.f32.gmra.mrb[0].mxu0 %v2524
  %v8847 = vpop.f32.mrb[0].mxu0
  %v8848 = vadd.f32 %v8774, %v8847
  %v8849 = vpop.f32.mrb[0].mxu0
  %8850 = vmatprep.mubr.f32.mxu0 0.0
  %8851 = vmatmul.mubr.f32.gmra.mrb[0].mxu0 %v2527
  %v8852 = vpop.f32.mrb[0].mxu0
  %v8853 = vadd.f32 %v8774, %v8852
  %v8854 = vpop.f32.mrb[0].mxu0
  %8855 = vmatprep.mubr.f32.mxu0 0.0
  %8856 = vmatmul.mubr.f32.gmra.mrb[0].mxu0 %v2530
  %v8857 = vpop.f32.mrb[0].mxu0
  %v8858 = vadd.f32 %v8774, %v8857
  %v8859 = vpop.f32.mrb[0].mxu0
  %8860 = vmatprep.mubr.f32.mxu0 0.0
  %8861 = vmatmul.mubr.f32.gmra.mrb[0].mxu0 %v2533
  %v8862 = vpop.f32.mrb[0].mxu0
  %v8863 = vadd.f32 %v8774, %v8862
  %v8864 = vpop.f32.mrb[0].mxu0
  %8865 = vmatprep.mubr.f32.mxu0 0.0
  %8866 = vmatmul.mubr.f32.gmra.mrb[0].mxu0 %v2536
  %v8867 = vpop.f32.mrb[0].mxu0
  %v8868 = vadd.f32 %v8774, %v8867
  %v8869 = vpop.f32.mrb[0].mxu0
  %8870 = vdwg.mxu0
  %s8871 = scalar_lea.vmem %s29, 384
  %v8872 = vld [vmem:[%s8871] sm:$0xff]
  %v8873 = vld [vmem:[%s8871 + $0x8] sm:$0xff]
  %v8874 = vld [vmem:[%s8871 + $0x10] sm:$0xff]
  %v8875 = vld [vmem:[%s8871 + $0x18] sm:$0xff]
  %v8876 = vld [vmem:[%s8871 + $0x20] sm:$0xff]
  %v8877 = vld [vmem:[%s8871 + $0x28] sm:$0xff]
  %v8878 = vld [vmem:[%s8871 + $0x30] sm:$0xff]
  %v8879 = vld [vmem:[%s8871 + $0x38] sm:$0xff]
  %s8880 = scalar_lea.vmem %s35, 6
  %v8881 = vld [vmem:[%s8880] sm:$0x1]
  %v8883 = vlaneseq
  %v8884 = vshrl.u32 %v8883, 7
  %v8885 = vsub.s32 0, %v8884
  %v8886 = vrot.slane %v8881, %v8885
  %8888 = vmatprep.subr.mxu0 0.0
  %8889 = vmatpush1.msra.mxu0 %v8872
  %8890 = vmatprep.subr.mxu0 0.0
  %8891 = vmatpush1.msra.mxu0 %v8873
  %8892 = vmatprep.subr.mxu0 0.0
  %8893 = vmatpush1.msra.mxu0 %v8874
  %8894 = vmatprep.subr.mxu0 0.0
  %8895 = vmatpush1.msra.mxu0 %v8875
  %8896 = vmatprep.subr.mxu0 0.0
  %8897 = vmatpush1.msra.mxu0 %v8876
  %8898 = vmatprep.subr.mxu0 0.0
  %8899 = vmatpush1.msra.mxu0 %v8877
  %8900 = vmatprep.subr.mxu0 0.0
  %8901 = vmatpush1.msra.mxu0 %v8878
  %8902 = vmatprep.subr.mxu0 0.0
  %8903 = vmatpush1.msra.mxu0 %v8879
  %8904 = vmatprep.subr.mxu0 0.0
  %8905 = vmatpush1.msra.mxu0 0.0
  %8906 = vmatprep.subr.mxu0 0.0
  %8907 = vmatpush1.msra.mxu0 0.0
  %8908 = vmatprep.subr.mxu0 0.0
  %8909 = vmatpush1.msra.mxu0 0.0
  %8910 = vmatprep.subr.mxu0 0.0
  %8911 = vmatpush1.msra.mxu0 0.0
  %8912 = vmatprep.subr.mxu0 0.0
  %8913 = vmatpush1.msra.mxu0 0.0
  %8914 = vmatprep.subr.mxu0 0.0
  %8915 = vmatpush1.msra.mxu0 0.0
  %8916 = vmatprep.subr.mxu0 0.0
  %8917 = vmatpush1.msra.mxu0 0.0
  %8918 = vmatprep.subr.mxu0 0.0
  %8919 = vmatpush1.msra.mxu0 0.0
  %8920 = vmatprep.subr.mxu0 0.0
  %8921 = vmatpush1.msra.mxu0 0.0
  %8922 = vmatprep.subr.mxu0 0.0
  %8923 = vmatpush1.msra.mxu0 0.0
  %8924 = vmatprep.subr.mxu0 0.0
  %8925 = vmatpush1.msra.mxu0 0.0
  %8926 = vmatprep.subr.mxu0 0.0
  %8927 = vmatpush1.msra.mxu0 0.0
  %8928 = vmatprep.subr.mxu0 0.0
  %8929 = vmatpush1.msra.mxu0 0.0
  %8930 = vmatprep.subr.mxu0 0.0
  %8931 = vmatpush1.msra.mxu0 0.0
  %8932 = vmatprep.subr.mxu0 0.0
  %8933 = vmatpush1.msra.mxu0 0.0
  %8934 = vmatprep.subr.mxu0 0.0
  %8935 = vmatpush1.msra.mxu0 0.0
  %8936 = vmatprep.subr.mxu0 0.0
  %8937 = vmatpush1.msra.mxu0 0.0
  %8938 = vmatprep.subr.mxu0 0.0
  %8939 = vmatpush1.msra.mxu0 0.0
  %8940 = vmatprep.subr.mxu0 0.0
  %8941 = vmatpush1.msra.mxu0 0.0
  %8942 = vmatprep.subr.mxu0 0.0
  %8943 = vmatpush1.msra.mxu0 0.0
  %8944 = vmatprep.subr.mxu0 0.0
  %8945 = vmatpush1.msra.mxu0 0.0
  %8946 = vmatprep.subr.mxu0 0.0
  %8947 = vmatpush1.msra.mxu0 0.0
  %8948 = vmatprep.subr.mxu0 0.0
  %8949 = vmatpush1.msra.mxu0 0.0
  %8950 = vmatprep.subr.mxu0 0.0
  %8951 = vmatpush1.msra.mxu0 0.0
  %8952 = vmatprep.mubr.f32.mxu0 0.0
  %8953 = vmatmul.mubr.f32.gmra.mrb[0].mxu0 %v2521
  %v8954 = vpop.f32.mrb[0].mxu0
  %v8955 = vadd.f32 %v8886, %v8954
  %v8956 = vpop.f32.mrb[0].mxu0
  %8957 = vmatprep.mubr.f32.mxu0 0.0
  %8958 = vmatmul.mubr.f32.gmra.mrb[0].mxu0 %v2524
  %v8959 = vpop.f32.mrb[0].mxu0
  %v8960 = vadd.f32 %v8886, %v8959
  %v8961 = vpop.f32.mrb[0].mxu0
  %8962 = vmatprep.mubr.f32.mxu0 0.0
  %8963 = vmatmul.mubr.f32.gmra.mrb[0].mxu0 %v2527
  %v8964 = vpop.f32.mrb[0].mxu0
  %v8965 = vadd.f32 %v8886, %v8964
  %v8966 = vpop.f32.mrb[0].mxu0
  %8967 = vmatprep.mubr.f32.mxu0 0.0
  %8968 = vmatmul.mubr.f32.gmra.mrb[0].mxu0 %v2530
  %v8969 = vpop.f32.mrb[0].mxu0
  %v8970 = vadd.f32 %v8886, %v8969
  %v8971 = vpop.f32.mrb[0].mxu0
  %8972 = vmatprep.mubr.f32.mxu0 0.0
  %8973 = vmatmul.mubr.f32.gmra.mrb[0].mxu0 %v2533
  %v8974 = vpop.f32.mrb[0].mxu0
  %v8975 = vadd.f32 %v8886, %v8974
  %v8976 = vpop.f32.mrb[0].mxu0
  %8977 = vmatprep.mubr.f32.mxu0 0.0
  %8978 = vmatmul.mubr.f32.gmra.mrb[0].mxu0 %v2536
  %v8979 = vpop.f32.mrb[0].mxu0
  %v8980 = vadd.f32 %v8886, %v8979
  %v8981 = vpop.f32.mrb[0].mxu0
  %8982 = vdwg.mxu0
  %v8984 = vsel %vm417, %v8757, 0
  %v8987 = vsel %vm417, %v8758, 0
  %v8990 = vsel %vm417, %v8843, 0
  %v8993 = vsel %vm417, %v8848, 0
  %v8996 = vsel %vm417, %v8853, 0
  %v8999 = vsel %vm417, %v8858, 0
  %v9002 = vsel %vm417, %v8863, 0
  %v9005 = vsel %vm417, %v8868, 0
  %9007 = vmatprep.subr.mxu0 0.0
  %9008 = vmatpush1.xpose.msra.mxu0 %v8990
  %9009 = vmatprep.subr.mxu0 0.0
  %9010 = vmatpush1.xpose.msra.mxu0 %v8993
  %9011 = vmatprep.subr.mxu0 0.0
  %9012 = vmatpush1.xpose.msra.mxu0 %v8996
  %9013 = vmatprep.subr.mxu0 0.0
  %9014 = vmatpush1.xpose.msra.mxu0 %v8999
  %9015 = vmatprep.subr.mxu0 0.0
  %9016 = vmatpush1.xpose.msra.mxu0 %v9002
  %9017 = vmatprep.subr.mxu0 0.0
  %9018 = vmatpush1.xpose.msra.mxu0 %v9005
  %9019 = vmatprep.subr.mxu0 0.0
  %9020 = vmatpush1.xpose.msra.mxu0 0.0
  %9021 = vmatprep.subr.mxu0 0.0
  %9022 = vmatpush1.xpose.msra.mxu0 0.0
  %9023 = vmatprep.subr.mxu0 0.0
  %9024 = vmatpush1.xpose.msra.mxu0 0.0
  %9025 = vmatprep.subr.mxu0 0.0
  %9026 = vmatpush1.xpose.msra.mxu0 0.0
  %9027 = vmatprep.subr.mxu0 0.0
  %9028 = vmatpush1.xpose.msra.mxu0 0.0
  %9029 = vmatprep.subr.mxu0 0.0
  %9030 = vmatpush1.xpose.msra.mxu0 0.0
  %9031 = vmatprep.subr.mxu0 0.0
  %9032 = vmatpush1.xpose.msra.mxu0 0.0
  %9033 = vmatprep.subr.mxu0 0.0
  %9034 = vmatpush1.xpose.msra.mxu0 0.0
  %9035 = vmatprep.subr.mxu0 0.0
  %9036 = vmatpush1.xpose.msra.mxu0 0.0
  %9037 = vmatprep.subr.mxu0 0.0
  %9038 = vmatpush1.xpose.msra.mxu0 0.0
  %9039 = vmatprep.subr.mxu0 0.0
  %9040 = vmatpush1.xpose.msra.mxu0 0.0
  %9041 = vmatprep.subr.mxu0 0.0
  %9042 = vmatpush1.xpose.msra.mxu0 0.0
  %9043 = vmatprep.subr.mxu0 0.0
  %9044 = vmatpush1.xpose.msra.mxu0 0.0
  %9045 = vmatprep.subr.mxu0 0.0
  %9046 = vmatpush1.xpose.msra.mxu0 0.0
  %9047 = vmatprep.subr.mxu0 0.0
  %9048 = vmatpush1.xpose.msra.mxu0 0.0
  %9049 = vmatprep.subr.mxu0 0.0
  %9050 = vmatpush1.xpose.msra.mxu0 0.0
  %9051 = vmatprep.subr.mxu0 0.0
  %9052 = vmatpush1.xpose.msra.mxu0 0.0
  %9053 = vmatprep.subr.mxu0 0.0
  %9054 = vmatpush1.xpose.msra.mxu0 0.0
  %9055 = vmatprep.subr.mxu0 0.0
  %9056 = vmatpush1.xpose.msra.mxu0 0.0
  %9057 = vmatprep.subr.mxu0 0.0
  %9058 = vmatpush1.xpose.msra.mxu0 0.0
  %9059 = vmatprep.subr.mxu0 0.0
  %9060 = vmatpush1.xpose.msra.mxu0 0.0
  %9061 = vmatprep.subr.mxu0 0.0
  %9062 = vmatpush1.xpose.msra.mxu0 0.0
  %9063 = vmatprep.subr.mxu0 0.0
  %9064 = vmatpush1.xpose.msra.mxu0 0.0
  %9065 = vmatprep.subr.mxu0 0.0
  %9066 = vmatpush1.xpose.msra.mxu0 0.0
  %9067 = vmatprep.subr.mxu0 0.0
  %9068 = vmatpush1.xpose.msra.mxu0 0.0
  %9069 = vmatprep.subr.mxu0 0.0
  %9070 = vmatpush1.xpose.msra.mxu0 0.0
  %9071 = vmatprep.mubr.f32.mxu0 0.0
  %9072 = vmatmul.mubr.f32.gmra.mrb[0].mxu0 %v8984
  %v9073 = vpop.f32.mrb[0].mxu0
  %v9074 = vadd.f32 %v136, %v9073
  %v9075 = vpop.f32.mrb[0].mxu0
  %9076 = vmatprep.mubr.f32.mxu0 0.0
  %9077 = vmatmul.mubr.f32.gmra.mrb[0].mxu0 %v8987
  %v9078 = vpop.f32.mrb[0].mxu0
  %v9079 = vadd.f32 %v137, %v9078
  %v9080 = vpop.f32.mrb[0].mxu0
  %9081 = vdwg.mxu0
  %v9082 = vsel %vm2842, %v9074, -inf
  %9083 = vmax.xlane.f32.xlu0 %v9082
  %v9084 = vpop.xlane.xlu0 %9083
  %v9085 = vsel %vm2842, %v9079, -inf
  %9086 = vmax.xlane.f32.xlu0 %v9085
  %v9087 = vpop.xlane.xlu0 %9086
  %v9088 = vsub.f32 %v9074, %v9084
  %v9089 = vsub.f32 %v9079, %v9087
  %v9090 = vmul.f32 %v9088, 1.442695
  %v9091 = vpow.pop %v9090
  %v9092 = vmul.f32 %v9089, 1.442695
  %v9093 = vpow.pop %v9092
  %v9094 = vsel %vm2842, %v9091, 0.0
  %9095 = vadd.xlane.f32.xlu0 %v9094
  %v9096 = vpop.xlane.xlu0 %9095
  %v9097 = vsel %vm2842, %v9093, 0.0
  %9098 = vadd.xlane.f32.xlu0 %v9097
  %v9099 = vpop.xlane.xlu0 %9098
  %v9100 = vrcp.pop %v9096
  %v9101 = vrcp.pop %v9099
  %v9102 = vmul.f32 %v9091, %v9100
  %v9103 = vmul.f32 %v9093, %v9101
  %v9105 = vsel %vm2842, %v9102, 0
  %v9108 = vsel %vm2842, %v9103, 0
  %9110 = vmatprep.subr.mxu0 0.0
  %9111 = vmatpush1.msra.mxu0 %v8955
  %9112 = vmatprep.subr.mxu0 0.0
  %9113 = vmatpush1.msra.mxu0 %v8960
  %9114 = vmatprep.subr.mxu0 0.0
  %9115 = vmatpush1.msra.mxu0 %v8965
  %9116 = vmatprep.subr.mxu0 0.0
  %9117 = vmatpush1.msra.mxu0 %v8970
  %9118 = vmatprep.subr.mxu0 0.0
  %9119 = vmatpush1.msra.mxu0 %v8975
  %9120 = vmatprep.subr.mxu0 0.0
  %9121 = vmatpush1.msra.mxu0 %v8980
  %9122 = vmatprep.subr.mxu0 0.0
  %9123 = vmatpush1.msra.mxu0 0.0
  %9124 = vmatprep.subr.mxu0 0.0
  %9125 = vmatpush1.msra.mxu0 0.0
  %9126 = vmatprep.subr.mxu0 0.0
  %9127 = vmatpush1.msra.mxu0 0.0
  %9128 = vmatprep.subr.mxu0 0.0
  %9129 = vmatpush1.msra.mxu0 0.0
  %9130 = vmatprep.subr.mxu0 0.0
  %9131 = vmatpush1.msra.mxu0 0.0
  %9132 = vmatprep.subr.mxu0 0.0
  %9133 = vmatpush1.msra.mxu0 0.0
  %9134 = vmatprep.subr.mxu0 0.0
  %9135 = vmatpush1.msra.mxu0 0.0
  %9136 = vmatprep.subr.mxu0 0.0
  %9137 = vmatpush1.msra.mxu0 0.0
  %9138 = vmatprep.subr.mxu0 0.0
  %9139 = vmatpush1.msra.mxu0 0.0
  %9140 = vmatprep.subr.mxu0 0.0
  %9141 = vmatpush1.msra.mxu0 0.0
  %9142 = vmatprep.subr.mxu0 0.0
  %9143 = vmatpush1.msra.mxu0 0.0
  %9144 = vmatprep.subr.mxu0 0.0
  %9145 = vmatpush1.msra.mxu0 0.0
  %9146 = vmatprep.subr.mxu0 0.0
  %9147 = vmatpush1.msra.mxu0 0.0
  %9148 = vmatprep.subr.mxu0 0.0
  %9149 = vmatpush1.msra.mxu0 0.0
  %9150 = vmatprep.subr.mxu0 0.0
  %9151 = vmatpush1.msra.mxu0 0.0
  %9152 = vmatprep.subr.mxu0 0.0
  %9153 = vmatpush1.msra.mxu0 0.0
  %9154 = vmatprep.subr.mxu0 0.0
  %9155 = vmatpush1.msra.mxu0 0.0
  %9156 = vmatprep.subr.mxu0 0.0
  %9157 = vmatpush1.msra.mxu0 0.0
  %9158 = vmatprep.subr.mxu0 0.0
  %9159 = vmatpush1.msra.mxu0 0.0
  %9160 = vmatprep.subr.mxu0 0.0
  %9161 = vmatpush1.msra.mxu0 0.0
  %9162 = vmatprep.subr.mxu0 0.0
  %9163 = vmatpush1.msra.mxu0 0.0
  %9164 = vmatprep.subr.mxu0 0.0
  %9165 = vmatpush1.msra.mxu0 0.0
  %9166 = vmatprep.subr.mxu0 0.0
  %9167 = vmatpush1.msra.mxu0 0.0
  %9168 = vmatprep.subr.mxu0 0.0
  %9169 = vmatpush1.msra.mxu0 0.0
  %9170 = vmatprep.subr.mxu0 0.0
  %9171 = vmatpush1.msra.mxu0 0.0
  %9172 = vmatprep.subr.mxu0 0.0
  %9173 = vmatpush1.msra.mxu0 0.0
  %9174 = vmatprep.mubr.f32.mxu0 0.0
  %9175 = vmatmul.mubr.f32.gmra.mrb[0].mxu0 %v9105
  %v9176 = vpop.f32.mrb[0].mxu0
  %v9177 = vadd.f32 0.0, %v9176
  %v9178 = vpop.f32.mrb[0].mxu0
  %9179 = vmatprep.mubr.f32.mxu0 0.0
  %9180 = vmatmul.mubr.f32.gmra.mrb[0].mxu0 %v9108
  %v9181 = vpop.f32.mrb[0].mxu0
  %v9182 = vadd.f32 0.0, %v9181
  %v9183 = vpop.f32.mrb[0].mxu0
  %9184 = vdwg.mxu0
  %s9185 = scalar_lea.vmem %s37, 96
  %v9186 = vld [vmem:[%s9185] sm:$0xff]
  %v9187 = vld [vmem:[%s9185 + $0x8] sm:$0xff]
  %v9189 = vsel %vm417, %v9177, 0
  %v9192 = vsel %vm417, %v9182, 0
  %9194 = vmatprep.subr.mxu0 0.0
  %9195 = vmatpush1.msra.mxu0 %v9186
  %9196 = vmatprep.subr.mxu0 0.0
  %9197 = vmatpush1.msra.mxu0 %v9187
  %9198 = vmatprep.subr.mxu0 0.0
  %9199 = vmatpush1.msra.mxu0 0.0
  %9200 = vmatprep.subr.mxu0 0.0
  %9201 = vmatpush1.msra.mxu0 0.0
  %9202 = vmatprep.subr.mxu0 0.0
  %9203 = vmatpush1.msra.mxu0 0.0
  %9204 = vmatprep.subr.mxu0 0.0
  %9205 = vmatpush1.msra.mxu0 0.0
  %9206 = vmatprep.subr.mxu0 0.0
  %9207 = vmatpush1.msra.mxu0 0.0
  %9208 = vmatprep.subr.mxu0 0.0
  %9209 = vmatpush1.msra.mxu0 0.0
  %9210 = vmatprep.subr.mxu0 0.0
  %9211 = vmatpush1.msra.mxu0 0.0
  %9212 = vmatprep.subr.mxu0 0.0
  %9213 = vmatpush1.msra.mxu0 0.0
  %9214 = vmatprep.subr.mxu0 0.0
  %9215 = vmatpush1.msra.mxu0 0.0
  %9216 = vmatprep.subr.mxu0 0.0
  %9217 = vmatpush1.msra.mxu0 0.0
  %9218 = vmatprep.subr.mxu0 0.0
  %9219 = vmatpush1.msra.mxu0 0.0
  %9220 = vmatprep.subr.mxu0 0.0
  %9221 = vmatpush1.msra.mxu0 0.0
  %9222 = vmatprep.subr.mxu0 0.0
  %9223 = vmatpush1.msra.mxu0 0.0
  %9224 = vmatprep.subr.mxu0 0.0
  %9225 = vmatpush1.msra.mxu0 0.0
  %9226 = vmatprep.subr.mxu0 0.0
  %9227 = vmatpush1.msra.mxu0 0.0
  %9228 = vmatprep.subr.mxu0 0.0
  %9229 = vmatpush1.msra.mxu0 0.0
  %9230 = vmatprep.subr.mxu0 0.0
  %9231 = vmatpush1.msra.mxu0 0.0
  %9232 = vmatprep.subr.mxu0 0.0
  %9233 = vmatpush1.msra.mxu0 0.0
  %9234 = vmatprep.subr.mxu0 0.0
  %9235 = vmatpush1.msra.mxu0 0.0
  %9236 = vmatprep.subr.mxu0 0.0
  %9237 = vmatpush1.msra.mxu0 0.0
  %9238 = vmatprep.subr.mxu0 0.0
  %9239 = vmatpush1.msra.mxu0 0.0
  %9240 = vmatprep.subr.mxu0 0.0
  %9241 = vmatpush1.msra.mxu0 0.0
  %9242 = vmatprep.subr.mxu0 0.0
  %9243 = vmatpush1.msra.mxu0 0.0
  %9244 = vmatprep.subr.mxu0 0.0
  %9245 = vmatpush1.msra.mxu0 0.0
  %9246 = vmatprep.subr.mxu0 0.0
  %9247 = vmatpush1.msra.mxu0 0.0
  %9248 = vmatprep.subr.mxu0 0.0
  %9249 = vmatpush1.msra.mxu0 0.0
  %9250 = vmatprep.subr.mxu0 0.0
  %9251 = vmatpush1.msra.mxu0 0.0
  %9252 = vmatprep.subr.mxu0 0.0
  %9253 = vmatpush1.msra.mxu0 0.0
  %9254 = vmatprep.subr.mxu0 0.0
  %9255 = vmatpush1.msra.mxu0 0.0
  %9256 = vmatprep.subr.mxu0 0.0
  %9257 = vmatpush1.msra.mxu0 0.0
  %9258 = vmatprep.mubr.f32.mxu0 0.0
  %9259 = vmatmul.mubr.f32.gmra.mrb[0].mxu0 %v9189
  %v9260 = vpop.f32.mrb[0].mxu0
  %v9261 = vadd.f32 0.0, %v9260
  %v9262 = vpop.f32.mrb[0].mxu0
  %9263 = vmatprep.mubr.f32.mxu0 0.0
  %9264 = vmatmul.mubr.f32.gmra.mrb[0].mxu0 %v9192
  %v9265 = vpop.f32.mrb[0].mxu0
  %v9266 = vadd.f32 0.0, %v9265
  %v9267 = vpop.f32.mrb[0].mxu0
  %9268 = vdwg.mxu0
  %v9269 = vadd.f32 %v8657, %v9261
  %v9270 = vadd.f32 %v8662, %v9266
  %s9271 = scalar_lea.vmem %s25, 448
  %v9272 = vld [vmem:[%s9271] sm:$0xff]
  %v9273 = vld [vmem:[%s9271 + $0x8] sm:$0xff]
  %v9274 = vld [vmem:[%s9271 + $0x10] sm:$0xff]
  %v9275 = vld [vmem:[%s9271 + $0x18] sm:$0xff]
  %v9276 = vld [vmem:[%s9271 + $0x20] sm:$0xff]
  %v9277 = vld [vmem:[%s9271 + $0x28] sm:$0xff]
  %v9278 = vld [vmem:[%s9271 + $0x30] sm:$0xff]
  %v9279 = vld [vmem:[%s9271 + $0x38] sm:$0xff]
  %s9280 = scalar_lea.vmem %s31, 7
  %v9281 = vld [vmem:[%s9280] sm:$0x1]
  %v9283 = vlaneseq
  %v9284 = vshrl.u32 %v9283, 7
  %v9285 = vsub.s32 0, %v9284
  %v9286 = vrot.slane %v9281, %v9285
  %9288 = vmatprep.subr.mxu0 0.0
  %9289 = vmatpush1.msra.mxu0 %v9272
  %9290 = vmatprep.subr.mxu0 0.0
  %9291 = vmatpush1.msra.mxu0 %v9273
  %9292 = vmatprep.subr.mxu0 0.0
  %9293 = vmatpush1.msra.mxu0 %v9274
  %9294 = vmatprep.subr.mxu0 0.0
  %9295 = vmatpush1.msra.mxu0 %v9275
  %9296 = vmatprep.subr.mxu0 0.0
  %9297 = vmatpush1.msra.mxu0 %v9276
  %9298 = vmatprep.subr.mxu0 0.0
  %9299 = vmatpush1.msra.mxu0 %v9277
  %9300 = vmatprep.subr.mxu0 0.0
  %9301 = vmatpush1.msra.mxu0 %v9278
  %9302 = vmatprep.subr.mxu0 0.0
  %9303 = vmatpush1.msra.mxu0 %v9279
  %9304 = vmatprep.subr.mxu0 0.0
  %9305 = vmatpush1.msra.mxu0 0.0
  %9306 = vmatprep.subr.mxu0 0.0
  %9307 = vmatpush1.msra.mxu0 0.0
  %9308 = vmatprep.subr.mxu0 0.0
  %9309 = vmatpush1.msra.mxu0 0.0
  %9310 = vmatprep.subr.mxu0 0.0
  %9311 = vmatpush1.msra.mxu0 0.0
  %9312 = vmatprep.subr.mxu0 0.0
  %9313 = vmatpush1.msra.mxu0 0.0
  %9314 = vmatprep.subr.mxu0 0.0
  %9315 = vmatpush1.msra.mxu0 0.0
  %9316 = vmatprep.subr.mxu0 0.0
  %9317 = vmatpush1.msra.mxu0 0.0
  %9318 = vmatprep.subr.mxu0 0.0
  %9319 = vmatpush1.msra.mxu0 0.0
  %9320 = vmatprep.subr.mxu0 0.0
  %9321 = vmatpush1.msra.mxu0 0.0
  %9322 = vmatprep.subr.mxu0 0.0
  %9323 = vmatpush1.msra.mxu0 0.0
  %9324 = vmatprep.subr.mxu0 0.0
  %9325 = vmatpush1.msra.mxu0 0.0
  %9326 = vmatprep.subr.mxu0 0.0
  %9327 = vmatpush1.msra.mxu0 0.0
  %9328 = vmatprep.subr.mxu0 0.0
  %9329 = vmatpush1.msra.mxu0 0.0
  %9330 = vmatprep.subr.mxu0 0.0
  %9331 = vmatpush1.msra.mxu0 0.0
  %9332 = vmatprep.subr.mxu0 0.0
  %9333 = vmatpush1.msra.mxu0 0.0
  %9334 = vmatprep.subr.mxu0 0.0
  %9335 = vmatpush1.msra.mxu0 0.0
  %9336 = vmatprep.subr.mxu0 0.0
  %9337 = vmatpush1.msra.mxu0 0.0
  %9338 = vmatprep.subr.mxu0 0.0
  %9339 = vmatpush1.msra.mxu0 0.0
  %9340 = vmatprep.subr.mxu0 0.0
  %9341 = vmatpush1.msra.mxu0 0.0
  %9342 = vmatprep.subr.mxu0 0.0
  %9343 = vmatpush1.msra.mxu0 0.0
  %9344 = vmatprep.subr.mxu0 0.0
  %9345 = vmatpush1.msra.mxu0 0.0
  %9346 = vmatprep.subr.mxu0 0.0
  %9347 = vmatpush1.msra.mxu0 0.0
  %9348 = vmatprep.subr.mxu0 0.0
  %9349 = vmatpush1.msra.mxu0 0.0
  %9350 = vmatprep.subr.mxu0 0.0
  %9351 = vmatpush1.msra.mxu0 0.0
  %9352 = vmatprep.mubr.f32.mxu0 0.0
  %9353 = vmatmul.mubr.f32.gmra.mrb[0].mxu0 %v7469
  %v9354 = vpop.f32.mrb[0].mxu0
  %v9355 = vadd.f32 %v9286, %v9354
  %v9356 = vpop.f32.mrb[0].mxu0
  %9357 = vmatprep.mubr.f32.mxu0 0.0
  %9358 = vmatmul.mubr.f32.gmra.mrb[0].mxu0 %v7472
  %v9359 = vpop.f32.mrb[0].mxu0
  %v9360 = vadd.f32 %v9286, %v9359
  %v9361 = vpop.f32.mrb[0].mxu0
  %9362 = vdwg.mxu0
  %v9363 = vmul.f32 %v9355, 0.25
  %v9364 = vmul.f32 %v9360, 0.25
  %s9365 = scalar_lea.vmem %s27, 448
  %v9366 = vld [vmem:[%s9365] sm:$0xff]
  %v9367 = vld [vmem:[%s9365 + $0x8] sm:$0xff]
  %v9368 = vld [vmem:[%s9365 + $0x10] sm:$0xff]
  %v9369 = vld [vmem:[%s9365 + $0x18] sm:$0xff]
  %v9370 = vld [vmem:[%s9365 + $0x20] sm:$0xff]
  %v9371 = vld [vmem:[%s9365 + $0x28] sm:$0xff]
  %v9372 = vld [vmem:[%s9365 + $0x30] sm:$0xff]
  %v9373 = vld [vmem:[%s9365 + $0x38] sm:$0xff]
  %s9374 = scalar_lea.vmem %s33, 7
  %v9375 = vld [vmem:[%s9374] sm:$0x1]
  %v9377 = vlaneseq
  %v9378 = vshrl.u32 %v9377, 7
  %v9379 = vsub.s32 0, %v9378
  %v9380 = vrot.slane %v9375, %v9379
  %9382 = vmatprep.subr.mxu0 0.0
  %9383 = vmatpush1.msra.mxu0 %v9366
  %9384 = vmatprep.subr.mxu0 0.0
  %9385 = vmatpush1.msra.mxu0 %v9367
  %9386 = vmatprep.subr.mxu0 0.0
  %9387 = vmatpush1.msra.mxu0 %v9368
  %9388 = vmatprep.subr.mxu0 0.0
  %9389 = vmatpush1.msra.mxu0 %v9369
  %9390 = vmatprep.subr.mxu0 0.0
  %9391 = vmatpush1.msra.mxu0 %v9370
  %9392 = vmatprep.subr.mxu0 0.0
  %9393 = vmatpush1.msra.mxu0 %v9371
  %9394 = vmatprep.subr.mxu0 0.0
  %9395 = vmatpush1.msra.mxu0 %v9372
  %9396 = vmatprep.subr.mxu0 0.0
  %9397 = vmatpush1.msra.mxu0 %v9373
  %9398 = vmatprep.subr.mxu0 0.0
  %9399 = vmatpush1.msra.mxu0 0.0
  %9400 = vmatprep.subr.mxu0 0.0
  %9401 = vmatpush1.msra.mxu0 0.0
  %9402 = vmatprep.subr.mxu0 0.0
  %9403 = vmatpush1.msra.mxu0 0.0
  %9404 = vmatprep.subr.mxu0 0.0
  %9405 = vmatpush1.msra.mxu0 0.0
  %9406 = vmatprep.subr.mxu0 0.0
  %9407 = vmatpush1.msra.mxu0 0.0
  %9408 = vmatprep.subr.mxu0 0.0
  %9409 = vmatpush1.msra.mxu0 0.0
  %9410 = vmatprep.subr.mxu0 0.0
  %9411 = vmatpush1.msra.mxu0 0.0
  %9412 = vmatprep.subr.mxu0 0.0
  %9413 = vmatpush1.msra.mxu0 0.0
  %9414 = vmatprep.subr.mxu0 0.0
  %9415 = vmatpush1.msra.mxu0 0.0
  %9416 = vmatprep.subr.mxu0 0.0
  %9417 = vmatpush1.msra.mxu0 0.0
  %9418 = vmatprep.subr.mxu0 0.0
  %9419 = vmatpush1.msra.mxu0 0.0
  %9420 = vmatprep.subr.mxu0 0.0
  %9421 = vmatpush1.msra.mxu0 0.0
  %9422 = vmatprep.subr.mxu0 0.0
  %9423 = vmatpush1.msra.mxu0 0.0
  %9424 = vmatprep.subr.mxu0 0.0
  %9425 = vmatpush1.msra.mxu0 0.0
  %9426 = vmatprep.subr.mxu0 0.0
  %9427 = vmatpush1.msra.mxu0 0.0
  %9428 = vmatprep.subr.mxu0 0.0
  %9429 = vmatpush1.msra.mxu0 0.0
  %9430 = vmatprep.subr.mxu0 0.0
  %9431 = vmatpush1.msra.mxu0 0.0
  %9432 = vmatprep.subr.mxu0 0.0
  %9433 = vmatpush1.msra.mxu0 0.0
  %9434 = vmatprep.subr.mxu0 0.0
  %9435 = vmatpush1.msra.mxu0 0.0
  %9436 = vmatprep.subr.mxu0 0.0
  %9437 = vmatpush1.msra.mxu0 0.0
  %9438 = vmatprep.subr.mxu0 0.0
  %9439 = vmatpush1.msra.mxu0 0.0
  %9440 = vmatprep.subr.mxu0 0.0
  %9441 = vmatpush1.msra.mxu0 0.0
  %9442 = vmatprep.subr.mxu0 0.0
  %9443 = vmatpush1.msra.mxu0 0.0
  %9444 = vmatprep.subr.mxu0 0.0
  %9445 = vmatpush1.msra.mxu0 0.0
  %9446 = vmatprep.mubr.f32.mxu0 0.0
  %9447 = vmatmul.mubr.f32.gmra.mrb[0].mxu0 %v2521
  %v9448 = vpop.f32.mrb[0].mxu0
  %v9449 = vadd.f32 %v9380, %v9448
  %v9450 = vpop.f32.mrb[0].mxu0
  %9451 = vmatprep.mubr.f32.mxu0 0.0
  %9452 = vmatmul.mubr.f32.gmra.mrb[0].mxu0 %v2524
  %v9453 = vpop.f32.mrb[0].mxu0
  %v9454 = vadd.f32 %v9380, %v9453
  %v9455 = vpop.f32.mrb[0].mxu0
  %9456 = vmatprep.mubr.f32.mxu0 0.0
  %9457 = vmatmul.mubr.f32.gmra.mrb[0].mxu0 %v2527
  %v9458 = vpop.f32.mrb[0].mxu0
  %v9459 = vadd.f32 %v9380, %v9458
  %v9460 = vpop.f32.mrb[0].mxu0
  %9461 = vmatprep.mubr.f32.mxu0 0.0
  %9462 = vmatmul.mubr.f32.gmra.mrb[0].mxu0 %v2530
  %v9463 = vpop.f32.mrb[0].mxu0
  %v9464 = vadd.f32 %v9380, %v9463
  %v9465 = vpop.f32.mrb[0].mxu0
  %9466 = vmatprep.mubr.f32.mxu0 0.0
  %9467 = vmatmul.mubr.f32.gmra.mrb[0].mxu0 %v2533
  %v9468 = vpop.f32.mrb[0].mxu0
  %v9469 = vadd.f32 %v9380, %v9468
  %v9470 = vpop.f32.mrb[0].mxu0
  %9471 = vmatprep.mubr.f32.mxu0 0.0
  %9472 = vmatmul.mubr.f32.gmra.mrb[0].mxu0 %v2536
  %v9473 = vpop.f32.mrb[0].mxu0
  %v9474 = vadd.f32 %v9380, %v9473
  %v9475 = vpop.f32.mrb[0].mxu0
  %9476 = vdwg.mxu0
  %s9477 = scalar_lea.vmem %s29, 448
  %v9478 = vld [vmem:[%s9477] sm:$0xff]
  %v9479 = vld [vmem:[%s9477 + $0x8] sm:$0xff]
  %v9480 = vld [vmem:[%s9477 + $0x10] sm:$0xff]
  %v9481 = vld [vmem:[%s9477 + $0x18] sm:$0xff]
  %v9482 = vld [vmem:[%s9477 + $0x20] sm:$0xff]
  %v9483 = vld [vmem:[%s9477 + $0x28] sm:$0xff]
  %v9484 = vld [vmem:[%s9477 + $0x30] sm:$0xff]
  %v9485 = vld [vmem:[%s9477 + $0x38] sm:$0xff]
  %s9486 = scalar_lea.vmem %s35, 7
  %v9487 = vld [vmem:[%s9486] sm:$0x1]
  %v9489 = vlaneseq
  %v9490 = vshrl.u32 %v9489, 7
  %v9491 = vsub.s32 0, %v9490
  %v9492 = vrot.slane %v9487, %v9491
  %9494 = vmatprep.subr.mxu0 0.0
  %9495 = vmatpush1.msra.mxu0 %v9478
  %9496 = vmatprep.subr.mxu0 0.0
  %9497 = vmatpush1.msra.mxu0 %v9479
  %9498 = vmatprep.subr.mxu0 0.0
  %9499 = vmatpush1.msra.mxu0 %v9480
  %9500 = vmatprep.subr.mxu0 0.0
  %9501 = vmatpush1.msra.mxu0 %v9481
  %9502 = vmatprep.subr.mxu0 0.0
  %9503 = vmatpush1.msra.mxu0 %v9482
  %9504 = vmatprep.subr.mxu0 0.0
  %9505 = vmatpush1.msra.mxu0 %v9483
  %9506 = vmatprep.subr.mxu0 0.0
  %9507 = vmatpush1.msra.mxu0 %v9484
  %9508 = vmatprep.subr.mxu0 0.0
  %9509 = vmatpush1.msra.mxu0 %v9485
  %9510 = vmatprep.subr.mxu0 0.0
  %9511 = vmatpush1.msra.mxu0 0.0
  %9512 = vmatprep.subr.mxu0 0.0
  %9513 = vmatpush1.msra.mxu0 0.0
  %9514 = vmatprep.subr.mxu0 0.0
  %9515 = vmatpush1.msra.mxu0 0.0
  %9516 = vmatprep.subr.mxu0 0.0
  %9517 = vmatpush1.msra.mxu0 0.0
  %9518 = vmatprep.subr.mxu0 0.0
  %9519 = vmatpush1.msra.mxu0 0.0
  %9520 = vmatprep.subr.mxu0 0.0
  %9521 = vmatpush1.msra.mxu0 0.0
  %9522 = vmatprep.subr.mxu0 0.0
  %9523 = vmatpush1.msra.mxu0 0.0
  %9524 = vmatprep.subr.mxu0 0.0
  %9525 = vmatpush1.msra.mxu0 0.0
  %9526 = vmatprep.subr.mxu0 0.0
  %9527 = vmatpush1.msra.mxu0 0.0
  %9528 = vmatprep.subr.mxu0 0.0
  %9529 = vmatpush1.msra.mxu0 0.0
  %9530 = vmatprep.subr.mxu0 0.0
  %9531 = vmatpush1.msra.mxu0 0.0
  %9532 = vmatprep.subr.mxu0 0.0
  %9533 = vmatpush1.msra.mxu0 0.0
  %9534 = vmatprep.subr.mxu0 0.0
  %9535 = vmatpush1.msra.mxu0 0.0
  %9536 = vmatprep.subr.mxu0 0.0
  %9537 = vmatpush1.msra.mxu0 0.0
  %9538 = vmatprep.subr.mxu0 0.0
  %9539 = vmatpush1.msra.mxu0 0.0
  %9540 = vmatprep.subr.mxu0 0.0
  %9541 = vmatpush1.msra.mxu0 0.0
  %9542 = vmatprep.subr.mxu0 0.0
  %9543 = vmatpush1.msra.mxu0 0.0
  %9544 = vmatprep.subr.mxu0 0.0
  %9545 = vmatpush1.msra.mxu0 0.0
  %9546 = vmatprep.subr.mxu0 0.0
  %9547 = vmatpush1.msra.mxu0 0.0
  %9548 = vmatprep.subr.mxu0 0.0
  %9549 = vmatpush1.msra.mxu0 0.0
  %9550 = vmatprep.subr.mxu0 0.0
  %9551 = vmatpush1.msra.mxu0 0.0
  %9552 = vmatprep.subr.mxu0 0.0
  %9553 = vmatpush1.msra.mxu0 0.0
  %9554 = vmatprep.subr.mxu0 0.0
  %9555 = vmatpush1.msra.mxu0 0.0
  %9556 = vmatprep.subr.mxu0 0.0
  %9557 = vmatpush1.msra.mxu0 0.0
  %9558 = vmatprep.mubr.f32.mxu0 0.0
  %9559 = vmatmul.mubr.f32.gmra.mrb[0].mxu0 %v2521
  %v9560 = vpop.f32.mrb[0].mxu0
  %v9561 = vadd.f32 %v9492, %v9560
  %v9562 = vpop.f32.mrb[0].mxu0
  %9563 = vmatprep.mubr.f32.mxu0 0.0
  %9564 = vmatmul.mubr.f32.gmra.mrb[0].mxu0 %v2524
  %v9565 = vpop.f32.mrb[0].mxu0
  %v9566 = vadd.f32 %v9492, %v9565
  %v9567 = vpop.f32.mrb[0].mxu0
  %9568 = vmatprep.mubr.f32.mxu0 0.0
  %9569 = vmatmul.mubr.f32.gmra.mrb[0].mxu0 %v2527
  %v9570 = vpop.f32.mrb[0].mxu0
  %v9571 = vadd.f32 %v9492, %v9570
  %v9572 = vpop.f32.mrb[0].mxu0
  %9573 = vmatprep.mubr.f32.mxu0 0.0
  %9574 = vmatmul.mubr.f32.gmra.mrb[0].mxu0 %v2530
  %v9575 = vpop.f32.mrb[0].mxu0
  %v9576 = vadd.f32 %v9492, %v9575
  %v9577 = vpop.f32.mrb[0].mxu0
  %9578 = vmatprep.mubr.f32.mxu0 0.0
  %9579 = vmatmul.mubr.f32.gmra.mrb[0].mxu0 %v2533
  %v9580 = vpop.f32.mrb[0].mxu0
  %v9581 = vadd.f32 %v9492, %v9580
  %v9582 = vpop.f32.mrb[0].mxu0
  %9583 = vmatprep.mubr.f32.mxu0 0.0
  %9584 = vmatmul.mubr.f32.gmra.mrb[0].mxu0 %v2536
  %v9585 = vpop.f32.mrb[0].mxu0
  %v9586 = vadd.f32 %v9492, %v9585
  %v9587 = vpop.f32.mrb[0].mxu0
  %9588 = vdwg.mxu0
  %v9590 = vsel %vm417, %v9363, 0
  %v9593 = vsel %vm417, %v9364, 0
  %v9596 = vsel %vm417, %v9449, 0
  %v9599 = vsel %vm417, %v9454, 0
  %v9602 = vsel %vm417, %v9459, 0
  %v9605 = vsel %vm417, %v9464, 0
  %v9608 = vsel %vm417, %v9469, 0
  %v9611 = vsel %vm417, %v9474, 0
  %9613 = vmatprep.subr.mxu0 0.0
  %9614 = vmatpush1.xpose.msra.mxu0 %v9596
  %9615 = vmatprep.subr.mxu0 0.0
  %9616 = vmatpush1.xpose.msra.mxu0 %v9599
  %9617 = vmatprep.subr.mxu0 0.0
  %9618 = vmatpush1.xpose.msra.mxu0 %v9602
  %9619 = vmatprep.subr.mxu0 0.0
  %9620 = vmatpush1.xpose.msra.mxu0 %v9605
  %9621 = vmatprep.subr.mxu0 0.0
  %9622 = vmatpush1.xpose.msra.mxu0 %v9608
  %9623 = vmatprep.subr.mxu0 0.0
  %9624 = vmatpush1.xpose.msra.mxu0 %v9611
  %9625 = vmatprep.subr.mxu0 0.0
  %9626 = vmatpush1.xpose.msra.mxu0 0.0
  %9627 = vmatprep.subr.mxu0 0.0
  %9628 = vmatpush1.xpose.msra.mxu0 0.0
  %9629 = vmatprep.subr.mxu0 0.0
  %9630 = vmatpush1.xpose.msra.mxu0 0.0
  %9631 = vmatprep.subr.mxu0 0.0
  %9632 = vmatpush1.xpose.msra.mxu0 0.0
  %9633 = vmatprep.subr.mxu0 0.0
  %9634 = vmatpush1.xpose.msra.mxu0 0.0
  %9635 = vmatprep.subr.mxu0 0.0
  %9636 = vmatpush1.xpose.msra.mxu0 0.0
  %9637 = vmatprep.subr.mxu0 0.0
  %9638 = vmatpush1.xpose.msra.mxu0 0.0
  %9639 = vmatprep.subr.mxu0 0.0
  %9640 = vmatpush1.xpose.msra.mxu0 0.0
  %9641 = vmatprep.subr.mxu0 0.0
  %9642 = vmatpush1.xpose.msra.mxu0 0.0
  %9643 = vmatprep.subr.mxu0 0.0
  %9644 = vmatpush1.xpose.msra.mxu0 0.0
  %9645 = vmatprep.subr.mxu0 0.0
  %9646 = vmatpush1.xpose.msra.mxu0 0.0
  %9647 = vmatprep.subr.mxu0 0.0
  %9648 = vmatpush1.xpose.msra.mxu0 0.0
  %9649 = vmatprep.subr.mxu0 0.0
  %9650 = vmatpush1.xpose.msra.mxu0 0.0
  %9651 = vmatprep.subr.mxu0 0.0
  %9652 = vmatpush1.xpose.msra.mxu0 0.0
  %9653 = vmatprep.subr.mxu0 0.0
  %9654 = vmatpush1.xpose.msra.mxu0 0.0
  %9655 = vmatprep.subr.mxu0 0.0
  %9656 = vmatpush1.xpose.msra.mxu0 0.0
  %9657 = vmatprep.subr.mxu0 0.0
  %9658 = vmatpush1.xpose.msra.mxu0 0.0
  %9659 = vmatprep.subr.mxu0 0.0
  %9660 = vmatpush1.xpose.msra.mxu0 0.0
  %9661 = vmatprep.subr.mxu0 0.0
  %9662 = vmatpush1.xpose.msra.mxu0 0.0
  %9663 = vmatprep.subr.mxu0 0.0
  %9664 = vmatpush1.xpose.msra.mxu0 0.0
  %9665 = vmatprep.subr.mxu0 0.0
  %9666 = vmatpush1.xpose.msra.mxu0 0.0
  %9667 = vmatprep.subr.mxu0 0.0
  %9668 = vmatpush1.xpose.msra.mxu0 0.0
  %9669 = vmatprep.subr.mxu0 0.0
  %9670 = vmatpush1.xpose.msra.mxu0 0.0
  %9671 = vmatprep.subr.mxu0 0.0
  %9672 = vmatpush1.xpose.msra.mxu0 0.0
  %9673 = vmatprep.subr.mxu0 0.0
  %9674 = vmatpush1.xpose.msra.mxu0 0.0
  %9675 = vmatprep.subr.mxu0 0.0
  %9676 = vmatpush1.xpose.msra.mxu0 0.0
  %9677 = vmatprep.mubr.f32.mxu0 0.0
  %9678 = vmatmul.mubr.f32.gmra.mrb[0].mxu0 %v9590
  %v9679 = vpop.f32.mrb[0].mxu0
  %v9680 = vadd.f32 %v136, %v9679
  %v9681 = vpop.f32.mrb[0].mxu0
  %9682 = vmatprep.mubr.f32.mxu0 0.0
  %9683 = vmatmul.mubr.f32.gmra.mrb[0].mxu0 %v9593
  %v9684 = vpop.f32.mrb[0].mxu0
  %v9685 = vadd.f32 %v137, %v9684
  %v9686 = vpop.f32.mrb[0].mxu0
  %9687 = vdwg.mxu0
  %v9688 = vsel %vm2842, %v9680, -inf
  %9689 = vmax.xlane.f32.xlu0 %v9688
  %v9690 = vpop.xlane.xlu0 %9689
  %v9691 = vsel %vm2842, %v9685, -inf
  %9692 = vmax.xlane.f32.xlu0 %v9691
  %v9693 = vpop.xlane.xlu0 %9692
  %v9694 = vsub.f32 %v9680, %v9690
  %v9695 = vsub.f32 %v9685, %v9693
  %v9696 = vmul.f32 %v9694, 1.442695
  %v9697 = vpow.pop %v9696
  %v9698 = vmul.f32 %v9695, 1.442695
  %v9699 = vpow.pop %v9698
  %v9700 = vsel %vm2842, %v9697, 0.0
  %9701 = vadd.xlane.f32.xlu0 %v9700
  %v9702 = vpop.xlane.xlu0 %9701
  %v9703 = vsel %vm2842, %v9699, 0.0
  %9704 = vadd.xlane.f32.xlu0 %v9703
  %v9705 = vpop.xlane.xlu0 %9704
  %v9706 = vrcp.pop %v9702
  %v9707 = vrcp.pop %v9705
  %v9708 = vmul.f32 %v9697, %v9706
  %v9709 = vmul.f32 %v9699, %v9707
  %v9711 = vsel %vm2842, %v9708, 0
  %v9714 = vsel %vm2842, %v9709, 0
  %9716 = vmatprep.subr.mxu0 0.0
  %9717 = vmatpush1.msra.mxu0 %v9561
  %9718 = vmatprep.subr.mxu0 0.0
  %9719 = vmatpush1.msra.mxu0 %v9566
  %9720 = vmatprep.subr.mxu0 0.0
  %9721 = vmatpush1.msra.mxu0 %v9571
  %9722 = vmatprep.subr.mxu0 0.0
  %9723 = vmatpush1.msra.mxu0 %v9576
  %9724 = vmatprep.subr.mxu0 0.0
  %9725 = vmatpush1.msra.mxu0 %v9581
  %9726 = vmatprep.subr.mxu0 0.0
  %9727 = vmatpush1.msra.mxu0 %v9586
  %9728 = vmatprep.subr.mxu0 0.0
  %9729 = vmatpush1.msra.mxu0 0.0
  %9730 = vmatprep.subr.mxu0 0.0
  %9731 = vmatpush1.msra.mxu0 0.0
  %9732 = vmatprep.subr.mxu0 0.0
  %9733 = vmatpush1.msra.mxu0 0.0
  %9734 = vmatprep.subr.mxu0 0.0
  %9735 = vmatpush1.msra.mxu0 0.0
  %9736 = vmatprep.subr.mxu0 0.0
  %9737 = vmatpush1.msra.mxu0 0.0
  %9738 = vmatprep.subr.mxu0 0.0
  %9739 = vmatpush1.msra.mxu0 0.0
  %9740 = vmatprep.subr.mxu0 0.0
  %9741 = vmatpush1.msra.mxu0 0.0
  %9742 = vmatprep.subr.mxu0 0.0
  %9743 = vmatpush1.msra.mxu0 0.0
  %9744 = vmatprep.subr.mxu0 0.0
  %9745 = vmatpush1.msra.mxu0 0.0
  %9746 = vmatprep.subr.mxu0 0.0
  %9747 = vmatpush1.msra.mxu0 0.0
  %9748 = vmatprep.subr.mxu0 0.0
  %9749 = vmatpush1.msra.mxu0 0.0
  %9750 = vmatprep.subr.mxu0 0.0
  %9751 = vmatpush1.msra.mxu0 0.0
  %9752 = vmatprep.subr.mxu0 0.0
  %9753 = vmatpush1.msra.mxu0 0.0
  %9754 = vmatprep.subr.mxu0 0.0
  %9755 = vmatpush1.msra.mxu0 0.0
  %9756 = vmatprep.subr.mxu0 0.0
  %9757 = vmatpush1.msra.mxu0 0.0
  %9758 = vmatprep.subr.mxu0 0.0
  %9759 = vmatpush1.msra.mxu0 0.0
  %9760 = vmatprep.subr.mxu0 0.0
  %9761 = vmatpush1.msra.mxu0 0.0
  %9762 = vmatprep.subr.mxu0 0.0
  %9763 = vmatpush1.msra.mxu0 0.0
  %9764 = vmatprep.subr.mxu0 0.0
  %9765 = vmatpush1.msra.mxu0 0.0
  %9766 = vmatprep.subr.mxu0 0.0
  %9767 = vmatpush1.msra.mxu0 0.0
  %9768 = vmatprep.subr.mxu0 0.0
  %9769 = vmatpush1.msra.mxu0 0.0
  %9770 = vmatprep.subr.mxu0 0.0
  %9771 = vmatpush1.msra.mxu0 0.0
  %9772 = vmatprep.subr.mxu0 0.0
  %9773 = vmatpush1.msra.mxu0 0.0
  %9774 = vmatprep.subr.mxu0 0.0
  %9775 = vmatpush1.msra.mxu0 0.0
  %9776 = vmatprep.subr.mxu0 0.0
  %9777 = vmatpush1.msra.mxu0 0.0
  %9778 = vmatprep.subr.mxu0 0.0
  %9779 = vmatpush1.msra.mxu0 0.0
  %9780 = vmatprep.mubr.f32.mxu0 0.0
  %9781 = vmatmul.mubr.f32.gmra.mrb[0].mxu0 %v9711
  %v9782 = vpop.f32.mrb[0].mxu0
  %v9783 = vadd.f32 0.0, %v9782
  %v9784 = vpop.f32.mrb[0].mxu0
  %9785 = vmatprep.mubr.f32.mxu0 0.0
  %9786 = vmatmul.mubr.f32.gmra.mrb[0].mxu0 %v9714
  %v9787 = vpop.f32.mrb[0].mxu0
  %v9788 = vadd.f32 0.0, %v9787
  %v9789 = vpop.f32.mrb[0].mxu0
  %9790 = vdwg.mxu0
  %s9791 = scalar_lea.vmem %s37, 112
  %v9792 = vld [vmem:[%s9791] sm:$0xff]
  %v9793 = vld [vmem:[%s9791 + $0x8] sm:$0xff]
  %v9795 = vsel %vm417, %v9783, 0
  %v9798 = vsel %vm417, %v9788, 0
  %9800 = vmatprep.subr.mxu0 0.0
  %9801 = vmatpush1.msra.mxu0 %v9792
  %9802 = vmatprep.subr.mxu0 0.0
  %9803 = vmatpush1.msra.mxu0 %v9793
  %9804 = vmatprep.subr.mxu0 0.0
  %9805 = vmatpush1.msra.mxu0 0.0
  %9806 = vmatprep.subr.mxu0 0.0
  %9807 = vmatpush1.msra.mxu0 0.0
  %9808 = vmatprep.subr.mxu0 0.0
  %9809 = vmatpush1.msra.mxu0 0.0
  %9810 = vmatprep.subr.mxu0 0.0
  %9811 = vmatpush1.msra.mxu0 0.0
  %9812 = vmatprep.subr.mxu0 0.0
  %9813 = vmatpush1.msra.mxu0 0.0
  %9814 = vmatprep.subr.mxu0 0.0
  %9815 = vmatpush1.msra.mxu0 0.0
  %9816 = vmatprep.subr.mxu0 0.0
  %9817 = vmatpush1.msra.mxu0 0.0
  %9818 = vmatprep.subr.mxu0 0.0
  %9819 = vmatpush1.msra.mxu0 0.0
  %9820 = vmatprep.subr.mxu0 0.0
  %9821 = vmatpush1.msra.mxu0 0.0
  %9822 = vmatprep.subr.mxu0 0.0
  %9823 = vmatpush1.msra.mxu0 0.0
  %9824 = vmatprep.subr.mxu0 0.0
  %9825 = vmatpush1.msra.mxu0 0.0
  %9826 = vmatprep.subr.mxu0 0.0
  %9827 = vmatpush1.msra.mxu0 0.0
  %9828 = vmatprep.subr.mxu0 0.0
  %9829 = vmatpush1.msra.mxu0 0.0
  %9830 = vmatprep.subr.mxu0 0.0
  %9831 = vmatpush1.msra.mxu0 0.0
  %9832 = vmatprep.subr.mxu0 0.0
  %9833 = vmatpush1.msra.mxu0 0.0
  %9834 = vmatprep.subr.mxu0 0.0
  %9835 = vmatpush1.msra.mxu0 0.0
  %9836 = vmatprep.subr.mxu0 0.0
  %9837 = vmatpush1.msra.mxu0 0.0
  %9838 = vmatprep.subr.mxu0 0.0
  %9839 = vmatpush1.msra.mxu0 0.0
  %9840 = vmatprep.subr.mxu0 0.0
  %9841 = vmatpush1.msra.mxu0 0.0
  %9842 = vmatprep.subr.mxu0 0.0
  %9843 = vmatpush1.msra.mxu0 0.0
  %9844 = vmatprep.subr.mxu0 0.0
  %9845 = vmatpush1.msra.mxu0 0.0
  %9846 = vmatprep.subr.mxu0 0.0
  %9847 = vmatpush1.msra.mxu0 0.0
  %9848 = vmatprep.subr.mxu0 0.0
  %9849 = vmatpush1.msra.mxu0 0.0
  %9850 = vmatprep.subr.mxu0 0.0
  %9851 = vmatpush1.msra.mxu0 0.0
  %9852 = vmatprep.subr.mxu0 0.0
  %9853 = vmatpush1.msra.mxu0 0.0
  %9854 = vmatprep.subr.mxu0 0.0
  %9855 = vmatpush1.msra.mxu0 0.0
  %9856 = vmatprep.subr.mxu0 0.0
  %9857 = vmatpush1.msra.mxu0 0.0
  %9858 = vmatprep.subr.mxu0 0.0
  %9859 = vmatpush1.msra.mxu0 0.0
  %9860 = vmatprep.subr.mxu0 0.0
  %9861 = vmatpush1.msra.mxu0 0.0
  %9862 = vmatprep.subr.mxu0 0.0
  %9863 = vmatpush1.msra.mxu0 0.0
  %9864 = vmatprep.mubr.f32.mxu0 0.0
  %9865 = vmatmul.mubr.f32.gmra.mrb[0].mxu0 %v9795
  %v9866 = vpop.f32.mrb[0].mxu0
  %v9867 = vadd.f32 0.0, %v9866
  %v9868 = vpop.f32.mrb[0].mxu0
  %9869 = vmatprep.mubr.f32.mxu0 0.0
  %9870 = vmatmul.mubr.f32.gmra.mrb[0].mxu0 %v9798
  %v9871 = vpop.f32.mrb[0].mxu0
  %v9872 = vadd.f32 0.0, %v9871
  %v9873 = vpop.f32.mrb[0].mxu0
  %9874 = vdwg.mxu0
  %v9875 = vadd.f32 %v9269, %v9867
  %v9876 = vadd.f32 %v9270, %v9872
  %s9877 = scalar_lea.vmem %s39, 1
  %v9878 = vld [vmem:[%s9877] sm:$0x1]
  %v9880 = vlaneseq
  %v9881 = vshrl.u32 %v9880, 7
  %v9882 = vsub.s32 0, %v9881
  %v9883 = vrot.slane %v9878, %v9882
  %v9885 = vadd.f32 %v9875, %v9883
  %v9886 = vadd.f32 %v9876, %v9883
  %v9887 = vadd.f32 %v7449, %v9885
  %v9888 = vadd.f32 %v7450, %v9886
  %s9889 = scalar_lea.vmem %s45, 1
  %v9890 = vld [vmem:[%s9889] sm:$0x1]
  %s9891 = scalar_lea.vmem %s47, 1
  %v9892 = vld [vmem:[%s9891] sm:$0x1]
  %v9893 = vsel %vm153, %v9887, 0.0
  %9894 = vadd.xlane.f32.xlu0 %v9893
  %v9895 = vpop.xlane.xlu0 %9894
  %v9896 = vsel %vm153, %v9888, 0.0
  %9897 = vadd.xlane.f32.xlu0 %v9896
  %v9898 = vpop.xlane.xlu0 %9897
  %v9899 = vmul.f32 %v9895, %v2370
  %v9900 = vmul.f32 %v9898, %v2370
  %v9901 = vsub.f32 %v9887, %v9899
  %v9902 = vsub.f32 %v9888, %v9900
  %v9903 = vmul.f32 %v9901, %v9901
  %v9904 = vmul.f32 %v9902, %v9902
  %v9905 = vsel %vm153, %v9903, 0.0
  %9906 = vadd.xlane.f32.xlu0 %v9905
  %v9907 = vpop.xlane.xlu0 %9906
  %v9908 = vsel %vm153, %v9904, 0.0
  %9909 = vadd.xlane.f32.xlu0 %v9908
  %v9910 = vpop.xlane.xlu0 %9909
  %v9911 = vmul.f32 %v9907, %v2370
  %v9912 = vmul.f32 %v9910, %v2370
  %v9913 = vadd.f32 %v9911, 1e-05
  %v9914 = vadd.f32 %v9912, 1e-05
  %v9915 = vrsqrt.pop %v9913
  %v9916 = vrsqrt.pop %v9914
  %v9917 = vmul.f32 %v9901, %v9915
  %v9918 = vmul.f32 %v9902, %v9916
  %v9920 = vlaneseq
  %v9921 = vshrl.u32 %v9920, 7
  %v9922 = vsub.s32 0, %v9921
  %v9923 = vrot.slane %v9890, %v9922
  %v9925 = vmul.f32 %v9917, %v9923
  %v9926 = vmul.f32 %v9918, %v9923
  %v9928 = vlaneseq
  %v9929 = vshrl.u32 %v9928, 7
  %v9930 = vsub.s32 0, %v9929
  %v9931 = vrot.slane %v9892, %v9930
  %v9933 = vadd.f32 %v9925, %v9931
  %v9934 = vadd.f32 %v9926, %v9931
  %s9935 = scalar_lea.vmem %s53, 128
  %v9936 = vld [vmem:[%s9935] sm:$0xff]
  %v9937 = vld [vmem:[%s9935 + $0x8] sm:$0xff]
  %v9938 = vld [vmem:[%s9935 + $0x10] sm:$0xff]
  %v9939 = vld [vmem:[%s9935 + $0x18] sm:$0xff]
  %v9940 = vld [vmem:[%s9935 + $0x20] sm:$0xff]
  %v9941 = vld [vmem:[%s9935 + $0x28] sm:$0xff]
  %v9942 = vld [vmem:[%s9935 + $0x30] sm:$0xff]
  %v9943 = vld [vmem:[%s9935 + $0x38] sm:$0xff]
  %v9944 = vld [vmem:[%s9935 + $0x40] sm:$0xff]
  %v9945 = vld [vmem:[%s9935 + $0x48] sm:$0xff]
  %v9946 = vld [vmem:[%s9935 + $0x50] sm:$0xff]
  %v9947 = vld [vmem:[%s9935 + $0x58] sm:$0xff]
  %v9948 = vld [vmem:[%s9935 + $0x60] sm:$0xff]
  %v9949 = vld [vmem:[%s9935 + $0x68] sm:$0xff]
  %v9950 = vld [vmem:[%s9935 + $0x70] sm:$0xff]
  %v9951 = vld [vmem:[%s9935 + $0x78] sm:$0xff]
  %s9952 = scalar_lea.vmem %s55, 2
  %v9953 = vld [vmem:[%s9952] sm:$0x3]
  %v9955 = vlaneseq
  %v9956 = vshrl.u32 %v9955, 7
  %v9957 = vsub.s32 0, %v9956
  %v9958 = vrot.slane %v9953, %v9957
  %v9959 = vlaneseq
  %v9960 = vshrl.u32 %v9959, 7
  %v9961 = vsub.s32 1, %v9960
  %v9962 = vrot.slane %v9953, %v9961
  %v9966 = vsel %vm153, %v9933, 0
  %v9969 = vsel %vm153, %v9934, 0
  %9971 = vmatprep.subr.mxu0 %v9937
  %9972 = vmatpush1.msra.mxu0 %v9936
  %9973 = vmatprep.subr.mxu0 %v9939
  %9974 = vmatpush1.msra.mxu0 %v9938
  %9975 = vmatprep.subr.mxu0 %v9941
  %9976 = vmatpush1.msra.mxu0 %v9940
  %9977 = vmatprep.subr.mxu0 %v9943
  %9978 = vmatpush1.msra.mxu0 %v9942
  %9979 = vmatprep.subr.mxu0 %v9945
  %9980 = vmatpush1.msra.mxu0 %v9944
  %9981 = vmatprep.subr.mxu0 %v9947
  %9982 = vmatpush1.msra.mxu0 %v9946
  %9983 = vmatprep.subr.mxu0 %v9949
  %9984 = vmatpush1.msra.mxu0 %v9948
  %9985 = vmatprep.subr.mxu0 %v9951
  %9986 = vmatpush1.msra.mxu0 %v9950
  %9987 = vmatprep.subr.mxu0 0.0
  %9988 = vmatpush1.msra.mxu0 0.0
  %9989 = vmatprep.subr.mxu0 0.0
  %9990 = vmatpush1.msra.mxu0 0.0
  %9991 = vmatprep.subr.mxu0 0.0
  %9992 = vmatpush1.msra.mxu0 0.0
  %9993 = vmatprep.subr.mxu0 0.0
  %9994 = vmatpush1.msra.mxu0 0.0
  %9995 = vmatprep.subr.mxu0 0.0
  %9996 = vmatpush1.msra.mxu0 0.0
  %9997 = vmatprep.subr.mxu0 0.0
  %9998 = vmatpush1.msra.mxu0 0.0
  %9999 = vmatprep.subr.mxu0 0.0
  %10000 = vmatpush1.msra.mxu0 0.0
  %10001 = vmatprep.subr.mxu0 0.0
  %10002 = vmatpush1.msra.mxu0 0.0
  %10003 = vmatprep.subr.mxu0 0.0
  %10004 = vmatpush1.msra.mxu0 0.0
  %10005 = vmatprep.subr.mxu0 0.0
  %10006 = vmatpush1.msra.mxu0 0.0
  %10007 = vmatprep.subr.mxu0 0.0
  %10008 = vmatpush1.msra.mxu0 0.0
  %10009 = vmatprep.subr.mxu0 0.0
  %10010 = vmatpush1.msra.mxu0 0.0
  %10011 = vmatprep.subr.mxu0 0.0
  %10012 = vmatpush1.msra.mxu0 0.0
  %10013 = vmatprep.subr.mxu0 0.0
  %10014 = vmatpush1.msra.mxu0 0.0
  %10015 = vmatprep.subr.mxu0 0.0
  %10016 = vmatpush1.msra.mxu0 0.0
  %10017 = vmatprep.subr.mxu0 0.0
  %10018 = vmatpush1.msra.mxu0 0.0
  %10019 = vmatprep.subr.mxu0 0.0
  %10020 = vmatpush1.msra.mxu0 0.0
  %10021 = vmatprep.subr.mxu0 0.0
  %10022 = vmatpush1.msra.mxu0 0.0
  %10023 = vmatprep.subr.mxu0 0.0
  %10024 = vmatpush1.msra.mxu0 0.0
  %10025 = vmatprep.subr.mxu0 0.0
  %10026 = vmatpush1.msra.mxu0 0.0
  %10027 = vmatprep.subr.mxu0 0.0
  %10028 = vmatpush1.msra.mxu0 0.0
  %10029 = vmatprep.subr.mxu0 0.0
  %10030 = vmatpush1.msra.mxu0 0.0
  %10031 = vmatprep.subr.mxu0 0.0
  %10032 = vmatpush1.msra.mxu0 0.0
  %10033 = vmatprep.subr.mxu0 0.0
  %10034 = vmatpush1.msra.mxu0 0.0
  %10035 = vmatprep.mubr.f32.mxu0 0.0
  %10036 = vmatmul.mubr.f32.gmra.mrb[0].mxu0 %v9966
  %v10037 = vpop.f32.mrb[0].mxu0
  %v10038 = vadd.f32 %v9958, %v10037
  %v10039 = vpop.f32.mrb[0].mxu0
  %v10040 = vadd.f32 %v9962, %v10039
  %10041 = vmatprep.mubr.f32.mxu0 0.0
  %10042 = vmatmul.mubr.f32.gmra.mrb[0].mxu0 %v9969
  %v10043 = vpop.f32.mrb[0].mxu0
  %v10044 = vadd.f32 %v9958, %v10043
  %v10045 = vpop.f32.mrb[0].mxu0
  %v10046 = vadd.f32 %v9962, %v10045
  %10047 = vdwg.mxu0
  %v10048 = vmax.f32 %v10038, 0.0
  %v10049 = vmax.f32 %v10040, 0.0
  %v10050 = vmax.f32 %v10044, 0.0
  %v10051 = vmax.f32 %v10046, 0.0
  %s10052 = scalar_lea.vmem %s57, 256
  %v10053 = vld [vmem:[%s10052] sm:$0xff]
  %v10054 = vld [vmem:[%s10052 + $0x8] sm:$0xff]
  %v10055 = vld [vmem:[%s10052 + $0x10] sm:$0xff]
  %v10056 = vld [vmem:[%s10052 + $0x18] sm:$0xff]
  %v10057 = vld [vmem:[%s10052 + $0x20] sm:$0xff]
  %v10058 = vld [vmem:[%s10052 + $0x28] sm:$0xff]
  %v10059 = vld [vmem:[%s10052 + $0x30] sm:$0xff]
  %v10060 = vld [vmem:[%s10052 + $0x38] sm:$0xff]
  %v10061 = vld [vmem:[%s10052 + $0x40] sm:$0xff]
  %v10062 = vld [vmem:[%s10052 + $0x48] sm:$0xff]
  %v10063 = vld [vmem:[%s10052 + $0x50] sm:$0xff]
  %v10064 = vld [vmem:[%s10052 + $0x58] sm:$0xff]
  %v10065 = vld [vmem:[%s10052 + $0x60] sm:$0xff]
  %v10066 = vld [vmem:[%s10052 + $0x68] sm:$0xff]
  %v10067 = vld [vmem:[%s10052 + $0x70] sm:$0xff]
  %v10068 = vld [vmem:[%s10052 + $0x78] sm:$0xff]
  %v10069 = vld [vmem:[%s10052 + $0x80] sm:$0xff]
  %v10070 = vld [vmem:[%s10052 + $0x88] sm:$0xff]
  %v10071 = vld [vmem:[%s10052 + $0x90] sm:$0xff]
  %v10072 = vld [vmem:[%s10052 + $0x98] sm:$0xff]
  %v10073 = vld [vmem:[%s10052 + $0xa0] sm:$0xff]
  %v10074 = vld [vmem:[%s10052 + $0xa8] sm:$0xff]
  %v10075 = vld [vmem:[%s10052 + $0xb0] sm:$0xff]
  %v10076 = vld [vmem:[%s10052 + $0xb8] sm:$0xff]
  %v10077 = vld [vmem:[%s10052 + $0xc0] sm:$0xff]
  %v10078 = vld [vmem:[%s10052 + $0xc8] sm:$0xff]
  %v10079 = vld [vmem:[%s10052 + $0xd0] sm:$0xff]
  %v10080 = vld [vmem:[%s10052 + $0xd8] sm:$0xff]
  %v10081 = vld [vmem:[%s10052 + $0xe0] sm:$0xff]
  %v10082 = vld [vmem:[%s10052 + $0xe8] sm:$0xff]
  %v10083 = vld [vmem:[%s10052 + $0xf0] sm:$0xff]
  %v10084 = vld [vmem:[%s10052 + $0xf8] sm:$0xff]
  %s10085 = scalar_lea.vmem %s59, 1
  %v10086 = vld [vmem:[%s10085] sm:$0x1]
  %v10088 = vlaneseq
  %v10089 = vshrl.u32 %v10088, 7
  %v10090 = vsub.s32 0, %v10089
  %v10091 = vrot.slane %v10086, %v10090
  %10093 = vmatprep.subr.mxu0 0.0
  %10094 = vmatpush1.msra.mxu0 %v10053
  %10095 = vmatprep.subr.mxu0 0.0
  %10096 = vmatpush1.msra.mxu0 %v10054
  %10097 = vmatprep.subr.mxu0 0.0
  %10098 = vmatpush1.msra.mxu0 %v10055
  %10099 = vmatprep.subr.mxu0 0.0
  %10100 = vmatpush1.msra.mxu0 %v10056
  %10101 = vmatprep.subr.mxu0 0.0
  %10102 = vmatpush1.msra.mxu0 %v10057
  %10103 = vmatprep.subr.mxu0 0.0
  %10104 = vmatpush1.msra.mxu0 %v10058
  %10105 = vmatprep.subr.mxu0 0.0
  %10106 = vmatpush1.msra.mxu0 %v10059
  %10107 = vmatprep.subr.mxu0 0.0
  %10108 = vmatpush1.msra.mxu0 %v10060
  %10109 = vmatprep.subr.mxu0 0.0
  %10110 = vmatpush1.msra.mxu0 %v10061
  %10111 = vmatprep.subr.mxu0 0.0
  %10112 = vmatpush1.msra.mxu0 %v10062
  %10113 = vmatprep.subr.mxu0 0.0
  %10114 = vmatpush1.msra.mxu0 %v10063
  %10115 = vmatprep.subr.mxu0 0.0
  %10116 = vmatpush1.msra.mxu0 %v10064
  %10117 = vmatprep.subr.mxu0 0.0
  %10118 = vmatpush1.msra.mxu0 %v10065
  %10119 = vmatprep.subr.mxu0 0.0
  %10120 = vmatpush1.msra.mxu0 %v10066
  %10121 = vmatprep.subr.mxu0 0.0
  %10122 = vmatpush1.msra.mxu0 %v10067
  %10123 = vmatprep.subr.mxu0 0.0
  %10124 = vmatpush1.msra.mxu0 %v10068
  %10125 = vmatprep.subr.mxu0 0.0
  %10126 = vmatpush1.msra.mxu0 %v10069
  %10127 = vmatprep.subr.mxu0 0.0
  %10128 = vmatpush1.msra.mxu0 %v10070
  %10129 = vmatprep.subr.mxu0 0.0
  %10130 = vmatpush1.msra.mxu0 %v10071
  %10131 = vmatprep.subr.mxu0 0.0
  %10132 = vmatpush1.msra.mxu0 %v10072
  %10133 = vmatprep.subr.mxu0 0.0
  %10134 = vmatpush1.msra.mxu0 %v10073
  %10135 = vmatprep.subr.mxu0 0.0
  %10136 = vmatpush1.msra.mxu0 %v10074
  %10137 = vmatprep.subr.mxu0 0.0
  %10138 = vmatpush1.msra.mxu0 %v10075
  %10139 = vmatprep.subr.mxu0 0.0
  %10140 = vmatpush1.msra.mxu0 %v10076
  %10141 = vmatprep.subr.mxu0 0.0
  %10142 = vmatpush1.msra.mxu0 %v10077
  %10143 = vmatprep.subr.mxu0 0.0
  %10144 = vmatpush1.msra.mxu0 %v10078
  %10145 = vmatprep.subr.mxu0 0.0
  %10146 = vmatpush1.msra.mxu0 %v10079
  %10147 = vmatprep.subr.mxu0 0.0
  %10148 = vmatpush1.msra.mxu0 %v10080
  %10149 = vmatprep.subr.mxu0 0.0
  %10150 = vmatpush1.msra.mxu0 %v10081
  %10151 = vmatprep.subr.mxu0 0.0
  %10152 = vmatpush1.msra.mxu0 %v10082
  %10153 = vmatprep.subr.mxu0 0.0
  %10154 = vmatpush1.msra.mxu0 %v10083
  %10155 = vmatprep.subr.mxu0 0.0
  %10156 = vmatpush1.msra.mxu0 %v10084
  %10157 = vmatprep.mubr.f32.mxu0 %v10049
  %10158 = vmatmul.mubr.f32.gmra.mrb[0].mxu0 %v10048
  %v10159 = vpop.f32.mrb[0].mxu0
  %v10160 = vadd.f32 %v10091, %v10159
  %v10161 = vpop.f32.mrb[0].mxu0
  %10162 = vmatprep.mubr.f32.mxu0 %v10051
  %10163 = vmatmul.mubr.f32.gmra.mrb[0].mxu0 %v10050
  %v10164 = vpop.f32.mrb[0].mxu0
  %v10165 = vadd.f32 %v10091, %v10164
  %v10166 = vpop.f32.mrb[0].mxu0
  %10167 = vdwg.mxu0
  %v10168 = vadd.f32 %v9933, %v10160
  %v10169 = vadd.f32 %v9934, %v10165
  %s10170 = scalar_lea.vmem %s49, 1
  %v10171 = vld [vmem:[%s10170] sm:$0x1]
  %s10172 = scalar_lea.vmem %s51, 1
  %v10173 = vld [vmem:[%s10172] sm:$0x1]
  %v10174 = vsel %vm153, %v10168, 0.0
  %10175 = vadd.xlane.f32.xlu0 %v10174
  %v10176 = vpop.xlane.xlu0 %10175
  %v10177 = vsel %vm153, %v10169, 0.0
  %10178 = vadd.xlane.f32.xlu0 %v10177
  %v10179 = vpop.xlane.xlu0 %10178
  %v10180 = vmul.f32 %v10176, %v2370
  %v10181 = vmul.f32 %v10179, %v2370
  %v10182 = vsub.f32 %v10168, %v10180
  %v10183 = vsub.f32 %v10169, %v10181
  %v10184 = vmul.f32 %v10182, %v10182
  %v10185 = vmul.f32 %v10183, %v10183
  %v10186 = vsel %vm153, %v10184, 0.0
  %10187 = vadd.xlane.f32.xlu0 %v10186
  %v10188 = vpop.xlane.xlu0 %10187
  %v10189 = vsel %vm153, %v10185, 0.0
  %10190 = vadd.xlane.f32.xlu0 %v10189
  %v10191 = vpop.xlane.xlu0 %10190
  %v10192 = vmul.f32 %v10188, %v2370
  %v10193 = vmul.f32 %v10191, %v2370
  %v10194 = vadd.f32 %v10192, 1e-05
  %v10195 = vadd.f32 %v10193, 1e-05
  %v10196 = vrsqrt.pop %v10194
  %v10197 = vrsqrt.pop %v10195
  %v10198 = vmul.f32 %v10182, %v10196
  %v10199 = vmul.f32 %v10183, %v10197
  %v10201 = vlaneseq
  %v10202 = vshrl.u32 %v10201, 7
  %v10203 = vsub.s32 0, %v10202
  %v10204 = vrot.slane %v10171, %v10203
  %v10206 = vmul.f32 %v10198, %v10204
  %v10207 = vmul.f32 %v10199, %v10204
  %v10209 = vlaneseq
  %v10210 = vshrl.u32 %v10209, 7
  %v10211 = vsub.s32 0, %v10210
  %v10212 = vrot.slane %v10173, %v10211
  %v10214 = vadd.f32 %v10206, %v10212
  %v10215 = vadd.f32 %v10207, %v10212
  %v10216 = vadd.f32 %v10214, %v132
  %v10217 = vadd.f32 %v10215, %v133
  %10218 = vst.msk [vmem:[%s61] sm:$0xff] %vm153, %v10216
  %10219 = vst.msk [vmem:[%s61 + $0x8] sm:$0xff] %vm153, %v10217
  // Predicated region
  $region122: #{transformer_planner_forward.1} parent=0 // pred_check
    _
  $region123: #{transformer_planner_forward.1} parent=0 // pred_check_branch
    %10221 = sbr.rel (0) target = $region125
  $region124: #{transformer_planner_forward.1} parent=0 // pred_region
    _
  $region125: #{transformer_planner_forward.1} parent=0 // pred_fallthru
    _
  // Predicated region
  $region126: #{transformer_planner_forward.1} parent=0 // pred_check
    _
  $region127: #{transformer_planner_forward.1} parent=0 // pred_check_branch
    %10223 = sbr.rel (0) target = $region129
  $region128: #{transformer_planner_forward.1} parent=0 // pred_region
    _
  $region129: #{transformer_planner_forward.1} parent=0 // pred_fallthru
    _

</llo_original>
